<compile_context>
chip_gen: v6e
topology: v6e:2x2x1
jax: 0.10.0
libtpu: 0.0.40
codegen_flags: <defaults>
</compile_context>

<pallas_src>
import functools

import jax
import jax.numpy as jnp
from jax.experimental import pallas as pl
from jax.experimental.pallas import tpu as pltpu


MXU_DTYPE = jnp.bfloat16


# ---------------------------------------------------------------------------
# In-kernel conv layer: 3x3 conv (+bias+ReLU) as 4 matmuls on a (H, C*W) slab
# ---------------------------------------------------------------------------
def _conv3x3_as_matmuls(a, asel_ref, rdt_ref, bias_ref):
    """a:        (Hin, Cin*Win)            a[h, ci*Win + w] = x[ci, h, w]
       asel_ref: (3*Hout, Hin)             bf16  row-tap selection (shift/pad/stride)
       rdt_ref:  (3*Cin*Win, Cout*Wout)    bf16  col-taps + channel mix, stacked over dy
       bias_ref: (1, Cout*Wout)            f32
       returns   (Hout, Cout*Wout)         f32 (post-ReLU)"""
    hout = asel_ref.shape[0] // 3
    k = rdt_ref.shape[0] // 3
    nout = rdt_ref.shape[1]

    a16 = a.astype(MXU_DTYPE)
    # All 3 row taps in one MXU matmul (selection matrices are exact in bf16).
    taps = jnp.dot(asel_ref[...], a16, preferred_element_type=jnp.float32)
    taps = taps.astype(MXU_DTYPE)                            # (3*Hout, Cin*Win)

    acc = jnp.zeros((hout, nout), jnp.float32)
    for dy in range(3):
        acc = acc + jnp.dot(taps[dy * hout:(dy + 1) * hout, :],
                            rdt_ref[dy * k:(dy + 1) * k, :],
                            preferred_element_type=jnp.float32)
    return jnp.maximum(acc + bias_ref[...], 0.0)             # f32 bias + ReLU epilogue


def _encoder_kernel(slab_ref, *refs, n_x_params, obs_lanes):
    param_refs = refs[:-1]
    out_ref = refs[-1]
    x_params = param_refs[:n_x_params]
    o_params = param_refs[n_x_params:]

    slab = slab_ref[0]                                       # (H0, (Co0+Cx0)*W0) bf16

    # x_encoder branch on the full slab (obs-first packing; weights pre-permuted).
    a = slab
    for j in range(0, len(x_params), 3):
        a = _conv3x3_as_matmuls(a, x_params[j], x_params[j + 1], x_params[j + 2])
    y = a                                                    # (Hf, Cf*Wf) f32

    # o_encoder branch on the obs sub-slab (zero-offset lane slice).
    a = slab[:, :obs_lanes]
    for j in range(0, len(o_params), 3):
        a = _conv3x3_as_matmuls(a, o_params[j], o_params[j + 1], o_params[j + 2])
    z = a                                                    # (Hf, Cf*Wf) f32

    # Single lane-dense writeback: [y | z] -> (1, Hf, 2*Cf*Wf).
    out_ref[...] = jnp.concatenate([y, z], axis=-1)[None].astype(out_ref.dtype)


# ---------------------------------------------------------------------------
# Host-side operand packing (done once, eagerly, outside jit)
# ---------------------------------------------------------------------------
def _selection_matrices(n_in, n_out, stride):
    """S[d][o, i] = 1 if i == stride*o + d - 1 (zero rows encode the zero padding)."""
    o = jnp.arange(n_out)[:, None]
    i = jnp.arange(n_in)[None, :]
    return jnp.stack([(i == stride * o + d - 1).astype(jnp.float32) for d in range(3)])


def _prepare_layer(w, b, stride, hin, win):
    """w: (Cout, Cin, 3, 3) PyTorch-layout conv weight; b: (Cout,)."""
    cout, cin = w.shape[0], w.shape[1]
    hout = (hin - 1) // stride + 1
    wout = (win - 1) // stride + 1
    arow = _selection_matrices(hin, hout, stride)            # (3, hout, hin)
    bcol = _selection_matrices(win, wout, stride)            # (3, wout, win)
    astack = arow.reshape(3 * hout, hin).astype(MXU_DTYPE)
    rdt = []
    for dy in range(3):
        # Rd[dy][co*wout+ox, ci*win+w] = sum_dx W[co,ci,dy,dx] * B[dx][ox,w]
        rd4 = jnp.einsum("oid,dxw->oxiw", w[:, :, dy, :], bcol)
        rdt.append(rd4.reshape(cout * wout, cin * win).T)    # (cin*win, cout*wout)
    rdt = jnp.concatenate(rdt, axis=0).astype(MXU_DTYPE)     # (3*cin*win, cout*wout)
    brow = jnp.repeat(b, wout).reshape(1, cout * wout).astype(jnp.float32)
    return (astack, rdt, brow), hout, wout


def prepare_branch_operands(blocks, h, w, stride=2):
    ops = []
    for blk in blocks:
        for i, (wgt, bias) in enumerate(blk):
            (astack, rdt, brow), h, w = _prepare_layer(
                wgt, bias, stride if i == 0 else 1, h, w)
            ops += [astack, rdt, brow]
    return ops, (h, w)


def permute_first_layer_cin(blocks, cx, co):
    """Re-order the first conv's Cin axis from torch order [x, obs] to slab order
    [obs, x] (the slab packs obs channels first so the o-branch can slice at lane 0)."""
    blocks = [list(b) for b in blocks]
    w0, b0 = blocks[0][0]
    w0p = jnp.concatenate([w0[:, cx:cx + co], w0[:, :cx]], axis=1)
    blocks[0][0] = (w0p, b0)
    return blocks


# ---------------------------------------------------------------------------
# Public forward: one pallas_call for the whole Encoder
# ---------------------------------------------------------------------------
def encoder_forward(x, obs, x_ops, o_ops, out_channels, hf, wf):
    n, cx, h, w = x.shape
    co = obs.shape[1]
    ctot = cx + co

    # Pack obs channels first so the o-branch input is a zero-offset lane slice.
    slab4 = jnp.concatenate([obs, x], axis=1)                        # (N, Co+Cx, H, W)
    slab = (jnp.transpose(slab4, (0, 2, 1, 3))                       # NCHW -> (N,H,C*W)
            .reshape(n, h, ctot * w)
            .astype(MXU_DTYPE))                                      # halve input DMA

    params = list(x_ops) + list(o_ops)
    nf = out_channels * wf

    in_specs = (
        [pl.BlockSpec((1, h, ctot * w), lambda i: (i, 0, 0))]
        + [pl.BlockSpec(p.shape, lambda i: (0, 0)) for p in params]  # all params are 2-D
    )
    out_specs = pl.BlockSpec((1, hf, 2 * nf), lambda i: (i, 0, 0))
    out_shape = jax.ShapeDtypeStruct((n, hf, 2 * nf), jnp.float32)

    kernel = functools.partial(
        _encoder_kernel, n_x_params=len(x_ops), obs_lanes=co * w)

    out = pl.pallas_call(
        kernel,
        grid=(n,),
        in_specs=in_specs,
        out_specs=out_specs,
        out_shape=out_shape,
        compiler_params=pltpu.CompilerParams(dimension_semantics=("parallel",)),
    )(slab, *params)

    # (N, Hf, 2*Cf*Wf) -> two NCHW tensors (tiny boundary slice/reshape/transpose)
    y = out[:, :, :nf].reshape(n, hf, out_channels, wf).transpose(0, 2, 1, 3)
    z = out[:, :, nf:].reshape(n, hf, out_channels, wf).transpose(0, 2, 1, 3)
    return y, z


# ---------------------------------------------------------------------------
# Parameter init (He-style) and pure-JAX reference for validation
# ---------------------------------------------------------------------------
def init_downblock_params(key, cin, cout, num_layers, use_bias):
    layers = []
    c = cin
    for _ in range(num_layers):
        key, kw, kb = jax.random.split(key, 3)
        fan_in = 9 * c
        w = jax.random.normal(kw, (cout, c, 3, 3), jnp.float32) * (2.0 / fan_in) ** 0.5
        b = (jax.random.uniform(kb, (cout,), jnp.float32, -0.1, 0.1)
             if use_bias else jnp.zeros((cout,), jnp.float32))
        layers.append((w, b))
        c = cout
    return layers, key


def init_encoder_params(key, x_feat, o_feat, out_channels, nx, no, bias_x, bias_o):
    x_chain = (x_feat[0] + o_feat[0], x_feat[1], x_feat[2], x_feat[3], out_channels)
    o_chain = (o_feat[0], o_feat[1], o_feat[2], o_feat[3], out_channels)
    params = {"x": [], "o": []}
    for cin, cout in zip(x_chain[:-1], x_chain[1:]):
        blk, key = init_downblock_params(key, cin, cout, nx, bias_x)
        params["x"].append(blk)
    for cin, cout in zip(o_chain[:-1], o_chain[1:]):
        blk, key = init_downblock_params(key, cin, cout, no, bias_o)
        params["o"].append(blk)
    return params


def _ref_downblock(a, layers, stride):
    for i, (w, b) in enumerate(layers):
        s = stride if i == 0 else 1
        a = jax.lax.conv_general_dilated(
            a, w, window_strides=(s, s), padding=((1, 1), (1, 1)),
            dimension_numbers=("NCHW", "OIHW", "NCHW"))
        a = jnp.maximum(a + b[None, :, None, None], 0.0)
    return a


def encoder_reference(x, obs, params, stride=2):
    y = jnp.concatenate([x, obs], axis=1)
    for blk in params["x"]:
        y = _ref_downblock(y, blk, stride)
    z = obs
    for blk in params["o"]:
        z = _ref_downblock(z, blk, stride)
    return y, z


# ---------------------------------------------------------------------------
if __name__ == "__main__":
    key = jax.random.PRNGKey(0)

    # Small config consistent with the module.
    x_feat = (2, 8, 16, 16)        # x_feat_channels_0..3
    o_feat = (2, 8, 16, 16)        # o_feat_channels_0..3
    out_channels = 32
    num_layers_x = 2
    num_layers_o = 2
    bias_x = True
    bias_o = True
    N, H, W = 2, 32, 32

    key, kx, ko, kp = jax.random.split(key, 4)
    x = jax.random.normal(kx, (N, x_feat[0], H, W), jnp.float32)     # NCHW
    obs = jax.random.normal(ko, (N, o_feat[0], H, W), jnp.float32)   # NCHW

    raw = init_encoder_params(kp, x_feat, o_feat, out_channels,
                              num_layers_x, num_layers_o, bias_x, bias_o)

    # Pre-pack operands (first x-layer Cin permuted to the obs-first slab layout).
    x_blocks_slab = permute_first_layer_cin(raw["x"], x_feat[0], o_feat[0])
    x_ops, (hf, wf) = prepare_branch_operands(x_blocks_slab, H, W)
    o_ops, _ = prepare_branch_operands(raw["o"], H, W)

    fwd = jax.jit(encoder_forward, static_argnums=(4, 5, 6))
    y, z = fwd(x, obs, tuple(x_ops), tuple(o_ops), out_channels, hf, wf)
    jax.block_until_ready((y, z))

    # Validate against a plain-JAX reference (bf16 MXU operands -> loose tolerance).
    y_ref, z_ref = encoder_reference(x, obs, raw)
    for got, want, name in ((y, y_ref, "y"), (z, z_ref, "z")):
        err = float(jnp.max(jnp.abs(got - want)))
        scale = float(jnp.max(jnp.abs(want)))
        assert err <= 0.1 * scale + 1e-5, (name, err, scale)

    assert y.shape == (N, out_channels, hf, wf), y.shape
    assert z.shape == (N, out_channels, hf, wf), z.shape
    assert bool(jnp.all(jnp.isfinite(y))) and bool(jnp.all(jnp.isfinite(z)))
    print("KERNEL_OK")
</pallas_src>

<mosaic_0001>
module attributes {stable_mosaic.version = 11 : i64} {
  func.func @_encoder_kernel(%arg0: i32, %arg1: memref<1x32x128xbf16, #tpu.memory_space<vmem>>, %arg2: memref<48x32xbf16, #tpu.memory_space<vmem>>, %arg3: memref<384x128xbf16, #tpu.memory_space<vmem>>, %arg4: memref<1x128xf32, #tpu.memory_space<vmem>>, %arg5: memref<48x16xbf16, #tpu.memory_space<vmem>>, %arg6: memref<384x128xbf16, #tpu.memory_space<vmem>>, %arg7: memref<1x128xf32, #tpu.memory_space<vmem>>, %arg8: memref<24x16xbf16, #tpu.memory_space<vmem>>, %arg9: memref<384x128xbf16, #tpu.memory_space<vmem>>, %arg10: memref<1x128xf32, #tpu.memory_space<vmem>>, %arg11: memref<24x8xbf16, #tpu.memory_space<vmem>>, %arg12: memref<384x128xbf16, #tpu.memory_space<vmem>>, %arg13: memref<1x128xf32, #tpu.memory_space<vmem>>, %arg14: memref<12x8xbf16, #tpu.memory_space<vmem>>, %arg15: memref<384x64xbf16, #tpu.memory_space<vmem>>, %arg16: memref<1x64xf32, #tpu.memory_space<vmem>>, %arg17: memref<12x4xbf16, #tpu.memory_space<vmem>>, %arg18: memref<192x64xbf16, #tpu.memory_space<vmem>>, %arg19: memref<1x64xf32, #tpu.memory_space<vmem>>, %arg20: memref<6x4xbf16, #tpu.memory_space<vmem>>, %arg21: memref<192x64xbf16, #tpu.memory_space<vmem>>, %arg22: memref<1x64xf32, #tpu.memory_space<vmem>>, %arg23: memref<6x2xbf16, #tpu.memory_space<vmem>>, %arg24: memref<192x64xbf16, #tpu.memory_space<vmem>>, %arg25: memref<1x64xf32, #tpu.memory_space<vmem>>, %arg26: memref<48x32xbf16, #tpu.memory_space<vmem>>, %arg27: memref<192x128xbf16, #tpu.memory_space<vmem>>, %arg28: memref<1x128xf32, #tpu.memory_space<vmem>>, %arg29: memref<48x16xbf16, #tpu.memory_space<vmem>>, %arg30: memref<384x128xbf16, #tpu.memory_space<vmem>>, %arg31: memref<1x128xf32, #tpu.memory_space<vmem>>, %arg32: memref<24x16xbf16, #tpu.memory_space<vmem>>, %arg33: memref<384x128xbf16, #tpu.memory_space<vmem>>, %arg34: memref<1x128xf32, #tpu.memory_space<vmem>>, %arg35: memref<24x8xbf16, #tpu.memory_space<vmem>>, %arg36: memref<384x128xbf16, #tpu.memory_space<vmem>>, %arg37: memref<1x128xf32, #tpu.memory_space<vmem>>, %arg38: memref<12x8xbf16, #tpu.memory_space<vmem>>, %arg39: memref<384x64xbf16, #tpu.memory_space<vmem>>, %arg40: memref<1x64xf32, #tpu.memory_space<vmem>>, %arg41: memref<12x4xbf16, #tpu.memory_space<vmem>>, %arg42: memref<192x64xbf16, #tpu.memory_space<vmem>>, %arg43: memref<1x64xf32, #tpu.memory_space<vmem>>, %arg44: memref<6x4xbf16, #tpu.memory_space<vmem>>, %arg45: memref<192x64xbf16, #tpu.memory_space<vmem>>, %arg46: memref<1x64xf32, #tpu.memory_space<vmem>>, %arg47: memref<6x2xbf16, #tpu.memory_space<vmem>>, %arg48: memref<192x64xbf16, #tpu.memory_space<vmem>>, %arg49: memref<1x64xf32, #tpu.memory_space<vmem>>, %arg50: memref<1x2x128xf32, #tpu.memory_space<vmem>>) attributes {dimension_semantics = [#tpu.dimension_semantics<parallel>], iteration_bounds = array<i64: 2>, scalar_prefetch = 0 : i64, scratch_operands = 0 : i64, tpu.core_type = #tpu.core_type<tc>, window_params = [{transform_indices = @transform_0, window_bounds = array<i64: 1, 32, 128>}, {pipeline_mode = #tpu.pipeline_mode<synchronous>, transform_indices = @transform_1, window_bounds = array<i64: 48, 32>}, {pipeline_mode = #tpu.pipeline_mode<synchronous>, transform_indices = @transform_2, window_bounds = array<i64: 384, 128>}, {pipeline_mode = #tpu.pipeline_mode<synchronous>, transform_indices = @transform_3, window_bounds = array<i64: 1, 128>}, {pipeline_mode = #tpu.pipeline_mode<synchronous>, transform_indices = @transform_4, window_bounds = array<i64: 48, 16>}, {pipeline_mode = #tpu.pipeline_mode<synchronous>, transform_indices = @transform_5, window_bounds = array<i64: 384, 128>}, {pipeline_mode = #tpu.pipeline_mode<synchronous>, transform_indices = @transform_6, window_bounds = array<i64: 1, 128>}, {pipeline_mode = #tpu.pipeline_mode<synchronous>, transform_indices = @transform_7, window_bounds = array<i64: 24, 16>}, {pipeline_mode = #tpu.pipeline_mode<synchronous>, transform_indices = @transform_8, window_bounds = array<i64: 384, 128>}, {pipeline_mode = #tpu.pipeline_mode<synchronous>, transform_indices = @transform_9, window_bounds = array<i64: 1, 128>}, {pipeline_mode = #tpu.pipeline_mode<synchronous>, transform_indices = @transform_10, window_bounds = array<i64: 24, 8>}, {pipeline_mode = #tpu.pipeline_mode<synchronous>, transform_indices = @transform_11, window_bounds = array<i64: 384, 128>}, {pipeline_mode = #tpu.pipeline_mode<synchronous>, transform_indices = @transform_12, window_bounds = array<i64: 1, 128>}, {pipeline_mode = #tpu.pipeline_mode<synchronous>, transform_indices = @transform_13, window_bounds = array<i64: 12, 8>}, {pipeline_mode = #tpu.pipeline_mode<synchronous>, transform_indices = @transform_14, window_bounds = array<i64: 384, 64>}, {pipeline_mode = #tpu.pipeline_mode<synchronous>, transform_indices = @transform_15, window_bounds = array<i64: 1, 64>}, {pipeline_mode = #tpu.pipeline_mode<synchronous>, transform_indices = @transform_16, window_bounds = array<i64: 12, 4>}, {pipeline_mode = #tpu.pipeline_mode<synchronous>, transform_indices = @transform_17, window_bounds = array<i64: 192, 64>}, {pipeline_mode = #tpu.pipeline_mode<synchronous>, transform_indices = @transform_18, window_bounds = array<i64: 1, 64>}, {pipeline_mode = #tpu.pipeline_mode<synchronous>, transform_indices = @transform_19, window_bounds = array<i64: 6, 4>}, {pipeline_mode = #tpu.pipeline_mode<synchronous>, transform_indices = @transform_20, window_bounds = array<i64: 192, 64>}, {pipeline_mode = #tpu.pipeline_mode<synchronous>, transform_indices = @transform_21, window_bounds = array<i64: 1, 64>}, {pipeline_mode = #tpu.pipeline_mode<synchronous>, transform_indices = @transform_22, window_bounds = array<i64: 6, 2>}, {pipeline_mode = #tpu.pipeline_mode<synchronous>, transform_indices = @transform_23, window_bounds = array<i64: 192, 64>}, {pipeline_mode = #tpu.pipeline_mode<synchronous>, transform_indices = @transform_24, window_bounds = array<i64: 1, 64>}, {pipeline_mode = #tpu.pipeline_mode<synchronous>, transform_indices = @transform_25, window_bounds = array<i64: 48, 32>}, {pipeline_mode = #tpu.pipeline_mode<synchronous>, transform_indices = @transform_26, window_bounds = array<i64: 192, 128>}, {pipeline_mode = #tpu.pipeline_mode<synchronous>, transform_indices = @transform_27, window_bounds = array<i64: 1, 128>}, {pipeline_mode = #tpu.pipeline_mode<synchronous>, transform_indices = @transform_28, window_bounds = array<i64: 48, 16>}, {pipeline_mode = #tpu.pipeline_mode<synchronous>, transform_indices = @transform_29, window_bounds = array<i64: 384, 128>}, {pipeline_mode = #tpu.pipeline_mode<synchronous>, transform_indices = @transform_30, window_bounds = array<i64: 1, 128>}, {pipeline_mode = #tpu.pipeline_mode<synchronous>, transform_indices = @transform_31, window_bounds = array<i64: 24, 16>}, {pipeline_mode = #tpu.pipeline_mode<synchronous>, transform_indices = @transform_32, window_bounds = array<i64: 384, 128>}, {pipeline_mode = #tpu.pipeline_mode<synchronous>, transform_indices = @transform_33, window_bounds = array<i64: 1, 128>}, {pipeline_mode = #tpu.pipeline_mode<synchronous>, transform_indices = @transform_34, window_bounds = array<i64: 24, 8>}, {pipeline_mode = #tpu.pipeline_mode<synchronous>, transform_indices = @transform_35, window_bounds = array<i64: 384, 128>}, {pipeline_mode = #tpu.pipeline_mode<synchronous>, transform_indices = @transform_36, window_bounds = array<i64: 1, 128>}, {pipeline_mode = #tpu.pipeline_mode<synchronous>, transform_indices = @transform_37, window_bounds = array<i64: 12, 8>}, {pipeline_mode = #tpu.pipeline_mode<synchronous>, transform_indices = @transform_38, window_bounds = array<i64: 384, 64>}, {pipeline_mode = #tpu.pipeline_mode<synchronous>, transform_indices = @transform_39, window_bounds = array<i64: 1, 64>}, {pipeline_mode = #tpu.pipeline_mode<synchronous>, transform_indices = @transform_40, window_bounds = array<i64: 12, 4>}, {pipeline_mode = #tpu.pipeline_mode<synchronous>, transform_indices = @transform_41, window_bounds = array<i64: 192, 64>}, {pipeline_mode = #tpu.pipeline_mode<synchronous>, transform_indices = @transform_42, window_bounds = array<i64: 1, 64>}, {pipeline_mode = #tpu.pipeline_mode<synchronous>, transform_indices = @transform_43, window_bounds = array<i64: 6, 4>}, {pipeline_mode = #tpu.pipeline_mode<synchronous>, transform_indices = @transform_44, window_bounds = array<i64: 192, 64>}, {pipeline_mode = #tpu.pipeline_mode<synchronous>, transform_indices = @transform_45, window_bounds = array<i64: 1, 64>}, {pipeline_mode = #tpu.pipeline_mode<synchronous>, transform_indices = @transform_46, window_bounds = array<i64: 6, 2>}, {pipeline_mode = #tpu.pipeline_mode<synchronous>, transform_indices = @transform_47, window_bounds = array<i64: 192, 64>}, {pipeline_mode = #tpu.pipeline_mode<synchronous>, transform_indices = @transform_48, window_bounds = array<i64: 1, 64>}, {transform_indices = @transform_49, window_bounds = array<i64: 1, 2, 128>}]} {
    %c0 = arith.constant 0 : index
    %c0_0 = arith.constant 0 : index
    %c0_1 = arith.constant 0 : index
    %0 = vector.load %arg1[%c0, %c0_0, %c0_1] : memref<1x32x128xbf16, #tpu.memory_space<vmem>>, vector<1x32x128xbf16>
    %1 = vector.shape_cast %0 : vector<1x32x128xbf16> to vector<32x128xbf16>
    %c0_2 = arith.constant 0 : index
    %c0_3 = arith.constant 0 : index
    %2 = vector.load %arg2[%c0_2, %c0_3] : memref<48x32xbf16, #tpu.memory_space<vmem>>, vector<48x32xbf16>
    %cst = arith.constant dense<0.000000e+00> : vector<48x128xf32>
    %3 = tpu.matmul %2, %1, %cst {dimension_numbers = #tpu.dot_dimension_numbers<[1], [0], [0], [1], [0, 0, 1, 1], [], []>} : vector<48x32xbf16>, vector<32x128xbf16>, vector<48x128xf32> -> vector<48x128xf32>
    %4 = arith.truncf %3 : vector<48x128xf32> to vector<48x128xbf16>
    %cst_4 = arith.constant 0.000000e+00 : f32
    %5 = vector.broadcast %cst_4 : f32 to vector<16x128xf32>
    %6 = vector.extract_strided_slice %4 {offsets = [0, 0], sizes = [16, 128], strides = [1, 1]} : vector<48x128xbf16> to vector<16x128xbf16>
    %c0_5 = arith.constant 0 : index
    %c0_6 = arith.constant 0 : index
    %7 = vector.load %arg3[%c0_5, %c0_6] : memref<384x128xbf16, #tpu.memory_space<vmem>>, vector<128x128xbf16>
    %cst_7 = arith.constant dense<0.000000e+00> : vector<16x128xf32>
    %8 = tpu.matmul %6, %7, %cst_7 {dimension_numbers = #tpu.dot_dimension_numbers<[1], [0], [0], [1], [0, 0, 1, 1], [], []>} : vector<16x128xbf16>, vector<128x128xbf16>, vector<16x128xf32> -> vector<16x128xf32>
    %9 = arith.addf %5, %8 : vector<16x128xf32>
    %10 = vector.extract_strided_slice %4 {offsets = [16, 0], sizes = [16, 128], strides = [1, 1]} : vector<48x128xbf16> to vector<16x128xbf16>
    %c128 = arith.constant 128 : index
    %c0_8 = arith.constant 0 : index
    %11 = vector.load %arg3[%c128, %c0_8] : memref<384x128xbf16, #tpu.memory_space<vmem>>, vector<128x128xbf16>
    %cst_9 = arith.constant dense<0.000000e+00> : vector<16x128xf32>
    %12 = tpu.matmul %10, %11, %cst_9 {dimension_numbers = #tpu.dot_dimension_numbers<[1], [0], [0], [1], [0, 0, 1, 1], [], []>} : vector<16x128xbf16>, vector<128x128xbf16>, vector<16x128xf32> -> vector<16x128xf32>
    %13 = arith.addf %9, %12 : vector<16x128xf32>
    %14 = vector.extract_strided_slice %4 {offsets = [32, 0], sizes = [16, 128], strides = [1, 1]} : vector<48x128xbf16> to vector<16x128xbf16>
    %c256 = arith.constant 256 : index
    %c0_10 = arith.constant 0 : index
    %15 = vector.load %arg3[%c256, %c0_10] : memref<384x128xbf16, #tpu.memory_space<vmem>>, vector<128x128xbf16>
    %cst_11 = arith.constant dense<0.000000e+00> : vector<16x128xf32>
    %16 = tpu.matmul %14, %15, %cst_11 {dimension_numbers = #tpu.dot_dimension_numbers<[1], [0], [0], [1], [0, 0, 1, 1], [], []>} : vector<16x128xbf16>, vector<128x128xbf16>, vector<16x128xf32> -> vector<16x128xf32>
    %17 = arith.addf %13, %16 : vector<16x128xf32>
    %c0_12 = arith.constant 0 : index
    %c0_13 = arith.constant 0 : index
    %18 = vector.load %arg4[%c0_12, %c0_13] : memref<1x128xf32, #tpu.memory_space<vmem>>, vector<1x128xf32>
    %19 = vector.broadcast %18 : vector<1x128xf32> to vector<16x128xf32>
    %20 = arith.addf %17, %19 : vector<16x128xf32>
    %cst_14 = arith.constant 0.000000e+00 : f32
    %21 = vector.broadcast %cst_14 : f32 to vector<16x128xf32>
    %22 = arith.maximumf %20, %21 : vector<16x128xf32>
    %23 = arith.truncf %22 : vector<16x128xf32> to vector<16x128xbf16>
    %c0_15 = arith.constant 0 : index
    %c0_16 = arith.constant 0 : index
    %24 = vector.load %arg5[%c0_15, %c0_16] : memref<48x16xbf16, #tpu.memory_space<vmem>>, vector<48x16xbf16>
    %cst_17 = arith.constant dense<0.000000e+00> : vector<48x128xf32>
    %25 = tpu.matmul %24, %23, %cst_17 {dimension_numbers = #tpu.dot_dimension_numbers<[1], [0], [0], [1], [0, 0, 1, 1], [], []>} : vector<48x16xbf16>, vector<16x128xbf16>, vector<48x128xf32> -> vector<48x128xf32>
    %26 = arith.truncf %25 : vector<48x128xf32> to vector<48x128xbf16>
    %cst_18 = arith.constant 0.000000e+00 : f32
    %27 = vector.broadcast %cst_18 : f32 to vector<16x128xf32>
    %28 = vector.extract_strided_slice %26 {offsets = [0, 0], sizes = [16, 128], strides = [1, 1]} : vector<48x128xbf16> to vector<16x128xbf16>
    %c0_19 = arith.constant 0 : index
    %c0_20 = arith.constant 0 : index
    %29 = vector.load %arg6[%c0_19, %c0_20] : memref<384x128xbf16, #tpu.memory_space<vmem>>, vector<128x128xbf16>
    %cst_21 = arith.constant dense<0.000000e+00> : vector<16x128xf32>
    %30 = tpu.matmul %28, %29, %cst_21 {dimension_numbers = #tpu.dot_dimension_numbers<[1], [0], [0], [1], [0, 0, 1, 1], [], []>} : vector<16x128xbf16>, vector<128x128xbf16>, vector<16x128xf32> -> vector<16x128xf32>
    %31 = arith.addf %27, %30 : vector<16x128xf32>
    %32 = vector.extract_strided_slice %26 {offsets = [16, 0], sizes = [16, 128], strides = [1, 1]} : vector<48x128xbf16> to vector<16x128xbf16>
    %c128_22 = arith.constant 128 : index
    %c0_23 = arith.constant 0 : index
    %33 = vector.load %arg6[%c128_22, %c0_23] : memref<384x128xbf16, #tpu.memory_space<vmem>>, vector<128x128xbf16>
    %cst_24 = arith.constant dense<0.000000e+00> : vector<16x128xf32>
    %34 = tpu.matmul %32, %33, %cst_24 {dimension_numbers = #tpu.dot_dimension_numbers<[1], [0], [0], [1], [0, 0, 1, 1], [], []>} : vector<16x128xbf16>, vector<128x128xbf16>, vector<16x128xf32> -> vector<16x128xf32>
    %35 = arith.addf %31, %34 : vector<16x128xf32>
    %36 = vector.extract_strided_slice %26 {offsets = [32, 0], sizes = [16, 128], strides = [1, 1]} : vector<48x128xbf16> to vector<16x128xbf16>
    %c256_25 = arith.constant 256 : index
    %c0_26 = arith.constant 0 : index
    %37 = vector.load %arg6[%c256_25, %c0_26] : memref<384x128xbf16, #tpu.memory_space<vmem>>, vector<128x128xbf16>
    %cst_27 = arith.constant dense<0.000000e+00> : vector<16x128xf32>
    %38 = tpu.matmul %36, %37, %cst_27 {dimension_numbers = #tpu.dot_dimension_numbers<[1], [0], [0], [1], [0, 0, 1, 1], [], []>} : vector<16x128xbf16>, vector<128x128xbf16>, vector<16x128xf32> -> vector<16x128xf32>
    %39 = arith.addf %35, %38 : vector<16x128xf32>
    %c0_28 = arith.constant 0 : index
    %c0_29 = arith.constant 0 : index
    %40 = vector.load %arg7[%c0_28, %c0_29] : memref<1x128xf32, #tpu.memory_space<vmem>>, vector<1x128xf32>
    %41 = vector.broadcast %40 : vector<1x128xf32> to vector<16x128xf32>
    %42 = arith.addf %39, %41 : vector<16x128xf32>
    %cst_30 = arith.constant 0.000000e+00 : f32
    %43 = vector.broadcast %cst_30 : f32 to vector<16x128xf32>
    %44 = arith.maximumf %42, %43 : vector<16x128xf32>
    %45 = arith.truncf %44 : vector<16x128xf32> to vector<16x128xbf16>
    %c0_31 = arith.constant 0 : index
    %c0_32 = arith.constant 0 : index
    %46 = vector.load %arg8[%c0_31, %c0_32] : memref<24x16xbf16, #tpu.memory_space<vmem>>, vector<24x16xbf16>
    %cst_33 = arith.constant dense<0.000000e+00> : vector<24x128xf32>
    %47 = tpu.matmul %46, %45, %cst_33 {dimension_numbers = #tpu.dot_dimension_numbers<[1], [0], [0], [1], [0, 0, 1, 1], [], []>} : vector<24x16xbf16>, vector<16x128xbf16>, vector<24x128xf32> -> vector<24x128xf32>
    %48 = arith.truncf %47 : vector<24x128xf32> to vector<24x128xbf16>
    %cst_34 = arith.constant 0.000000e+00 : f32
    %49 = vector.broadcast %cst_34 : f32 to vector<8x128xf32>
    %50 = vector.extract_strided_slice %48 {offsets = [0, 0], sizes = [8, 128], strides = [1, 1]} : vector<24x128xbf16> to vector<8x128xbf16>
    %c0_35 = arith.constant 0 : index
    %c0_36 = arith.constant 0 : index
    %51 = vector.load %arg9[%c0_35, %c0_36] : memref<384x128xbf16, #tpu.memory_space<vmem>>, vector<128x128xbf16>
    %cst_37 = arith.constant dense<0.000000e+00> : vector<8x128xf32>
    %52 = tpu.matmul %50, %51, %cst_37 {dimension_numbers = #tpu.dot_dimension_numbers<[1], [0], [0], [1], [0, 0, 1, 1], [], []>} : vector<8x128xbf16>, vector<128x128xbf16>, vector<8x128xf32> -> vector<8x128xf32>
    %53 = arith.addf %49, %52 : vector<8x128xf32>
    %54 = vector.extract_strided_slice %48 {offsets = [8, 0], sizes = [8, 128], strides = [1, 1]} : vector<24x128xbf16> to vector<8x128xbf16>
    %c128_38 = arith.constant 128 : index
    %c0_39 = arith.constant 0 : index
    %55 = vector.load %arg9[%c128_38, %c0_39] : memref<384x128xbf16, #tpu.memory_space<vmem>>, vector<128x128xbf16>
    %cst_40 = arith.constant dense<0.000000e+00> : vector<8x128xf32>
    %56 = tpu.matmul %54, %55, %cst_40 {dimension_numbers = #tpu.dot_dimension_numbers<[1], [0], [0], [1], [0, 0, 1, 1], [], []>} : vector<8x128xbf16>, vector<128x128xbf16>, vector<8x128xf32> -> vector<8x128xf32>
    %57 = arith.addf %53, %56 : vector<8x128xf32>
    %58 = vector.extract_strided_slice %48 {offsets = [16, 0], sizes = [8, 128], strides = [1, 1]} : vector<24x128xbf16> to vector<8x128xbf16>
    %c256_41 = arith.constant 256 : index
    %c0_42 = arith.constant 0 : index
    %59 = vector.load %arg9[%c256_41, %c0_42] : memref<384x128xbf16, #tpu.memory_space<vmem>>, vector<128x128xbf16>
    %cst_43 = arith.constant dense<0.000000e+00> : vector<8x128xf32>
    %60 = tpu.matmul %58, %59, %cst_43 {dimension_numbers = #tpu.dot_dimension_numbers<[1], [0], [0], [1], [0, 0, 1, 1], [], []>} : vector<8x128xbf16>, vector<128x128xbf16>, vector<8x128xf32> -> vector<8x128xf32>
    %61 = arith.addf %57, %60 : vector<8x128xf32>
    %c0_44 = arith.constant 0 : index
    %c0_45 = arith.constant 0 : index
    %62 = vector.load %arg10[%c0_44, %c0_45] : memref<1x128xf32, #tpu.memory_space<vmem>>, vector<1x128xf32>
    %63 = vector.broadcast %62 : vector<1x128xf32> to vector<8x128xf32>
    %64 = arith.addf %61, %63 : vector<8x128xf32>
    %cst_46 = arith.constant 0.000000e+00 : f32
    %65 = vector.broadcast %cst_46 : f32 to vector<8x128xf32>
    %66 = arith.maximumf %64, %65 : vector<8x128xf32>
    %67 = arith.truncf %66 : vector<8x128xf32> to vector<8x128xbf16>
    %c0_47 = arith.constant 0 : index
    %c0_48 = arith.constant 0 : index
    %68 = vector.load %arg11[%c0_47, %c0_48] : memref<24x8xbf16, #tpu.memory_space<vmem>>, vector<24x8xbf16>
    %cst_49 = arith.constant dense<0.000000e+00> : vector<24x128xf32>
    %69 = tpu.matmul %68, %67, %cst_49 {dimension_numbers = #tpu.dot_dimension_numbers<[1], [0], [0], [1], [0, 0, 1, 1], [], []>} : vector<24x8xbf16>, vector<8x128xbf16>, vector<24x128xf32> -> vector<24x128xf32>
    %70 = arith.truncf %69 : vector<24x128xf32> to vector<24x128xbf16>
    %cst_50 = arith.constant 0.000000e+00 : f32
    %71 = vector.broadcast %cst_50 : f32 to vector<8x128xf32>
    %72 = vector.extract_strided_slice %70 {offsets = [0, 0], sizes = [8, 128], strides = [1, 1]} : vector<24x128xbf16> to vector<8x128xbf16>
    %c0_51 = arith.constant 0 : index
    %c0_52 = arith.constant 0 : index
    %73 = vector.load %arg12[%c0_51, %c0_52] : memref<384x128xbf16, #tpu.memory_space<vmem>>, vector<128x128xbf16>
    %cst_53 = arith.constant dense<0.000000e+00> : vector<8x128xf32>
    %74 = tpu.matmul %72, %73, %cst_53 {dimension_numbers = #tpu.dot_dimension_numbers<[1], [0], [0], [1], [0, 0, 1, 1], [], []>} : vector<8x128xbf16>, vector<128x128xbf16>, vector<8x128xf32> -> vector<8x128xf32>
    %75 = arith.addf %71, %74 : vector<8x128xf32>
    %76 = vector.extract_strided_slice %70 {offsets = [8, 0], sizes = [8, 128], strides = [1, 1]} : vector<24x128xbf16> to vector<8x128xbf16>
    %c128_54 = arith.constant 128 : index
    %c0_55 = arith.constant 0 : index
    %77 = vector.load %arg12[%c128_54, %c0_55] : memref<384x128xbf16, #tpu.memory_space<vmem>>, vector<128x128xbf16>
    %cst_56 = arith.constant dense<0.000000e+00> : vector<8x128xf32>
    %78 = tpu.matmul %76, %77, %cst_56 {dimension_numbers = #tpu.dot_dimension_numbers<[1], [0], [0], [1], [0, 0, 1, 1], [], []>} : vector<8x128xbf16>, vector<128x128xbf16>, vector<8x128xf32> -> vector<8x128xf32>
    %79 = arith.addf %75, %78 : vector<8x128xf32>
    %80 = vector.extract_strided_slice %70 {offsets = [16, 0], sizes = [8, 128], strides = [1, 1]} : vector<24x128xbf16> to vector<8x128xbf16>
    %c256_57 = arith.constant 256 : index
    %c0_58 = arith.constant 0 : index
    %81 = vector.load %arg12[%c256_57, %c0_58] : memref<384x128xbf16, #tpu.memory_space<vmem>>, vector<128x128xbf16>
    %cst_59 = arith.constant dense<0.000000e+00> : vector<8x128xf32>
    %82 = tpu.matmul %80, %81, %cst_59 {dimension_numbers = #tpu.dot_dimension_numbers<[1], [0], [0], [1], [0, 0, 1, 1], [], []>} : vector<8x128xbf16>, vector<128x128xbf16>, vector<8x128xf32> -> vector<8x128xf32>
    %83 = arith.addf %79, %82 : vector<8x128xf32>
    %c0_60 = arith.constant 0 : index
    %c0_61 = arith.constant 0 : index
    %84 = vector.load %arg13[%c0_60, %c0_61] : memref<1x128xf32, #tpu.memory_space<vmem>>, vector<1x128xf32>
    %85 = vector.broadcast %84 : vector<1x128xf32> to vector<8x128xf32>
    %86 = arith.addf %83, %85 : vector<8x128xf32>
    %cst_62 = arith.constant 0.000000e+00 : f32
    %87 = vector.broadcast %cst_62 : f32 to vector<8x128xf32>
    %88 = arith.maximumf %86, %87 : vector<8x128xf32>
    %89 = arith.truncf %88 : vector<8x128xf32> to vector<8x128xbf16>
    %c0_63 = arith.constant 0 : index
    %c0_64 = arith.constant 0 : index
    %90 = vector.load %arg14[%c0_63, %c0_64] : memref<12x8xbf16, #tpu.memory_space<vmem>>, vector<12x8xbf16>
    %cst_65 = arith.constant dense<0.000000e+00> : vector<12x128xf32>
    %91 = tpu.matmul %90, %89, %cst_65 {dimension_numbers = #tpu.dot_dimension_numbers<[1], [0], [0], [1], [0, 0, 1, 1], [], []>} : vector<12x8xbf16>, vector<8x128xbf16>, vector<12x128xf32> -> vector<12x128xf32>
    %92 = arith.truncf %91 : vector<12x128xf32> to vector<12x128xbf16>
    %cst_66 = arith.constant 0.000000e+00 : f32
    %93 = vector.broadcast %cst_66 : f32 to vector<4x64xf32>
    %94 = vector.extract_strided_slice %92 {offsets = [0, 0], sizes = [4, 128], strides = [1, 1]} : vector<12x128xbf16> to vector<4x128xbf16>
    %c0_67 = arith.constant 0 : index
    %c0_68 = arith.constant 0 : index
    %95 = vector.load %arg15[%c0_67, %c0_68] : memref<384x64xbf16, #tpu.memory_space<vmem>>, vector<128x64xbf16>
    %cst_69 = arith.constant dense<0.000000e+00> : vector<4x64xf32>
    %96 = tpu.matmul %94, %95, %cst_69 {dimension_numbers = #tpu.dot_dimension_numbers<[1], [0], [0], [1], [0, 0, 1, 1], [], []>} : vector<4x128xbf16>, vector<128x64xbf16>, vector<4x64xf32> -> vector<4x64xf32>
    %97 = arith.addf %93, %96 : vector<4x64xf32>
    %98 = vector.extract_strided_slice %92 {offsets = [4, 0], sizes = [4, 128], strides = [1, 1]} : vector<12x128xbf16> to vector<4x128xbf16>
    %c128_70 = arith.constant 128 : index
    %c0_71 = arith.constant 0 : index
    %99 = vector.load %arg15[%c128_70, %c0_71] : memref<384x64xbf16, #tpu.memory_space<vmem>>, vector<128x64xbf16>
    %cst_72 = arith.constant dense<0.000000e+00> : vector<4x64xf32>
    %100 = tpu.matmul %98, %99, %cst_72 {dimension_numbers = #tpu.dot_dimension_numbers<[1], [0], [0], [1], [0, 0, 1, 1], [], []>} : vector<4x128xbf16>, vector<128x64xbf16>, vector<4x64xf32> -> vector<4x64xf32>
    %101 = arith.addf %97, %100 : vector<4x64xf32>
    %102 = vector.extract_strided_slice %92 {offsets = [8, 0], sizes = [4, 128], strides = [1, 1]} : vector<12x128xbf16> to vector<4x128xbf16>
    %c256_73 = arith.constant 256 : index
    %c0_74 = arith.constant 0 : index
    %103 = vector.load %arg15[%c256_73, %c0_74] : memref<384x64xbf16, #tpu.memory_space<vmem>>, vector<128x64xbf16>
    %cst_75 = arith.constant dense<0.000000e+00> : vector<4x64xf32>
    %104 = tpu.matmul %102, %103, %cst_75 {dimension_numbers = #tpu.dot_dimension_numbers<[1], [0], [0], [1], [0, 0, 1, 1], [], []>} : vector<4x128xbf16>, vector<128x64xbf16>, vector<4x64xf32> -> vector<4x64xf32>
    %105 = arith.addf %101, %104 : vector<4x64xf32>
    %c0_76 = arith.constant 0 : index
    %c0_77 = arith.constant 0 : index
    %106 = vector.load %arg16[%c0_76, %c0_77] : memref<1x64xf32, #tpu.memory_space<vmem>>, vector<1x64xf32>
    %107 = vector.broadcast %106 : vector<1x64xf32> to vector<4x64xf32>
    %108 = arith.addf %105, %107 : vector<4x64xf32>
    %cst_78 = arith.constant 0.000000e+00 : f32
    %109 = vector.broadcast %cst_78 : f32 to vector<4x64xf32>
    %110 = arith.maximumf %108, %109 : vector<4x64xf32>
    %111 = arith.truncf %110 : vector<4x64xf32> to vector<4x64xbf16>
    %c0_79 = arith.constant 0 : index
    %c0_80 = arith.constant 0 : index
    %112 = vector.load %arg17[%c0_79, %c0_80] : memref<12x4xbf16, #tpu.memory_space<vmem>>, vector<12x4xbf16>
    %cst_81 = arith.constant dense<0.000000e+00> : vector<12x64xf32>
    %113 = tpu.matmul %112, %111, %cst_81 {dimension_numbers = #tpu.dot_dimension_numbers<[1], [0], [0], [1], [0, 0, 1, 1], [], []>} : vector<12x4xbf16>, vector<4x64xbf16>, vector<12x64xf32> -> vector<12x64xf32>
    %114 = arith.truncf %113 : vector<12x64xf32> to vector<12x64xbf16>
    %cst_82 = arith.constant 0.000000e+00 : f32
    %115 = vector.broadcast %cst_82 : f32 to vector<4x64xf32>
    %116 = vector.extract_strided_slice %114 {offsets = [0, 0], sizes = [4, 64], strides = [1, 1]} : vector<12x64xbf16> to vector<4x64xbf16>
    %c0_83 = arith.constant 0 : index
    %c0_84 = arith.constant 0 : index
    %117 = vector.load %arg18[%c0_83, %c0_84] : memref<192x64xbf16, #tpu.memory_space<vmem>>, vector<64x64xbf16>
    %cst_85 = arith.constant dense<0.000000e+00> : vector<4x64xf32>
    %118 = tpu.matmul %116, %117, %cst_85 {dimension_numbers = #tpu.dot_dimension_numbers<[1], [0], [0], [1], [0, 0, 1, 1], [], []>} : vector<4x64xbf16>, vector<64x64xbf16>, vector<4x64xf32> -> vector<4x64xf32>
    %119 = arith.addf %115, %118 : vector<4x64xf32>
    %120 = vector.extract_strided_slice %114 {offsets = [4, 0], sizes = [4, 64], strides = [1, 1]} : vector<12x64xbf16> to vector<4x64xbf16>
    %c64 = arith.constant 64 : index
    %c0_86 = arith.constant 0 : index
    %121 = vector.load %arg18[%c64, %c0_86] : memref<192x64xbf16, #tpu.memory_space<vmem>>, vector<64x64xbf16>
    %cst_87 = arith.constant dense<0.000000e+00> : vector<4x64xf32>
    %122 = tpu.matmul %120, %121, %cst_87 {dimension_numbers = #tpu.dot_dimension_numbers<[1], [0], [0], [1], [0, 0, 1, 1], [], []>} : vector<4x64xbf16>, vector<64x64xbf16>, vector<4x64xf32> -> vector<4x64xf32>
    %123 = arith.addf %119, %122 : vector<4x64xf32>
    %124 = vector.extract_strided_slice %114 {offsets = [8, 0], sizes = [4, 64], strides = [1, 1]} : vector<12x64xbf16> to vector<4x64xbf16>
    %c128_88 = arith.constant 128 : index
    %c0_89 = arith.constant 0 : index
    %125 = vector.load %arg18[%c128_88, %c0_89] : memref<192x64xbf16, #tpu.memory_space<vmem>>, vector<64x64xbf16>
    %cst_90 = arith.constant dense<0.000000e+00> : vector<4x64xf32>
    %126 = tpu.matmul %124, %125, %cst_90 {dimension_numbers = #tpu.dot_dimension_numbers<[1], [0], [0], [1], [0, 0, 1, 1], [], []>} : vector<4x64xbf16>, vector<64x64xbf16>, vector<4x64xf32> -> vector<4x64xf32>
    %127 = arith.addf %123, %126 : vector<4x64xf32>
    %c0_91 = arith.constant 0 : index
    %c0_92 = arith.constant 0 : index
    %128 = vector.load %arg19[%c0_91, %c0_92] : memref<1x64xf32, #tpu.memory_space<vmem>>, vector<1x64xf32>
    %129 = vector.broadcast %128 : vector<1x64xf32> to vector<4x64xf32>
    %130 = arith.addf %127, %129 : vector<4x64xf32>
    %cst_93 = arith.constant 0.000000e+00 : f32
    %131 = vector.broadcast %cst_93 : f32 to vector<4x64xf32>
    %132 = arith.maximumf %130, %131 : vector<4x64xf32>
    %133 = arith.truncf %132 : vector<4x64xf32> to vector<4x64xbf16>
    %c0_94 = arith.constant 0 : index
    %c0_95 = arith.constant 0 : index
    %134 = vector.load %arg20[%c0_94, %c0_95] : memref<6x4xbf16, #tpu.memory_space<vmem>>, vector<6x4xbf16>
    %cst_96 = arith.constant dense<0.000000e+00> : vector<6x64xf32>
    %135 = tpu.matmul %134, %133, %cst_96 {dimension_numbers = #tpu.dot_dimension_numbers<[1], [0], [0], [1], [0, 0, 1, 1], [], []>} : vector<6x4xbf16>, vector<4x64xbf16>, vector<6x64xf32> -> vector<6x64xf32>
    %136 = arith.truncf %135 : vector<6x64xf32> to vector<6x64xbf16>
    %cst_97 = arith.constant 0.000000e+00 : f32
    %137 = vector.broadcast %cst_97 : f32 to vector<2x64xf32>
    %138 = vector.extract_strided_slice %136 {offsets = [0, 0], sizes = [2, 64], strides = [1, 1]} : vector<6x64xbf16> to vector<2x64xbf16>
    %c0_98 = arith.constant 0 : index
    %c0_99 = arith.constant 0 : index
    %139 = vector.load %arg21[%c0_98, %c0_99] : memref<192x64xbf16, #tpu.memory_space<vmem>>, vector<64x64xbf16>
    %cst_100 = arith.constant dense<0.000000e+00> : vector<2x64xf32>
    %140 = tpu.matmul %138, %139, %cst_100 {dimension_numbers = #tpu.dot_dimension_numbers<[1], [0], [0], [1], [0, 0, 1, 1], [], []>} : vector<2x64xbf16>, vector<64x64xbf16>, vector<2x64xf32> -> vector<2x64xf32>
    %141 = arith.addf %137, %140 : vector<2x64xf32>
    %142 = vector.extract_strided_slice %136 {offsets = [2, 0], sizes = [2, 64], strides = [1, 1]} : vector<6x64xbf16> to vector<2x64xbf16>
    %c64_101 = arith.constant 64 : index
    %c0_102 = arith.constant 0 : index
    %143 = vector.load %arg21[%c64_101, %c0_102] : memref<192x64xbf16, #tpu.memory_space<vmem>>, vector<64x64xbf16>
    %cst_103 = arith.constant dense<0.000000e+00> : vector<2x64xf32>
    %144 = tpu.matmul %142, %143, %cst_103 {dimension_numbers = #tpu.dot_dimension_numbers<[1], [0], [0], [1], [0, 0, 1, 1], [], []>} : vector<2x64xbf16>, vector<64x64xbf16>, vector<2x64xf32> -> vector<2x64xf32>
    %145 = arith.addf %141, %144 : vector<2x64xf32>
    %146 = vector.extract_strided_slice %136 {offsets = [4, 0], sizes = [2, 64], strides = [1, 1]} : vector<6x64xbf16> to vector<2x64xbf16>
    %c128_104 = arith.constant 128 : index
    %c0_105 = arith.constant 0 : index
    %147 = vector.load %arg21[%c128_104, %c0_105] : memref<192x64xbf16, #tpu.memory_space<vmem>>, vector<64x64xbf16>
    %cst_106 = arith.constant dense<0.000000e+00> : vector<2x64xf32>
    %148 = tpu.matmul %146, %147, %cst_106 {dimension_numbers = #tpu.dot_dimension_numbers<[1], [0], [0], [1], [0, 0, 1, 1], [], []>} : vector<2x64xbf16>, vector<64x64xbf16>, vector<2x64xf32> -> vector<2x64xf32>
    %149 = arith.addf %145, %148 : vector<2x64xf32>
    %c0_107 = arith.constant 0 : index
    %c0_108 = arith.constant 0 : index
    %150 = vector.load %arg22[%c0_107, %c0_108] : memref<1x64xf32, #tpu.memory_space<vmem>>, vector<1x64xf32>
    %151 = vector.broadcast %150 : vector<1x64xf32> to vector<2x64xf32>
    %152 = arith.addf %149, %151 : vector<2x64xf32>
    %cst_109 = arith.constant 0.000000e+00 : f32
    %153 = vector.broadcast %cst_109 : f32 to vector<2x64xf32>
    %154 = arith.maximumf %152, %153 : vector<2x64xf32>
    %155 = arith.truncf %154 : vector<2x64xf32> to vector<2x64xbf16>
    %c0_110 = arith.constant 0 : index
    %c0_111 = arith.constant 0 : index
    %156 = vector.load %arg23[%c0_110, %c0_111] : memref<6x2xbf16, #tpu.memory_space<vmem>>, vector<6x2xbf16>
    %cst_112 = arith.constant dense<0.000000e+00> : vector<6x64xf32>
    %157 = tpu.matmul %156, %155, %cst_112 {dimension_numbers = #tpu.dot_dimension_numbers<[1], [0], [0], [1], [0, 0, 1, 1], [], []>} : vector<6x2xbf16>, vector<2x64xbf16>, vector<6x64xf32> -> vector<6x64xf32>
    %158 = arith.truncf %157 : vector<6x64xf32> to vector<6x64xbf16>
    %cst_113 = arith.constant 0.000000e+00 : f32
    %159 = vector.broadcast %cst_113 : f32 to vector<2x64xf32>
    %160 = vector.extract_strided_slice %158 {offsets = [0, 0], sizes = [2, 64], strides = [1, 1]} : vector<6x64xbf16> to vector<2x64xbf16>
    %c0_114 = arith.constant 0 : index
    %c0_115 = arith.constant 0 : index
    %161 = vector.load %arg24[%c0_114, %c0_115] : memref<192x64xbf16, #tpu.memory_space<vmem>>, vector<64x64xbf16>
    %cst_116 = arith.constant dense<0.000000e+00> : vector<2x64xf32>
    %162 = tpu.matmul %160, %161, %cst_116 {dimension_numbers = #tpu.dot_dimension_numbers<[1], [0], [0], [1], [0, 0, 1, 1], [], []>} : vector<2x64xbf16>, vector<64x64xbf16>, vector<2x64xf32> -> vector<2x64xf32>
    %163 = arith.addf %159, %162 : vector<2x64xf32>
    %164 = vector.extract_strided_slice %158 {offsets = [2, 0], sizes = [2, 64], strides = [1, 1]} : vector<6x64xbf16> to vector<2x64xbf16>
    %c64_117 = arith.constant 64 : index
    %c0_118 = arith.constant 0 : index
    %165 = vector.load %arg24[%c64_117, %c0_118] : memref<192x64xbf16, #tpu.memory_space<vmem>>, vector<64x64xbf16>
    %cst_119 = arith.constant dense<0.000000e+00> : vector<2x64xf32>
    %166 = tpu.matmul %164, %165, %cst_119 {dimension_numbers = #tpu.dot_dimension_numbers<[1], [0], [0], [1], [0, 0, 1, 1], [], []>} : vector<2x64xbf16>, vector<64x64xbf16>, vector<2x64xf32> -> vector<2x64xf32>
    %167 = arith.addf %163, %166 : vector<2x64xf32>
    %168 = vector.extract_strided_slice %158 {offsets = [4, 0], sizes = [2, 64], strides = [1, 1]} : vector<6x64xbf16> to vector<2x64xbf16>
    %c128_120 = arith.constant 128 : index
    %c0_121 = arith.constant 0 : index
    %169 = vector.load %arg24[%c128_120, %c0_121] : memref<192x64xbf16, #tpu.memory_space<vmem>>, vector<64x64xbf16>
    %cst_122 = arith.constant dense<0.000000e+00> : vector<2x64xf32>
    %170 = tpu.matmul %168, %169, %cst_122 {dimension_numbers = #tpu.dot_dimension_numbers<[1], [0], [0], [1], [0, 0, 1, 1], [], []>} : vector<2x64xbf16>, vector<64x64xbf16>, vector<2x64xf32> -> vector<2x64xf32>
    %171 = arith.addf %167, %170 : vector<2x64xf32>
    %c0_123 = arith.constant 0 : index
    %c0_124 = arith.constant 0 : index
    %172 = vector.load %arg25[%c0_123, %c0_124] : memref<1x64xf32, #tpu.memory_space<vmem>>, vector<1x64xf32>
    %173 = vector.broadcast %172 : vector<1x64xf32> to vector<2x64xf32>
    %174 = arith.addf %171, %173 : vector<2x64xf32>
    %cst_125 = arith.constant 0.000000e+00 : f32
    %175 = vector.broadcast %cst_125 : f32 to vector<2x64xf32>
    %176 = arith.maximumf %174, %175 : vector<2x64xf32>
    %177 = vector.extract_strided_slice %1 {offsets = [0, 0], sizes = [32, 64], strides = [1, 1]} : vector<32x128xbf16> to vector<32x64xbf16>
    %c0_126 = arith.constant 0 : index
    %c0_127 = arith.constant 0 : index
    %178 = vector.load %arg26[%c0_126, %c0_127] : memref<48x32xbf16, #tpu.memory_space<vmem>>, vector<48x32xbf16>
    %cst_128 = arith.constant dense<0.000000e+00> : vector<48x64xf32>
    %179 = tpu.matmul %178, %177, %cst_128 {dimension_numbers = #tpu.dot_dimension_numbers<[1], [0], [0], [1], [0, 0, 1, 1], [], []>} : vector<48x32xbf16>, vector<32x64xbf16>, vector<48x64xf32> -> vector<48x64xf32>
    %180 = arith.truncf %179 : vector<48x64xf32> to vector<48x64xbf16>
    %cst_129 = arith.constant 0.000000e+00 : f32
    %181 = vector.broadcast %cst_129 : f32 to vector<16x128xf32>
    %182 = vector.extract_strided_slice %180 {offsets = [0, 0], sizes = [16, 64], strides = [1, 1]} : vector<48x64xbf16> to vector<16x64xbf16>
    %c0_130 = arith.constant 0 : index
    %c0_131 = arith.constant 0 : index
    %183 = vector.load %arg27[%c0_130, %c0_131] : memref<192x128xbf16, #tpu.memory_space<vmem>>, vector<64x128xbf16>
    %cst_132 = arith.constant dense<0.000000e+00> : vector<16x128xf32>
    %184 = tpu.matmul %182, %183, %cst_132 {dimension_numbers = #tpu.dot_dimension_numbers<[1], [0], [0], [1], [0, 0, 1, 1], [], []>} : vector<16x64xbf16>, vector<64x128xbf16>, vector<16x128xf32> -> vector<16x128xf32>
    %185 = arith.addf %181, %184 : vector<16x128xf32>
    %186 = vector.extract_strided_slice %180 {offsets = [16, 0], sizes = [16, 64], strides = [1, 1]} : vector<48x64xbf16> to vector<16x64xbf16>
    %c64_133 = arith.constant 64 : index
    %c0_134 = arith.constant 0 : index
    %187 = vector.load %arg27[%c64_133, %c0_134] : memref<192x128xbf16, #tpu.memory_space<vmem>>, vector<64x128xbf16>
    %cst_135 = arith.constant dense<0.000000e+00> : vector<16x128xf32>
    %188 = tpu.matmul %186, %187, %cst_135 {dimension_numbers = #tpu.dot_dimension_numbers<[1], [0], [0], [1], [0, 0, 1, 1], [], []>} : vector<16x64xbf16>, vector<64x128xbf16>, vector<16x128xf32> -> vector<16x128xf32>
    %189 = arith.addf %185, %188 : vector<16x128xf32>
    %190 = vector.extract_strided_slice %180 {offsets = [32, 0], sizes = [16, 64], strides = [1, 1]} : vector<48x64xbf16> to vector<16x64xbf16>
    %c128_136 = arith.constant 128 : index
    %c0_137 = arith.constant 0 : index
    %191 = vector.load %arg27[%c128_136, %c0_137] : memref<192x128xbf16, #tpu.memory_space<vmem>>, vector<64x128xbf16>
    %cst_138 = arith.constant dense<0.000000e+00> : vector<16x128xf32>
    %192 = tpu.matmul %190, %191, %cst_138 {dimension_numbers = #tpu.dot_dimension_numbers<[1], [0], [0], [1], [0, 0, 1, 1], [], []>} : vector<16x64xbf16>, vector<64x128xbf16>, vector<16x128xf32> -> vector<16x128xf32>
    %193 = arith.addf %189, %192 : vector<16x128xf32>
    %c0_139 = arith.constant 0 : index
    %c0_140 = arith.constant 0 : index
    %194 = vector.load %arg28[%c0_139, %c0_140] : memref<1x128xf32, #tpu.memory_space<vmem>>, vector<1x128xf32>
    %195 = vector.broadcast %194 : vector<1x128xf32> to vector<16x128xf32>
    %196 = arith.addf %193, %195 : vector<16x128xf32>
    %cst_141 = arith.constant 0.000000e+00 : f32
    %197 = vector.broadcast %cst_141 : f32 to vector<16x128xf32>
    %198 = arith.maximumf %196, %197 : vector<16x128xf32>
    %199 = arith.truncf %198 : vector<16x128xf32> to vector<16x128xbf16>
    %c0_142 = arith.constant 0 : index
    %c0_143 = arith.constant 0 : index
    %200 = vector.load %arg29[%c0_142, %c0_143] : memref<48x16xbf16, #tpu.memory_space<vmem>>, vector<48x16xbf16>
    %cst_144 = arith.constant dense<0.000000e+00> : vector<48x128xf32>
    %201 = tpu.matmul %200, %199, %cst_144 {dimension_numbers = #tpu.dot_dimension_numbers<[1], [0], [0], [1], [0, 0, 1, 1], [], []>} : vector<48x16xbf16>, vector<16x128xbf16>, vector<48x128xf32> -> vector<48x128xf32>
    %202 = arith.truncf %201 : vector<48x128xf32> to vector<48x128xbf16>
    %cst_145 = arith.constant 0.000000e+00 : f32
    %203 = vector.broadcast %cst_145 : f32 to vector<16x128xf32>
    %204 = vector.extract_strided_slice %202 {offsets = [0, 0], sizes = [16, 128], strides = [1, 1]} : vector<48x128xbf16> to vector<16x128xbf16>
    %c0_146 = arith.constant 0 : index
    %c0_147 = arith.constant 0 : index
    %205 = vector.load %arg30[%c0_146, %c0_147] : memref<384x128xbf16, #tpu.memory_space<vmem>>, vector<128x128xbf16>
    %cst_148 = arith.constant dense<0.000000e+00> : vector<16x128xf32>
    %206 = tpu.matmul %204, %205, %cst_148 {dimension_numbers = #tpu.dot_dimension_numbers<[1], [0], [0], [1], [0, 0, 1, 1], [], []>} : vector<16x128xbf16>, vector<128x128xbf16>, vector<16x128xf32> -> vector<16x128xf32>
    %207 = arith.addf %203, %206 : vector<16x128xf32>
    %208 = vector.extract_strided_slice %202 {offsets = [16, 0], sizes = [16, 128], strides = [1, 1]} : vector<48x128xbf16> to vector<16x128xbf16>
    %c128_149 = arith.constant 128 : index
    %c0_150 = arith.constant 0 : index
    %209 = vector.load %arg30[%c128_149, %c0_150] : memref<384x128xbf16, #tpu.memory_space<vmem>>, vector<128x128xbf16>
    %cst_151 = arith.constant dense<0.000000e+00> : vector<16x128xf32>
    %210 = tpu.matmul %208, %209, %cst_151 {dimension_numbers = #tpu.dot_dimension_numbers<[1], [0], [0], [1], [0, 0, 1, 1], [], []>} : vector<16x128xbf16>, vector<128x128xbf16>, vector<16x128xf32> -> vector<16x128xf32>
    %211 = arith.addf %207, %210 : vector<16x128xf32>
    %212 = vector.extract_strided_slice %202 {offsets = [32, 0], sizes = [16, 128], strides = [1, 1]} : vector<48x128xbf16> to vector<16x128xbf16>
    %c256_152 = arith.constant 256 : index
    %c0_153 = arith.constant 0 : index
    %213 = vector.load %arg30[%c256_152, %c0_153] : memref<384x128xbf16, #tpu.memory_space<vmem>>, vector<128x128xbf16>
    %cst_154 = arith.constant dense<0.000000e+00> : vector<16x128xf32>
    %214 = tpu.matmul %212, %213, %cst_154 {dimension_numbers = #tpu.dot_dimension_numbers<[1], [0], [0], [1], [0, 0, 1, 1], [], []>} : vector<16x128xbf16>, vector<128x128xbf16>, vector<16x128xf32> -> vector<16x128xf32>
    %215 = arith.addf %211, %214 : vector<16x128xf32>
    %c0_155 = arith.constant 0 : index
    %c0_156 = arith.constant 0 : index
    %216 = vector.load %arg31[%c0_155, %c0_156] : memref<1x128xf32, #tpu.memory_space<vmem>>, vector<1x128xf32>
    %217 = vector.broadcast %216 : vector<1x128xf32> to vector<16x128xf32>
    %218 = arith.addf %215, %217 : vector<16x128xf32>
    %cst_157 = arith.constant 0.000000e+00 : f32
    %219 = vector.broadcast %cst_157 : f32 to vector<16x128xf32>
    %220 = arith.maximumf %218, %219 : vector<16x128xf32>
    %221 = arith.truncf %220 : vector<16x128xf32> to vector<16x128xbf16>
    %c0_158 = arith.constant 0 : index
    %c0_159 = arith.constant 0 : index
    %222 = vector.load %arg32[%c0_158, %c0_159] : memref<24x16xbf16, #tpu.memory_space<vmem>>, vector<24x16xbf16>
    %cst_160 = arith.constant dense<0.000000e+00> : vector<24x128xf32>
    %223 = tpu.matmul %222, %221, %cst_160 {dimension_numbers = #tpu.dot_dimension_numbers<[1], [0], [0], [1], [0, 0, 1, 1], [], []>} : vector<24x16xbf16>, vector<16x128xbf16>, vector<24x128xf32> -> vector<24x128xf32>
    %224 = arith.truncf %223 : vector<24x128xf32> to vector<24x128xbf16>
    %cst_161 = arith.constant 0.000000e+00 : f32
    %225 = vector.broadcast %cst_161 : f32 to vector<8x128xf32>
    %226 = vector.extract_strided_slice %224 {offsets = [0, 0], sizes = [8, 128], strides = [1, 1]} : vector<24x128xbf16> to vector<8x128xbf16>
    %c0_162 = arith.constant 0 : index
    %c0_163 = arith.constant 0 : index
    %227 = vector.load %arg33[%c0_162, %c0_163] : memref<384x128xbf16, #tpu.memory_space<vmem>>, vector<128x128xbf16>
    %cst_164 = arith.constant dense<0.000000e+00> : vector<8x128xf32>
    %228 = tpu.matmul %226, %227, %cst_164 {dimension_numbers = #tpu.dot_dimension_numbers<[1], [0], [0], [1], [0, 0, 1, 1], [], []>} : vector<8x128xbf16>, vector<128x128xbf16>, vector<8x128xf32> -> vector<8x128xf32>
    %229 = arith.addf %225, %228 : vector<8x128xf32>
    %230 = vector.extract_strided_slice %224 {offsets = [8, 0], sizes = [8, 128], strides = [1, 1]} : vector<24x128xbf16> to vector<8x128xbf16>
    %c128_165 = arith.constant 128 : index
    %c0_166 = arith.constant 0 : index
    %231 = vector.load %arg33[%c128_165, %c0_166] : memref<384x128xbf16, #tpu.memory_space<vmem>>, vector<128x128xbf16>
    %cst_167 = arith.constant dense<0.000000e+00> : vector<8x128xf32>
    %232 = tpu.matmul %230, %231, %cst_167 {dimension_numbers = #tpu.dot_dimension_numbers<[1], [0], [0], [1], [0, 0, 1, 1], [], []>} : vector<8x128xbf16>, vector<128x128xbf16>, vector<8x128xf32> -> vector<8x128xf32>
    %233 = arith.addf %229, %232 : vector<8x128xf32>
    %234 = vector.extract_strided_slice %224 {offsets = [16, 0], sizes = [8, 128], strides = [1, 1]} : vector<24x128xbf16> to vector<8x128xbf16>
    %c256_168 = arith.constant 256 : index
    %c0_169 = arith.constant 0 : index
    %235 = vector.load %arg33[%c256_168, %c0_169] : memref<384x128xbf16, #tpu.memory_space<vmem>>, vector<128x128xbf16>
    %cst_170 = arith.constant dense<0.000000e+00> : vector<8x128xf32>
    %236 = tpu.matmul %234, %235, %cst_170 {dimension_numbers = #tpu.dot_dimension_numbers<[1], [0], [0], [1], [0, 0, 1, 1], [], []>} : vector<8x128xbf16>, vector<128x128xbf16>, vector<8x128xf32> -> vector<8x128xf32>
    %237 = arith.addf %233, %236 : vector<8x128xf32>
    %c0_171 = arith.constant 0 : index
    %c0_172 = arith.constant 0 : index
    %238 = vector.load %arg34[%c0_171, %c0_172] : memref<1x128xf32, #tpu.memory_space<vmem>>, vector<1x128xf32>
    %239 = vector.broadcast %238 : vector<1x128xf32> to vector<8x128xf32>
    %240 = arith.addf %237, %239 : vector<8x128xf32>
    %cst_173 = arith.constant 0.000000e+00 : f32
    %241 = vector.broadcast %cst_173 : f32 to vector<8x128xf32>
    %242 = arith.maximumf %240, %241 : vector<8x128xf32>
    %243 = arith.truncf %242 : vector<8x128xf32> to vector<8x128xbf16>
    %c0_174 = arith.constant 0 : index
    %c0_175 = arith.constant 0 : index
    %244 = vector.load %arg35[%c0_174, %c0_175] : memref<24x8xbf16, #tpu.memory_space<vmem>>, vector<24x8xbf16>
    %cst_176 = arith.constant dense<0.000000e+00> : vector<24x128xf32>
    %245 = tpu.matmul %244, %243, %cst_176 {dimension_numbers = #tpu.dot_dimension_numbers<[1], [0], [0], [1], [0, 0, 1, 1], [], []>} : vector<24x8xbf16>, vector<8x128xbf16>, vector<24x128xf32> -> vector<24x128xf32>
    %246 = arith.truncf %245 : vector<24x128xf32> to vector<24x128xbf16>
    %cst_177 = arith.constant 0.000000e+00 : f32
    %247 = vector.broadcast %cst_177 : f32 to vector<8x128xf32>
    %248 = vector.extract_strided_slice %246 {offsets = [0, 0], sizes = [8, 128], strides = [1, 1]} : vector<24x128xbf16> to vector<8x128xbf16>
    %c0_178 = arith.constant 0 : index
    %c0_179 = arith.constant 0 : index
    %249 = vector.load %arg36[%c0_178, %c0_179] : memref<384x128xbf16, #tpu.memory_space<vmem>>, vector<128x128xbf16>
    %cst_180 = arith.constant dense<0.000000e+00> : vector<8x128xf32>
    %250 = tpu.matmul %248, %249, %cst_180 {dimension_numbers = #tpu.dot_dimension_numbers<[1], [0], [0], [1], [0, 0, 1, 1], [], []>} : vector<8x128xbf16>, vector<128x128xbf16>, vector<8x128xf32> -> vector<8x128xf32>
    %251 = arith.addf %247, %250 : vector<8x128xf32>
    %252 = vector.extract_strided_slice %246 {offsets = [8, 0], sizes = [8, 128], strides = [1, 1]} : vector<24x128xbf16> to vector<8x128xbf16>
    %c128_181 = arith.constant 128 : index
    %c0_182 = arith.constant 0 : index
    %253 = vector.load %arg36[%c128_181, %c0_182] : memref<384x128xbf16, #tpu.memory_space<vmem>>, vector<128x128xbf16>
    %cst_183 = arith.constant dense<0.000000e+00> : vector<8x128xf32>
    %254 = tpu.matmul %252, %253, %cst_183 {dimension_numbers = #tpu.dot_dimension_numbers<[1], [0], [0], [1], [0, 0, 1, 1], [], []>} : vector<8x128xbf16>, vector<128x128xbf16>, vector<8x128xf32> -> vector<8x128xf32>
    %255 = arith.addf %251, %254 : vector<8x128xf32>
    %256 = vector.extract_strided_slice %246 {offsets = [16, 0], sizes = [8, 128], strides = [1, 1]} : vector<24x128xbf16> to vector<8x128xbf16>
    %c256_184 = arith.constant 256 : index
    %c0_185 = arith.constant 0 : index
    %257 = vector.load %arg36[%c256_184, %c0_185] : memref<384x128xbf16, #tpu.memory_space<vmem>>, vector<128x128xbf16>
    %cst_186 = arith.constant dense<0.000000e+00> : vector<8x128xf32>
    %258 = tpu.matmul %256, %257, %cst_186 {dimension_numbers = #tpu.dot_dimension_numbers<[1], [0], [0], [1], [0, 0, 1, 1], [], []>} : vector<8x128xbf16>, vector<128x128xbf16>, vector<8x128xf32> -> vector<8x128xf32>
    %259 = arith.addf %255, %258 : vector<8x128xf32>
    %c0_187 = arith.constant 0 : index
    %c0_188 = arith.constant 0 : index
    %260 = vector.load %arg37[%c0_187, %c0_188] : memref<1x128xf32, #tpu.memory_space<vmem>>, vector<1x128xf32>
    %261 = vector.broadcast %260 : vector<1x128xf32> to vector<8x128xf32>
    %262 = arith.addf %259, %261 : vector<8x128xf32>
    %cst_189 = arith.constant 0.000000e+00 : f32
    %263 = vector.broadcast %cst_189 : f32 to vector<8x128xf32>
    %264 = arith.maximumf %262, %263 : vector<8x128xf32>
    %265 = arith.truncf %264 : vector<8x128xf32> to vector<8x128xbf16>
    %c0_190 = arith.constant 0 : index
    %c0_191 = arith.constant 0 : index
    %266 = vector.load %arg38[%c0_190, %c0_191] : memref<12x8xbf16, #tpu.memory_space<vmem>>, vector<12x8xbf16>
    %cst_192 = arith.constant dense<0.000000e+00> : vector<12x128xf32>
    %267 = tpu.matmul %266, %265, %cst_192 {dimension_numbers = #tpu.dot_dimension_numbers<[1], [0], [0], [1], [0, 0, 1, 1], [], []>} : vector<12x8xbf16>, vector<8x128xbf16>, vector<12x128xf32> -> vector<12x128xf32>
    %268 = arith.truncf %267 : vector<12x128xf32> to vector<12x128xbf16>
    %cst_193 = arith.constant 0.000000e+00 : f32
    %269 = vector.broadcast %cst_193 : f32 to vector<4x64xf32>
    %270 = vector.extract_strided_slice %268 {offsets = [0, 0], sizes = [4, 128], strides = [1, 1]} : vector<12x128xbf16> to vector<4x128xbf16>
    %c0_194 = arith.constant 0 : index
    %c0_195 = arith.constant 0 : index
    %271 = vector.load %arg39[%c0_194, %c0_195] : memref<384x64xbf16, #tpu.memory_space<vmem>>, vector<128x64xbf16>
    %cst_196 = arith.constant dense<0.000000e+00> : vector<4x64xf32>
    %272 = tpu.matmul %270, %271, %cst_196 {dimension_numbers = #tpu.dot_dimension_numbers<[1], [0], [0], [1], [0, 0, 1, 1], [], []>} : vector<4x128xbf16>, vector<128x64xbf16>, vector<4x64xf32> -> vector<4x64xf32>
    %273 = arith.addf %269, %272 : vector<4x64xf32>
    %274 = vector.extract_strided_slice %268 {offsets = [4, 0], sizes = [4, 128], strides = [1, 1]} : vector<12x128xbf16> to vector<4x128xbf16>
    %c128_197 = arith.constant 128 : index
    %c0_198 = arith.constant 0 : index
    %275 = vector.load %arg39[%c128_197, %c0_198] : memref<384x64xbf16, #tpu.memory_space<vmem>>, vector<128x64xbf16>
    %cst_199 = arith.constant dense<0.000000e+00> : vector<4x64xf32>
    %276 = tpu.matmul %274, %275, %cst_199 {dimension_numbers = #tpu.dot_dimension_numbers<[1], [0], [0], [1], [0, 0, 1, 1], [], []>} : vector<4x128xbf16>, vector<128x64xbf16>, vector<4x64xf32> -> vector<4x64xf32>
    %277 = arith.addf %273, %276 : vector<4x64xf32>
    %278 = vector.extract_strided_slice %268 {offsets = [8, 0], sizes = [4, 128], strides = [1, 1]} : vector<12x128xbf16> to vector<4x128xbf16>
    %c256_200 = arith.constant 256 : index
    %c0_201 = arith.constant 0 : index
    %279 = vector.load %arg39[%c256_200, %c0_201] : memref<384x64xbf16, #tpu.memory_space<vmem>>, vector<128x64xbf16>
    %cst_202 = arith.constant dense<0.000000e+00> : vector<4x64xf32>
    %280 = tpu.matmul %278, %279, %cst_202 {dimension_numbers = #tpu.dot_dimension_numbers<[1], [0], [0], [1], [0, 0, 1, 1], [], []>} : vector<4x128xbf16>, vector<128x64xbf16>, vector<4x64xf32> -> vector<4x64xf32>
    %281 = arith.addf %277, %280 : vector<4x64xf32>
    %c0_203 = arith.constant 0 : index
    %c0_204 = arith.constant 0 : index
    %282 = vector.load %arg40[%c0_203, %c0_204] : memref<1x64xf32, #tpu.memory_space<vmem>>, vector<1x64xf32>
    %283 = vector.broadcast %282 : vector<1x64xf32> to vector<4x64xf32>
    %284 = arith.addf %281, %283 : vector<4x64xf32>
    %cst_205 = arith.constant 0.000000e+00 : f32
    %285 = vector.broadcast %cst_205 : f32 to vector<4x64xf32>
    %286 = arith.maximumf %284, %285 : vector<4x64xf32>
    %287 = arith.truncf %286 : vector<4x64xf32> to vector<4x64xbf16>
    %c0_206 = arith.constant 0 : index
    %c0_207 = arith.constant 0 : index
    %288 = vector.load %arg41[%c0_206, %c0_207] : memref<12x4xbf16, #tpu.memory_space<vmem>>, vector<12x4xbf16>
    %cst_208 = arith.constant dense<0.000000e+00> : vector<12x64xf32>
    %289 = tpu.matmul %288, %287, %cst_208 {dimension_numbers = #tpu.dot_dimension_numbers<[1], [0], [0], [1], [0, 0, 1, 1], [], []>} : vector<12x4xbf16>, vector<4x64xbf16>, vector<12x64xf32> -> vector<12x64xf32>
    %290 = arith.truncf %289 : vector<12x64xf32> to vector<12x64xbf16>
    %cst_209 = arith.constant 0.000000e+00 : f32
    %291 = vector.broadcast %cst_209 : f32 to vector<4x64xf32>
    %292 = vector.extract_strided_slice %290 {offsets = [0, 0], sizes = [4, 64], strides = [1, 1]} : vector<12x64xbf16> to vector<4x64xbf16>
    %c0_210 = arith.constant 0 : index
    %c0_211 = arith.constant 0 : index
    %293 = vector.load %arg42[%c0_210, %c0_211] : memref<192x64xbf16, #tpu.memory_space<vmem>>, vector<64x64xbf16>
    %cst_212 = arith.constant dense<0.000000e+00> : vector<4x64xf32>
    %294 = tpu.matmul %292, %293, %cst_212 {dimension_numbers = #tpu.dot_dimension_numbers<[1], [0], [0], [1], [0, 0, 1, 1], [], []>} : vector<4x64xbf16>, vector<64x64xbf16>, vector<4x64xf32> -> vector<4x64xf32>
    %295 = arith.addf %291, %294 : vector<4x64xf32>
    %296 = vector.extract_strided_slice %290 {offsets = [4, 0], sizes = [4, 64], strides = [1, 1]} : vector<12x64xbf16> to vector<4x64xbf16>
    %c64_213 = arith.constant 64 : index
    %c0_214 = arith.constant 0 : index
    %297 = vector.load %arg42[%c64_213, %c0_214] : memref<192x64xbf16, #tpu.memory_space<vmem>>, vector<64x64xbf16>
    %cst_215 = arith.constant dense<0.000000e+00> : vector<4x64xf32>
    %298 = tpu.matmul %296, %297, %cst_215 {dimension_numbers = #tpu.dot_dimension_numbers<[1], [0], [0], [1], [0, 0, 1, 1], [], []>} : vector<4x64xbf16>, vector<64x64xbf16>, vector<4x64xf32> -> vector<4x64xf32>
    %299 = arith.addf %295, %298 : vector<4x64xf32>
    %300 = vector.extract_strided_slice %290 {offsets = [8, 0], sizes = [4, 64], strides = [1, 1]} : vector<12x64xbf16> to vector<4x64xbf16>
    %c128_216 = arith.constant 128 : index
    %c0_217 = arith.constant 0 : index
    %301 = vector.load %arg42[%c128_216, %c0_217] : memref<192x64xbf16, #tpu.memory_space<vmem>>, vector<64x64xbf16>
    %cst_218 = arith.constant dense<0.000000e+00> : vector<4x64xf32>
    %302 = tpu.matmul %300, %301, %cst_218 {dimension_numbers = #tpu.dot_dimension_numbers<[1], [0], [0], [1], [0, 0, 1, 1], [], []>} : vector<4x64xbf16>, vector<64x64xbf16>, vector<4x64xf32> -> vector<4x64xf32>
    %303 = arith.addf %299, %302 : vector<4x64xf32>
    %c0_219 = arith.constant 0 : index
    %c0_220 = arith.constant 0 : index
    %304 = vector.load %arg43[%c0_219, %c0_220] : memref<1x64xf32, #tpu.memory_space<vmem>>, vector<1x64xf32>
    %305 = vector.broadcast %304 : vector<1x64xf32> to vector<4x64xf32>
    %306 = arith.addf %303, %305 : vector<4x64xf32>
    %cst_221 = arith.constant 0.000000e+00 : f32
    %307 = vector.broadcast %cst_221 : f32 to vector<4x64xf32>
    %308 = arith.maximumf %306, %307 : vector<4x64xf32>
    %309 = arith.truncf %308 : vector<4x64xf32> to vector<4x64xbf16>
    %c0_222 = arith.constant 0 : index
    %c0_223 = arith.constant 0 : index
    %310 = vector.load %arg44[%c0_222, %c0_223] : memref<6x4xbf16, #tpu.memory_space<vmem>>, vector<6x4xbf16>
    %cst_224 = arith.constant dense<0.000000e+00> : vector<6x64xf32>
    %311 = tpu.matmul %310, %309, %cst_224 {dimension_numbers = #tpu.dot_dimension_numbers<[1], [0], [0], [1], [0, 0, 1, 1], [], []>} : vector<6x4xbf16>, vector<4x64xbf16>, vector<6x64xf32> -> vector<6x64xf32>
    %312 = arith.truncf %311 : vector<6x64xf32> to vector<6x64xbf16>
    %cst_225 = arith.constant 0.000000e+00 : f32
    %313 = vector.broadcast %cst_225 : f32 to vector<2x64xf32>
    %314 = vector.extract_strided_slice %312 {offsets = [0, 0], sizes = [2, 64], strides = [1, 1]} : vector<6x64xbf16> to vector<2x64xbf16>
    %c0_226 = arith.constant 0 : index
    %c0_227 = arith.constant 0 : index
    %315 = vector.load %arg45[%c0_226, %c0_227] : memref<192x64xbf16, #tpu.memory_space<vmem>>, vector<64x64xbf16>
    %cst_228 = arith.constant dense<0.000000e+00> : vector<2x64xf32>
    %316 = tpu.matmul %314, %315, %cst_228 {dimension_numbers = #tpu.dot_dimension_numbers<[1], [0], [0], [1], [0, 0, 1, 1], [], []>} : vector<2x64xbf16>, vector<64x64xbf16>, vector<2x64xf32> -> vector<2x64xf32>
    %317 = arith.addf %313, %316 : vector<2x64xf32>
    %318 = vector.extract_strided_slice %312 {offsets = [2, 0], sizes = [2, 64], strides = [1, 1]} : vector<6x64xbf16> to vector<2x64xbf16>
    %c64_229 = arith.constant 64 : index
    %c0_230 = arith.constant 0 : index
    %319 = vector.load %arg45[%c64_229, %c0_230] : memref<192x64xbf16, #tpu.memory_space<vmem>>, vector<64x64xbf16>
    %cst_231 = arith.constant dense<0.000000e+00> : vector<2x64xf32>
    %320 = tpu.matmul %318, %319, %cst_231 {dimension_numbers = #tpu.dot_dimension_numbers<[1], [0], [0], [1], [0, 0, 1, 1], [], []>} : vector<2x64xbf16>, vector<64x64xbf16>, vector<2x64xf32> -> vector<2x64xf32>
    %321 = arith.addf %317, %320 : vector<2x64xf32>
    %322 = vector.extract_strided_slice %312 {offsets = [4, 0], sizes = [2, 64], strides = [1, 1]} : vector<6x64xbf16> to vector<2x64xbf16>
    %c128_232 = arith.constant 128 : index
    %c0_233 = arith.constant 0 : index
    %323 = vector.load %arg45[%c128_232, %c0_233] : memref<192x64xbf16, #tpu.memory_space<vmem>>, vector<64x64xbf16>
    %cst_234 = arith.constant dense<0.000000e+00> : vector<2x64xf32>
    %324 = tpu.matmul %322, %323, %cst_234 {dimension_numbers = #tpu.dot_dimension_numbers<[1], [0], [0], [1], [0, 0, 1, 1], [], []>} : vector<2x64xbf16>, vector<64x64xbf16>, vector<2x64xf32> -> vector<2x64xf32>
    %325 = arith.addf %321, %324 : vector<2x64xf32>
    %c0_235 = arith.constant 0 : index
    %c0_236 = arith.constant 0 : index
    %326 = vector.load %arg46[%c0_235, %c0_236] : memref<1x64xf32, #tpu.memory_space<vmem>>, vector<1x64xf32>
    %327 = vector.broadcast %326 : vector<1x64xf32> to vector<2x64xf32>
    %328 = arith.addf %325, %327 : vector<2x64xf32>
    %cst_237 = arith.constant 0.000000e+00 : f32
    %329 = vector.broadcast %cst_237 : f32 to vector<2x64xf32>
    %330 = arith.maximumf %328, %329 : vector<2x64xf32>
    %331 = arith.truncf %330 : vector<2x64xf32> to vector<2x64xbf16>
    %c0_238 = arith.constant 0 : index
    %c0_239 = arith.constant 0 : index
    %332 = vector.load %arg47[%c0_238, %c0_239] : memref<6x2xbf16, #tpu.memory_space<vmem>>, vector<6x2xbf16>
    %cst_240 = arith.constant dense<0.000000e+00> : vector<6x64xf32>
    %333 = tpu.matmul %332, %331, %cst_240 {dimension_numbers = #tpu.dot_dimension_numbers<[1], [0], [0], [1], [0, 0, 1, 1], [], []>} : vector<6x2xbf16>, vector<2x64xbf16>, vector<6x64xf32> -> vector<6x64xf32>
    %334 = arith.truncf %333 : vector<6x64xf32> to vector<6x64xbf16>
    %cst_241 = arith.constant 0.000000e+00 : f32
    %335 = vector.broadcast %cst_241 : f32 to vector<2x64xf32>
    %336 = vector.extract_strided_slice %334 {offsets = [0, 0], sizes = [2, 64], strides = [1, 1]} : vector<6x64xbf16> to vector<2x64xbf16>
    %c0_242 = arith.constant 0 : index
    %c0_243 = arith.constant 0 : index
    %337 = vector.load %arg48[%c0_242, %c0_243] : memref<192x64xbf16, #tpu.memory_space<vmem>>, vector<64x64xbf16>
    %cst_244 = arith.constant dense<0.000000e+00> : vector<2x64xf32>
    %338 = tpu.matmul %336, %337, %cst_244 {dimension_numbers = #tpu.dot_dimension_numbers<[1], [0], [0], [1], [0, 0, 1, 1], [], []>} : vector<2x64xbf16>, vector<64x64xbf16>, vector<2x64xf32> -> vector<2x64xf32>
    %339 = arith.addf %335, %338 : vector<2x64xf32>
    %340 = vector.extract_strided_slice %334 {offsets = [2, 0], sizes = [2, 64], strides = [1, 1]} : vector<6x64xbf16> to vector<2x64xbf16>
    %c64_245 = arith.constant 64 : index
    %c0_246 = arith.constant 0 : index
    %341 = vector.load %arg48[%c64_245, %c0_246] : memref<192x64xbf16, #tpu.memory_space<vmem>>, vector<64x64xbf16>
    %cst_247 = arith.constant dense<0.000000e+00> : vector<2x64xf32>
    %342 = tpu.matmul %340, %341, %cst_247 {dimension_numbers = #tpu.dot_dimension_numbers<[1], [0], [0], [1], [0, 0, 1, 1], [], []>} : vector<2x64xbf16>, vector<64x64xbf16>, vector<2x64xf32> -> vector<2x64xf32>
    %343 = arith.addf %339, %342 : vector<2x64xf32>
    %344 = vector.extract_strided_slice %334 {offsets = [4, 0], sizes = [2, 64], strides = [1, 1]} : vector<6x64xbf16> to vector<2x64xbf16>
    %c128_248 = arith.constant 128 : index
    %c0_249 = arith.constant 0 : index
    %345 = vector.load %arg48[%c128_248, %c0_249] : memref<192x64xbf16, #tpu.memory_space<vmem>>, vector<64x64xbf16>
    %cst_250 = arith.constant dense<0.000000e+00> : vector<2x64xf32>
    %346 = tpu.matmul %344, %345, %cst_250 {dimension_numbers = #tpu.dot_dimension_numbers<[1], [0], [0], [1], [0, 0, 1, 1], [], []>} : vector<2x64xbf16>, vector<64x64xbf16>, vector<2x64xf32> -> vector<2x64xf32>
    %347 = arith.addf %343, %346 : vector<2x64xf32>
    %c0_251 = arith.constant 0 : index
    %c0_252 = arith.constant 0 : index
    %348 = vector.load %arg49[%c0_251, %c0_252] : memref<1x64xf32, #tpu.memory_space<vmem>>, vector<1x64xf32>
    %349 = vector.broadcast %348 : vector<1x64xf32> to vector<2x64xf32>
    %350 = arith.addf %347, %349 : vector<2x64xf32>
    %cst_253 = arith.constant 0.000000e+00 : f32
    %351 = vector.broadcast %cst_253 : f32 to vector<2x64xf32>
    %352 = arith.maximumf %350, %351 : vector<2x64xf32>
    %353 = tpu.concatenate %176, %352 in 1 : vector<2x64xf32>, vector<2x64xf32> -> vector<2x128xf32>
    %354 = vector.shape_cast %353 : vector<2x128xf32> to vector<1x2x128xf32>
    %c0_254 = arith.constant 0 : index
    %c0_255 = arith.constant 0 : index
    %c0_256 = arith.constant 0 : index
    %355 = vector.load %arg50[%c0_254, %c0_255, %c0_256] : memref<1x2x128xf32, #tpu.memory_space<vmem>>, vector<1x2x128xf32>
    tpu.vector_store %arg50[%c0_254, %c0_255, %c0_256], %354 {strides = array<i32>} : memref<1x2x128xf32, #tpu.memory_space<vmem>>, vector<1x2x128xf32>,
    return
  }
  func.func @transform_0(%arg0: i32) -> (i32, i32, i32) {
    %c0_i32 = arith.constant 0 : i32
    %c0_i32_0 = arith.constant 0 : i32
    %c0_i32_1 = arith.constant 0 : i32
    return %arg0, %c0_i32, %c0_i32_0 : i32, i32, i32
  }
  func.func @transform_1(%arg0: i32) -> (i32, i32) {
    %c0_i32 = arith.constant 0 : i32
    %c0_i32_0 = arith.constant 0 : i32
    %c0_i32_1 = arith.constant 0 : i32
    return %c0_i32, %c0_i32_0 : i32, i32
  }
  func.func @transform_2(%arg0: i32) -> (i32, i32) {
    %c0_i32 = arith.constant 0 : i32
    %c0_i32_0 = arith.constant 0 : i32
    %c0_i32_1 = arith.constant 0 : i32
    return %c0_i32, %c0_i32_0 : i32, i32
  }
  func.func @transform_3(%arg0: i32) -> (i32, i32) {
    %c0_i32 = arith.constant 0 : i32
    %c0_i32_0 = arith.constant 0 : i32
    %c0_i32_1 = arith.constant 0 : i32
    return %c0_i32, %c0_i32_0 : i32, i32
  }
  func.func @transform_4(%arg0: i32) -> (i32, i32) {
    %c0_i32 = arith.constant 0 : i32
    %c0_i32_0 = arith.constant 0 : i32
    %c0_i32_1 = arith.constant 0 : i32
    return %c0_i32, %c0_i32_0 : i32, i32
  }
  func.func @transform_5(%arg0: i32) -> (i32, i32) {
    %c0_i32 = arith.constant 0 : i32
    %c0_i32_0 = arith.constant 0 : i32
    %c0_i32_1 = arith.constant 0 : i32
    return %c0_i32, %c0_i32_0 : i32, i32
  }
  func.func @transform_6(%arg0: i32) -> (i32, i32) {
    %c0_i32 = arith.constant 0 : i32
    %c0_i32_0 = arith.constant 0 : i32
    %c0_i32_1 = arith.constant 0 : i32
    return %c0_i32, %c0_i32_0 : i32, i32
  }
  func.func @transform_7(%arg0: i32) -> (i32, i32) {
    %c0_i32 = arith.constant 0 : i32
    %c0_i32_0 = arith.constant 0 : i32
    %c0_i32_1 = arith.constant 0 : i32
    return %c0_i32, %c0_i32_0 : i32, i32
  }
  func.func @transform_8(%arg0: i32) -> (i32, i32) {
    %c0_i32 = arith.constant 0 : i32
    %c0_i32_0 = arith.constant 0 : i32
    %c0_i32_1 = arith.constant 0 : i32
    return %c0_i32, %c0_i32_0 : i32, i32
  }
  func.func @transform_9(%arg0: i32) -> (i32, i32) {
    %c0_i32 = arith.constant 0 : i32
    %c0_i32_0 = arith.constant 0 : i32
    %c0_i32_1 = arith.constant 0 : i32
    return %c0_i32, %c0_i32_0 : i32, i32
  }
  func.func @transform_10(%arg0: i32) -> (i32, i32) {
    %c0_i32 = arith.constant 0 : i32
    %c0_i32_0 = arith.constant 0 : i32
    %c0_i32_1 = arith.constant 0 : i32
    return %c0_i32, %c0_i32_0 : i32, i32
  }
  func.func @transform_11(%arg0: i32) -> (i32, i32) {
    %c0_i32 = arith.constant 0 : i32
    %c0_i32_0 = arith.constant 0 : i32
    %c0_i32_1 = arith.constant 0 : i32
    return %c0_i32, %c0_i32_0 : i32, i32
  }
  func.func @transform_12(%arg0: i32) -> (i32, i32) {
    %c0_i32 = arith.constant 0 : i32
    %c0_i32_0 = arith.constant 0 : i32
    %c0_i32_1 = arith.constant 0 : i32
    return %c0_i32, %c0_i32_0 : i32, i32
  }
  func.func @transform_13(%arg0: i32) -> (i32, i32) {
    %c0_i32 = arith.constant 0 : i32
    %c0_i32_0 = arith.constant 0 : i32
    %c0_i32_1 = arith.constant 0 : i32
    return %c0_i32, %c0_i32_0 : i32, i32
  }
  func.func @transform_14(%arg0: i32) -> (i32, i32) {
    %c0_i32 = arith.constant 0 : i32
    %c0_i32_0 = arith.constant 0 : i32
    %c0_i32_1 = arith.constant 0 : i32
    return %c0_i32, %c0_i32_0 : i32, i32
  }
  func.func @transform_15(%arg0: i32) -> (i32, i32) {
    %c0_i32 = arith.constant 0 : i32
    %c0_i32_0 = arith.constant 0 : i32
    %c0_i32_1 = arith.constant 0 : i32
    return %c0_i32, %c0_i32_0 : i32, i32
  }
  func.func @transform_16(%arg0: i32) -> (i32, i32) {
    %c0_i32 = arith.constant 0 : i32
    %c0_i32_0 = arith.constant 0 : i32
    %c0_i32_1 = arith.constant 0 : i32
    return %c0_i32, %c0_i32_0 : i32, i32
  }
  func.func @transform_17(%arg0: i32) -> (i32, i32) {
    %c0_i32 = arith.constant 0 : i32
    %c0_i32_0 = arith.constant 0 : i32
    %c0_i32_1 = arith.constant 0 : i32
    return %c0_i32, %c0_i32_0 : i32, i32
  }
  func.func @transform_18(%arg0: i32) -> (i32, i32) {
    %c0_i32 = arith.constant 0 : i32
    %c0_i32_0 = arith.constant 0 : i32
    %c0_i32_1 = arith.constant 0 : i32
    return %c0_i32, %c0_i32_0 : i32, i32
  }
  func.func @transform_19(%arg0: i32) -> (i32, i32) {
    %c0_i32 = arith.constant 0 : i32
    %c0_i32_0 = arith.constant 0 : i32
    %c0_i32_1 = arith.constant 0 : i32
    return %c0_i32, %c0_i32_0 : i32, i32
  }
  func.func @transform_20(%arg0: i32) -> (i32, i32) {
    %c0_i32 = arith.constant 0 : i32
    %c0_i32_0 = arith.constant 0 : i32
    %c0_i32_1 = arith.constant 0 : i32
    return %c0_i32, %c0_i32_0 : i32, i32
  }
  func.func @transform_21(%arg0: i32) -> (i32, i32) {
    %c0_i32 = arith.constant 0 : i32
    %c0_i32_0 = arith.constant 0 : i32
    %c0_i32_1 = arith.constant 0 : i32
    return %c0_i32, %c0_i32_0 : i32, i32
  }
  func.func @transform_22(%arg0: i32) -> (i32, i32) {
    %c0_i32 = arith.constant 0 : i32
    %c0_i32_0 = arith.constant 0 : i32
    %c0_i32_1 = arith.constant 0 : i32
    return %c0_i32, %c0_i32_0 : i32, i32
  }
  func.func @transform_23(%arg0: i32) -> (i32, i32) {
    %c0_i32 = arith.constant 0 : i32
    %c0_i32_0 = arith.constant 0 : i32
    %c0_i32_1 = arith.constant 0 : i32
    return %c0_i32, %c0_i32_0 : i32, i32
  }
  func.func @transform_24(%arg0: i32) -> (i32, i32) {
    %c0_i32 = arith.constant 0 : i32
    %c0_i32_0 = arith.constant 0 : i32
    %c0_i32_1 = arith.constant 0 : i32
    return %c0_i32, %c0_i32_0 : i32, i32
  }
  func.func @transform_25(%arg0: i32) -> (i32, i32) {
    %c0_i32 = arith.constant 0 : i32
    %c0_i32_0 = arith.constant 0 : i32
    %c0_i32_1 = arith.constant 0 : i32
    return %c0_i32, %c0_i32_0 : i32, i32
  }
  func.func @transform_26(%arg0: i32) -> (i32, i32) {
    %c0_i32 = arith.constant 0 : i32
    %c0_i32_0 = arith.constant 0 : i32
    %c0_i32_1 = arith.constant 0 : i32
    return %c0_i32, %c0_i32_0 : i32, i32
  }
  func.func @transform_27(%arg0: i32) -> (i32, i32) {
    %c0_i32 = arith.constant 0 : i32
    %c0_i32_0 = arith.constant 0 : i32
    %c0_i32_1 = arith.constant 0 : i32
    return %c0_i32, %c0_i32_0 : i32, i32
  }
  func.func @transform_28(%arg0: i32) -> (i32, i32) {
    %c0_i32 = arith.constant 0 : i32
    %c0_i32_0 = arith.constant 0 : i32
    %c0_i32_1 = arith.constant 0 : i32
    return %c0_i32, %c0_i32_0 : i32, i32
  }
  func.func @transform_29(%arg0: i32) -> (i32, i32) {
    %c0_i32 = arith.constant 0 : i32
    %c0_i32_0 = arith.constant 0 : i32
    %c0_i32_1 = arith.constant 0 : i32
    return %c0_i32, %c0_i32_0 : i32, i32
  }
  func.func @transform_30(%arg0: i32) -> (i32, i32) {
    %c0_i32 = arith.constant 0 : i32
    %c0_i32_0 = arith.constant 0 : i32
    %c0_i32_1 = arith.constant 0 : i32
    return %c0_i32, %c0_i32_0 : i32, i32
  }
  func.func @transform_31(%arg0: i32) -> (i32, i32) {
    %c0_i32 = arith.constant 0 : i32
    %c0_i32_0 = arith.constant 0 : i32
    %c0_i32_1 = arith.constant 0 : i32
    return %c0_i32, %c0_i32_0 : i32, i32
  }
  func.func @transform_32(%arg0: i32) -> (i32, i32) {
    %c0_i32 = arith.constant 0 : i32
    %c0_i32_0 = arith.constant 0 : i32
    %c0_i32_1 = arith.constant 0 : i32
    return %c0_i32, %c0_i32_0 : i32, i32
  }
  func.func @transform_33(%arg0: i32) -> (i32, i32) {
    %c0_i32 = arith.constant 0 : i32
    %c0_i32_0 = arith.constant 0 : i32
    %c0_i32_1 = arith.constant 0 : i32
    return %c0_i32, %c0_i32_0 : i32, i32
  }
  func.func @transform_34(%arg0: i32) -> (i32, i32) {
    %c0_i32 = arith.constant 0 : i32
    %c0_i32_0 = arith.constant 0 : i32
    %c0_i32_1 = arith.constant 0 : i32
    return %c0_i32, %c0_i32_0 : i32, i32
  }
  func.func @transform_35(%arg0: i32) -> (i32, i32) {
    %c0_i32 = arith.constant 0 : i32
    %c0_i32_0 = arith.constant 0 : i32
    %c0_i32_1 = arith.constant 0 : i32
    return %c0_i32, %c0_i32_0 : i32, i32
  }
  func.func @transform_36(%arg0: i32) -> (i32, i32) {
    %c0_i32 = arith.constant 0 : i32
    %c0_i32_0 = arith.constant 0 : i32
    %c0_i32_1 = arith.constant 0 : i32
    return %c0_i32, %c0_i32_0 : i32, i32
  }
  func.func @transform_37(%arg0: i32) -> (i32, i32) {
    %c0_i32 = arith.constant 0 : i32
    %c0_i32_0 = arith.constant 0 : i32
    %c0_i32_1 = arith.constant 0 : i32
    return %c0_i32, %c0_i32_0 : i32, i32
  }
  func.func @transform_38(%arg0: i32) -> (i32, i32) {
    %c0_i32 = arith.constant 0 : i32
    %c0_i32_0 = arith.constant 0 : i32
    %c0_i32_1 = arith.constant 0 : i32
    return %c0_i32, %c0_i32_0 : i32, i32
  }
  func.func @transform_39(%arg0: i32) -> (i32, i32) {
    %c0_i32 = arith.constant 0 : i32
    %c0_i32_0 = arith.constant 0 : i32
    %c0_i32_1 = arith.constant 0 : i32
    return %c0_i32, %c0_i32_0 : i32, i32
  }
  func.func @transform_40(%arg0: i32) -> (i32, i32) {
    %c0_i32 = arith.constant 0 : i32
    %c0_i32_0 = arith.constant 0 : i32
    %c0_i32_1 = arith.constant 0 : i32
    return %c0_i32, %c0_i32_0 : i32, i32
  }
  func.func @transform_41(%arg0: i32) -> (i32, i32) {
    %c0_i32 = arith.constant 0 : i32
    %c0_i32_0 = arith.constant 0 : i32
    %c0_i32_1 = arith.constant 0 : i32
    return %c0_i32, %c0_i32_0 : i32, i32
  }
  func.func @transform_42(%arg0: i32) -> (i32, i32) {
    %c0_i32 = arith.constant 0 : i32
    %c0_i32_0 = arith.constant 0 : i32
    %c0_i32_1 = arith.constant 0 : i32
    return %c0_i32, %c0_i32_0 : i32, i32
  }
  func.func @transform_43(%arg0: i32) -> (i32, i32) {
    %c0_i32 = arith.constant 0 : i32
    %c0_i32_0 = arith.constant 0 : i32
    %c0_i32_1 = arith.constant 0 : i32
    return %c0_i32, %c0_i32_0 : i32, i32
  }
  func.func @transform_44(%arg0: i32) -> (i32, i32) {
    %c0_i32 = arith.constant 0 : i32
    %c0_i32_0 = arith.constant 0 : i32
    %c0_i32_1 = arith.constant 0 : i32
    return %c0_i32, %c0_i32_0 : i32, i32
  }
  func.func @transform_45(%arg0: i32) -> (i32, i32) {
    %c0_i32 = arith.constant 0 : i32
    %c0_i32_0 = arith.constant 0 : i32
    %c0_i32_1 = arith.constant 0 : i32
    return %c0_i32, %c0_i32_0 : i32, i32
  }
  func.func @transform_46(%arg0: i32) -> (i32, i32) {
    %c0_i32 = arith.constant 0 : i32
    %c0_i32_0 = arith.constant 0 : i32
    %c0_i32_1 = arith.constant 0 : i32
    return %c0_i32, %c0_i32_0 : i32, i32
  }
  func.func @transform_47(%arg0: i32) -> (i32, i32) {
    %c0_i32 = arith.constant 0 : i32
    %c0_i32_0 = arith.constant 0 : i32
    %c0_i32_1 = arith.constant 0 : i32
    return %c0_i32, %c0_i32_0 : i32, i32
  }
  func.func @transform_48(%arg0: i32) -> (i32, i32) {
    %c0_i32 = arith.constant 0 : i32
    %c0_i32_0 = arith.constant 0 : i32
    %c0_i32_1 = arith.constant 0 : i32
    return %c0_i32, %c0_i32_0 : i32, i32
  }
  func.func @transform_49(%arg0: i32) -> (i32, i32, i32) {
    %c0_i32 = arith.constant 0 : i32
    %c0_i32_0 = arith.constant 0 : i32
    %c0_i32_1 = arith.constant 0 : i32
    return %arg0, %c0_i32, %c0_i32_0 : i32, i32, i32
  }
}

</mosaic_0001>

<llo_original>
// kernel: encoder_forward.1
$region0: #{encoder_forward.1}
  #allocation0 [shape = 'u32[]', space=smem, size = 0x4, offset = 0x4, fixed_abs, tag = 'smem constant byte address 0x4 - core index']
  #allocation1 [shape = 'u32[144,128]{1,0:T(1,128)}', space=vmem, size = 0x12000, scoped, tag = 'internal scratch']
  %s0 = inlined_call_operand.smem [shape: u32[50], index: -1, kind: input, shape index: {}]
  %s1 = sld [smem:[%s0]]
  %s2 = scalar_lea.smem %s0, 1
  %s3 = sld [smem:[%s2]]
  %s4 = scalar_lea.smem %s0, 2
  %s5 = sld [smem:[%s4]]
  %s6 = scalar_lea.smem %s0, 3
  %s7 = sld [smem:[%s6]]
  %s8 = scalar_lea.smem %s0, 4
  %s9 = sld [smem:[%s8]]
  %s10 = scalar_lea.smem %s0, 5
  %s11 = sld [smem:[%s10]]
  %s12 = scalar_lea.smem %s0, 6
  %s13 = sld [smem:[%s12]]
  %s14 = scalar_lea.smem %s0, 7
  %s15 = sld [smem:[%s14]]
  %s16 = scalar_lea.smem %s0, 8
  %s17 = sld [smem:[%s16]]
  %s18 = scalar_lea.smem %s0, 9
  %s19 = sld [smem:[%s18]]
  %s20 = scalar_lea.smem %s0, 10
  %s21 = sld [smem:[%s20]]
  %s22 = scalar_lea.smem %s0, 11
  %s23 = sld [smem:[%s22]]
  %s24 = scalar_lea.smem %s0, 12
  %s25 = sld [smem:[%s24]]
  %s26 = scalar_lea.smem %s0, 13
  %s27 = sld [smem:[%s26]]
  %s28 = scalar_lea.smem %s0, 14
  %s29 = sld [smem:[%s28]]
  %s30 = scalar_lea.smem %s0, 15
  %s31 = sld [smem:[%s30]]
  %s32 = scalar_lea.smem %s0, 16
  %s33 = sld [smem:[%s32]]
  %s34 = scalar_lea.smem %s0, 17
  %s35 = sld [smem:[%s34]]
  %s36 = scalar_lea.smem %s0, 18
  %s37 = sld [smem:[%s36]]
  %s38 = scalar_lea.smem %s0, 19
  %s39 = sld [smem:[%s38]]
  %s40 = scalar_lea.smem %s0, 20
  %s41 = sld [smem:[%s40]]
  %s42 = scalar_lea.smem %s0, 21
  %s43 = sld [smem:[%s42]]
  %s44 = scalar_lea.smem %s0, 22
  %s45 = sld [smem:[%s44]]
  %s46 = scalar_lea.smem %s0, 23
  %s47 = sld [smem:[%s46]]
  %s48 = scalar_lea.smem %s0, 24
  %s49 = sld [smem:[%s48]]
  %s50 = scalar_lea.smem %s0, 25
  %s51 = sld [smem:[%s50]]
  %s52 = scalar_lea.smem %s0, 26
  %s53 = sld [smem:[%s52]]
  %s54 = scalar_lea.smem %s0, 27
  %s55 = sld [smem:[%s54]]
  %s56 = scalar_lea.smem %s0, 28
  %s57 = sld [smem:[%s56]]
  %s58 = scalar_lea.smem %s0, 29
  %s59 = sld [smem:[%s58]]
  %s60 = scalar_lea.smem %s0, 30
  %s61 = sld [smem:[%s60]]
  %s62 = scalar_lea.smem %s0, 31
  %s63 = sld [smem:[%s62]]
  %s64 = scalar_lea.smem %s0, 32
  %s65 = sld [smem:[%s64]]
  %s66 = scalar_lea.smem %s0, 33
  %s67 = sld [smem:[%s66]]
  %s68 = scalar_lea.smem %s0, 34
  %s69 = sld [smem:[%s68]]
  %s70 = scalar_lea.smem %s0, 35
  %s71 = sld [smem:[%s70]]
  %s72 = scalar_lea.smem %s0, 36
  %s73 = sld [smem:[%s72]]
  %s74 = scalar_lea.smem %s0, 37
  %s75 = sld [smem:[%s74]]
  %s76 = scalar_lea.smem %s0, 38
  %s77 = sld [smem:[%s76]]
  %s78 = scalar_lea.smem %s0, 39
  %s79 = sld [smem:[%s78]]
  %s80 = scalar_lea.smem %s0, 40
  %s81 = sld [smem:[%s80]]
  %s82 = scalar_lea.smem %s0, 41
  %s83 = sld [smem:[%s82]]
  %s84 = scalar_lea.smem %s0, 42
  %s85 = sld [smem:[%s84]]
  %s86 = scalar_lea.smem %s0, 43
  %s87 = sld [smem:[%s86]]
  %s88 = scalar_lea.smem %s0, 44
  %s89 = sld [smem:[%s88]]
  %s90 = scalar_lea.smem %s0, 45
  %s91 = sld [smem:[%s90]]
  %s92 = scalar_lea.smem %s0, 46
  %s93 = sld [smem:[%s92]]
  %s94 = scalar_lea.smem %s0, 47
  %s95 = sld [smem:[%s94]]
  %s96 = scalar_lea.smem %s0, 48
  %s97 = sld [smem:[%s96]]
  %s98 = scalar_lea.smem %s0, 49
  %s99 = sld [smem:[%s98]]
  %s100 = sld [smem:[#allocation0]]
  $region229: #{encoder_forward.1} parent=0
    _
  %s102 = ssub.s32 1, %s100
  %s103 = scalar_select 0, %s102, %s100
  loop: start=0, step=1, limit=4
  $region2: #{encoder_forward.1} parent=0 // loop_pre_header
    _
  $region3: #{encoder_forward.1} parent=0 // loop_header
    %s105 = sphi 0, %s109
    %p106 = scmp.ge.s32.totalorder %s105, 4
    %s115 = sphi 0, %s117
    %s118 = sphi 0, %s115
    %s119 = sphi 0, %s118
    %s135 = sphi 0, %s119
    %s139 = sphi 0, %s139
    %s141 = sphi 0, %s139
    %s142 = sphi 0, %s141
    %s156 = sphi 0, %s142
    %s160 = sphi 0, %s160
    %s162 = sphi 0, %s160
    %s163 = sphi 0, %s162
    %s177 = sphi 0, %s163
    %s181 = sphi 0, %s181
    %s183 = sphi 0, %s181
    %s184 = sphi 0, %s183
    %s198 = sphi 0, %s184
    %s202 = sphi 0, %s202
    %s204 = sphi 0, %s202
    %s205 = sphi 0, %s204
    %s219 = sphi 0, %s205
    %s223 = sphi 0, %s223
    %s225 = sphi 0, %s223
    %s226 = sphi 0, %s225
    %s240 = sphi 0, %s226
    %s244 = sphi 0, %s244
    %s246 = sphi 0, %s244
    %s247 = sphi 0, %s246
    %s261 = sphi 0, %s247
    %s265 = sphi 0, %s265
    %s267 = sphi 0, %s265
    %s268 = sphi 0, %s267
    %s282 = sphi 0, %s268
    %s286 = sphi 0, %s286
    %s288 = sphi 0, %s286
    %s289 = sphi 0, %s288
    %s303 = sphi 0, %s289
    %s307 = sphi 0, %s307
    %s309 = sphi 0, %s307
    %s310 = sphi 0, %s309
    %s324 = sphi 0, %s310
    %s328 = sphi 0, %s328
    %s330 = sphi 0, %s328
    %s331 = sphi 0, %s330
    %s345 = sphi 0, %s331
    %s349 = sphi 0, %s349
    %s351 = sphi 0, %s349
    %s352 = sphi 0, %s351
    %s366 = sphi 0, %s352
    %s370 = sphi 0, %s370
    %s372 = sphi 0, %s370
    %s373 = sphi 0, %s372
    %s387 = sphi 0, %s373
    %s391 = sphi 0, %s391
    %s393 = sphi 0, %s391
    %s394 = sphi 0, %s393
    %s408 = sphi 0, %s394
    %s412 = sphi 0, %s412
    %s414 = sphi 0, %s412
    %s415 = sphi 0, %s414
    %s429 = sphi 0, %s415
    %s433 = sphi 0, %s433
    %s435 = sphi 0, %s433
    %s436 = sphi 0, %s435
    %s450 = sphi 0, %s436
    %s454 = sphi 0, %s454
    %s456 = sphi 0, %s454
    %s457 = sphi 0, %s456
    %s471 = sphi 0, %s457
    %s475 = sphi 0, %s475
    %s477 = sphi 0, %s475
    %s478 = sphi 0, %s477
    %s492 = sphi 0, %s478
    %s496 = sphi 0, %s496
    %s498 = sphi 0, %s496
    %s499 = sphi 0, %s498
    %s513 = sphi 0, %s499
    %s517 = sphi 0, %s517
    %s519 = sphi 0, %s517
    %s520 = sphi 0, %s519
    %s534 = sphi 0, %s520
    %s538 = sphi 0, %s538
    %s540 = sphi 0, %s538
    %s541 = sphi 0, %s540
    %s555 = sphi 0, %s541
    %s559 = sphi 0, %s559
    %s561 = sphi 0, %s559
    %s562 = sphi 0, %s561
    %s576 = sphi 0, %s562
    %s580 = sphi 0, %s580
    %s582 = sphi 0, %s580
    %s583 = sphi 0, %s582
    %s597 = sphi 0, %s583
    %s601 = sphi 0, %s601
    %s603 = sphi 0, %s601
    %s604 = sphi 0, %s603
    %s618 = sphi 0, %s604
    %s622 = sphi 0, %s622
    %s624 = sphi 0, %s622
    %s625 = sphi 0, %s624
    %s639 = sphi 0, %s625
    %s643 = sphi 0, %s643
    %s645 = sphi 0, %s643
    %s646 = sphi 0, %s645
    %s660 = sphi 0, %s646
    %s664 = sphi 0, %s664
    %s666 = sphi 0, %s664
    %s667 = sphi 0, %s666
    %s681 = sphi 0, %s667
    %s685 = sphi 0, %s685
    %s687 = sphi 0, %s685
    %s688 = sphi 0, %s687
    %s702 = sphi 0, %s688
    %s706 = sphi 0, %s706
    %s708 = sphi 0, %s706
    %s709 = sphi 0, %s708
    %s723 = sphi 0, %s709
    %s727 = sphi 0, %s727
    %s729 = sphi 0, %s727
    %s730 = sphi 0, %s729
    %s744 = sphi 0, %s730
    %s748 = sphi 0, %s748
    %s750 = sphi 0, %s748
    %s751 = sphi 0, %s750
    %s765 = sphi 0, %s751
    %s769 = sphi 0, %s769
    %s771 = sphi 0, %s769
    %s772 = sphi 0, %s771
    %s786 = sphi 0, %s772
    %s790 = sphi 0, %s790
    %s792 = sphi 0, %s790
    %s793 = sphi 0, %s792
    %s807 = sphi 0, %s793
    %s811 = sphi 0, %s811
    %s813 = sphi 0, %s811
    %s814 = sphi 0, %s813
    %s828 = sphi 0, %s814
    %s832 = sphi 0, %s832
    %s834 = sphi 0, %s832
    %s835 = sphi 0, %s834
    %s849 = sphi 0, %s835
    %s853 = sphi 0, %s853
    %s855 = sphi 0, %s853
    %s856 = sphi 0, %s855
    %s870 = sphi 0, %s856
    %s874 = sphi 0, %s874
    %s876 = sphi 0, %s874
    %s877 = sphi 0, %s876
    %s891 = sphi 0, %s877
    %s895 = sphi 0, %s895
    %s897 = sphi 0, %s895
    %s898 = sphi 0, %s897
    %s912 = sphi 0, %s898
    %s916 = sphi 0, %s916
    %s918 = sphi 0, %s916
    %s919 = sphi 0, %s918
    %s933 = sphi 0, %s919
    %s937 = sphi 0, %s937
    %s939 = sphi 0, %s937
    %s940 = sphi 0, %s939
    %s954 = sphi 0, %s940
    %s958 = sphi 0, %s958
    %s960 = sphi 0, %s958
    %s961 = sphi 0, %s960
    %s975 = sphi 0, %s961
    %s979 = sphi 0, %s979
    %s981 = sphi 0, %s979
    %s982 = sphi 0, %s981
    %s996 = sphi 0, %s982
    %s1000 = sphi 0, %s1000
    %s1002 = sphi 0, %s1000
    %s1003 = sphi 0, %s1002
    %s1017 = sphi 0, %s1003
    %s1021 = sphi 0, %s1021
    %s1023 = sphi 0, %s1021
    %s1024 = sphi 0, %s1023
    %s1038 = sphi 0, %s1024
    %s1042 = sphi 0, %s1042
    %s1044 = sphi 0, %s1042
    %s1045 = sphi 0, %s1044
    %s1059 = sphi 0, %s1045
    %s1063 = sphi 0, %s1063
    %s1065 = sphi 0, %s1063
    %s1066 = sphi 0, %s1065
    %s1080 = sphi 0, %s1066
    %s1084 = sphi 0, %s1084
    %s1086 = sphi 0, %s1084
    %s1087 = sphi 0, %s1086
    %s1101 = sphi 0, %s1087
    %s1105 = sphi 0, %s1105
    %s1107 = sphi 0, %s1105
    %s1108 = sphi 0, %s1107
    %s1122 = sphi 0, %s1108
    %s1126 = sphi 0, %s1126
    %s1128 = sphi 0, %s1126
    %s1129 = sphi 0, %s1128
    %s1143 = sphi 0, %s1129
    %s1149 = sphi 0, %s1151
    %s1152 = sphi 0, %s1149
    %s1153 = sphi 0, %s1152
    %s1169 = sphi 0, %s1153
  $region4: #{encoder_forward.1} parent=0 // loop_header_branch
    %108 = sbr.rel (%p106) target = $region8
  $region5: #{encoder_forward.1} parent=0 // loop_body
    %s110 = ssub.s32 %s105, 1
    %s111 = ssub.s32 %s105, 2
    %s112 = sadd.s32 %s105, 1
    %s113 = ssub.s32 %s105, %s112
    %p114 = scmp.eq.s32.totalorder %s113, 0
    %s116 = sadd.s32 %s115, 1
    %s117 = scalar_select %p114, %s115, %s116
    %p120 = pneg %p114
    %p121 = scmp.eq.s32.totalorder %s105, 1
    %p122 = por %p120, %p121
    %p123 = scmp.ne.s32.totalorder %s115, %s118
    %p124 = scmp.eq.s32.totalorder %s105, 0
    %p125 = por %p123, %p124
    %p126 = scmp.ne.s32.totalorder %s115, %s118
    %p127 = scmp.eq.s32.totalorder %s110, 1
    %p128 = por %p126, %p127
    %p129 = scmp.ne.s32.totalorder %s118, %s119
    %p130 = scmp.eq.s32.totalorder %s110, 0
    %p131 = por %p129, %p130
    %p132 = scmp.ne.s32.totalorder %s118, %s119
    %p133 = scmp.eq.s32.totalorder %s111, 1
    %p134 = por %p132, %p133
    %p136 = scmp.ne.s32.totalorder %s119, %s135
    %p137 = scmp.eq.s32.totalorder %s111, 0
    %p138 = por %p136, %p137
    %s140 = sadd.s32 %s139, 1
    %p143 = scmp.eq.s32.totalorder %s105, 1
    %p144 = scmp.ne.s32.totalorder %s139, %s141
    %p145 = scmp.eq.s32.totalorder %s105, 0
    %p146 = por %p144, %p145
    %p147 = scmp.ne.s32.totalorder %s139, %s141
    %p148 = scmp.eq.s32.totalorder %s110, 1
    %p149 = por %p147, %p148
    %p150 = scmp.ne.s32.totalorder %s141, %s142
    %p151 = scmp.eq.s32.totalorder %s110, 0
    %p152 = por %p150, %p151
    %p153 = scmp.ne.s32.totalorder %s141, %s142
    %p154 = scmp.eq.s32.totalorder %s111, 1
    %p155 = por %p153, %p154
    %p157 = scmp.ne.s32.totalorder %s142, %s156
    %p158 = scmp.eq.s32.totalorder %s111, 0
    %p159 = por %p157, %p158
    %s161 = sadd.s32 %s160, 1
    %p164 = scmp.eq.s32.totalorder %s105, 1
    %p165 = scmp.ne.s32.totalorder %s160, %s162
    %p166 = scmp.eq.s32.totalorder %s105, 0
    %p167 = por %p165, %p166
    %p168 = scmp.ne.s32.totalorder %s160, %s162
    %p169 = scmp.eq.s32.totalorder %s110, 1
    %p170 = por %p168, %p169
    %p171 = scmp.ne.s32.totalorder %s162, %s163
    %p172 = scmp.eq.s32.totalorder %s110, 0
    %p173 = por %p171, %p172
    %p174 = scmp.ne.s32.totalorder %s162, %s163
    %p175 = scmp.eq.s32.totalorder %s111, 1
    %p176 = por %p174, %p175
    %p178 = scmp.ne.s32.totalorder %s163, %s177
    %p179 = scmp.eq.s32.totalorder %s111, 0
    %p180 = por %p178, %p179
    %s182 = sadd.s32 %s181, 1
    %p185 = scmp.eq.s32.totalorder %s105, 1
    %p186 = scmp.ne.s32.totalorder %s181, %s183
    %p187 = scmp.eq.s32.totalorder %s105, 0
    %p188 = por %p186, %p187
    %p189 = scmp.ne.s32.totalorder %s181, %s183
    %p190 = scmp.eq.s32.totalorder %s110, 1
    %p191 = por %p189, %p190
    %p192 = scmp.ne.s32.totalorder %s183, %s184
    %p193 = scmp.eq.s32.totalorder %s110, 0
    %p194 = por %p192, %p193
    %p195 = scmp.ne.s32.totalorder %s183, %s184
    %p196 = scmp.eq.s32.totalorder %s111, 1
    %p197 = por %p195, %p196
    %p199 = scmp.ne.s32.totalorder %s184, %s198
    %p200 = scmp.eq.s32.totalorder %s111, 0
    %p201 = por %p199, %p200
    %s203 = sadd.s32 %s202, 1
    %p206 = scmp.eq.s32.totalorder %s105, 1
    %p207 = scmp.ne.s32.totalorder %s202, %s204
    %p208 = scmp.eq.s32.totalorder %s105, 0
    %p209 = por %p207, %p208
    %p210 = scmp.ne.s32.totalorder %s202, %s204
    %p211 = scmp.eq.s32.totalorder %s110, 1
    %p212 = por %p210, %p211
    %p213 = scmp.ne.s32.totalorder %s204, %s205
    %p214 = scmp.eq.s32.totalorder %s110, 0
    %p215 = por %p213, %p214
    %p216 = scmp.ne.s32.totalorder %s204, %s205
    %p217 = scmp.eq.s32.totalorder %s111, 1
    %p218 = por %p216, %p217
    %p220 = scmp.ne.s32.totalorder %s205, %s219
    %p221 = scmp.eq.s32.totalorder %s111, 0
    %p222 = por %p220, %p221
    %s224 = sadd.s32 %s223, 1
    %p227 = scmp.eq.s32.totalorder %s105, 1
    %p228 = scmp.ne.s32.totalorder %s223, %s225
    %p229 = scmp.eq.s32.totalorder %s105, 0
    %p230 = por %p228, %p229
    %p231 = scmp.ne.s32.totalorder %s223, %s225
    %p232 = scmp.eq.s32.totalorder %s110, 1
    %p233 = por %p231, %p232
    %p234 = scmp.ne.s32.totalorder %s225, %s226
    %p235 = scmp.eq.s32.totalorder %s110, 0
    %p236 = por %p234, %p235
    %p237 = scmp.ne.s32.totalorder %s225, %s226
    %p238 = scmp.eq.s32.totalorder %s111, 1
    %p239 = por %p237, %p238
    %p241 = scmp.ne.s32.totalorder %s226, %s240
    %p242 = scmp.eq.s32.totalorder %s111, 0
    %p243 = por %p241, %p242
    %s245 = sadd.s32 %s244, 1
    %p248 = scmp.eq.s32.totalorder %s105, 1
    %p249 = scmp.ne.s32.totalorder %s244, %s246
    %p250 = scmp.eq.s32.totalorder %s105, 0
    %p251 = por %p249, %p250
    %p252 = scmp.ne.s32.totalorder %s244, %s246
    %p253 = scmp.eq.s32.totalorder %s110, 1
    %p254 = por %p252, %p253
    %p255 = scmp.ne.s32.totalorder %s246, %s247
    %p256 = scmp.eq.s32.totalorder %s110, 0
    %p257 = por %p255, %p256
    %p258 = scmp.ne.s32.totalorder %s246, %s247
    %p259 = scmp.eq.s32.totalorder %s111, 1
    %p260 = por %p258, %p259
    %p262 = scmp.ne.s32.totalorder %s247, %s261
    %p263 = scmp.eq.s32.totalorder %s111, 0
    %p264 = por %p262, %p263
    %s266 = sadd.s32 %s265, 1
    %p269 = scmp.eq.s32.totalorder %s105, 1
    %p270 = scmp.ne.s32.totalorder %s265, %s267
    %p271 = scmp.eq.s32.totalorder %s105, 0
    %p272 = por %p270, %p271
    %p273 = scmp.ne.s32.totalorder %s265, %s267
    %p274 = scmp.eq.s32.totalorder %s110, 1
    %p275 = por %p273, %p274
    %p276 = scmp.ne.s32.totalorder %s267, %s268
    %p277 = scmp.eq.s32.totalorder %s110, 0
    %p278 = por %p276, %p277
    %p279 = scmp.ne.s32.totalorder %s267, %s268
    %p280 = scmp.eq.s32.totalorder %s111, 1
    %p281 = por %p279, %p280
    %p283 = scmp.ne.s32.totalorder %s268, %s282
    %p284 = scmp.eq.s32.totalorder %s111, 0
    %p285 = por %p283, %p284
    %s287 = sadd.s32 %s286, 1
    %p290 = scmp.eq.s32.totalorder %s105, 1
    %p291 = scmp.ne.s32.totalorder %s286, %s288
    %p292 = scmp.eq.s32.totalorder %s105, 0
    %p293 = por %p291, %p292
    %p294 = scmp.ne.s32.totalorder %s286, %s288
    %p295 = scmp.eq.s32.totalorder %s110, 1
    %p296 = por %p294, %p295
    %p297 = scmp.ne.s32.totalorder %s288, %s289
    %p298 = scmp.eq.s32.totalorder %s110, 0
    %p299 = por %p297, %p298
    %p300 = scmp.ne.s32.totalorder %s288, %s289
    %p301 = scmp.eq.s32.totalorder %s111, 1
    %p302 = por %p300, %p301
    %p304 = scmp.ne.s32.totalorder %s289, %s303
    %p305 = scmp.eq.s32.totalorder %s111, 0
    %p306 = por %p304, %p305
    %s308 = sadd.s32 %s307, 1
    %p311 = scmp.eq.s32.totalorder %s105, 1
    %p312 = scmp.ne.s32.totalorder %s307, %s309
    %p313 = scmp.eq.s32.totalorder %s105, 0
    %p314 = por %p312, %p313
    %p315 = scmp.ne.s32.totalorder %s307, %s309
    %p316 = scmp.eq.s32.totalorder %s110, 1
    %p317 = por %p315, %p316
    %p318 = scmp.ne.s32.totalorder %s309, %s310
    %p319 = scmp.eq.s32.totalorder %s110, 0
    %p320 = por %p318, %p319
    %p321 = scmp.ne.s32.totalorder %s309, %s310
    %p322 = scmp.eq.s32.totalorder %s111, 1
    %p323 = por %p321, %p322
    %p325 = scmp.ne.s32.totalorder %s310, %s324
    %p326 = scmp.eq.s32.totalorder %s111, 0
    %p327 = por %p325, %p326
    %s329 = sadd.s32 %s328, 1
    %p332 = scmp.eq.s32.totalorder %s105, 1
    %p333 = scmp.ne.s32.totalorder %s328, %s330
    %p334 = scmp.eq.s32.totalorder %s105, 0
    %p335 = por %p333, %p334
    %p336 = scmp.ne.s32.totalorder %s328, %s330
    %p337 = scmp.eq.s32.totalorder %s110, 1
    %p338 = por %p336, %p337
    %p339 = scmp.ne.s32.totalorder %s330, %s331
    %p340 = scmp.eq.s32.totalorder %s110, 0
    %p341 = por %p339, %p340
    %p342 = scmp.ne.s32.totalorder %s330, %s331
    %p343 = scmp.eq.s32.totalorder %s111, 1
    %p344 = por %p342, %p343
    %p346 = scmp.ne.s32.totalorder %s331, %s345
    %p347 = scmp.eq.s32.totalorder %s111, 0
    %p348 = por %p346, %p347
    %s350 = sadd.s32 %s349, 1
    %p353 = scmp.eq.s32.totalorder %s105, 1
    %p354 = scmp.ne.s32.totalorder %s349, %s351
    %p355 = scmp.eq.s32.totalorder %s105, 0
    %p356 = por %p354, %p355
    %p357 = scmp.ne.s32.totalorder %s349, %s351
    %p358 = scmp.eq.s32.totalorder %s110, 1
    %p359 = por %p357, %p358
    %p360 = scmp.ne.s32.totalorder %s351, %s352
    %p361 = scmp.eq.s32.totalorder %s110, 0
    %p362 = por %p360, %p361
    %p363 = scmp.ne.s32.totalorder %s351, %s352
    %p364 = scmp.eq.s32.totalorder %s111, 1
    %p365 = por %p363, %p364
    %p367 = scmp.ne.s32.totalorder %s352, %s366
    %p368 = scmp.eq.s32.totalorder %s111, 0
    %p369 = por %p367, %p368
    %s371 = sadd.s32 %s370, 1
    %p374 = scmp.eq.s32.totalorder %s105, 1
    %p375 = scmp.ne.s32.totalorder %s370, %s372
    %p376 = scmp.eq.s32.totalorder %s105, 0
    %p377 = por %p375, %p376
    %p378 = scmp.ne.s32.totalorder %s370, %s372
    %p379 = scmp.eq.s32.totalorder %s110, 1
    %p380 = por %p378, %p379
    %p381 = scmp.ne.s32.totalorder %s372, %s373
    %p382 = scmp.eq.s32.totalorder %s110, 0
    %p383 = por %p381, %p382
    %p384 = scmp.ne.s32.totalorder %s372, %s373
    %p385 = scmp.eq.s32.totalorder %s111, 1
    %p386 = por %p384, %p385
    %p388 = scmp.ne.s32.totalorder %s373, %s387
    %p389 = scmp.eq.s32.totalorder %s111, 0
    %p390 = por %p388, %p389
    %s392 = sadd.s32 %s391, 1
    %p395 = scmp.eq.s32.totalorder %s105, 1
    %p396 = scmp.ne.s32.totalorder %s391, %s393
    %p397 = scmp.eq.s32.totalorder %s105, 0
    %p398 = por %p396, %p397
    %p399 = scmp.ne.s32.totalorder %s391, %s393
    %p400 = scmp.eq.s32.totalorder %s110, 1
    %p401 = por %p399, %p400
    %p402 = scmp.ne.s32.totalorder %s393, %s394
    %p403 = scmp.eq.s32.totalorder %s110, 0
    %p404 = por %p402, %p403
    %p405 = scmp.ne.s32.totalorder %s393, %s394
    %p406 = scmp.eq.s32.totalorder %s111, 1
    %p407 = por %p405, %p406
    %p409 = scmp.ne.s32.totalorder %s394, %s408
    %p410 = scmp.eq.s32.totalorder %s111, 0
    %p411 = por %p409, %p410
    %s413 = sadd.s32 %s412, 1
    %p416 = scmp.eq.s32.totalorder %s105, 1
    %p417 = scmp.ne.s32.totalorder %s412, %s414
    %p418 = scmp.eq.s32.totalorder %s105, 0
    %p419 = por %p417, %p418
    %p420 = scmp.ne.s32.totalorder %s412, %s414
    %p421 = scmp.eq.s32.totalorder %s110, 1
    %p422 = por %p420, %p421
    %p423 = scmp.ne.s32.totalorder %s414, %s415
    %p424 = scmp.eq.s32.totalorder %s110, 0
    %p425 = por %p423, %p424
    %p426 = scmp.ne.s32.totalorder %s414, %s415
    %p427 = scmp.eq.s32.totalorder %s111, 1
    %p428 = por %p426, %p427
    %p430 = scmp.ne.s32.totalorder %s415, %s429
    %p431 = scmp.eq.s32.totalorder %s111, 0
    %p432 = por %p430, %p431
    %s434 = sadd.s32 %s433, 1
    %p437 = scmp.eq.s32.totalorder %s105, 1
    %p438 = scmp.ne.s32.totalorder %s433, %s435
    %p439 = scmp.eq.s32.totalorder %s105, 0
    %p440 = por %p438, %p439
    %p441 = scmp.ne.s32.totalorder %s433, %s435
    %p442 = scmp.eq.s32.totalorder %s110, 1
    %p443 = por %p441, %p442
    %p444 = scmp.ne.s32.totalorder %s435, %s436
    %p445 = scmp.eq.s32.totalorder %s110, 0
    %p446 = por %p444, %p445
    %p447 = scmp.ne.s32.totalorder %s435, %s436
    %p448 = scmp.eq.s32.totalorder %s111, 1
    %p449 = por %p447, %p448
    %p451 = scmp.ne.s32.totalorder %s436, %s450
    %p452 = scmp.eq.s32.totalorder %s111, 0
    %p453 = por %p451, %p452
    %s455 = sadd.s32 %s454, 1
    %p458 = scmp.eq.s32.totalorder %s105, 1
    %p459 = scmp.ne.s32.totalorder %s454, %s456
    %p460 = scmp.eq.s32.totalorder %s105, 0
    %p461 = por %p459, %p460
    %p462 = scmp.ne.s32.totalorder %s454, %s456
    %p463 = scmp.eq.s32.totalorder %s110, 1
    %p464 = por %p462, %p463
    %p465 = scmp.ne.s32.totalorder %s456, %s457
    %p466 = scmp.eq.s32.totalorder %s110, 0
    %p467 = por %p465, %p466
    %p468 = scmp.ne.s32.totalorder %s456, %s457
    %p469 = scmp.eq.s32.totalorder %s111, 1
    %p470 = por %p468, %p469
    %p472 = scmp.ne.s32.totalorder %s457, %s471
    %p473 = scmp.eq.s32.totalorder %s111, 0
    %p474 = por %p472, %p473
    %s476 = sadd.s32 %s475, 1
    %p479 = scmp.eq.s32.totalorder %s105, 1
    %p480 = scmp.ne.s32.totalorder %s475, %s477
    %p481 = scmp.eq.s32.totalorder %s105, 0
    %p482 = por %p480, %p481
    %p483 = scmp.ne.s32.totalorder %s475, %s477
    %p484 = scmp.eq.s32.totalorder %s110, 1
    %p485 = por %p483, %p484
    %p486 = scmp.ne.s32.totalorder %s477, %s478
    %p487 = scmp.eq.s32.totalorder %s110, 0
    %p488 = por %p486, %p487
    %p489 = scmp.ne.s32.totalorder %s477, %s478
    %p490 = scmp.eq.s32.totalorder %s111, 1
    %p491 = por %p489, %p490
    %p493 = scmp.ne.s32.totalorder %s478, %s492
    %p494 = scmp.eq.s32.totalorder %s111, 0
    %p495 = por %p493, %p494
    %s497 = sadd.s32 %s496, 1
    %p500 = scmp.eq.s32.totalorder %s105, 1
    %p501 = scmp.ne.s32.totalorder %s496, %s498
    %p502 = scmp.eq.s32.totalorder %s105, 0
    %p503 = por %p501, %p502
    %p504 = scmp.ne.s32.totalorder %s496, %s498
    %p505 = scmp.eq.s32.totalorder %s110, 1
    %p506 = por %p504, %p505
    %p507 = scmp.ne.s32.totalorder %s498, %s499
    %p508 = scmp.eq.s32.totalorder %s110, 0
    %p509 = por %p507, %p508
    %p510 = scmp.ne.s32.totalorder %s498, %s499
    %p511 = scmp.eq.s32.totalorder %s111, 1
    %p512 = por %p510, %p511
    %p514 = scmp.ne.s32.totalorder %s499, %s513
    %p515 = scmp.eq.s32.totalorder %s111, 0
    %p516 = por %p514, %p515
    %s518 = sadd.s32 %s517, 1
    %p521 = scmp.eq.s32.totalorder %s105, 1
    %p522 = scmp.ne.s32.totalorder %s517, %s519
    %p523 = scmp.eq.s32.totalorder %s105, 0
    %p524 = por %p522, %p523
    %p525 = scmp.ne.s32.totalorder %s517, %s519
    %p526 = scmp.eq.s32.totalorder %s110, 1
    %p527 = por %p525, %p526
    %p528 = scmp.ne.s32.totalorder %s519, %s520
    %p529 = scmp.eq.s32.totalorder %s110, 0
    %p530 = por %p528, %p529
    %p531 = scmp.ne.s32.totalorder %s519, %s520
    %p532 = scmp.eq.s32.totalorder %s111, 1
    %p533 = por %p531, %p532
    %p535 = scmp.ne.s32.totalorder %s520, %s534
    %p536 = scmp.eq.s32.totalorder %s111, 0
    %p537 = por %p535, %p536
    %s539 = sadd.s32 %s538, 1
    %p542 = scmp.eq.s32.totalorder %s105, 1
    %p543 = scmp.ne.s32.totalorder %s538, %s540
    %p544 = scmp.eq.s32.totalorder %s105, 0
    %p545 = por %p543, %p544
    %p546 = scmp.ne.s32.totalorder %s538, %s540
    %p547 = scmp.eq.s32.totalorder %s110, 1
    %p548 = por %p546, %p547
    %p549 = scmp.ne.s32.totalorder %s540, %s541
    %p550 = scmp.eq.s32.totalorder %s110, 0
    %p551 = por %p549, %p550
    %p552 = scmp.ne.s32.totalorder %s540, %s541
    %p553 = scmp.eq.s32.totalorder %s111, 1
    %p554 = por %p552, %p553
    %p556 = scmp.ne.s32.totalorder %s541, %s555
    %p557 = scmp.eq.s32.totalorder %s111, 0
    %p558 = por %p556, %p557
    %s560 = sadd.s32 %s559, 1
    %p563 = scmp.eq.s32.totalorder %s105, 1
    %p564 = scmp.ne.s32.totalorder %s559, %s561
    %p565 = scmp.eq.s32.totalorder %s105, 0
    %p566 = por %p564, %p565
    %p567 = scmp.ne.s32.totalorder %s559, %s561
    %p568 = scmp.eq.s32.totalorder %s110, 1
    %p569 = por %p567, %p568
    %p570 = scmp.ne.s32.totalorder %s561, %s562
    %p571 = scmp.eq.s32.totalorder %s110, 0
    %p572 = por %p570, %p571
    %p573 = scmp.ne.s32.totalorder %s561, %s562
    %p574 = scmp.eq.s32.totalorder %s111, 1
    %p575 = por %p573, %p574
    %p577 = scmp.ne.s32.totalorder %s562, %s576
    %p578 = scmp.eq.s32.totalorder %s111, 0
    %p579 = por %p577, %p578
    %s581 = sadd.s32 %s580, 1
    %p584 = scmp.eq.s32.totalorder %s105, 1
    %p585 = scmp.ne.s32.totalorder %s580, %s582
    %p586 = scmp.eq.s32.totalorder %s105, 0
    %p587 = por %p585, %p586
    %p588 = scmp.ne.s32.totalorder %s580, %s582
    %p589 = scmp.eq.s32.totalorder %s110, 1
    %p590 = por %p588, %p589
    %p591 = scmp.ne.s32.totalorder %s582, %s583
    %p592 = scmp.eq.s32.totalorder %s110, 0
    %p593 = por %p591, %p592
    %p594 = scmp.ne.s32.totalorder %s582, %s583
    %p595 = scmp.eq.s32.totalorder %s111, 1
    %p596 = por %p594, %p595
    %p598 = scmp.ne.s32.totalorder %s583, %s597
    %p599 = scmp.eq.s32.totalorder %s111, 0
    %p600 = por %p598, %p599
    %s602 = sadd.s32 %s601, 1
    %p605 = scmp.eq.s32.totalorder %s105, 1
    %p606 = scmp.ne.s32.totalorder %s601, %s603
    %p607 = scmp.eq.s32.totalorder %s105, 0
    %p608 = por %p606, %p607
    %p609 = scmp.ne.s32.totalorder %s601, %s603
    %p610 = scmp.eq.s32.totalorder %s110, 1
    %p611 = por %p609, %p610
    %p612 = scmp.ne.s32.totalorder %s603, %s604
    %p613 = scmp.eq.s32.totalorder %s110, 0
    %p614 = por %p612, %p613
    %p615 = scmp.ne.s32.totalorder %s603, %s604
    %p616 = scmp.eq.s32.totalorder %s111, 1
    %p617 = por %p615, %p616
    %p619 = scmp.ne.s32.totalorder %s604, %s618
    %p620 = scmp.eq.s32.totalorder %s111, 0
    %p621 = por %p619, %p620
    %s623 = sadd.s32 %s622, 1
    %p626 = scmp.eq.s32.totalorder %s105, 1
    %p627 = scmp.ne.s32.totalorder %s622, %s624
    %p628 = scmp.eq.s32.totalorder %s105, 0
    %p629 = por %p627, %p628
    %p630 = scmp.ne.s32.totalorder %s622, %s624
    %p631 = scmp.eq.s32.totalorder %s110, 1
    %p632 = por %p630, %p631
    %p633 = scmp.ne.s32.totalorder %s624, %s625
    %p634 = scmp.eq.s32.totalorder %s110, 0
    %p635 = por %p633, %p634
    %p636 = scmp.ne.s32.totalorder %s624, %s625
    %p637 = scmp.eq.s32.totalorder %s111, 1
    %p638 = por %p636, %p637
    %p640 = scmp.ne.s32.totalorder %s625, %s639
    %p641 = scmp.eq.s32.totalorder %s111, 0
    %p642 = por %p640, %p641
    %s644 = sadd.s32 %s643, 1
    %p647 = scmp.eq.s32.totalorder %s105, 1
    %p648 = scmp.ne.s32.totalorder %s643, %s645
    %p649 = scmp.eq.s32.totalorder %s105, 0
    %p650 = por %p648, %p649
    %p651 = scmp.ne.s32.totalorder %s643, %s645
    %p652 = scmp.eq.s32.totalorder %s110, 1
    %p653 = por %p651, %p652
    %p654 = scmp.ne.s32.totalorder %s645, %s646
    %p655 = scmp.eq.s32.totalorder %s110, 0
    %p656 = por %p654, %p655
    %p657 = scmp.ne.s32.totalorder %s645, %s646
    %p658 = scmp.eq.s32.totalorder %s111, 1
    %p659 = por %p657, %p658
    %p661 = scmp.ne.s32.totalorder %s646, %s660
    %p662 = scmp.eq.s32.totalorder %s111, 0
    %p663 = por %p661, %p662
    %s665 = sadd.s32 %s664, 1
    %p668 = scmp.eq.s32.totalorder %s105, 1
    %p669 = scmp.ne.s32.totalorder %s664, %s666
    %p670 = scmp.eq.s32.totalorder %s105, 0
    %p671 = por %p669, %p670
    %p672 = scmp.ne.s32.totalorder %s664, %s666
    %p673 = scmp.eq.s32.totalorder %s110, 1
    %p674 = por %p672, %p673
    %p675 = scmp.ne.s32.totalorder %s666, %s667
    %p676 = scmp.eq.s32.totalorder %s110, 0
    %p677 = por %p675, %p676
    %p678 = scmp.ne.s32.totalorder %s666, %s667
    %p679 = scmp.eq.s32.totalorder %s111, 1
    %p680 = por %p678, %p679
    %p682 = scmp.ne.s32.totalorder %s667, %s681
    %p683 = scmp.eq.s32.totalorder %s111, 0
    %p684 = por %p682, %p683
    %s686 = sadd.s32 %s685, 1
    %p689 = scmp.eq.s32.totalorder %s105, 1
    %p690 = scmp.ne.s32.totalorder %s685, %s687
    %p691 = scmp.eq.s32.totalorder %s105, 0
    %p692 = por %p690, %p691
    %p693 = scmp.ne.s32.totalorder %s685, %s687
    %p694 = scmp.eq.s32.totalorder %s110, 1
    %p695 = por %p693, %p694
    %p696 = scmp.ne.s32.totalorder %s687, %s688
    %p697 = scmp.eq.s32.totalorder %s110, 0
    %p698 = por %p696, %p697
    %p699 = scmp.ne.s32.totalorder %s687, %s688
    %p700 = scmp.eq.s32.totalorder %s111, 1
    %p701 = por %p699, %p700
    %p703 = scmp.ne.s32.totalorder %s688, %s702
    %p704 = scmp.eq.s32.totalorder %s111, 0
    %p705 = por %p703, %p704
    %s707 = sadd.s32 %s706, 1
    %p710 = scmp.eq.s32.totalorder %s105, 1
    %p711 = scmp.ne.s32.totalorder %s706, %s708
    %p712 = scmp.eq.s32.totalorder %s105, 0
    %p713 = por %p711, %p712
    %p714 = scmp.ne.s32.totalorder %s706, %s708
    %p715 = scmp.eq.s32.totalorder %s110, 1
    %p716 = por %p714, %p715
    %p717 = scmp.ne.s32.totalorder %s708, %s709
    %p718 = scmp.eq.s32.totalorder %s110, 0
    %p719 = por %p717, %p718
    %p720 = scmp.ne.s32.totalorder %s708, %s709
    %p721 = scmp.eq.s32.totalorder %s111, 1
    %p722 = por %p720, %p721
    %p724 = scmp.ne.s32.totalorder %s709, %s723
    %p725 = scmp.eq.s32.totalorder %s111, 0
    %p726 = por %p724, %p725
    %s728 = sadd.s32 %s727, 1
    %p731 = scmp.eq.s32.totalorder %s105, 1
    %p732 = scmp.ne.s32.totalorder %s727, %s729
    %p733 = scmp.eq.s32.totalorder %s105, 0
    %p734 = por %p732, %p733
    %p735 = scmp.ne.s32.totalorder %s727, %s729
    %p736 = scmp.eq.s32.totalorder %s110, 1
    %p737 = por %p735, %p736
    %p738 = scmp.ne.s32.totalorder %s729, %s730
    %p739 = scmp.eq.s32.totalorder %s110, 0
    %p740 = por %p738, %p739
    %p741 = scmp.ne.s32.totalorder %s729, %s730
    %p742 = scmp.eq.s32.totalorder %s111, 1
    %p743 = por %p741, %p742
    %p745 = scmp.ne.s32.totalorder %s730, %s744
    %p746 = scmp.eq.s32.totalorder %s111, 0
    %p747 = por %p745, %p746
    %s749 = sadd.s32 %s748, 1
    %p752 = scmp.eq.s32.totalorder %s105, 1
    %p753 = scmp.ne.s32.totalorder %s748, %s750
    %p754 = scmp.eq.s32.totalorder %s105, 0
    %p755 = por %p753, %p754
    %p756 = scmp.ne.s32.totalorder %s748, %s750
    %p757 = scmp.eq.s32.totalorder %s110, 1
    %p758 = por %p756, %p757
    %p759 = scmp.ne.s32.totalorder %s750, %s751
    %p760 = scmp.eq.s32.totalorder %s110, 0
    %p761 = por %p759, %p760
    %p762 = scmp.ne.s32.totalorder %s750, %s751
    %p763 = scmp.eq.s32.totalorder %s111, 1
    %p764 = por %p762, %p763
    %p766 = scmp.ne.s32.totalorder %s751, %s765
    %p767 = scmp.eq.s32.totalorder %s111, 0
    %p768 = por %p766, %p767
    %s770 = sadd.s32 %s769, 1
    %p773 = scmp.eq.s32.totalorder %s105, 1
    %p774 = scmp.ne.s32.totalorder %s769, %s771
    %p775 = scmp.eq.s32.totalorder %s105, 0
    %p776 = por %p774, %p775
    %p777 = scmp.ne.s32.totalorder %s769, %s771
    %p778 = scmp.eq.s32.totalorder %s110, 1
    %p779 = por %p777, %p778
    %p780 = scmp.ne.s32.totalorder %s771, %s772
    %p781 = scmp.eq.s32.totalorder %s110, 0
    %p782 = por %p780, %p781
    %p783 = scmp.ne.s32.totalorder %s771, %s772
    %p784 = scmp.eq.s32.totalorder %s111, 1
    %p785 = por %p783, %p784
    %p787 = scmp.ne.s32.totalorder %s772, %s786
    %p788 = scmp.eq.s32.totalorder %s111, 0
    %p789 = por %p787, %p788
    %s791 = sadd.s32 %s790, 1
    %p794 = scmp.eq.s32.totalorder %s105, 1
    %p795 = scmp.ne.s32.totalorder %s790, %s792
    %p796 = scmp.eq.s32.totalorder %s105, 0
    %p797 = por %p795, %p796
    %p798 = scmp.ne.s32.totalorder %s790, %s792
    %p799 = scmp.eq.s32.totalorder %s110, 1
    %p800 = por %p798, %p799
    %p801 = scmp.ne.s32.totalorder %s792, %s793
    %p802 = scmp.eq.s32.totalorder %s110, 0
    %p803 = por %p801, %p802
    %p804 = scmp.ne.s32.totalorder %s792, %s793
    %p805 = scmp.eq.s32.totalorder %s111, 1
    %p806 = por %p804, %p805
    %p808 = scmp.ne.s32.totalorder %s793, %s807
    %p809 = scmp.eq.s32.totalorder %s111, 0
    %p810 = por %p808, %p809
    %s812 = sadd.s32 %s811, 1
    %p815 = scmp.eq.s32.totalorder %s105, 1
    %p816 = scmp.ne.s32.totalorder %s811, %s813
    %p817 = scmp.eq.s32.totalorder %s105, 0
    %p818 = por %p816, %p817
    %p819 = scmp.ne.s32.totalorder %s811, %s813
    %p820 = scmp.eq.s32.totalorder %s110, 1
    %p821 = por %p819, %p820
    %p822 = scmp.ne.s32.totalorder %s813, %s814
    %p823 = scmp.eq.s32.totalorder %s110, 0
    %p824 = por %p822, %p823
    %p825 = scmp.ne.s32.totalorder %s813, %s814
    %p826 = scmp.eq.s32.totalorder %s111, 1
    %p827 = por %p825, %p826
    %p829 = scmp.ne.s32.totalorder %s814, %s828
    %p830 = scmp.eq.s32.totalorder %s111, 0
    %p831 = por %p829, %p830
    %s833 = sadd.s32 %s832, 1
    %p836 = scmp.eq.s32.totalorder %s105, 1
    %p837 = scmp.ne.s32.totalorder %s832, %s834
    %p838 = scmp.eq.s32.totalorder %s105, 0
    %p839 = por %p837, %p838
    %p840 = scmp.ne.s32.totalorder %s832, %s834
    %p841 = scmp.eq.s32.totalorder %s110, 1
    %p842 = por %p840, %p841
    %p843 = scmp.ne.s32.totalorder %s834, %s835
    %p844 = scmp.eq.s32.totalorder %s110, 0
    %p845 = por %p843, %p844
    %p846 = scmp.ne.s32.totalorder %s834, %s835
    %p847 = scmp.eq.s32.totalorder %s111, 1
    %p848 = por %p846, %p847
    %p850 = scmp.ne.s32.totalorder %s835, %s849
    %p851 = scmp.eq.s32.totalorder %s111, 0
    %p852 = por %p850, %p851
    %s854 = sadd.s32 %s853, 1
    %p857 = scmp.eq.s32.totalorder %s105, 1
    %p858 = scmp.ne.s32.totalorder %s853, %s855
    %p859 = scmp.eq.s32.totalorder %s105, 0
    %p860 = por %p858, %p859
    %p861 = scmp.ne.s32.totalorder %s853, %s855
    %p862 = scmp.eq.s32.totalorder %s110, 1
    %p863 = por %p861, %p862
    %p864 = scmp.ne.s32.totalorder %s855, %s856
    %p865 = scmp.eq.s32.totalorder %s110, 0
    %p866 = por %p864, %p865
    %p867 = scmp.ne.s32.totalorder %s855, %s856
    %p868 = scmp.eq.s32.totalorder %s111, 1
    %p869 = por %p867, %p868
    %p871 = scmp.ne.s32.totalorder %s856, %s870
    %p872 = scmp.eq.s32.totalorder %s111, 0
    %p873 = por %p871, %p872
    %s875 = sadd.s32 %s874, 1
    %p878 = scmp.eq.s32.totalorder %s105, 1
    %p879 = scmp.ne.s32.totalorder %s874, %s876
    %p880 = scmp.eq.s32.totalorder %s105, 0
    %p881 = por %p879, %p880
    %p882 = scmp.ne.s32.totalorder %s874, %s876
    %p883 = scmp.eq.s32.totalorder %s110, 1
    %p884 = por %p882, %p883
    %p885 = scmp.ne.s32.totalorder %s876, %s877
    %p886 = scmp.eq.s32.totalorder %s110, 0
    %p887 = por %p885, %p886
    %p888 = scmp.ne.s32.totalorder %s876, %s877
    %p889 = scmp.eq.s32.totalorder %s111, 1
    %p890 = por %p888, %p889
    %p892 = scmp.ne.s32.totalorder %s877, %s891
    %p893 = scmp.eq.s32.totalorder %s111, 0
    %p894 = por %p892, %p893
    %s896 = sadd.s32 %s895, 1
    %p899 = scmp.eq.s32.totalorder %s105, 1
    %p900 = scmp.ne.s32.totalorder %s895, %s897
    %p901 = scmp.eq.s32.totalorder %s105, 0
    %p902 = por %p900, %p901
    %p903 = scmp.ne.s32.totalorder %s895, %s897
    %p904 = scmp.eq.s32.totalorder %s110, 1
    %p905 = por %p903, %p904
    %p906 = scmp.ne.s32.totalorder %s897, %s898
    %p907 = scmp.eq.s32.totalorder %s110, 0
    %p908 = por %p906, %p907
    %p909 = scmp.ne.s32.totalorder %s897, %s898
    %p910 = scmp.eq.s32.totalorder %s111, 1
    %p911 = por %p909, %p910
    %p913 = scmp.ne.s32.totalorder %s898, %s912
    %p914 = scmp.eq.s32.totalorder %s111, 0
    %p915 = por %p913, %p914
    %s917 = sadd.s32 %s916, 1
    %p920 = scmp.eq.s32.totalorder %s105, 1
    %p921 = scmp.ne.s32.totalorder %s916, %s918
    %p922 = scmp.eq.s32.totalorder %s105, 0
    %p923 = por %p921, %p922
    %p924 = scmp.ne.s32.totalorder %s916, %s918
    %p925 = scmp.eq.s32.totalorder %s110, 1
    %p926 = por %p924, %p925
    %p927 = scmp.ne.s32.totalorder %s918, %s919
    %p928 = scmp.eq.s32.totalorder %s110, 0
    %p929 = por %p927, %p928
    %p930 = scmp.ne.s32.totalorder %s918, %s919
    %p931 = scmp.eq.s32.totalorder %s111, 1
    %p932 = por %p930, %p931
    %p934 = scmp.ne.s32.totalorder %s919, %s933
    %p935 = scmp.eq.s32.totalorder %s111, 0
    %p936 = por %p934, %p935
    %s938 = sadd.s32 %s937, 1
    %p941 = scmp.eq.s32.totalorder %s105, 1
    %p942 = scmp.ne.s32.totalorder %s937, %s939
    %p943 = scmp.eq.s32.totalorder %s105, 0
    %p944 = por %p942, %p943
    %p945 = scmp.ne.s32.totalorder %s937, %s939
    %p946 = scmp.eq.s32.totalorder %s110, 1
    %p947 = por %p945, %p946
    %p948 = scmp.ne.s32.totalorder %s939, %s940
    %p949 = scmp.eq.s32.totalorder %s110, 0
    %p950 = por %p948, %p949
    %p951 = scmp.ne.s32.totalorder %s939, %s940
    %p952 = scmp.eq.s32.totalorder %s111, 1
    %p953 = por %p951, %p952
    %p955 = scmp.ne.s32.totalorder %s940, %s954
    %p956 = scmp.eq.s32.totalorder %s111, 0
    %p957 = por %p955, %p956
    %s959 = sadd.s32 %s958, 1
    %p962 = scmp.eq.s32.totalorder %s105, 1
    %p963 = scmp.ne.s32.totalorder %s958, %s960
    %p964 = scmp.eq.s32.totalorder %s105, 0
    %p965 = por %p963, %p964
    %p966 = scmp.ne.s32.totalorder %s958, %s960
    %p967 = scmp.eq.s32.totalorder %s110, 1
    %p968 = por %p966, %p967
    %p969 = scmp.ne.s32.totalorder %s960, %s961
    %p970 = scmp.eq.s32.totalorder %s110, 0
    %p971 = por %p969, %p970
    %p972 = scmp.ne.s32.totalorder %s960, %s961
    %p973 = scmp.eq.s32.totalorder %s111, 1
    %p974 = por %p972, %p973
    %p976 = scmp.ne.s32.totalorder %s961, %s975
    %p977 = scmp.eq.s32.totalorder %s111, 0
    %p978 = por %p976, %p977
    %s980 = sadd.s32 %s979, 1
    %p983 = scmp.eq.s32.totalorder %s105, 1
    %p984 = scmp.ne.s32.totalorder %s979, %s981
    %p985 = scmp.eq.s32.totalorder %s105, 0
    %p986 = por %p984, %p985
    %p987 = scmp.ne.s32.totalorder %s979, %s981
    %p988 = scmp.eq.s32.totalorder %s110, 1
    %p989 = por %p987, %p988
    %p990 = scmp.ne.s32.totalorder %s981, %s982
    %p991 = scmp.eq.s32.totalorder %s110, 0
    %p992 = por %p990, %p991
    %p993 = scmp.ne.s32.totalorder %s981, %s982
    %p994 = scmp.eq.s32.totalorder %s111, 1
    %p995 = por %p993, %p994
    %p997 = scmp.ne.s32.totalorder %s982, %s996
    %p998 = scmp.eq.s32.totalorder %s111, 0
    %p999 = por %p997, %p998
    %s1001 = sadd.s32 %s1000, 1
    %p1004 = scmp.eq.s32.totalorder %s105, 1
    %p1005 = scmp.ne.s32.totalorder %s1000, %s1002
    %p1006 = scmp.eq.s32.totalorder %s105, 0
    %p1007 = por %p1005, %p1006
    %p1008 = scmp.ne.s32.totalorder %s1000, %s1002
    %p1009 = scmp.eq.s32.totalorder %s110, 1
    %p1010 = por %p1008, %p1009
    %p1011 = scmp.ne.s32.totalorder %s1002, %s1003
    %p1012 = scmp.eq.s32.totalorder %s110, 0
    %p1013 = por %p1011, %p1012
    %p1014 = scmp.ne.s32.totalorder %s1002, %s1003
    %p1015 = scmp.eq.s32.totalorder %s111, 1
    %p1016 = por %p1014, %p1015
    %p1018 = scmp.ne.s32.totalorder %s1003, %s1017
    %p1019 = scmp.eq.s32.totalorder %s111, 0
    %p1020 = por %p1018, %p1019
    %s1022 = sadd.s32 %s1021, 1
    %p1025 = scmp.eq.s32.totalorder %s105, 1
    %p1026 = scmp.ne.s32.totalorder %s1021, %s1023
    %p1027 = scmp.eq.s32.totalorder %s105, 0
    %p1028 = por %p1026, %p1027
    %p1029 = scmp.ne.s32.totalorder %s1021, %s1023
    %p1030 = scmp.eq.s32.totalorder %s110, 1
    %p1031 = por %p1029, %p1030
    %p1032 = scmp.ne.s32.totalorder %s1023, %s1024
    %p1033 = scmp.eq.s32.totalorder %s110, 0
    %p1034 = por %p1032, %p1033
    %p1035 = scmp.ne.s32.totalorder %s1023, %s1024
    %p1036 = scmp.eq.s32.totalorder %s111, 1
    %p1037 = por %p1035, %p1036
    %p1039 = scmp.ne.s32.totalorder %s1024, %s1038
    %p1040 = scmp.eq.s32.totalorder %s111, 0
    %p1041 = por %p1039, %p1040
    %s1043 = sadd.s32 %s1042, 1
    %p1046 = scmp.eq.s32.totalorder %s105, 1
    %p1047 = scmp.ne.s32.totalorder %s1042, %s1044
    %p1048 = scmp.eq.s32.totalorder %s105, 0
    %p1049 = por %p1047, %p1048
    %p1050 = scmp.ne.s32.totalorder %s1042, %s1044
    %p1051 = scmp.eq.s32.totalorder %s110, 1
    %p1052 = por %p1050, %p1051
    %p1053 = scmp.ne.s32.totalorder %s1044, %s1045
    %p1054 = scmp.eq.s32.totalorder %s110, 0
    %p1055 = por %p1053, %p1054
    %p1056 = scmp.ne.s32.totalorder %s1044, %s1045
    %p1057 = scmp.eq.s32.totalorder %s111, 1
    %p1058 = por %p1056, %p1057
    %p1060 = scmp.ne.s32.totalorder %s1045, %s1059
    %p1061 = scmp.eq.s32.totalorder %s111, 0
    %p1062 = por %p1060, %p1061
    %s1064 = sadd.s32 %s1063, 1
    %p1067 = scmp.eq.s32.totalorder %s105, 1
    %p1068 = scmp.ne.s32.totalorder %s1063, %s1065
    %p1069 = scmp.eq.s32.totalorder %s105, 0
    %p1070 = por %p1068, %p1069
    %p1071 = scmp.ne.s32.totalorder %s1063, %s1065
    %p1072 = scmp.eq.s32.totalorder %s110, 1
    %p1073 = por %p1071, %p1072
    %p1074 = scmp.ne.s32.totalorder %s1065, %s1066
    %p1075 = scmp.eq.s32.totalorder %s110, 0
    %p1076 = por %p1074, %p1075
    %p1077 = scmp.ne.s32.totalorder %s1065, %s1066
    %p1078 = scmp.eq.s32.totalorder %s111, 1
    %p1079 = por %p1077, %p1078
    %p1081 = scmp.ne.s32.totalorder %s1066, %s1080
    %p1082 = scmp.eq.s32.totalorder %s111, 0
    %p1083 = por %p1081, %p1082
    %s1085 = sadd.s32 %s1084, 1
    %p1088 = scmp.eq.s32.totalorder %s105, 1
    %p1089 = scmp.ne.s32.totalorder %s1084, %s1086
    %p1090 = scmp.eq.s32.totalorder %s105, 0
    %p1091 = por %p1089, %p1090
    %p1092 = scmp.ne.s32.totalorder %s1084, %s1086
    %p1093 = scmp.eq.s32.totalorder %s110, 1
    %p1094 = por %p1092, %p1093
    %p1095 = scmp.ne.s32.totalorder %s1086, %s1087
    %p1096 = scmp.eq.s32.totalorder %s110, 0
    %p1097 = por %p1095, %p1096
    %p1098 = scmp.ne.s32.totalorder %s1086, %s1087
    %p1099 = scmp.eq.s32.totalorder %s111, 1
    %p1100 = por %p1098, %p1099
    %p1102 = scmp.ne.s32.totalorder %s1087, %s1101
    %p1103 = scmp.eq.s32.totalorder %s111, 0
    %p1104 = por %p1102, %p1103
    %s1106 = sadd.s32 %s1105, 1
    %p1109 = scmp.eq.s32.totalorder %s105, 1
    %p1110 = scmp.ne.s32.totalorder %s1105, %s1107
    %p1111 = scmp.eq.s32.totalorder %s105, 0
    %p1112 = por %p1110, %p1111
    %p1113 = scmp.ne.s32.totalorder %s1105, %s1107
    %p1114 = scmp.eq.s32.totalorder %s110, 1
    %p1115 = por %p1113, %p1114
    %p1116 = scmp.ne.s32.totalorder %s1107, %s1108
    %p1117 = scmp.eq.s32.totalorder %s110, 0
    %p1118 = por %p1116, %p1117
    %p1119 = scmp.ne.s32.totalorder %s1107, %s1108
    %p1120 = scmp.eq.s32.totalorder %s111, 1
    %p1121 = por %p1119, %p1120
    %p1123 = scmp.ne.s32.totalorder %s1108, %s1122
    %p1124 = scmp.eq.s32.totalorder %s111, 0
    %p1125 = por %p1123, %p1124
    %s1127 = sadd.s32 %s1126, 1
    %p1130 = scmp.eq.s32.totalorder %s105, 1
    %p1131 = scmp.ne.s32.totalorder %s1126, %s1128
    %p1132 = scmp.eq.s32.totalorder %s105, 0
    %p1133 = por %p1131, %p1132
    %p1134 = scmp.ne.s32.totalorder %s1126, %s1128
    %p1135 = scmp.eq.s32.totalorder %s110, 1
    %p1136 = por %p1134, %p1135
    %p1137 = scmp.ne.s32.totalorder %s1128, %s1129
    %p1138 = scmp.eq.s32.totalorder %s110, 0
    %p1139 = por %p1137, %p1138
    %p1140 = scmp.ne.s32.totalorder %s1128, %s1129
    %p1141 = scmp.eq.s32.totalorder %s111, 1
    %p1142 = por %p1140, %p1141
    %p1144 = scmp.ne.s32.totalorder %s1129, %s1143
    %p1145 = scmp.eq.s32.totalorder %s111, 0
    %p1146 = por %p1144, %p1145
    %s1147 = ssub.s32 %s105, %s112
    %p1148 = scmp.eq.s32.totalorder %s1147, 0
    %s1150 = sadd.s32 %s1149, 1
    %s1151 = scalar_select %p1148, %s1149, %s1150
    %p1154 = pneg %p1148
    %p1155 = scmp.eq.s32.totalorder %s105, 1
    %p1156 = por %p1154, %p1155
    %p1157 = scmp.ne.s32.totalorder %s1149, %s1152
    %p1158 = scmp.eq.s32.totalorder %s105, 0
    %p1159 = por %p1157, %p1158
    %p1160 = scmp.ne.s32.totalorder %s1149, %s1152
    %p1161 = scmp.eq.s32.totalorder %s110, 1
    %p1162 = por %p1160, %p1161
    %p1163 = scmp.ne.s32.totalorder %s1152, %s1153
    %p1164 = scmp.eq.s32.totalorder %s110, 0
    %p1165 = por %p1163, %p1164
    %p1166 = scmp.ne.s32.totalorder %s1152, %s1153
    %p1167 = scmp.eq.s32.totalorder %s111, 1
    %p1168 = por %p1166, %p1167
    %p1170 = scmp.ne.s32.totalorder %s1153, %s1169
    %p1171 = scmp.eq.s32.totalorder %s111, 0
    %p1172 = por %p1170, %p1171
    %p1173 = scmp.le.s32.totalorder 1, %s105
    %p1174 = scmp.lt.s32.totalorder %s105, 3
    %p1175 = pnand %p1173, %p1174
    %p1176 = pneg %p1175
    // Predicated region
    $region9: #{encoder_forward.1} parent=5 // pred_check
      _
    $region10: #{encoder_forward.1} parent=5 // pred_check_branch
      %1178 = sbr.rel (%p1175) target = $region12
    $region11: #{encoder_forward.1} parent=5 // pred_region
      %s1179 = ssub.s32 %s105, 1
      // Predicated region
      $region13: #{encoder_forward.1} parent=11 // pred_check
        %p1180 = pneg %p152
      $region14: #{encoder_forward.1} parent=11 // pred_check_branch
        %1182 = sbr.rel (%p1180) target = $region16
      $region15: #{encoder_forward.1} parent=11 // pred_region
        _
      $region16: #{encoder_forward.1} parent=11 // pred_fallthru
        _
      // Predicated region
      $region17: #{encoder_forward.1} parent=11 // pred_check
        %p1183 = pneg %p173
      $region18: #{encoder_forward.1} parent=11 // pred_check_branch
        %1185 = sbr.rel (%p1183) target = $region20
      $region19: #{encoder_forward.1} parent=11 // pred_region
        _
      $region20: #{encoder_forward.1} parent=11 // pred_fallthru
        _
      // Predicated region
      $region21: #{encoder_forward.1} parent=11 // pred_check
        %p1186 = pneg %p194
      $region22: #{encoder_forward.1} parent=11 // pred_check_branch
        %1188 = sbr.rel (%p1186) target = $region24
      $region23: #{encoder_forward.1} parent=11 // pred_region
        _
      $region24: #{encoder_forward.1} parent=11 // pred_fallthru
        _
      // Predicated region
      $region25: #{encoder_forward.1} parent=11 // pred_check
        %p1189 = pneg %p215
      $region26: #{encoder_forward.1} parent=11 // pred_check_branch
        %1191 = sbr.rel (%p1189) target = $region28
      $region27: #{encoder_forward.1} parent=11 // pred_region
        _
      $region28: #{encoder_forward.1} parent=11 // pred_fallthru
        _
      // Predicated region
      $region29: #{encoder_forward.1} parent=11 // pred_check
        %p1192 = pneg %p236
      $region30: #{encoder_forward.1} parent=11 // pred_check_branch
        %1194 = sbr.rel (%p1192) target = $region32
      $region31: #{encoder_forward.1} parent=11 // pred_region
        _
      $region32: #{encoder_forward.1} parent=11 // pred_fallthru
        _
      // Predicated region
      $region33: #{encoder_forward.1} parent=11 // pred_check
        %p1195 = pneg %p257
      $region34: #{encoder_forward.1} parent=11 // pred_check_branch
        %1197 = sbr.rel (%p1195) target = $region36
      $region35: #{encoder_forward.1} parent=11 // pred_region
        _
      $region36: #{encoder_forward.1} parent=11 // pred_fallthru
        _
      // Predicated region
      $region37: #{encoder_forward.1} parent=11 // pred_check
        %p1198 = pneg %p278
      $region38: #{encoder_forward.1} parent=11 // pred_check_branch
        %1200 = sbr.rel (%p1198) target = $region40
      $region39: #{encoder_forward.1} parent=11 // pred_region
        _
      $region40: #{encoder_forward.1} parent=11 // pred_fallthru
        _
      // Predicated region
      $region41: #{encoder_forward.1} parent=11 // pred_check
        %p1201 = pneg %p299
      $region42: #{encoder_forward.1} parent=11 // pred_check_branch
        %1203 = sbr.rel (%p1201) target = $region44
      $region43: #{encoder_forward.1} parent=11 // pred_region
        _
      $region44: #{encoder_forward.1} parent=11 // pred_fallthru
        _
      // Predicated region
      $region45: #{encoder_forward.1} parent=11 // pred_check
        %p1204 = pneg %p320
      $region46: #{encoder_forward.1} parent=11 // pred_check_branch
        %1206 = sbr.rel (%p1204) target = $region48
      $region47: #{encoder_forward.1} parent=11 // pred_region
        _
      $region48: #{encoder_forward.1} parent=11 // pred_fallthru
        _
      // Predicated region
      $region49: #{encoder_forward.1} parent=11 // pred_check
        %p1207 = pneg %p341
      $region50: #{encoder_forward.1} parent=11 // pred_check_branch
        %1209 = sbr.rel (%p1207) target = $region52
      $region51: #{encoder_forward.1} parent=11 // pred_region
        _
      $region52: #{encoder_forward.1} parent=11 // pred_fallthru
        _
      // Predicated region
      $region53: #{encoder_forward.1} parent=11 // pred_check
        %p1210 = pneg %p362
      $region54: #{encoder_forward.1} parent=11 // pred_check_branch
        %1212 = sbr.rel (%p1210) target = $region56
      $region55: #{encoder_forward.1} parent=11 // pred_region
        _
      $region56: #{encoder_forward.1} parent=11 // pred_fallthru
        _
      // Predicated region
      $region57: #{encoder_forward.1} parent=11 // pred_check
        %p1213 = pneg %p383
      $region58: #{encoder_forward.1} parent=11 // pred_check_branch
        %1215 = sbr.rel (%p1213) target = $region60
      $region59: #{encoder_forward.1} parent=11 // pred_region
        _
      $region60: #{encoder_forward.1} parent=11 // pred_fallthru
        _
      // Predicated region
      $region61: #{encoder_forward.1} parent=11 // pred_check
        %p1216 = pneg %p404
      $region62: #{encoder_forward.1} parent=11 // pred_check_branch
        %1218 = sbr.rel (%p1216) target = $region64
      $region63: #{encoder_forward.1} parent=11 // pred_region
        _
      $region64: #{encoder_forward.1} parent=11 // pred_fallthru
        _
      // Predicated region
      $region65: #{encoder_forward.1} parent=11 // pred_check
        %p1219 = pneg %p425
      $region66: #{encoder_forward.1} parent=11 // pred_check_branch
        %1221 = sbr.rel (%p1219) target = $region68
      $region67: #{encoder_forward.1} parent=11 // pred_region
        _
      $region68: #{encoder_forward.1} parent=11 // pred_fallthru
        _
      // Predicated region
      $region69: #{encoder_forward.1} parent=11 // pred_check
        %p1222 = pneg %p446
      $region70: #{encoder_forward.1} parent=11 // pred_check_branch
        %1224 = sbr.rel (%p1222) target = $region72
      $region71: #{encoder_forward.1} parent=11 // pred_region
        _
      $region72: #{encoder_forward.1} parent=11 // pred_fallthru
        _
      // Predicated region
      $region73: #{encoder_forward.1} parent=11 // pred_check
        %p1225 = pneg %p467
      $region74: #{encoder_forward.1} parent=11 // pred_check_branch
        %1227 = sbr.rel (%p1225) target = $region76
      $region75: #{encoder_forward.1} parent=11 // pred_region
        _
      $region76: #{encoder_forward.1} parent=11 // pred_fallthru
        _
      // Predicated region
      $region77: #{encoder_forward.1} parent=11 // pred_check
        %p1228 = pneg %p488
      $region78: #{encoder_forward.1} parent=11 // pred_check_branch
        %1230 = sbr.rel (%p1228) target = $region80
      $region79: #{encoder_forward.1} parent=11 // pred_region
        _
      $region80: #{encoder_forward.1} parent=11 // pred_fallthru
        _
      // Predicated region
      $region81: #{encoder_forward.1} parent=11 // pred_check
        %p1231 = pneg %p509
      $region82: #{encoder_forward.1} parent=11 // pred_check_branch
        %1233 = sbr.rel (%p1231) target = $region84
      $region83: #{encoder_forward.1} parent=11 // pred_region
        _
      $region84: #{encoder_forward.1} parent=11 // pred_fallthru
        _
      // Predicated region
      $region85: #{encoder_forward.1} parent=11 // pred_check
        %p1234 = pneg %p530
      $region86: #{encoder_forward.1} parent=11 // pred_check_branch
        %1236 = sbr.rel (%p1234) target = $region88
      $region87: #{encoder_forward.1} parent=11 // pred_region
        _
      $region88: #{encoder_forward.1} parent=11 // pred_fallthru
        _
      // Predicated region
      $region89: #{encoder_forward.1} parent=11 // pred_check
        %p1237 = pneg %p551
      $region90: #{encoder_forward.1} parent=11 // pred_check_branch
        %1239 = sbr.rel (%p1237) target = $region92
      $region91: #{encoder_forward.1} parent=11 // pred_region
        _
      $region92: #{encoder_forward.1} parent=11 // pred_fallthru
        _
      // Predicated region
      $region93: #{encoder_forward.1} parent=11 // pred_check
        %p1240 = pneg %p572
      $region94: #{encoder_forward.1} parent=11 // pred_check_branch
        %1242 = sbr.rel (%p1240) target = $region96
      $region95: #{encoder_forward.1} parent=11 // pred_region
        _
      $region96: #{encoder_forward.1} parent=11 // pred_fallthru
        _
      // Predicated region
      $region97: #{encoder_forward.1} parent=11 // pred_check
        %p1243 = pneg %p593
      $region98: #{encoder_forward.1} parent=11 // pred_check_branch
        %1245 = sbr.rel (%p1243) target = $region100
      $region99: #{encoder_forward.1} parent=11 // pred_region
        _
      $region100: #{encoder_forward.1} parent=11 // pred_fallthru
        _
      // Predicated region
      $region101: #{encoder_forward.1} parent=11 // pred_check
        %p1246 = pneg %p614
      $region102: #{encoder_forward.1} parent=11 // pred_check_branch
        %1248 = sbr.rel (%p1246) target = $region104
      $region103: #{encoder_forward.1} parent=11 // pred_region
        _
      $region104: #{encoder_forward.1} parent=11 // pred_fallthru
        _
      // Predicated region
      $region105: #{encoder_forward.1} parent=11 // pred_check
        %p1249 = pneg %p635
      $region106: #{encoder_forward.1} parent=11 // pred_check_branch
        %1251 = sbr.rel (%p1249) target = $region108
      $region107: #{encoder_forward.1} parent=11 // pred_region
        _
      $region108: #{encoder_forward.1} parent=11 // pred_fallthru
        _
      // Predicated region
      $region109: #{encoder_forward.1} parent=11 // pred_check
        %p1252 = pneg %p656
      $region110: #{encoder_forward.1} parent=11 // pred_check_branch
        %1254 = sbr.rel (%p1252) target = $region112
      $region111: #{encoder_forward.1} parent=11 // pred_region
        _
      $region112: #{encoder_forward.1} parent=11 // pred_fallthru
        _
      // Predicated region
      $region113: #{encoder_forward.1} parent=11 // pred_check
        %p1255 = pneg %p677
      $region114: #{encoder_forward.1} parent=11 // pred_check_branch
        %1257 = sbr.rel (%p1255) target = $region116
      $region115: #{encoder_forward.1} parent=11 // pred_region
        _
      $region116: #{encoder_forward.1} parent=11 // pred_fallthru
        _
      // Predicated region
      $region117: #{encoder_forward.1} parent=11 // pred_check
        %p1258 = pneg %p698
      $region118: #{encoder_forward.1} parent=11 // pred_check_branch
        %1260 = sbr.rel (%p1258) target = $region120
      $region119: #{encoder_forward.1} parent=11 // pred_region
        _
      $region120: #{encoder_forward.1} parent=11 // pred_fallthru
        _
      // Predicated region
      $region121: #{encoder_forward.1} parent=11 // pred_check
        %p1261 = pneg %p719
      $region122: #{encoder_forward.1} parent=11 // pred_check_branch
        %1263 = sbr.rel (%p1261) target = $region124
      $region123: #{encoder_forward.1} parent=11 // pred_region
        _
      $region124: #{encoder_forward.1} parent=11 // pred_fallthru
        _
      // Predicated region
      $region125: #{encoder_forward.1} parent=11 // pred_check
        %p1264 = pneg %p740
      $region126: #{encoder_forward.1} parent=11 // pred_check_branch
        %1266 = sbr.rel (%p1264) target = $region128
      $region127: #{encoder_forward.1} parent=11 // pred_region
        _
      $region128: #{encoder_forward.1} parent=11 // pred_fallthru
        _
      // Predicated region
      $region129: #{encoder_forward.1} parent=11 // pred_check
        %p1267 = pneg %p761
      $region130: #{encoder_forward.1} parent=11 // pred_check_branch
        %1269 = sbr.rel (%p1267) target = $region132
      $region131: #{encoder_forward.1} parent=11 // pred_region
        _
      $region132: #{encoder_forward.1} parent=11 // pred_fallthru
        _
      // Predicated region
      $region133: #{encoder_forward.1} parent=11 // pred_check
        %p1270 = pneg %p782
      $region134: #{encoder_forward.1} parent=11 // pred_check_branch
        %1272 = sbr.rel (%p1270) target = $region136
      $region135: #{encoder_forward.1} parent=11 // pred_region
        _
      $region136: #{encoder_forward.1} parent=11 // pred_fallthru
        _
      // Predicated region
      $region137: #{encoder_forward.1} parent=11 // pred_check
        %p1273 = pneg %p803
      $region138: #{encoder_forward.1} parent=11 // pred_check_branch
        %1275 = sbr.rel (%p1273) target = $region140
      $region139: #{encoder_forward.1} parent=11 // pred_region
        _
      $region140: #{encoder_forward.1} parent=11 // pred_fallthru
        _
      // Predicated region
      $region141: #{encoder_forward.1} parent=11 // pred_check
        %p1276 = pneg %p824
      $region142: #{encoder_forward.1} parent=11 // pred_check_branch
        %1278 = sbr.rel (%p1276) target = $region144
      $region143: #{encoder_forward.1} parent=11 // pred_region
        _
      $region144: #{encoder_forward.1} parent=11 // pred_fallthru
        _
      // Predicated region
      $region145: #{encoder_forward.1} parent=11 // pred_check
        %p1279 = pneg %p845
      $region146: #{encoder_forward.1} parent=11 // pred_check_branch
        %1281 = sbr.rel (%p1279) target = $region148
      $region147: #{encoder_forward.1} parent=11 // pred_region
        _
      $region148: #{encoder_forward.1} parent=11 // pred_fallthru
        _
      // Predicated region
      $region149: #{encoder_forward.1} parent=11 // pred_check
        %p1282 = pneg %p866
      $region150: #{encoder_forward.1} parent=11 // pred_check_branch
        %1284 = sbr.rel (%p1282) target = $region152
      $region151: #{encoder_forward.1} parent=11 // pred_region
        _
      $region152: #{encoder_forward.1} parent=11 // pred_fallthru
        _
      // Predicated region
      $region153: #{encoder_forward.1} parent=11 // pred_check
        %p1285 = pneg %p887
      $region154: #{encoder_forward.1} parent=11 // pred_check_branch
        %1287 = sbr.rel (%p1285) target = $region156
      $region155: #{encoder_forward.1} parent=11 // pred_region
        _
      $region156: #{encoder_forward.1} parent=11 // pred_fallthru
        _
      // Predicated region
      $region157: #{encoder_forward.1} parent=11 // pred_check
        %p1288 = pneg %p908
      $region158: #{encoder_forward.1} parent=11 // pred_check_branch
        %1290 = sbr.rel (%p1288) target = $region160
      $region159: #{encoder_forward.1} parent=11 // pred_region
        _
      $region160: #{encoder_forward.1} parent=11 // pred_fallthru
        _
      // Predicated region
      $region161: #{encoder_forward.1} parent=11 // pred_check
        %p1291 = pneg %p929
      $region162: #{encoder_forward.1} parent=11 // pred_check_branch
        %1293 = sbr.rel (%p1291) target = $region164
      $region163: #{encoder_forward.1} parent=11 // pred_region
        _
      $region164: #{encoder_forward.1} parent=11 // pred_fallthru
        _
      // Predicated region
      $region165: #{encoder_forward.1} parent=11 // pred_check
        %p1294 = pneg %p950
      $region166: #{encoder_forward.1} parent=11 // pred_check_branch
        %1296 = sbr.rel (%p1294) target = $region168
      $region167: #{encoder_forward.1} parent=11 // pred_region
        _
      $region168: #{encoder_forward.1} parent=11 // pred_fallthru
        _
      // Predicated region
      $region169: #{encoder_forward.1} parent=11 // pred_check
        %p1297 = pneg %p971
      $region170: #{encoder_forward.1} parent=11 // pred_check_branch
        %1299 = sbr.rel (%p1297) target = $region172
      $region171: #{encoder_forward.1} parent=11 // pred_region
        _
      $region172: #{encoder_forward.1} parent=11 // pred_fallthru
        _
      // Predicated region
      $region173: #{encoder_forward.1} parent=11 // pred_check
        %p1300 = pneg %p992
      $region174: #{encoder_forward.1} parent=11 // pred_check_branch
        %1302 = sbr.rel (%p1300) target = $region176
      $region175: #{encoder_forward.1} parent=11 // pred_region
        _
      $region176: #{encoder_forward.1} parent=11 // pred_fallthru
        _
      // Predicated region
      $region177: #{encoder_forward.1} parent=11 // pred_check
        %p1303 = pneg %p1013
      $region178: #{encoder_forward.1} parent=11 // pred_check_branch
        %1305 = sbr.rel (%p1303) target = $region180
      $region179: #{encoder_forward.1} parent=11 // pred_region
        _
      $region180: #{encoder_forward.1} parent=11 // pred_fallthru
        _
      // Predicated region
      $region181: #{encoder_forward.1} parent=11 // pred_check
        %p1306 = pneg %p1034
      $region182: #{encoder_forward.1} parent=11 // pred_check_branch
        %1308 = sbr.rel (%p1306) target = $region184
      $region183: #{encoder_forward.1} parent=11 // pred_region
        _
      $region184: #{encoder_forward.1} parent=11 // pred_fallthru
        _
      // Predicated region
      $region185: #{encoder_forward.1} parent=11 // pred_check
        %p1309 = pneg %p1055
      $region186: #{encoder_forward.1} parent=11 // pred_check_branch
        %1311 = sbr.rel (%p1309) target = $region188
      $region187: #{encoder_forward.1} parent=11 // pred_region
        _
      $region188: #{encoder_forward.1} parent=11 // pred_fallthru
        _
      // Predicated region
      $region189: #{encoder_forward.1} parent=11 // pred_check
        %p1312 = pneg %p1076
      $region190: #{encoder_forward.1} parent=11 // pred_check_branch
        %1314 = sbr.rel (%p1312) target = $region192
      $region191: #{encoder_forward.1} parent=11 // pred_region
        _
      $region192: #{encoder_forward.1} parent=11 // pred_fallthru
        _
      // Predicated region
      $region193: #{encoder_forward.1} parent=11 // pred_check
        %p1315 = pneg %p1097
      $region194: #{encoder_forward.1} parent=11 // pred_check_branch
        %1317 = sbr.rel (%p1315) target = $region196
      $region195: #{encoder_forward.1} parent=11 // pred_region
        _
      $region196: #{encoder_forward.1} parent=11 // pred_fallthru
        _
      // Predicated region
      $region197: #{encoder_forward.1} parent=11 // pred_check
        %p1318 = pneg %p1118
      $region198: #{encoder_forward.1} parent=11 // pred_check_branch
        %1320 = sbr.rel (%p1318) target = $region200
      $region199: #{encoder_forward.1} parent=11 // pred_region
        _
      $region200: #{encoder_forward.1} parent=11 // pred_fallthru
        _
      // Predicated region
      $region201: #{encoder_forward.1} parent=11 // pred_check
        %p1321 = pneg %p1139
      $region202: #{encoder_forward.1} parent=11 // pred_check_branch
        %1323 = sbr.rel (%p1321) target = $region204
      $region203: #{encoder_forward.1} parent=11 // pred_region
        _
      $region204: #{encoder_forward.1} parent=11 // pred_fallthru
        _
    $region12: #{encoder_forward.1} parent=5 // pred_fallthru
      _
    %p1324 = scmp.lt.s32.totalorder %s105, 2
    // Predicated region
    $region205: #{encoder_forward.1} parent=5 // pred_check
      %p1325 = pneg %p1324
    $region206: #{encoder_forward.1} parent=5 // pred_check_branch
      %1327 = sbr.rel (%p1325) target = $region208
    $region207: #{encoder_forward.1} parent=5 // pred_region
      // Predicated region
      $region209: #{encoder_forward.1} parent=207 // pred_check
        %p1328 = pneg %p125
      $region210: #{encoder_forward.1} parent=207 // pred_check_branch
        %1330 = sbr.rel (%p1328) target = $region212
      $region211: #{encoder_forward.1} parent=207 // pred_region
        %p1331 = scmp.lt.s32.totalorder %s105, 1
        %s1332 = scalar_select %p1331, %s105, 1
        %s1333 = smul.addr %s1332, 4
        %s1334 = smul.addr %s1333, 4
        %s1335 = scalar_lea.vmem %s1, %s1334
      $region212: #{encoder_forward.1} parent=207 // pred_fallthru
        _
    $region208: #{encoder_forward.1} parent=5 // pred_fallthru
      _
    %p1336 = scmp.le.s32.totalorder 1, %s105
    %p1337 = scmp.lt.s32.totalorder %s105, 3
    %p1338 = pnand %p1336, %p1337
    %p1339 = pneg %p1338
    // Predicated region
    $region213: #{encoder_forward.1} parent=5 // pred_check
      _
    $region214: #{encoder_forward.1} parent=5 // pred_check_branch
      %1341 = sbr.rel (%p1338) target = $region216
    $region215: #{encoder_forward.1} parent=5 // pred_region
      %s1342 = ssub.s32 %s105, 1
      %p1343 = scmp.lt.s32.totalorder %s110, 1
      %s1344 = scalar_select %p1343, %s110, 1
      %s1345 = smul.addr %s1344, 4
      %s1346 = smul.addr %s1345, 4
      %s1347 = scalar_lea.vmem %s1, %s1346
      %p1348 = pneg %p131
      %p1349 = pneg %p128
      %p1350 = pneg %p152
      %p1351 = pneg %p149
      %p1352 = pneg %p173
      %p1353 = pneg %p170
      %p1354 = pneg %p194
      %p1355 = pneg %p191
      %p1356 = pneg %p215
      %p1357 = pneg %p212
      %p1358 = pneg %p236
      %p1359 = pneg %p233
      %p1360 = pneg %p257
      %p1361 = pneg %p254
      %p1362 = pneg %p278
      %p1363 = pneg %p275
      %p1364 = pneg %p299
      %p1365 = pneg %p296
      %p1366 = pneg %p320
      %p1367 = pneg %p317
      %p1368 = pneg %p341
      %p1369 = pneg %p338
      %p1370 = pneg %p362
      %p1371 = pneg %p359
      %p1372 = pneg %p383
      %p1373 = pneg %p380
      %p1374 = pneg %p404
      %p1375 = pneg %p401
      %p1376 = pneg %p425
      %p1377 = pneg %p422
      %p1378 = pneg %p446
      %p1379 = pneg %p443
      %p1380 = pneg %p467
      %p1381 = pneg %p464
      %p1382 = pneg %p488
      %p1383 = pneg %p485
      %p1384 = pneg %p509
      %p1385 = pneg %p506
      %p1386 = pneg %p530
      %p1387 = pneg %p527
      %p1388 = pneg %p551
      %p1389 = pneg %p548
      %p1390 = pneg %p572
      %p1391 = pneg %p569
      %p1392 = pneg %p593
      %p1393 = pneg %p590
      %p1394 = pneg %p614
      %p1395 = pneg %p611
      %p1396 = pneg %p635
      %p1397 = pneg %p632
      %p1398 = pneg %p656
      %p1399 = pneg %p653
      %p1400 = pneg %p677
      %p1401 = pneg %p674
      %p1402 = pneg %p698
      %p1403 = pneg %p695
      %p1404 = pneg %p719
      %p1405 = pneg %p716
      %p1406 = pneg %p740
      %p1407 = pneg %p737
      %p1408 = pneg %p761
      %p1409 = pneg %p758
      %p1410 = pneg %p782
      %p1411 = pneg %p779
      %p1412 = pneg %p803
      %p1413 = pneg %p800
      %p1414 = pneg %p824
      %p1415 = pneg %p821
      %p1416 = pneg %p845
      %p1417 = pneg %p842
      %p1418 = pneg %p866
      %p1419 = pneg %p863
      %p1420 = pneg %p887
      %p1421 = pneg %p884
      %p1422 = pneg %p908
      %p1423 = pneg %p905
      %p1424 = pneg %p929
      %p1425 = pneg %p926
      %p1426 = pneg %p950
      %p1427 = pneg %p947
      %p1428 = pneg %p971
      %p1429 = pneg %p968
      %p1430 = pneg %p992
      %p1431 = pneg %p989
      %p1432 = pneg %p1013
      %p1433 = pneg %p1010
      %p1434 = pneg %p1034
      %p1435 = pneg %p1031
      %p1436 = pneg %p1055
      %p1437 = pneg %p1052
      %p1438 = pneg %p1076
      %p1439 = pneg %p1073
      %p1440 = pneg %p1097
      %p1441 = pneg %p1094
      %p1442 = pneg %p1118
      %p1443 = pneg %p1115
      %p1444 = pneg %p1139
      %p1445 = pneg %p1136
      %p1446 = pneg %p1165
      %p1447 = pneg %p1162
      %p1448 = scmp.lt.s32.totalorder %s110, 1
      %s1449 = scalar_select %p1448, %s110, 1
      %s1450 = smul.addr %s1449, 2
      %s1451 = scalar_lea.vmem %s99, %s1450
      %p1452 = scmp.lt.s32.totalorder %s110, 1
      %s1453 = scalar_select %p1452, %s110, 1
      %s1454 = smul.addr %s1453, 4
      %s1455 = smul.addr %s1454, 4
      %s1456 = scalar_lea.vmem %s1, %s1455
      %p1457 = scmp.lt.s32.totalorder %s110, 1
      %s1458 = scalar_select %p1457, %s110, 1
      %s1459 = smul.addr %s1458, 2
      %s1460 = scalar_lea.vmem %s99, %s1459
      %v1462 = vld [vmem:[%s1456] sm:$0xf]
      %v1463 = vld [vmem:[%s1456 + $0x4] sm:$0xf]
      %v1464 = vld [vmem:[%s1456 + $0x8] sm:$0xf]
      %v1465 = vld [vmem:[%s1456 + $0xc] sm:$0xf]
      %v1466 = vld [vmem:[%s3] sm:$0xf]
      %v1467 = vld [vmem:[%s3 + $0x4] sm:$0xf]
      %v1468 = vld [vmem:[%s3 + $0x8] sm:$0xf]
      %v1469 = vld [vmem:[%s3 + $0xc] sm:$0xf]
      %v1470 = vld [vmem:[%s3 + $0x10] sm:$0xf]
      %v1471 = vld [vmem:[%s3 + $0x14] sm:$0xf]
      %v1478 = vunpack.c.l.b16 %v1466
      %v1479 = vunpack.c.l.b16 %v1467
      %v1480 = vunpack.c.l.b16 %v1468
      %v1481 = vunpack.c.l.b16 %v1469
      %v1482 = vunpack.c.l.b16 %v1470
      %v1483 = vunpack.c.l.b16 %v1471
      %v1484 = vpack.c.b16 %v1479, %v1478
      %v1485 = vpack.c.b16 %v1481, %v1480
      %v1486 = vpack.c.b16 %v1483, %v1482
      %v1491 = vunpack.c.l.b16 %v1462
      %v1492 = vunpack.c.l.b16 %v1463
      %v1493 = vunpack.c.l.b16 %v1464
      %v1494 = vunpack.c.l.b16 %v1465
      %v1495 = vpack.c.b16 %v1492, %v1491
      %v1496 = vpack.c.b16 %v1494, %v1493
      %vm1499 = vcmask 261120
      %v1501 = vsel %vm1499, %v1484, 0
      %v1504 = vsel %vm1499, %v1485, 0
      %v1507 = vsel %vm1499, %v1486, 0
      %1509 = vmatprep.subr.bf16.mxu0 0
      %1510 = vmatpush1.bf16.msra.mxu0 0
      %1511 = vmatprep.subr.bf16.mxu0 0
      %1512 = vmatpush1.bf16.msra.mxu0 0
      %1513 = vmatprep.subr.bf16.mxu0 0
      %1514 = vmatpush1.bf16.msra.mxu0 0
      %1515 = vmatprep.subr.bf16.mxu0 0
      %1516 = vmatpush1.bf16.msra.mxu0 0
      %1517 = vmatprep.subr.bf16.mxu0 0
      %1518 = vmatpush1.bf16.msra.mxu0 0
      %1519 = vmatprep.subr.bf16.mxu0 0
      %1520 = vmatpush1.bf16.msra.mxu0 0
      %1521 = vmatprep.subr.bf16.mxu0 0
      %1522 = vmatpush1.bf16.msra.mxu0 %v1496
      %1523 = vmatprep.subr.bf16.mxu0 0
      %1524 = vmatpush1.bf16.msra.mxu0 %v1495
      %1525 = vmatprep.subr.bf16.mxu0 0
      %1526 = vmatpush2.bf16.msra.mxu0 0
      %1527 = vmatprep.subr.bf16.mxu0 0
      %1528 = vmatpush2.bf16.msra.mxu0 0
      %1529 = vmatprep.subr.bf16.mxu0 0
      %1530 = vmatpush2.bf16.msra.mxu0 0
      %1531 = vmatprep.subr.bf16.mxu0 0
      %1532 = vmatpush2.bf16.msra.mxu0 0
      %1533 = vmatprep.subr.bf16.mxu0 0
      %1534 = vmatpush2.bf16.msra.mxu0 0
      %1535 = vmatprep.subr.bf16.mxu0 0
      %1536 = vmatpush2.bf16.msra.mxu0 0
      %1537 = vmatprep.subr.bf16.mxu0 0
      %1538 = vmatpush2.bf16.msra.mxu0 0
      %1539 = vmatprep.subr.bf16.mxu0 0
      %1540 = vmatpush2.bf16.msra.mxu0 0
      %1541 = vmatprep.mubr.bf16.mxu0 0
      %1542 = vmatmul.mubr.bf16.gmra.mxu0 %v1501
      %v1543 = vpop.f32.mrf.mxu0
      %v1544 = vadd.f32 0.0, %v1543
      %v1545 = vpop.f32.mrf.mxu0
      %v1546 = vpop.f32.mrf.mxu0
      %v1547 = vadd.f32 0.0, %v1546
      %v1548 = vpop.f32.mrf.mxu0
      %1549 = vmatprep.mubr.bf16.mxu0 0
      %1550 = vmatmul.mubr.bf16.gmra.mxu0 %v1504
      %v1551 = vpop.f32.mrf.mxu0
      %v1552 = vadd.f32 0.0, %v1551
      %v1553 = vpop.f32.mrf.mxu0
      %v1554 = vpop.f32.mrf.mxu0
      %v1555 = vadd.f32 0.0, %v1554
      %v1556 = vpop.f32.mrf.mxu0
      %1557 = vmatprep.mubr.bf16.mxu0 0
      %1558 = vmatmul.mubr.bf16.gmra.mxu0 %v1507
      %v1559 = vpop.f32.mrf.mxu0
      %v1560 = vadd.f32 0.0, %v1559
      %v1561 = vpop.f32.mrf.mxu0
      %v1562 = vpop.f32.mrf.mxu0
      %v1563 = vadd.f32 0.0, %v1562
      %v1564 = vpop.f32.mrf.mxu0
      %1565 = vdwg.mxu0
      %v1566 = vpack.c.bf16 %v1547, %v1544
      %v1567 = vpack.c.bf16 %v1555, %v1552
      %v1568 = vpack.c.bf16 %v1563, %v1560
      %v1569 = vld [vmem:[%s5] sm:$0xf]
      %v1570 = vld [vmem:[%s5 + $0x4] sm:$0xf]
      %v1571 = vld [vmem:[%s5 + $0x8] sm:$0xf]
      %v1572 = vld [vmem:[%s5 + $0xc] sm:$0xf]
      %v1573 = vld [vmem:[%s5 + $0x10] sm:$0xf]
      %v1574 = vld [vmem:[%s5 + $0x14] sm:$0xf]
      %v1575 = vld [vmem:[%s5 + $0x18] sm:$0xf]
      %v1576 = vld [vmem:[%s5 + $0x1c] sm:$0xf]
      %v1577 = vld [vmem:[%s5 + $0x20] sm:$0xf]
      %v1578 = vld [vmem:[%s5 + $0x24] sm:$0xf]
      %v1579 = vld [vmem:[%s5 + $0x28] sm:$0xf]
      %v1580 = vld [vmem:[%s5 + $0x2c] sm:$0xf]
      %v1581 = vld [vmem:[%s5 + $0x30] sm:$0xf]
      %v1582 = vld [vmem:[%s5 + $0x34] sm:$0xf]
      %v1583 = vld [vmem:[%s5 + $0x38] sm:$0xf]
      %v1584 = vld [vmem:[%s5 + $0x3c] sm:$0xf]
      %v1585 = vld [vmem:[%s5 + $0x40] sm:$0xf]
      %v1586 = vld [vmem:[%s5 + $0x44] sm:$0xf]
      %v1587 = vld [vmem:[%s5 + $0x48] sm:$0xf]
      %v1588 = vld [vmem:[%s5 + $0x4c] sm:$0xf]
      %v1589 = vld [vmem:[%s5 + $0x50] sm:$0xf]
      %v1590 = vld [vmem:[%s5 + $0x54] sm:$0xf]
      %v1591 = vld [vmem:[%s5 + $0x58] sm:$0xf]
      %v1592 = vld [vmem:[%s5 + $0x5c] sm:$0xf]
      %v1593 = vld [vmem:[%s5 + $0x60] sm:$0xf]
      %v1594 = vld [vmem:[%s5 + $0x64] sm:$0xf]
      %v1595 = vld [vmem:[%s5 + $0x68] sm:$0xf]
      %v1596 = vld [vmem:[%s5 + $0x6c] sm:$0xf]
      %v1597 = vld [vmem:[%s5 + $0x70] sm:$0xf]
      %v1598 = vld [vmem:[%s5 + $0x74] sm:$0xf]
      %v1599 = vld [vmem:[%s5 + $0x78] sm:$0xf]
      %v1600 = vld [vmem:[%s5 + $0x7c] sm:$0xf]
      %v1617 = vunpack.c.l.b16 %v1585
      %v1618 = vunpack.c.l.b16 %v1586
      %v1619 = vunpack.c.l.b16 %v1587
      %v1620 = vunpack.c.l.b16 %v1588
      %v1621 = vunpack.c.l.b16 %v1589
      %v1622 = vunpack.c.l.b16 %v1590
      %v1623 = vunpack.c.l.b16 %v1591
      %v1624 = vunpack.c.l.b16 %v1592
      %v1625 = vunpack.c.l.b16 %v1593
      %v1626 = vunpack.c.l.b16 %v1594
      %v1627 = vunpack.c.l.b16 %v1595
      %v1628 = vunpack.c.l.b16 %v1596
      %v1629 = vunpack.c.l.b16 %v1597
      %v1630 = vunpack.c.l.b16 %v1598
      %v1631 = vunpack.c.l.b16 %v1599
      %v1632 = vunpack.c.l.b16 %v1600
      %v1633 = vpack.c.b16 %v1618, %v1617
      %v1634 = vpack.c.b16 %v1620, %v1619
      %v1635 = vpack.c.b16 %v1622, %v1621
      %v1636 = vpack.c.b16 %v1624, %v1623
      %v1637 = vpack.c.b16 %v1626, %v1625
      %v1638 = vpack.c.b16 %v1628, %v1627
      %v1639 = vpack.c.b16 %v1630, %v1629
      %v1640 = vpack.c.b16 %v1632, %v1631
      %1649 = vmatprep.subr.bf16.mxu0 0
      %1650 = vmatpush1.bf16.msra.mxu0 %v1640
      %1651 = vmatprep.subr.bf16.mxu0 0
      %1652 = vmatpush1.bf16.msra.mxu0 %v1639
      %1653 = vmatprep.subr.bf16.mxu0 0
      %1654 = vmatpush1.bf16.msra.mxu0 %v1638
      %1655 = vmatprep.subr.bf16.mxu0 0
      %1656 = vmatpush1.bf16.msra.mxu0 %v1637
      %1657 = vmatprep.subr.bf16.mxu0 0
      %1658 = vmatpush1.bf16.msra.mxu0 %v1636
      %1659 = vmatprep.subr.bf16.mxu0 0
      %1660 = vmatpush1.bf16.msra.mxu0 %v1635
      %1661 = vmatprep.subr.bf16.mxu0 0
      %1662 = vmatpush1.bf16.msra.mxu0 %v1634
      %1663 = vmatprep.subr.bf16.mxu0 0
      %1664 = vmatpush1.bf16.msra.mxu0 %v1633
      %1665 = vmatprep.subr.bf16.mxu0 0
      %1666 = vmatpush2.bf16.msra.mxu0 0
      %1667 = vmatprep.subr.bf16.mxu0 0
      %1668 = vmatpush2.bf16.msra.mxu0 0
      %1669 = vmatprep.subr.bf16.mxu0 0
      %1670 = vmatpush2.bf16.msra.mxu0 0
      %1671 = vmatprep.subr.bf16.mxu0 0
      %1672 = vmatpush2.bf16.msra.mxu0 0
      %1673 = vmatprep.subr.bf16.mxu0 0
      %1674 = vmatpush2.bf16.msra.mxu0 0
      %1675 = vmatprep.subr.bf16.mxu0 0
      %1676 = vmatpush2.bf16.msra.mxu0 0
      %1677 = vmatprep.subr.bf16.mxu0 0
      %1678 = vmatpush2.bf16.msra.mxu0 0
      %1679 = vmatprep.subr.bf16.mxu0 0
      %1680 = vmatpush2.bf16.msra.mxu0 0
      %1681 = vmatprep.mubr.bf16.mxu0 0
      %1682 = vmatmul.mubr.bf16.gmra.mxu0 %v1567
      %v1683 = vpop.f32.mrf.mxu0
      %v1684 = vadd.f32 0.0, %v1683
      %v1685 = vpop.f32.mrf.mxu0
      %v1686 = vpop.f32.mrf.mxu0
      %v1687 = vadd.f32 0.0, %v1686
      %v1688 = vpop.f32.mrf.mxu0
      %1689 = vdwg.mxu0
      %v1706 = vunpack.c.l.b16 %v1569
      %v1707 = vunpack.c.l.b16 %v1570
      %v1708 = vunpack.c.l.b16 %v1571
      %v1709 = vunpack.c.l.b16 %v1572
      %v1710 = vunpack.c.l.b16 %v1573
      %v1711 = vunpack.c.l.b16 %v1574
      %v1712 = vunpack.c.l.b16 %v1575
      %v1713 = vunpack.c.l.b16 %v1576
      %v1714 = vunpack.c.l.b16 %v1577
      %v1715 = vunpack.c.l.b16 %v1578
      %v1716 = vunpack.c.l.b16 %v1579
      %v1717 = vunpack.c.l.b16 %v1580
      %v1718 = vunpack.c.l.b16 %v1581
      %v1719 = vunpack.c.l.b16 %v1582
      %v1720 = vunpack.c.l.b16 %v1583
      %v1721 = vunpack.c.l.b16 %v1584
      %v1722 = vpack.c.b16 %v1707, %v1706
      %v1723 = vpack.c.b16 %v1709, %v1708
      %v1724 = vpack.c.b16 %v1711, %v1710
      %v1725 = vpack.c.b16 %v1713, %v1712
      %v1726 = vpack.c.b16 %v1715, %v1714
      %v1727 = vpack.c.b16 %v1717, %v1716
      %v1728 = vpack.c.b16 %v1719, %v1718
      %v1729 = vpack.c.b16 %v1721, %v1720
      %1738 = vmatprep.subr.bf16.mxu0 0
      %1739 = vmatpush1.bf16.msra.mxu0 %v1729
      %1740 = vmatprep.subr.bf16.mxu0 0
      %1741 = vmatpush1.bf16.msra.mxu0 %v1728
      %1742 = vmatprep.subr.bf16.mxu0 0
      %1743 = vmatpush1.bf16.msra.mxu0 %v1727
      %1744 = vmatprep.subr.bf16.mxu0 0
      %1745 = vmatpush1.bf16.msra.mxu0 %v1726
      %1746 = vmatprep.subr.bf16.mxu0 0
      %1747 = vmatpush1.bf16.msra.mxu0 %v1725
      %1748 = vmatprep.subr.bf16.mxu0 0
      %1749 = vmatpush1.bf16.msra.mxu0 %v1724
      %1750 = vmatprep.subr.bf16.mxu0 0
      %1751 = vmatpush1.bf16.msra.mxu0 %v1723
      %1752 = vmatprep.subr.bf16.mxu0 0
      %1753 = vmatpush1.bf16.msra.mxu0 %v1722
      %1754 = vmatprep.subr.bf16.mxu0 0
      %1755 = vmatpush2.bf16.msra.mxu0 0
      %1756 = vmatprep.subr.bf16.mxu0 0
      %1757 = vmatpush2.bf16.msra.mxu0 0
      %1758 = vmatprep.subr.bf16.mxu0 0
      %1759 = vmatpush2.bf16.msra.mxu0 0
      %1760 = vmatprep.subr.bf16.mxu0 0
      %1761 = vmatpush2.bf16.msra.mxu0 0
      %1762 = vmatprep.subr.bf16.mxu0 0
      %1763 = vmatpush2.bf16.msra.mxu0 0
      %1764 = vmatprep.subr.bf16.mxu0 0
      %1765 = vmatpush2.bf16.msra.mxu0 0
      %1766 = vmatprep.subr.bf16.mxu0 0
      %1767 = vmatpush2.bf16.msra.mxu0 0
      %1768 = vmatprep.subr.bf16.mxu0 0
      %1769 = vmatpush2.bf16.msra.mxu0 0
      %1770 = vmatprep.mubr.bf16.mxu0 0
      %1771 = vmatmul.mubr.bf16.gmra.mxu0 %v1566
      %v1772 = vpop.f32.mrf.mxu0
      %v1773 = vadd.f32 %v1684, %v1772
      %v1774 = vpop.f32.mrf.mxu0
      %v1775 = vpop.f32.mrf.mxu0
      %v1776 = vadd.f32 %v1687, %v1775
      %v1777 = vpop.f32.mrf.mxu0
      %1778 = vdwg.mxu0
      %v1779 = vld [vmem:[%s5 + $0x80] sm:$0xf]
      %v1780 = vld [vmem:[%s5 + $0x84] sm:$0xf]
      %v1781 = vld [vmem:[%s5 + $0x88] sm:$0xf]
      %v1782 = vld [vmem:[%s5 + $0x8c] sm:$0xf]
      %v1783 = vld [vmem:[%s5 + $0x90] sm:$0xf]
      %v1784 = vld [vmem:[%s5 + $0x94] sm:$0xf]
      %v1785 = vld [vmem:[%s5 + $0x98] sm:$0xf]
      %v1786 = vld [vmem:[%s5 + $0x9c] sm:$0xf]
      %v1787 = vld [vmem:[%s5 + $0xa0] sm:$0xf]
      %v1788 = vld [vmem:[%s5 + $0xa4] sm:$0xf]
      %v1789 = vld [vmem:[%s5 + $0xa8] sm:$0xf]
      %v1790 = vld [vmem:[%s5 + $0xac] sm:$0xf]
      %v1791 = vld [vmem:[%s5 + $0xb0] sm:$0xf]
      %v1792 = vld [vmem:[%s5 + $0xb4] sm:$0xf]
      %v1793 = vld [vmem:[%s5 + $0xb8] sm:$0xf]
      %v1794 = vld [vmem:[%s5 + $0xbc] sm:$0xf]
      %v1811 = vunpack.c.l.b16 %v1779
      %v1812 = vunpack.c.l.b16 %v1780
      %v1813 = vunpack.c.l.b16 %v1781
      %v1814 = vunpack.c.l.b16 %v1782
      %v1815 = vunpack.c.l.b16 %v1783
      %v1816 = vunpack.c.l.b16 %v1784
      %v1817 = vunpack.c.l.b16 %v1785
      %v1818 = vunpack.c.l.b16 %v1786
      %v1819 = vunpack.c.l.b16 %v1787
      %v1820 = vunpack.c.l.b16 %v1788
      %v1821 = vunpack.c.l.b16 %v1789
      %v1822 = vunpack.c.l.b16 %v1790
      %v1823 = vunpack.c.l.b16 %v1791
      %v1824 = vunpack.c.l.b16 %v1792
      %v1825 = vunpack.c.l.b16 %v1793
      %v1826 = vunpack.c.l.b16 %v1794
      %v1827 = vpack.c.b16 %v1812, %v1811
      %v1828 = vpack.c.b16 %v1814, %v1813
      %v1829 = vpack.c.b16 %v1816, %v1815
      %v1830 = vpack.c.b16 %v1818, %v1817
      %v1831 = vpack.c.b16 %v1820, %v1819
      %v1832 = vpack.c.b16 %v1822, %v1821
      %v1833 = vpack.c.b16 %v1824, %v1823
      %v1834 = vpack.c.b16 %v1826, %v1825
      %1843 = vmatprep.subr.bf16.mxu0 0
      %1844 = vmatpush1.bf16.msra.mxu0 %v1834
      %1845 = vmatprep.subr.bf16.mxu0 0
      %1846 = vmatpush1.bf16.msra.mxu0 %v1833
      %1847 = vmatprep.subr.bf16.mxu0 0
      %1848 = vmatpush1.bf16.msra.mxu0 %v1832
      %1849 = vmatprep.subr.bf16.mxu0 0
      %1850 = vmatpush1.bf16.msra.mxu0 %v1831
      %1851 = vmatprep.subr.bf16.mxu0 0
      %1852 = vmatpush1.bf16.msra.mxu0 %v1830
      %1853 = vmatprep.subr.bf16.mxu0 0
      %1854 = vmatpush1.bf16.msra.mxu0 %v1829
      %1855 = vmatprep.subr.bf16.mxu0 0
      %1856 = vmatpush1.bf16.msra.mxu0 %v1828
      %1857 = vmatprep.subr.bf16.mxu0 0
      %1858 = vmatpush1.bf16.msra.mxu0 %v1827
      %1859 = vmatprep.subr.bf16.mxu0 0
      %1860 = vmatpush2.bf16.msra.mxu0 0
      %1861 = vmatprep.subr.bf16.mxu0 0
      %1862 = vmatpush2.bf16.msra.mxu0 0
      %1863 = vmatprep.subr.bf16.mxu0 0
      %1864 = vmatpush2.bf16.msra.mxu0 0
      %1865 = vmatprep.subr.bf16.mxu0 0
      %1866 = vmatpush2.bf16.msra.mxu0 0
      %1867 = vmatprep.subr.bf16.mxu0 0
      %1868 = vmatpush2.bf16.msra.mxu0 0
      %1869 = vmatprep.subr.bf16.mxu0 0
      %1870 = vmatpush2.bf16.msra.mxu0 0
      %1871 = vmatprep.subr.bf16.mxu0 0
      %1872 = vmatpush2.bf16.msra.mxu0 0
      %1873 = vmatprep.subr.bf16.mxu0 0
      %1874 = vmatpush2.bf16.msra.mxu0 0
      %1875 = vmatprep.mubr.bf16.mxu0 0
      %1876 = vmatmul.mubr.bf16.gmra.mxu0 %v1568
      %v1877 = vpop.f32.mrf.mxu0
      %v1878 = vadd.f32 0.0, %v1877
      %v1879 = vpop.f32.mrf.mxu0
      %v1880 = vpop.f32.mrf.mxu0
      %v1881 = vadd.f32 0.0, %v1880
      %v1882 = vpop.f32.mrf.mxu0
      %1883 = vdwg.mxu0
      %v1884 = vadd.f32 %v1773, %v1878
      %v1885 = vadd.f32 %v1776, %v1881
      %v1886 = vld [vmem:[%s7] sm:$0x1]
      %v1888 = vlaneseq
      %v1889 = vshrl.u32 %v1888, 7
      %v1890 = vsub.s32 0, %v1889
      %v1891 = vrot.slane %v1886, %v1890
      %v1893 = vadd.f32 %v1884, %v1891
      %v1894 = vadd.f32 %v1885, %v1891
      %v1895 = vmax.f32 %v1893, 0.0
      %v1896 = vmax.f32 %v1894, 0.0
      %v1897 = vpack.c.bf16 %v1896, %v1895
      %v1898 = vld [vmem:[%s9] sm:$0xf]
      %v1899 = vld [vmem:[%s9 + $0x4] sm:$0xf]
      %v1900 = vld [vmem:[%s9 + $0x8] sm:$0xf]
      %v1901 = vld [vmem:[%s9 + $0xc] sm:$0xf]
      %v1902 = vld [vmem:[%s9 + $0x10] sm:$0xf]
      %v1903 = vld [vmem:[%s9 + $0x14] sm:$0xf]
      %v1910 = vunpack.c.l.b16 %v1898
      %v1911 = vunpack.c.l.b16 %v1899
      %v1912 = vunpack.c.l.b16 %v1900
      %v1913 = vunpack.c.l.b16 %v1901
      %v1914 = vunpack.c.l.b16 %v1902
      %v1915 = vunpack.c.l.b16 %v1903
      %v1916 = vpack.c.b16 %v1911, %v1910
      %v1917 = vpack.c.b16 %v1913, %v1912
      %v1918 = vpack.c.b16 %v1915, %v1914
      %vm1919 = vcmask 130048
      %v1921 = vsel %vm1919, %v1916, 0
      %v1924 = vsel %vm1919, %v1917, 0
      %v1927 = vsel %vm1919, %v1918, 0
      %1929 = vmatprep.subr.bf16.mxu0 0
      %1930 = vmatpush1.bf16.msra.mxu0 0
      %1931 = vmatprep.subr.bf16.mxu0 0
      %1932 = vmatpush1.bf16.msra.mxu0 0
      %1933 = vmatprep.subr.bf16.mxu0 0
      %1934 = vmatpush1.bf16.msra.mxu0 0
      %1935 = vmatprep.subr.bf16.mxu0 0
      %1936 = vmatpush1.bf16.msra.mxu0 0
      %1937 = vmatprep.subr.bf16.mxu0 0
      %1938 = vmatpush1.bf16.msra.mxu0 0
      %1939 = vmatprep.subr.bf16.mxu0 0
      %1940 = vmatpush1.bf16.msra.mxu0 0
      %1941 = vmatprep.subr.bf16.mxu0 0
      %1942 = vmatpush1.bf16.msra.mxu0 0
      %1943 = vmatprep.subr.bf16.mxu0 0
      %1944 = vmatpush1.bf16.msra.mxu0 %v1897
      %1945 = vmatprep.subr.bf16.mxu0 0
      %1946 = vmatpush2.bf16.msra.mxu0 0
      %1947 = vmatprep.subr.bf16.mxu0 0
      %1948 = vmatpush2.bf16.msra.mxu0 0
      %1949 = vmatprep.subr.bf16.mxu0 0
      %1950 = vmatpush2.bf16.msra.mxu0 0
      %1951 = vmatprep.subr.bf16.mxu0 0
      %1952 = vmatpush2.bf16.msra.mxu0 0
      %1953 = vmatprep.subr.bf16.mxu0 0
      %1954 = vmatpush2.bf16.msra.mxu0 0
      %1955 = vmatprep.subr.bf16.mxu0 0
      %1956 = vmatpush2.bf16.msra.mxu0 0
      %1957 = vmatprep.subr.bf16.mxu0 0
      %1958 = vmatpush2.bf16.msra.mxu0 0
      %1959 = vmatprep.subr.bf16.mxu0 0
      %1960 = vmatpush2.bf16.msra.mxu0 0
      %1961 = vmatprep.mubr.bf16.mxu0 0
      %1962 = vmatmul.mubr.bf16.gmra.mxu0 %v1921
      %v1963 = vpop.f32.mrf.mxu0
      %v1964 = vadd.f32 0.0, %v1963
      %v1965 = vpop.f32.mrf.mxu0
      %v1966 = vpop.f32.mrf.mxu0
      %v1967 = vadd.f32 0.0, %v1966
      %v1968 = vpop.f32.mrf.mxu0
      %1969 = vmatprep.mubr.bf16.mxu0 0
      %1970 = vmatmul.mubr.bf16.gmra.mxu0 %v1924
      %v1971 = vpop.f32.mrf.mxu0
      %v1972 = vadd.f32 0.0, %v1971
      %v1973 = vpop.f32.mrf.mxu0
      %v1974 = vpop.f32.mrf.mxu0
      %v1975 = vadd.f32 0.0, %v1974
      %v1976 = vpop.f32.mrf.mxu0
      %1977 = vmatprep.mubr.bf16.mxu0 0
      %1978 = vmatmul.mubr.bf16.gmra.mxu0 %v1927
      %v1979 = vpop.f32.mrf.mxu0
      %v1980 = vadd.f32 0.0, %v1979
      %v1981 = vpop.f32.mrf.mxu0
      %v1982 = vpop.f32.mrf.mxu0
      %v1983 = vadd.f32 0.0, %v1982
      %v1984 = vpop.f32.mrf.mxu0
      %1985 = vdwg.mxu0
      %v1986 = vpack.c.bf16 %v1967, %v1964
      %v1987 = vpack.c.bf16 %v1975, %v1972
      %v1988 = vpack.c.bf16 %v1983, %v1980
      %v1989 = vld [vmem:[%s11] sm:$0xf]
      %v1990 = vld [vmem:[%s11 + $0x4] sm:$0xf]
      %v1991 = vld [vmem:[%s11 + $0x8] sm:$0xf]
      %v1992 = vld [vmem:[%s11 + $0xc] sm:$0xf]
      %v1993 = vld [vmem:[%s11 + $0x10] sm:$0xf]
      %v1994 = vld [vmem:[%s11 + $0x14] sm:$0xf]
      %v1995 = vld [vmem:[%s11 + $0x18] sm:$0xf]
      %v1996 = vld [vmem:[%s11 + $0x1c] sm:$0xf]
      %v1997 = vld [vmem:[%s11 + $0x20] sm:$0xf]
      %v1998 = vld [vmem:[%s11 + $0x24] sm:$0xf]
      %v1999 = vld [vmem:[%s11 + $0x28] sm:$0xf]
      %v2000 = vld [vmem:[%s11 + $0x2c] sm:$0xf]
      %v2001 = vld [vmem:[%s11 + $0x30] sm:$0xf]
      %v2002 = vld [vmem:[%s11 + $0x34] sm:$0xf]
      %v2003 = vld [vmem:[%s11 + $0x38] sm:$0xf]
      %v2004 = vld [vmem:[%s11 + $0x3c] sm:$0xf]
      %v2005 = vld [vmem:[%s11 + $0x40] sm:$0xf]
      %v2006 = vld [vmem:[%s11 + $0x44] sm:$0xf]
      %v2007 = vld [vmem:[%s11 + $0x48] sm:$0xf]
      %v2008 = vld [vmem:[%s11 + $0x4c] sm:$0xf]
      %v2009 = vld [vmem:[%s11 + $0x50] sm:$0xf]
      %v2010 = vld [vmem:[%s11 + $0x54] sm:$0xf]
      %v2011 = vld [vmem:[%s11 + $0x58] sm:$0xf]
      %v2012 = vld [vmem:[%s11 + $0x5c] sm:$0xf]
      %v2013 = vld [vmem:[%s11 + $0x60] sm:$0xf]
      %v2014 = vld [vmem:[%s11 + $0x64] sm:$0xf]
      %v2015 = vld [vmem:[%s11 + $0x68] sm:$0xf]
      %v2016 = vld [vmem:[%s11 + $0x6c] sm:$0xf]
      %v2017 = vld [vmem:[%s11 + $0x70] sm:$0xf]
      %v2018 = vld [vmem:[%s11 + $0x74] sm:$0xf]
      %v2019 = vld [vmem:[%s11 + $0x78] sm:$0xf]
      %v2020 = vld [vmem:[%s11 + $0x7c] sm:$0xf]
      %v2037 = vunpack.c.l.b16 %v2005
      %v2038 = vunpack.c.l.b16 %v2006
      %v2039 = vunpack.c.l.b16 %v2007
      %v2040 = vunpack.c.l.b16 %v2008
      %v2041 = vunpack.c.l.b16 %v2009
      %v2042 = vunpack.c.l.b16 %v2010
      %v2043 = vunpack.c.l.b16 %v2011
      %v2044 = vunpack.c.l.b16 %v2012
      %v2045 = vunpack.c.l.b16 %v2013
      %v2046 = vunpack.c.l.b16 %v2014
      %v2047 = vunpack.c.l.b16 %v2015
      %v2048 = vunpack.c.l.b16 %v2016
      %v2049 = vunpack.c.l.b16 %v2017
      %v2050 = vunpack.c.l.b16 %v2018
      %v2051 = vunpack.c.l.b16 %v2019
      %v2052 = vunpack.c.l.b16 %v2020
      %v2053 = vpack.c.b16 %v2038, %v2037
      %v2054 = vpack.c.b16 %v2040, %v2039
      %v2055 = vpack.c.b16 %v2042, %v2041
      %v2056 = vpack.c.b16 %v2044, %v2043
      %v2057 = vpack.c.b16 %v2046, %v2045
      %v2058 = vpack.c.b16 %v2048, %v2047
      %v2059 = vpack.c.b16 %v2050, %v2049
      %v2060 = vpack.c.b16 %v2052, %v2051
      %2069 = vmatprep.subr.bf16.mxu0 0
      %2070 = vmatpush1.bf16.msra.mxu0 %v2060
      %2071 = vmatprep.subr.bf16.mxu0 0
      %2072 = vmatpush1.bf16.msra.mxu0 %v2059
      %2073 = vmatprep.subr.bf16.mxu0 0
      %2074 = vmatpush1.bf16.msra.mxu0 %v2058
      %2075 = vmatprep.subr.bf16.mxu0 0
      %2076 = vmatpush1.bf16.msra.mxu0 %v2057
      %2077 = vmatprep.subr.bf16.mxu0 0
      %2078 = vmatpush1.bf16.msra.mxu0 %v2056
      %2079 = vmatprep.subr.bf16.mxu0 0
      %2080 = vmatpush1.bf16.msra.mxu0 %v2055
      %2081 = vmatprep.subr.bf16.mxu0 0
      %2082 = vmatpush1.bf16.msra.mxu0 %v2054
      %2083 = vmatprep.subr.bf16.mxu0 0
      %2084 = vmatpush1.bf16.msra.mxu0 %v2053
      %2085 = vmatprep.subr.bf16.mxu0 0
      %2086 = vmatpush2.bf16.msra.mxu0 0
      %2087 = vmatprep.subr.bf16.mxu0 0
      %2088 = vmatpush2.bf16.msra.mxu0 0
      %2089 = vmatprep.subr.bf16.mxu0 0
      %2090 = vmatpush2.bf16.msra.mxu0 0
      %2091 = vmatprep.subr.bf16.mxu0 0
      %2092 = vmatpush2.bf16.msra.mxu0 0
      %2093 = vmatprep.subr.bf16.mxu0 0
      %2094 = vmatpush2.bf16.msra.mxu0 0
      %2095 = vmatprep.subr.bf16.mxu0 0
      %2096 = vmatpush2.bf16.msra.mxu0 0
      %2097 = vmatprep.subr.bf16.mxu0 0
      %2098 = vmatpush2.bf16.msra.mxu0 0
      %2099 = vmatprep.subr.bf16.mxu0 0
      %2100 = vmatpush2.bf16.msra.mxu0 0
      %2101 = vmatprep.mubr.bf16.mxu0 0
      %2102 = vmatmul.mubr.bf16.gmra.mxu0 %v1987
      %v2103 = vpop.f32.mrf.mxu0
      %v2104 = vadd.f32 0.0, %v2103
      %v2105 = vpop.f32.mrf.mxu0
      %v2106 = vpop.f32.mrf.mxu0
      %v2107 = vadd.f32 0.0, %v2106
      %v2108 = vpop.f32.mrf.mxu0
      %2109 = vdwg.mxu0
      %v2126 = vunpack.c.l.b16 %v1989
      %v2127 = vunpack.c.l.b16 %v1990
      %v2128 = vunpack.c.l.b16 %v1991
      %v2129 = vunpack.c.l.b16 %v1992
      %v2130 = vunpack.c.l.b16 %v1993
      %v2131 = vunpack.c.l.b16 %v1994
      %v2132 = vunpack.c.l.b16 %v1995
      %v2133 = vunpack.c.l.b16 %v1996
      %v2134 = vunpack.c.l.b16 %v1997
      %v2135 = vunpack.c.l.b16 %v1998
      %v2136 = vunpack.c.l.b16 %v1999
      %v2137 = vunpack.c.l.b16 %v2000
      %v2138 = vunpack.c.l.b16 %v2001
      %v2139 = vunpack.c.l.b16 %v2002
      %v2140 = vunpack.c.l.b16 %v2003
      %v2141 = vunpack.c.l.b16 %v2004
      %v2142 = vpack.c.b16 %v2127, %v2126
      %v2143 = vpack.c.b16 %v2129, %v2128
      %v2144 = vpack.c.b16 %v2131, %v2130
      %v2145 = vpack.c.b16 %v2133, %v2132
      %v2146 = vpack.c.b16 %v2135, %v2134
      %v2147 = vpack.c.b16 %v2137, %v2136
      %v2148 = vpack.c.b16 %v2139, %v2138
      %v2149 = vpack.c.b16 %v2141, %v2140
      %2158 = vmatprep.subr.bf16.mxu0 0
      %2159 = vmatpush1.bf16.msra.mxu0 %v2149
      %2160 = vmatprep.subr.bf16.mxu0 0
      %2161 = vmatpush1.bf16.msra.mxu0 %v2148
      %2162 = vmatprep.subr.bf16.mxu0 0
      %2163 = vmatpush1.bf16.msra.mxu0 %v2147
      %2164 = vmatprep.subr.bf16.mxu0 0
      %2165 = vmatpush1.bf16.msra.mxu0 %v2146
      %2166 = vmatprep.subr.bf16.mxu0 0
      %2167 = vmatpush1.bf16.msra.mxu0 %v2145
      %2168 = vmatprep.subr.bf16.mxu0 0
      %2169 = vmatpush1.bf16.msra.mxu0 %v2144
      %2170 = vmatprep.subr.bf16.mxu0 0
      %2171 = vmatpush1.bf16.msra.mxu0 %v2143
      %2172 = vmatprep.subr.bf16.mxu0 0
      %2173 = vmatpush1.bf16.msra.mxu0 %v2142
      %2174 = vmatprep.subr.bf16.mxu0 0
      %2175 = vmatpush2.bf16.msra.mxu0 0
      %2176 = vmatprep.subr.bf16.mxu0 0
      %2177 = vmatpush2.bf16.msra.mxu0 0
      %2178 = vmatprep.subr.bf16.mxu0 0
      %2179 = vmatpush2.bf16.msra.mxu0 0
      %2180 = vmatprep.subr.bf16.mxu0 0
      %2181 = vmatpush2.bf16.msra.mxu0 0
      %2182 = vmatprep.subr.bf16.mxu0 0
      %2183 = vmatpush2.bf16.msra.mxu0 0
      %2184 = vmatprep.subr.bf16.mxu0 0
      %2185 = vmatpush2.bf16.msra.mxu0 0
      %2186 = vmatprep.subr.bf16.mxu0 0
      %2187 = vmatpush2.bf16.msra.mxu0 0
      %2188 = vmatprep.subr.bf16.mxu0 0
      %2189 = vmatpush2.bf16.msra.mxu0 0
      %2190 = vmatprep.mubr.bf16.mxu0 0
      %2191 = vmatmul.mubr.bf16.gmra.mxu0 %v1986
      %v2192 = vpop.f32.mrf.mxu0
      %v2193 = vadd.f32 %v2104, %v2192
      %v2194 = vpop.f32.mrf.mxu0
      %v2195 = vpop.f32.mrf.mxu0
      %v2196 = vadd.f32 %v2107, %v2195
      %v2197 = vpop.f32.mrf.mxu0
      %2198 = vdwg.mxu0
      %v2199 = vld [vmem:[%s11 + $0x80] sm:$0xf]
      %v2200 = vld [vmem:[%s11 + $0x84] sm:$0xf]
      %v2201 = vld [vmem:[%s11 + $0x88] sm:$0xf]
      %v2202 = vld [vmem:[%s11 + $0x8c] sm:$0xf]
      %v2203 = vld [vmem:[%s11 + $0x90] sm:$0xf]
      %v2204 = vld [vmem:[%s11 + $0x94] sm:$0xf]
      %v2205 = vld [vmem:[%s11 + $0x98] sm:$0xf]
      %v2206 = vld [vmem:[%s11 + $0x9c] sm:$0xf]
      %v2207 = vld [vmem:[%s11 + $0xa0] sm:$0xf]
      %v2208 = vld [vmem:[%s11 + $0xa4] sm:$0xf]
      %v2209 = vld [vmem:[%s11 + $0xa8] sm:$0xf]
      %v2210 = vld [vmem:[%s11 + $0xac] sm:$0xf]
      %v2211 = vld [vmem:[%s11 + $0xb0] sm:$0xf]
      %v2212 = vld [vmem:[%s11 + $0xb4] sm:$0xf]
      %v2213 = vld [vmem:[%s11 + $0xb8] sm:$0xf]
      %v2214 = vld [vmem:[%s11 + $0xbc] sm:$0xf]
      %v2231 = vunpack.c.l.b16 %v2199
      %v2232 = vunpack.c.l.b16 %v2200
      %v2233 = vunpack.c.l.b16 %v2201
      %v2234 = vunpack.c.l.b16 %v2202
      %v2235 = vunpack.c.l.b16 %v2203
      %v2236 = vunpack.c.l.b16 %v2204
      %v2237 = vunpack.c.l.b16 %v2205
      %v2238 = vunpack.c.l.b16 %v2206
      %v2239 = vunpack.c.l.b16 %v2207
      %v2240 = vunpack.c.l.b16 %v2208
      %v2241 = vunpack.c.l.b16 %v2209
      %v2242 = vunpack.c.l.b16 %v2210
      %v2243 = vunpack.c.l.b16 %v2211
      %v2244 = vunpack.c.l.b16 %v2212
      %v2245 = vunpack.c.l.b16 %v2213
      %v2246 = vunpack.c.l.b16 %v2214
      %v2247 = vpack.c.b16 %v2232, %v2231
      %v2248 = vpack.c.b16 %v2234, %v2233
      %v2249 = vpack.c.b16 %v2236, %v2235
      %v2250 = vpack.c.b16 %v2238, %v2237
      %v2251 = vpack.c.b16 %v2240, %v2239
      %v2252 = vpack.c.b16 %v2242, %v2241
      %v2253 = vpack.c.b16 %v2244, %v2243
      %v2254 = vpack.c.b16 %v2246, %v2245
      %2263 = vmatprep.subr.bf16.mxu0 0
      %2264 = vmatpush1.bf16.msra.mxu0 %v2254
      %2265 = vmatprep.subr.bf16.mxu0 0
      %2266 = vmatpush1.bf16.msra.mxu0 %v2253
      %2267 = vmatprep.subr.bf16.mxu0 0
      %2268 = vmatpush1.bf16.msra.mxu0 %v2252
      %2269 = vmatprep.subr.bf16.mxu0 0
      %2270 = vmatpush1.bf16.msra.mxu0 %v2251
      %2271 = vmatprep.subr.bf16.mxu0 0
      %2272 = vmatpush1.bf16.msra.mxu0 %v2250
      %2273 = vmatprep.subr.bf16.mxu0 0
      %2274 = vmatpush1.bf16.msra.mxu0 %v2249
      %2275 = vmatprep.subr.bf16.mxu0 0
      %2276 = vmatpush1.bf16.msra.mxu0 %v2248
      %2277 = vmatprep.subr.bf16.mxu0 0
      %2278 = vmatpush1.bf16.msra.mxu0 %v2247
      %2279 = vmatprep.subr.bf16.mxu0 0
      %2280 = vmatpush2.bf16.msra.mxu0 0
      %2281 = vmatprep.subr.bf16.mxu0 0
      %2282 = vmatpush2.bf16.msra.mxu0 0
      %2283 = vmatprep.subr.bf16.mxu0 0
      %2284 = vmatpush2.bf16.msra.mxu0 0
      %2285 = vmatprep.subr.bf16.mxu0 0
      %2286 = vmatpush2.bf16.msra.mxu0 0
      %2287 = vmatprep.subr.bf16.mxu0 0
      %2288 = vmatpush2.bf16.msra.mxu0 0
      %2289 = vmatprep.subr.bf16.mxu0 0
      %2290 = vmatpush2.bf16.msra.mxu0 0
      %2291 = vmatprep.subr.bf16.mxu0 0
      %2292 = vmatpush2.bf16.msra.mxu0 0
      %2293 = vmatprep.subr.bf16.mxu0 0
      %2294 = vmatpush2.bf16.msra.mxu0 0
      %2295 = vmatprep.mubr.bf16.mxu0 0
      %2296 = vmatmul.mubr.bf16.gmra.mxu0 %v1988
      %v2297 = vpop.f32.mrf.mxu0
      %v2298 = vadd.f32 0.0, %v2297
      %v2299 = vpop.f32.mrf.mxu0
      %v2300 = vpop.f32.mrf.mxu0
      %v2301 = vadd.f32 0.0, %v2300
      %v2302 = vpop.f32.mrf.mxu0
      %2303 = vdwg.mxu0
      %v2304 = vadd.f32 %v2193, %v2298
      %v2305 = vadd.f32 %v2196, %v2301
      %v2306 = vld [vmem:[%s13] sm:$0x1]
      %v2308 = vlaneseq
      %v2309 = vshrl.u32 %v2308, 7
      %v2310 = vsub.s32 0, %v2309
      %v2311 = vrot.slane %v2306, %v2310
      %v2313 = vadd.f32 %v2304, %v2311
      %v2314 = vadd.f32 %v2305, %v2311
      %v2315 = vmax.f32 %v2313, 0.0
      %v2316 = vmax.f32 %v2314, 0.0
      %v2317 = vpack.c.bf16 %v2316, %v2315
      %v2318 = vld [vmem:[%s15] sm:$0xf]
      %v2319 = vld [vmem:[%s15 + $0x4] sm:$0xf]
      %v2320 = vld [vmem:[%s15 + $0x8] sm:$0xf]
      %v2324 = vunpack.c.l.b16 %v2318
      %v2325 = vunpack.c.l.b16 %v2319
      %v2326 = vunpack.c.l.b16 %v2320
      %v2327 = vpack.c.b16 %v2325, %v2324
      %v2328 = vpack.c.b16 %v2326, %v2326
      %v2330 = vsel %vm1919, %v2327, 0
      %v2333 = vsel %vm1919, %v2328, 0
      %2335 = vmatprep.subr.bf16.mxu0 0
      %2336 = vmatpush1.bf16.msra.mxu0 0
      %2337 = vmatprep.subr.bf16.mxu0 0
      %2338 = vmatpush1.bf16.msra.mxu0 0
      %2339 = vmatprep.subr.bf16.mxu0 0
      %2340 = vmatpush1.bf16.msra.mxu0 0
      %2341 = vmatprep.subr.bf16.mxu0 0
      %2342 = vmatpush1.bf16.msra.mxu0 0
      %2343 = vmatprep.subr.bf16.mxu0 0
      %2344 = vmatpush1.bf16.msra.mxu0 0
      %2345 = vmatprep.subr.bf16.mxu0 0
      %2346 = vmatpush1.bf16.msra.mxu0 0
      %2347 = vmatprep.subr.bf16.mxu0 0
      %2348 = vmatpush1.bf16.msra.mxu0 0
      %2349 = vmatprep.subr.bf16.mxu0 0
      %2350 = vmatpush1.bf16.msra.mxu0 %v2317
      %2351 = vmatprep.subr.bf16.mxu0 0
      %2352 = vmatpush2.bf16.msra.mxu0 0
      %2353 = vmatprep.subr.bf16.mxu0 0
      %2354 = vmatpush2.bf16.msra.mxu0 0
      %2355 = vmatprep.subr.bf16.mxu0 0
      %2356 = vmatpush2.bf16.msra.mxu0 0
      %2357 = vmatprep.subr.bf16.mxu0 0
      %2358 = vmatpush2.bf16.msra.mxu0 0
      %2359 = vmatprep.subr.bf16.mxu0 0
      %2360 = vmatpush2.bf16.msra.mxu0 0
      %2361 = vmatprep.subr.bf16.mxu0 0
      %2362 = vmatpush2.bf16.msra.mxu0 0
      %2363 = vmatprep.subr.bf16.mxu0 0
      %2364 = vmatpush2.bf16.msra.mxu0 0
      %2365 = vmatprep.subr.bf16.mxu0 0
      %2366 = vmatpush2.bf16.msra.mxu0 0
      %2367 = vmatprep.mubr.bf16.mxu0 0
      %2368 = vmatmul.mubr.bf16.gmra.mxu0 %v2330
      %v2369 = vpop.f32.mrf.mxu0
      %v2370 = vadd.f32 0.0, %v2369
      %v2371 = vpop.f32.mrf.mxu0
      %v2372 = vpop.f32.mrf.mxu0
      %v2373 = vadd.f32 0.0, %v2372
      %v2374 = vpop.f32.mrf.mxu0
      %2375 = vmatprep.mubr.bf16.mxu0 0
      %2376 = vmatmul.mubr.bf16.gmra.mxu0 %v2333
      %v2377 = vpop.f32.mrf.mxu0
      %v2378 = vadd.f32 0.0, %v2377
      %v2379 = vpop.f32.mrf.mxu0
      %v2380 = vpop.f32.mrf.mxu0
      %v2381 = vpop.f32.mrf.mxu0
      %2382 = vdwg.mxu0
      %v2383 = vpack.c.bf16 %v2373, %v2370
      %v2384 = vpack.c.bf16 %v2378, %v2378
      %v2385 = vld [vmem:[%s17] sm:$0xf]
      %v2386 = vld [vmem:[%s17 + $0x4] sm:$0xf]
      %v2387 = vld [vmem:[%s17 + $0x8] sm:$0xf]
      %v2388 = vld [vmem:[%s17 + $0xc] sm:$0xf]
      %v2389 = vld [vmem:[%s17 + $0x10] sm:$0xf]
      %v2390 = vld [vmem:[%s17 + $0x14] sm:$0xf]
      %v2391 = vld [vmem:[%s17 + $0x18] sm:$0xf]
      %v2392 = vld [vmem:[%s17 + $0x1c] sm:$0xf]
      %v2393 = vld [vmem:[%s17 + $0x20] sm:$0xf]
      %v2394 = vld [vmem:[%s17 + $0x24] sm:$0xf]
      %v2395 = vld [vmem:[%s17 + $0x28] sm:$0xf]
      %v2396 = vld [vmem:[%s17 + $0x2c] sm:$0xf]
      %v2397 = vld [vmem:[%s17 + $0x30] sm:$0xf]
      %v2398 = vld [vmem:[%s17 + $0x34] sm:$0xf]
      %v2399 = vld [vmem:[%s17 + $0x38] sm:$0xf]
      %v2400 = vld [vmem:[%s17 + $0x3c] sm:$0xf]
      %v2401 = vld [vmem:[%s17 + $0x40] sm:$0xf]
      %v2402 = vld [vmem:[%s17 + $0x44] sm:$0xf]
      %v2403 = vld [vmem:[%s17 + $0x48] sm:$0xf]
      %v2404 = vld [vmem:[%s17 + $0x4c] sm:$0xf]
      %v2405 = vld [vmem:[%s17 + $0x50] sm:$0xf]
      %v2406 = vld [vmem:[%s17 + $0x54] sm:$0xf]
      %v2407 = vld [vmem:[%s17 + $0x58] sm:$0xf]
      %v2408 = vld [vmem:[%s17 + $0x5c] sm:$0xf]
      %v2409 = vld [vmem:[%s17 + $0x60] sm:$0xf]
      %v2410 = vld [vmem:[%s17 + $0x64] sm:$0xf]
      %v2411 = vld [vmem:[%s17 + $0x68] sm:$0xf]
      %v2412 = vld [vmem:[%s17 + $0x6c] sm:$0xf]
      %v2413 = vld [vmem:[%s17 + $0x70] sm:$0xf]
      %v2414 = vld [vmem:[%s17 + $0x74] sm:$0xf]
      %v2415 = vld [vmem:[%s17 + $0x78] sm:$0xf]
      %v2416 = vld [vmem:[%s17 + $0x7c] sm:$0xf]
      %v2418 = vrot.slane %v2383, 4
      %v2436 = vunpack.c.l.b16 %v2401
      %v2437 = vunpack.c.l.b16 %v2402
      %v2438 = vunpack.c.l.b16 %v2403
      %v2439 = vunpack.c.l.b16 %v2404
      %v2440 = vunpack.c.l.b16 %v2405
      %v2441 = vunpack.c.l.b16 %v2406
      %v2442 = vunpack.c.l.b16 %v2407
      %v2443 = vunpack.c.l.b16 %v2408
      %v2444 = vunpack.c.l.b16 %v2409
      %v2445 = vunpack.c.l.b16 %v2410
      %v2446 = vunpack.c.l.b16 %v2411
      %v2447 = vunpack.c.l.b16 %v2412
      %v2448 = vunpack.c.l.b16 %v2413
      %v2449 = vunpack.c.l.b16 %v2414
      %v2450 = vunpack.c.l.b16 %v2415
      %v2451 = vunpack.c.l.b16 %v2416
      %v2452 = vpack.c.b16 %v2437, %v2436
      %v2453 = vpack.c.b16 %v2439, %v2438
      %v2454 = vpack.c.b16 %v2441, %v2440
      %v2455 = vpack.c.b16 %v2443, %v2442
      %v2456 = vpack.c.b16 %v2445, %v2444
      %v2457 = vpack.c.b16 %v2447, %v2446
      %v2458 = vpack.c.b16 %v2449, %v2448
      %v2459 = vpack.c.b16 %v2451, %v2450
      %2468 = vmatprep.subr.bf16.mxu0 0
      %2469 = vmatpush1.bf16.msra.mxu0 %v2459
      %2470 = vmatprep.subr.bf16.mxu0 0
      %2471 = vmatpush1.bf16.msra.mxu0 %v2458
      %2472 = vmatprep.subr.bf16.mxu0 0
      %2473 = vmatpush1.bf16.msra.mxu0 %v2457
      %2474 = vmatprep.subr.bf16.mxu0 0
      %2475 = vmatpush1.bf16.msra.mxu0 %v2456
      %2476 = vmatprep.subr.bf16.mxu0 0
      %2477 = vmatpush1.bf16.msra.mxu0 %v2455
      %2478 = vmatprep.subr.bf16.mxu0 0
      %2479 = vmatpush1.bf16.msra.mxu0 %v2454
      %2480 = vmatprep.subr.bf16.mxu0 0
      %2481 = vmatpush1.bf16.msra.mxu0 %v2453
      %2482 = vmatprep.subr.bf16.mxu0 0
      %2483 = vmatpush1.bf16.msra.mxu0 %v2452
      %2484 = vmatprep.subr.bf16.mxu0 0
      %2485 = vmatpush2.bf16.msra.mxu0 0
      %2486 = vmatprep.subr.bf16.mxu0 0
      %2487 = vmatpush2.bf16.msra.mxu0 0
      %2488 = vmatprep.subr.bf16.mxu0 0
      %2489 = vmatpush2.bf16.msra.mxu0 0
      %2490 = vmatprep.subr.bf16.mxu0 0
      %2491 = vmatpush2.bf16.msra.mxu0 0
      %2492 = vmatprep.subr.bf16.mxu0 0
      %2493 = vmatpush2.bf16.msra.mxu0 0
      %2494 = vmatprep.subr.bf16.mxu0 0
      %2495 = vmatpush2.bf16.msra.mxu0 0
      %2496 = vmatprep.subr.bf16.mxu0 0
      %2497 = vmatpush2.bf16.msra.mxu0 0
      %2498 = vmatprep.subr.bf16.mxu0 0
      %2499 = vmatpush2.bf16.msra.mxu0 0
      %2500 = vmatprep.mubr.bf16.mxu0 0
      %2501 = vmatmul.mubr.bf16.gmra.mxu0 %v2418
      %v2502 = vpop.f32.mrf.mxu0
      %v2503 = vadd.f32 0.0, %v2502
      %v2504 = vpop.f32.mrf.mxu0
      %v2505 = vpop.f32.mrf.mxu0
      %v2506 = vpop.f32.mrf.mxu0
      %2507 = vdwg.mxu0
      %v2524 = vunpack.c.l.b16 %v2385
      %v2525 = vunpack.c.l.b16 %v2386
      %v2526 = vunpack.c.l.b16 %v2387
      %v2527 = vunpack.c.l.b16 %v2388
      %v2528 = vunpack.c.l.b16 %v2389
      %v2529 = vunpack.c.l.b16 %v2390
      %v2530 = vunpack.c.l.b16 %v2391
      %v2531 = vunpack.c.l.b16 %v2392
      %v2532 = vunpack.c.l.b16 %v2393
      %v2533 = vunpack.c.l.b16 %v2394
      %v2534 = vunpack.c.l.b16 %v2395
      %v2535 = vunpack.c.l.b16 %v2396
      %v2536 = vunpack.c.l.b16 %v2397
      %v2537 = vunpack.c.l.b16 %v2398
      %v2538 = vunpack.c.l.b16 %v2399
      %v2539 = vunpack.c.l.b16 %v2400
      %v2540 = vpack.c.b16 %v2525, %v2524
      %v2541 = vpack.c.b16 %v2527, %v2526
      %v2542 = vpack.c.b16 %v2529, %v2528
      %v2543 = vpack.c.b16 %v2531, %v2530
      %v2544 = vpack.c.b16 %v2533, %v2532
      %v2545 = vpack.c.b16 %v2535, %v2534
      %v2546 = vpack.c.b16 %v2537, %v2536
      %v2547 = vpack.c.b16 %v2539, %v2538
      %2556 = vmatprep.subr.bf16.mxu0 0
      %2557 = vmatpush1.bf16.msra.mxu0 %v2547
      %2558 = vmatprep.subr.bf16.mxu0 0
      %2559 = vmatpush1.bf16.msra.mxu0 %v2546
      %2560 = vmatprep.subr.bf16.mxu0 0
      %2561 = vmatpush1.bf16.msra.mxu0 %v2545
      %2562 = vmatprep.subr.bf16.mxu0 0
      %2563 = vmatpush1.bf16.msra.mxu0 %v2544
      %2564 = vmatprep.subr.bf16.mxu0 0
      %2565 = vmatpush1.bf16.msra.mxu0 %v2543
      %2566 = vmatprep.subr.bf16.mxu0 0
      %2567 = vmatpush1.bf16.msra.mxu0 %v2542
      %2568 = vmatprep.subr.bf16.mxu0 0
      %2569 = vmatpush1.bf16.msra.mxu0 %v2541
      %2570 = vmatprep.subr.bf16.mxu0 0
      %2571 = vmatpush1.bf16.msra.mxu0 %v2540
      %2572 = vmatprep.subr.bf16.mxu0 0
      %2573 = vmatpush2.bf16.msra.mxu0 0
      %2574 = vmatprep.subr.bf16.mxu0 0
      %2575 = vmatpush2.bf16.msra.mxu0 0
      %2576 = vmatprep.subr.bf16.mxu0 0
      %2577 = vmatpush2.bf16.msra.mxu0 0
      %2578 = vmatprep.subr.bf16.mxu0 0
      %2579 = vmatpush2.bf16.msra.mxu0 0
      %2580 = vmatprep.subr.bf16.mxu0 0
      %2581 = vmatpush2.bf16.msra.mxu0 0
      %2582 = vmatprep.subr.bf16.mxu0 0
      %2583 = vmatpush2.bf16.msra.mxu0 0
      %2584 = vmatprep.subr.bf16.mxu0 0
      %2585 = vmatpush2.bf16.msra.mxu0 0
      %2586 = vmatprep.subr.bf16.mxu0 0
      %2587 = vmatpush2.bf16.msra.mxu0 0
      %2588 = vmatprep.mubr.bf16.mxu0 0
      %2589 = vmatmul.mubr.bf16.gmra.mxu0 %v2383
      %v2590 = vpop.f32.mrf.mxu0
      %v2591 = vadd.f32 %v2503, %v2590
      %v2592 = vpop.f32.mrf.mxu0
      %v2593 = vpop.f32.mrf.mxu0
      %v2594 = vpop.f32.mrf.mxu0
      %2595 = vdwg.mxu0
      %v2596 = vld [vmem:[%s17 + $0x80] sm:$0xf]
      %v2597 = vld [vmem:[%s17 + $0x84] sm:$0xf]
      %v2598 = vld [vmem:[%s17 + $0x88] sm:$0xf]
      %v2599 = vld [vmem:[%s17 + $0x8c] sm:$0xf]
      %v2600 = vld [vmem:[%s17 + $0x90] sm:$0xf]
      %v2601 = vld [vmem:[%s17 + $0x94] sm:$0xf]
      %v2602 = vld [vmem:[%s17 + $0x98] sm:$0xf]
      %v2603 = vld [vmem:[%s17 + $0x9c] sm:$0xf]
      %v2604 = vld [vmem:[%s17 + $0xa0] sm:$0xf]
      %v2605 = vld [vmem:[%s17 + $0xa4] sm:$0xf]
      %v2606 = vld [vmem:[%s17 + $0xa8] sm:$0xf]
      %v2607 = vld [vmem:[%s17 + $0xac] sm:$0xf]
      %v2608 = vld [vmem:[%s17 + $0xb0] sm:$0xf]
      %v2609 = vld [vmem:[%s17 + $0xb4] sm:$0xf]
      %v2610 = vld [vmem:[%s17 + $0xb8] sm:$0xf]
      %v2611 = vld [vmem:[%s17 + $0xbc] sm:$0xf]
      %v2628 = vunpack.c.l.b16 %v2596
      %v2629 = vunpack.c.l.b16 %v2597
      %v2630 = vunpack.c.l.b16 %v2598
      %v2631 = vunpack.c.l.b16 %v2599
      %v2632 = vunpack.c.l.b16 %v2600
      %v2633 = vunpack.c.l.b16 %v2601
      %v2634 = vunpack.c.l.b16 %v2602
      %v2635 = vunpack.c.l.b16 %v2603
      %v2636 = vunpack.c.l.b16 %v2604
      %v2637 = vunpack.c.l.b16 %v2605
      %v2638 = vunpack.c.l.b16 %v2606
      %v2639 = vunpack.c.l.b16 %v2607
      %v2640 = vunpack.c.l.b16 %v2608
      %v2641 = vunpack.c.l.b16 %v2609
      %v2642 = vunpack.c.l.b16 %v2610
      %v2643 = vunpack.c.l.b16 %v2611
      %v2644 = vpack.c.b16 %v2629, %v2628
      %v2645 = vpack.c.b16 %v2631, %v2630
      %v2646 = vpack.c.b16 %v2633, %v2632
      %v2647 = vpack.c.b16 %v2635, %v2634
      %v2648 = vpack.c.b16 %v2637, %v2636
      %v2649 = vpack.c.b16 %v2639, %v2638
      %v2650 = vpack.c.b16 %v2641, %v2640
      %v2651 = vpack.c.b16 %v2643, %v2642
      %2660 = vmatprep.subr.bf16.mxu0 0
      %2661 = vmatpush1.bf16.msra.mxu0 %v2651
      %2662 = vmatprep.subr.bf16.mxu0 0
      %2663 = vmatpush1.bf16.msra.mxu0 %v2650
      %2664 = vmatprep.subr.bf16.mxu0 0
      %2665 = vmatpush1.bf16.msra.mxu0 %v2649
      %2666 = vmatprep.subr.bf16.mxu0 0
      %2667 = vmatpush1.bf16.msra.mxu0 %v2648
      %2668 = vmatprep.subr.bf16.mxu0 0
      %2669 = vmatpush1.bf16.msra.mxu0 %v2647
      %2670 = vmatprep.subr.bf16.mxu0 0
      %2671 = vmatpush1.bf16.msra.mxu0 %v2646
      %2672 = vmatprep.subr.bf16.mxu0 0
      %2673 = vmatpush1.bf16.msra.mxu0 %v2645
      %2674 = vmatprep.subr.bf16.mxu0 0
      %2675 = vmatpush1.bf16.msra.mxu0 %v2644
      %2676 = vmatprep.subr.bf16.mxu0 0
      %2677 = vmatpush2.bf16.msra.mxu0 0
      %2678 = vmatprep.subr.bf16.mxu0 0
      %2679 = vmatpush2.bf16.msra.mxu0 0
      %2680 = vmatprep.subr.bf16.mxu0 0
      %2681 = vmatpush2.bf16.msra.mxu0 0
      %2682 = vmatprep.subr.bf16.mxu0 0
      %2683 = vmatpush2.bf16.msra.mxu0 0
      %2684 = vmatprep.subr.bf16.mxu0 0
      %2685 = vmatpush2.bf16.msra.mxu0 0
      %2686 = vmatprep.subr.bf16.mxu0 0
      %2687 = vmatpush2.bf16.msra.mxu0 0
      %2688 = vmatprep.subr.bf16.mxu0 0
      %2689 = vmatpush2.bf16.msra.mxu0 0
      %2690 = vmatprep.subr.bf16.mxu0 0
      %2691 = vmatpush2.bf16.msra.mxu0 0
      %2692 = vmatprep.mubr.bf16.mxu0 0
      %2693 = vmatmul.mubr.bf16.gmra.mxu0 %v2384
      %v2694 = vpop.f32.mrf.mxu0
      %v2695 = vadd.f32 0.0, %v2694
      %v2696 = vpop.f32.mrf.mxu0
      %v2697 = vpop.f32.mrf.mxu0
      %v2698 = vpop.f32.mrf.mxu0
      %2699 = vdwg.mxu0
      %v2700 = vadd.f32 %v2591, %v2695
      %v2701 = vld [vmem:[%s19] sm:$0x1]
      %v2703 = vlaneseq
      %v2704 = vshrl.u32 %v2703, 7
      %v2705 = vsub.s32 0, %v2704
      %v2706 = vrot.slane %v2701, %v2705
      %v2708 = vadd.f32 %v2700, %v2706
      %v2709 = vmax.f32 %v2708, 0.0
      %v2710 = vpack.c.bf16 %v2709, %v2709
      %v2711 = vld [vmem:[%s21] sm:$0xf]
      %v2712 = vld [vmem:[%s21 + $0x4] sm:$0xf]
      %v2713 = vld [vmem:[%s21 + $0x8] sm:$0xf]
      %v2717 = vunpack.c.l.b16 %v2711
      %v2718 = vunpack.c.l.b16 %v2712
      %v2719 = vunpack.c.l.b16 %v2713
      %v2720 = vpack.c.b16 %v2718, %v2717
      %v2721 = vpack.c.b16 %v2719, %v2719
      %vm2722 = vcmask 64512
      %v2724 = vsel %vm2722, %v2720, 0
      %v2727 = vsel %vm2722, %v2721, 0
      %vm2729 = vcmask 1043456
      %v2731 = vsel %vm2729, %v2710, 0
      %2733 = vmatprep.subr.bf16.mxu0 0
      %2734 = vmatpush1.bf16.msra.mxu0 0
      %2735 = vmatprep.subr.bf16.mxu0 0
      %2736 = vmatpush1.bf16.msra.mxu0 0
      %2737 = vmatprep.subr.bf16.mxu0 0
      %2738 = vmatpush1.bf16.msra.mxu0 0
      %2739 = vmatprep.subr.bf16.mxu0 0
      %2740 = vmatpush1.bf16.msra.mxu0 0
      %2741 = vmatprep.subr.bf16.mxu0 0
      %2742 = vmatpush1.bf16.msra.mxu0 0
      %2743 = vmatprep.subr.bf16.mxu0 0
      %2744 = vmatpush1.bf16.msra.mxu0 0
      %2745 = vmatprep.subr.bf16.mxu0 0
      %2746 = vmatpush1.bf16.msra.mxu0 0
      %2747 = vmatprep.subr.bf16.mxu0 0
      %2748 = vmatpush1.bf16.msra.mxu0 %v2731
      %2749 = vmatprep.subr.bf16.mxu0 0
      %2750 = vmatpush2.bf16.msra.mxu0 0
      %2751 = vmatprep.subr.bf16.mxu0 0
      %2752 = vmatpush2.bf16.msra.mxu0 0
      %2753 = vmatprep.subr.bf16.mxu0 0
      %2754 = vmatpush2.bf16.msra.mxu0 0
      %2755 = vmatprep.subr.bf16.mxu0 0
      %2756 = vmatpush2.bf16.msra.mxu0 0
      %2757 = vmatprep.subr.bf16.mxu0 0
      %2758 = vmatpush2.bf16.msra.mxu0 0
      %2759 = vmatprep.subr.bf16.mxu0 0
      %2760 = vmatpush2.bf16.msra.mxu0 0
      %2761 = vmatprep.subr.bf16.mxu0 0
      %2762 = vmatpush2.bf16.msra.mxu0 0
      %2763 = vmatprep.subr.bf16.mxu0 0
      %2764 = vmatpush2.bf16.msra.mxu0 0
      %2765 = vmatprep.mubr.bf16.mxu0 0
      %2766 = vmatmul.mubr.bf16.gmra.mxu0 %v2724
      %v2767 = vpop.f32.mrf.mxu0
      %v2768 = vadd.f32 0.0, %v2767
      %v2769 = vpop.f32.mrf.mxu0
      %v2770 = vpop.f32.mrf.mxu0
      %v2771 = vadd.f32 0.0, %v2770
      %v2772 = vpop.f32.mrf.mxu0
      %2773 = vmatprep.mubr.bf16.mxu0 0
      %2774 = vmatmul.mubr.bf16.gmra.mxu0 %v2727
      %v2775 = vpop.f32.mrf.mxu0
      %v2776 = vadd.f32 0.0, %v2775
      %v2777 = vpop.f32.mrf.mxu0
      %v2778 = vpop.f32.mrf.mxu0
      %v2779 = vpop.f32.mrf.mxu0
      %2780 = vdwg.mxu0
      %v2781 = vpack.c.bf16 %v2771, %v2768
      %v2782 = vpack.c.bf16 %v2776, %v2776
      %v2783 = vld [vmem:[%s23] sm:$0xf]
      %v2784 = vld [vmem:[%s23 + $0x4] sm:$0xf]
      %v2785 = vld [vmem:[%s23 + $0x8] sm:$0xf]
      %v2786 = vld [vmem:[%s23 + $0xc] sm:$0xf]
      %v2787 = vld [vmem:[%s23 + $0x10] sm:$0xf]
      %v2788 = vld [vmem:[%s23 + $0x14] sm:$0xf]
      %v2789 = vld [vmem:[%s23 + $0x18] sm:$0xf]
      %v2790 = vld [vmem:[%s23 + $0x1c] sm:$0xf]
      %v2791 = vld [vmem:[%s23 + $0x20] sm:$0xf]
      %v2792 = vld [vmem:[%s23 + $0x24] sm:$0xf]
      %v2793 = vld [vmem:[%s23 + $0x28] sm:$0xf]
      %v2794 = vld [vmem:[%s23 + $0x2c] sm:$0xf]
      %v2795 = vld [vmem:[%s23 + $0x30] sm:$0xf]
      %v2796 = vld [vmem:[%s23 + $0x34] sm:$0xf]
      %v2797 = vld [vmem:[%s23 + $0x38] sm:$0xf]
      %v2798 = vld [vmem:[%s23 + $0x3c] sm:$0xf]
      %v2799 = vld [vmem:[%s23 + $0x40] sm:$0xf]
      %v2800 = vld [vmem:[%s23 + $0x44] sm:$0xf]
      %v2801 = vld [vmem:[%s23 + $0x48] sm:$0xf]
      %v2802 = vld [vmem:[%s23 + $0x4c] sm:$0xf]
      %v2803 = vld [vmem:[%s23 + $0x50] sm:$0xf]
      %v2804 = vld [vmem:[%s23 + $0x54] sm:$0xf]
      %v2805 = vld [vmem:[%s23 + $0x58] sm:$0xf]
      %v2806 = vld [vmem:[%s23 + $0x5c] sm:$0xf]
      %v2807 = vld [vmem:[%s23 + $0x60] sm:$0xf]
      %v2808 = vld [vmem:[%s23 + $0x64] sm:$0xf]
      %v2809 = vld [vmem:[%s23 + $0x68] sm:$0xf]
      %v2810 = vld [vmem:[%s23 + $0x6c] sm:$0xf]
      %v2811 = vld [vmem:[%s23 + $0x70] sm:$0xf]
      %v2812 = vld [vmem:[%s23 + $0x74] sm:$0xf]
      %v2813 = vld [vmem:[%s23 + $0x78] sm:$0xf]
      %v2814 = vld [vmem:[%s23 + $0x7c] sm:$0xf]
      %v2816 = vrot.slane %v2781, 4
      %v2834 = vunpack.c.l.b16 %v2799
      %v2835 = vunpack.c.l.b16 %v2800
      %v2836 = vunpack.c.l.b16 %v2801
      %v2837 = vunpack.c.l.b16 %v2802
      %v2838 = vunpack.c.l.b16 %v2803
      %v2839 = vunpack.c.l.b16 %v2804
      %v2840 = vunpack.c.l.b16 %v2805
      %v2841 = vunpack.c.l.b16 %v2806
      %v2842 = vunpack.c.l.b16 %v2807
      %v2843 = vunpack.c.l.b16 %v2808
      %v2844 = vunpack.c.l.b16 %v2809
      %v2845 = vunpack.c.l.b16 %v2810
      %v2846 = vunpack.c.l.b16 %v2811
      %v2847 = vunpack.c.l.b16 %v2812
      %v2848 = vunpack.c.l.b16 %v2813
      %v2849 = vunpack.c.l.b16 %v2814
      %v2850 = vpack.c.b16 %v2835, %v2834
      %v2851 = vpack.c.b16 %v2837, %v2836
      %v2852 = vpack.c.b16 %v2839, %v2838
      %v2853 = vpack.c.b16 %v2841, %v2840
      %v2854 = vpack.c.b16 %v2843, %v2842
      %v2855 = vpack.c.b16 %v2845, %v2844
      %v2856 = vpack.c.b16 %v2847, %v2846
      %v2857 = vpack.c.b16 %v2849, %v2848
      %2866 = vmatprep.subr.bf16.mxu0 0
      %2867 = vmatpush1.bf16.msra.mxu0 %v2857
      %2868 = vmatprep.subr.bf16.mxu0 0
      %2869 = vmatpush1.bf16.msra.mxu0 %v2856
      %2870 = vmatprep.subr.bf16.mxu0 0
      %2871 = vmatpush1.bf16.msra.mxu0 %v2855
      %2872 = vmatprep.subr.bf16.mxu0 0
      %2873 = vmatpush1.bf16.msra.mxu0 %v2854
      %2874 = vmatprep.subr.bf16.mxu0 0
      %2875 = vmatpush1.bf16.msra.mxu0 %v2853
      %2876 = vmatprep.subr.bf16.mxu0 0
      %2877 = vmatpush1.bf16.msra.mxu0 %v2852
      %2878 = vmatprep.subr.bf16.mxu0 0
      %2879 = vmatpush1.bf16.msra.mxu0 %v2851
      %2880 = vmatprep.subr.bf16.mxu0 0
      %2881 = vmatpush1.bf16.msra.mxu0 %v2850
      %2882 = vmatprep.subr.bf16.mxu0 0
      %2883 = vmatpush2.bf16.msra.mxu0 0
      %2884 = vmatprep.subr.bf16.mxu0 0
      %2885 = vmatpush2.bf16.msra.mxu0 0
      %2886 = vmatprep.subr.bf16.mxu0 0
      %2887 = vmatpush2.bf16.msra.mxu0 0
      %2888 = vmatprep.subr.bf16.mxu0 0
      %2889 = vmatpush2.bf16.msra.mxu0 0
      %2890 = vmatprep.subr.bf16.mxu0 0
      %2891 = vmatpush2.bf16.msra.mxu0 0
      %2892 = vmatprep.subr.bf16.mxu0 0
      %2893 = vmatpush2.bf16.msra.mxu0 0
      %2894 = vmatprep.subr.bf16.mxu0 0
      %2895 = vmatpush2.bf16.msra.mxu0 0
      %2896 = vmatprep.subr.bf16.mxu0 0
      %2897 = vmatpush2.bf16.msra.mxu0 0
      %2898 = vmatprep.mubr.bf16.mxu0 0
      %2899 = vmatmul.mubr.bf16.gmra.mxu0 %v2816
      %v2900 = vpop.f32.mrf.mxu0
      %v2901 = vadd.f32 0.0, %v2900
      %v2902 = vpop.f32.mrf.mxu0
      %v2903 = vpop.f32.mrf.mxu0
      %v2904 = vpop.f32.mrf.mxu0
      %2905 = vdwg.mxu0
      %v2922 = vunpack.c.l.b16 %v2783
      %v2923 = vunpack.c.l.b16 %v2784
      %v2924 = vunpack.c.l.b16 %v2785
      %v2925 = vunpack.c.l.b16 %v2786
      %v2926 = vunpack.c.l.b16 %v2787
      %v2927 = vunpack.c.l.b16 %v2788
      %v2928 = vunpack.c.l.b16 %v2789
      %v2929 = vunpack.c.l.b16 %v2790
      %v2930 = vunpack.c.l.b16 %v2791
      %v2931 = vunpack.c.l.b16 %v2792
      %v2932 = vunpack.c.l.b16 %v2793
      %v2933 = vunpack.c.l.b16 %v2794
      %v2934 = vunpack.c.l.b16 %v2795
      %v2935 = vunpack.c.l.b16 %v2796
      %v2936 = vunpack.c.l.b16 %v2797
      %v2937 = vunpack.c.l.b16 %v2798
      %v2938 = vpack.c.b16 %v2923, %v2922
      %v2939 = vpack.c.b16 %v2925, %v2924
      %v2940 = vpack.c.b16 %v2927, %v2926
      %v2941 = vpack.c.b16 %v2929, %v2928
      %v2942 = vpack.c.b16 %v2931, %v2930
      %v2943 = vpack.c.b16 %v2933, %v2932
      %v2944 = vpack.c.b16 %v2935, %v2934
      %v2945 = vpack.c.b16 %v2937, %v2936
      %2954 = vmatprep.subr.bf16.mxu0 0
      %2955 = vmatpush1.bf16.msra.mxu0 %v2945
      %2956 = vmatprep.subr.bf16.mxu0 0
      %2957 = vmatpush1.bf16.msra.mxu0 %v2944
      %2958 = vmatprep.subr.bf16.mxu0 0
      %2959 = vmatpush1.bf16.msra.mxu0 %v2943
      %2960 = vmatprep.subr.bf16.mxu0 0
      %2961 = vmatpush1.bf16.msra.mxu0 %v2942
      %2962 = vmatprep.subr.bf16.mxu0 0
      %2963 = vmatpush1.bf16.msra.mxu0 %v2941
      %2964 = vmatprep.subr.bf16.mxu0 0
      %2965 = vmatpush1.bf16.msra.mxu0 %v2940
      %2966 = vmatprep.subr.bf16.mxu0 0
      %2967 = vmatpush1.bf16.msra.mxu0 %v2939
      %2968 = vmatprep.subr.bf16.mxu0 0
      %2969 = vmatpush1.bf16.msra.mxu0 %v2938
      %2970 = vmatprep.subr.bf16.mxu0 0
      %2971 = vmatpush2.bf16.msra.mxu0 0
      %2972 = vmatprep.subr.bf16.mxu0 0
      %2973 = vmatpush2.bf16.msra.mxu0 0
      %2974 = vmatprep.subr.bf16.mxu0 0
      %2975 = vmatpush2.bf16.msra.mxu0 0
      %2976 = vmatprep.subr.bf16.mxu0 0
      %2977 = vmatpush2.bf16.msra.mxu0 0
      %2978 = vmatprep.subr.bf16.mxu0 0
      %2979 = vmatpush2.bf16.msra.mxu0 0
      %2980 = vmatprep.subr.bf16.mxu0 0
      %2981 = vmatpush2.bf16.msra.mxu0 0
      %2982 = vmatprep.subr.bf16.mxu0 0
      %2983 = vmatpush2.bf16.msra.mxu0 0
      %2984 = vmatprep.subr.bf16.mxu0 0
      %2985 = vmatpush2.bf16.msra.mxu0 0
      %2986 = vmatprep.mubr.bf16.mxu0 0
      %2987 = vmatmul.mubr.bf16.gmra.mxu0 %v2781
      %v2988 = vpop.f32.mrf.mxu0
      %v2989 = vadd.f32 %v2901, %v2988
      %v2990 = vpop.f32.mrf.mxu0
      %v2991 = vpop.f32.mrf.mxu0
      %v2992 = vpop.f32.mrf.mxu0
      %2993 = vdwg.mxu0
      %v2994 = vld [vmem:[%s23 + $0x80] sm:$0xf]
      %v2995 = vld [vmem:[%s23 + $0x84] sm:$0xf]
      %v2996 = vld [vmem:[%s23 + $0x88] sm:$0xf]
      %v2997 = vld [vmem:[%s23 + $0x8c] sm:$0xf]
      %v2998 = vld [vmem:[%s23 + $0x90] sm:$0xf]
      %v2999 = vld [vmem:[%s23 + $0x94] sm:$0xf]
      %v3000 = vld [vmem:[%s23 + $0x98] sm:$0xf]
      %v3001 = vld [vmem:[%s23 + $0x9c] sm:$0xf]
      %v3002 = vld [vmem:[%s23 + $0xa0] sm:$0xf]
      %v3003 = vld [vmem:[%s23 + $0xa4] sm:$0xf]
      %v3004 = vld [vmem:[%s23 + $0xa8] sm:$0xf]
      %v3005 = vld [vmem:[%s23 + $0xac] sm:$0xf]
      %v3006 = vld [vmem:[%s23 + $0xb0] sm:$0xf]
      %v3007 = vld [vmem:[%s23 + $0xb4] sm:$0xf]
      %v3008 = vld [vmem:[%s23 + $0xb8] sm:$0xf]
      %v3009 = vld [vmem:[%s23 + $0xbc] sm:$0xf]
      %v3026 = vunpack.c.l.b16 %v2994
      %v3027 = vunpack.c.l.b16 %v2995
      %v3028 = vunpack.c.l.b16 %v2996
      %v3029 = vunpack.c.l.b16 %v2997
      %v3030 = vunpack.c.l.b16 %v2998
      %v3031 = vunpack.c.l.b16 %v2999
      %v3032 = vunpack.c.l.b16 %v3000
      %v3033 = vunpack.c.l.b16 %v3001
      %v3034 = vunpack.c.l.b16 %v3002
      %v3035 = vunpack.c.l.b16 %v3003
      %v3036 = vunpack.c.l.b16 %v3004
      %v3037 = vunpack.c.l.b16 %v3005
      %v3038 = vunpack.c.l.b16 %v3006
      %v3039 = vunpack.c.l.b16 %v3007
      %v3040 = vunpack.c.l.b16 %v3008
      %v3041 = vunpack.c.l.b16 %v3009
      %v3042 = vpack.c.b16 %v3027, %v3026
      %v3043 = vpack.c.b16 %v3029, %v3028
      %v3044 = vpack.c.b16 %v3031, %v3030
      %v3045 = vpack.c.b16 %v3033, %v3032
      %v3046 = vpack.c.b16 %v3035, %v3034
      %v3047 = vpack.c.b16 %v3037, %v3036
      %v3048 = vpack.c.b16 %v3039, %v3038
      %v3049 = vpack.c.b16 %v3041, %v3040
      %3058 = vmatprep.subr.bf16.mxu0 0
      %3059 = vmatpush1.bf16.msra.mxu0 %v3049
      %3060 = vmatprep.subr.bf16.mxu0 0
      %3061 = vmatpush1.bf16.msra.mxu0 %v3048
      %3062 = vmatprep.subr.bf16.mxu0 0
      %3063 = vmatpush1.bf16.msra.mxu0 %v3047
      %3064 = vmatprep.subr.bf16.mxu0 0
      %3065 = vmatpush1.bf16.msra.mxu0 %v3046
      %3066 = vmatprep.subr.bf16.mxu0 0
      %3067 = vmatpush1.bf16.msra.mxu0 %v3045
      %3068 = vmatprep.subr.bf16.mxu0 0
      %3069 = vmatpush1.bf16.msra.mxu0 %v3044
      %3070 = vmatprep.subr.bf16.mxu0 0
      %3071 = vmatpush1.bf16.msra.mxu0 %v3043
      %3072 = vmatprep.subr.bf16.mxu0 0
      %3073 = vmatpush1.bf16.msra.mxu0 %v3042
      %3074 = vmatprep.subr.bf16.mxu0 0
      %3075 = vmatpush2.bf16.msra.mxu0 0
      %3076 = vmatprep.subr.bf16.mxu0 0
      %3077 = vmatpush2.bf16.msra.mxu0 0
      %3078 = vmatprep.subr.bf16.mxu0 0
      %3079 = vmatpush2.bf16.msra.mxu0 0
      %3080 = vmatprep.subr.bf16.mxu0 0
      %3081 = vmatpush2.bf16.msra.mxu0 0
      %3082 = vmatprep.subr.bf16.mxu0 0
      %3083 = vmatpush2.bf16.msra.mxu0 0
      %3084 = vmatprep.subr.bf16.mxu0 0
      %3085 = vmatpush2.bf16.msra.mxu0 0
      %3086 = vmatprep.subr.bf16.mxu0 0
      %3087 = vmatpush2.bf16.msra.mxu0 0
      %3088 = vmatprep.subr.bf16.mxu0 0
      %3089 = vmatpush2.bf16.msra.mxu0 0
      %3090 = vmatprep.mubr.bf16.mxu0 0
      %3091 = vmatmul.mubr.bf16.gmra.mxu0 %v2782
      %v3092 = vpop.f32.mrf.mxu0
      %v3093 = vadd.f32 0.0, %v3092
      %v3094 = vpop.f32.mrf.mxu0
      %v3095 = vpop.f32.mrf.mxu0
      %v3096 = vpop.f32.mrf.mxu0
      %3097 = vdwg.mxu0
      %v3098 = vadd.f32 %v2989, %v3093
      %v3099 = vld [vmem:[%s25] sm:$0x1]
      %v3101 = vlaneseq
      %v3102 = vshrl.u32 %v3101, 7
      %v3103 = vsub.s32 0, %v3102
      %v3104 = vrot.slane %v3099, %v3103
      %v3106 = vadd.f32 %v3098, %v3104
      %v3107 = vmax.f32 %v3106, 0.0
      %v3108 = vpack.c.bf16 %v3107, %v3107
      %v3109 = vld [vmem:[%s27] sm:$0xf]
      %v3110 = vld [vmem:[%s27 + $0x4] sm:$0x3]
      %v3113 = vunpack.c.l.b16 %v3109
      %v3114 = vunpack.c.l.b16 %v3110
      %v3115 = vpack.c.b16 %v3114, %v3113
      %v3117 = vsel %vm2722, %v3115, 0
      %v3120 = vsel %vm2729, %v3108, 0
      %3122 = vmatprep.subr.bf16.mxu0 0
      %3123 = vmatpush1.bf16.msra.mxu0 0
      %3124 = vmatprep.subr.bf16.mxu0 0
      %3125 = vmatpush1.bf16.msra.mxu0 0
      %3126 = vmatprep.subr.bf16.mxu0 0
      %3127 = vmatpush1.bf16.msra.mxu0 0
      %3128 = vmatprep.subr.bf16.mxu0 0
      %3129 = vmatpush1.bf16.msra.mxu0 0
      %3130 = vmatprep.subr.bf16.mxu0 0
      %3131 = vmatpush1.bf16.msra.mxu0 0
      %3132 = vmatprep.subr.bf16.mxu0 0
      %3133 = vmatpush1.bf16.msra.mxu0 0
      %3134 = vmatprep.subr.bf16.mxu0 0
      %3135 = vmatpush1.bf16.msra.mxu0 0
      %3136 = vmatprep.subr.bf16.mxu0 0
      %3137 = vmatpush1.bf16.msra.mxu0 %v3120
      %3138 = vmatprep.subr.bf16.mxu0 0
      %3139 = vmatpush2.bf16.msra.mxu0 0
      %3140 = vmatprep.subr.bf16.mxu0 0
      %3141 = vmatpush2.bf16.msra.mxu0 0
      %3142 = vmatprep.subr.bf16.mxu0 0
      %3143 = vmatpush2.bf16.msra.mxu0 0
      %3144 = vmatprep.subr.bf16.mxu0 0
      %3145 = vmatpush2.bf16.msra.mxu0 0
      %3146 = vmatprep.subr.bf16.mxu0 0
      %3147 = vmatpush2.bf16.msra.mxu0 0
      %3148 = vmatprep.subr.bf16.mxu0 0
      %3149 = vmatpush2.bf16.msra.mxu0 0
      %3150 = vmatprep.subr.bf16.mxu0 0
      %3151 = vmatpush2.bf16.msra.mxu0 0
      %3152 = vmatprep.subr.bf16.mxu0 0
      %3153 = vmatpush2.bf16.msra.mxu0 0
      %3154 = vmatprep.mubr.bf16.mxu0 0
      %3155 = vmatmul.mubr.bf16.gmra.mxu0 %v3117
      %v3156 = vpop.f32.mrf.mxu0
      %v3157 = vadd.f32 0.0, %v3156
      %v3158 = vpop.f32.mrf.mxu0
      %v3159 = vpop.f32.mrf.mxu0
      %v3160 = vadd.f32 0.0, %v3159
      %v3161 = vpop.f32.mrf.mxu0
      %3162 = vdwg.mxu0
      %v3163 = vpack.c.bf16 %v3160, %v3157
      %v3164 = vld [vmem:[%s29] sm:$0xf]
      %v3165 = vld [vmem:[%s29 + $0x4] sm:$0xf]
      %v3166 = vld [vmem:[%s29 + $0x8] sm:$0xf]
      %v3167 = vld [vmem:[%s29 + $0xc] sm:$0xf]
      %v3168 = vld [vmem:[%s29 + $0x10] sm:$0xf]
      %v3169 = vld [vmem:[%s29 + $0x14] sm:$0xf]
      %v3170 = vld [vmem:[%s29 + $0x18] sm:$0xf]
      %v3171 = vld [vmem:[%s29 + $0x1c] sm:$0xf]
      %v3172 = vld [vmem:[%s29 + $0x20] sm:$0xf]
      %v3173 = vld [vmem:[%s29 + $0x24] sm:$0xf]
      %v3174 = vld [vmem:[%s29 + $0x28] sm:$0xf]
      %v3175 = vld [vmem:[%s29 + $0x2c] sm:$0xf]
      %v3176 = vld [vmem:[%s29 + $0x30] sm:$0xf]
      %v3177 = vld [vmem:[%s29 + $0x34] sm:$0xf]
      %v3178 = vld [vmem:[%s29 + $0x38] sm:$0xf]
      %v3179 = vld [vmem:[%s29 + $0x3c] sm:$0xf]
      %v3180 = vld [vmem:[%s29 + $0x40] sm:$0xf]
      %v3181 = vld [vmem:[%s29 + $0x44] sm:$0xf]
      %v3182 = vld [vmem:[%s29 + $0x48] sm:$0xf]
      %v3183 = vld [vmem:[%s29 + $0x4c] sm:$0xf]
      %v3184 = vld [vmem:[%s29 + $0x50] sm:$0xf]
      %v3185 = vld [vmem:[%s29 + $0x54] sm:$0xf]
      %v3186 = vld [vmem:[%s29 + $0x58] sm:$0xf]
      %v3187 = vld [vmem:[%s29 + $0x5c] sm:$0xf]
      %v3188 = vld [vmem:[%s29 + $0x60] sm:$0xf]
      %v3189 = vld [vmem:[%s29 + $0x64] sm:$0xf]
      %v3190 = vld [vmem:[%s29 + $0x68] sm:$0xf]
      %v3191 = vld [vmem:[%s29 + $0x6c] sm:$0xf]
      %v3192 = vld [vmem:[%s29 + $0x70] sm:$0xf]
      %v3193 = vld [vmem:[%s29 + $0x74] sm:$0xf]
      %v3194 = vld [vmem:[%s29 + $0x78] sm:$0xf]
      %v3195 = vld [vmem:[%s29 + $0x7c] sm:$0xf]
      %v3197 = vrot.slane %v3163, 2
      %v3215 = vunpack.c.l.b16 %v3180
      %v3216 = vunpack.c.l.b16 %v3181
      %v3217 = vunpack.c.l.b16 %v3182
      %v3218 = vunpack.c.l.b16 %v3183
      %v3219 = vunpack.c.l.b16 %v3184
      %v3220 = vunpack.c.l.b16 %v3185
      %v3221 = vunpack.c.l.b16 %v3186
      %v3222 = vunpack.c.l.b16 %v3187
      %v3223 = vunpack.c.l.b16 %v3188
      %v3224 = vunpack.c.l.b16 %v3189
      %v3225 = vunpack.c.l.b16 %v3190
      %v3226 = vunpack.c.l.b16 %v3191
      %v3227 = vunpack.c.l.b16 %v3192
      %v3228 = vunpack.c.l.b16 %v3193
      %v3229 = vunpack.c.l.b16 %v3194
      %v3230 = vunpack.c.l.b16 %v3195
      %v3231 = vpack.c.b16 %v3216, %v3215
      %v3232 = vpack.c.b16 %v3218, %v3217
      %v3233 = vpack.c.b16 %v3220, %v3219
      %v3234 = vpack.c.b16 %v3222, %v3221
      %v3235 = vpack.c.b16 %v3224, %v3223
      %v3236 = vpack.c.b16 %v3226, %v3225
      %v3237 = vpack.c.b16 %v3228, %v3227
      %v3238 = vpack.c.b16 %v3230, %v3229
      %3247 = vmatprep.subr.bf16.mxu0 0
      %3248 = vmatpush1.bf16.msra.mxu0 %v3238
      %3249 = vmatprep.subr.bf16.mxu0 0
      %3250 = vmatpush1.bf16.msra.mxu0 %v3237
      %3251 = vmatprep.subr.bf16.mxu0 0
      %3252 = vmatpush1.bf16.msra.mxu0 %v3236
      %3253 = vmatprep.subr.bf16.mxu0 0
      %3254 = vmatpush1.bf16.msra.mxu0 %v3235
      %3255 = vmatprep.subr.bf16.mxu0 0
      %3256 = vmatpush1.bf16.msra.mxu0 %v3234
      %3257 = vmatprep.subr.bf16.mxu0 0
      %3258 = vmatpush1.bf16.msra.mxu0 %v3233
      %3259 = vmatprep.subr.bf16.mxu0 0
      %3260 = vmatpush1.bf16.msra.mxu0 %v3232
      %3261 = vmatprep.subr.bf16.mxu0 0
      %3262 = vmatpush1.bf16.msra.mxu0 %v3231
      %3263 = vmatprep.subr.bf16.mxu0 0
      %3264 = vmatpush2.bf16.msra.mxu0 0
      %3265 = vmatprep.subr.bf16.mxu0 0
      %3266 = vmatpush2.bf16.msra.mxu0 0
      %3267 = vmatprep.subr.bf16.mxu0 0
      %3268 = vmatpush2.bf16.msra.mxu0 0
      %3269 = vmatprep.subr.bf16.mxu0 0
      %3270 = vmatpush2.bf16.msra.mxu0 0
      %3271 = vmatprep.subr.bf16.mxu0 0
      %3272 = vmatpush2.bf16.msra.mxu0 0
      %3273 = vmatprep.subr.bf16.mxu0 0
      %3274 = vmatpush2.bf16.msra.mxu0 0
      %3275 = vmatprep.subr.bf16.mxu0 0
      %3276 = vmatpush2.bf16.msra.mxu0 0
      %3277 = vmatprep.subr.bf16.mxu0 0
      %3278 = vmatpush2.bf16.msra.mxu0 0
      %3279 = vmatprep.mubr.bf16.mxu0 0
      %3280 = vmatmul.mubr.bf16.gmra.mxu0 %v3197
      %v3281 = vpop.f32.mrf.mxu0
      %v3282 = vadd.f32 0.0, %v3281
      %v3283 = vpop.f32.mrf.mxu0
      %v3284 = vpop.f32.mrf.mxu0
      %v3285 = vpop.f32.mrf.mxu0
      %3286 = vdwg.mxu0
      %v3303 = vunpack.c.l.b16 %v3164
      %v3304 = vunpack.c.l.b16 %v3165
      %v3305 = vunpack.c.l.b16 %v3166
      %v3306 = vunpack.c.l.b16 %v3167
      %v3307 = vunpack.c.l.b16 %v3168
      %v3308 = vunpack.c.l.b16 %v3169
      %v3309 = vunpack.c.l.b16 %v3170
      %v3310 = vunpack.c.l.b16 %v3171
      %v3311 = vunpack.c.l.b16 %v3172
      %v3312 = vunpack.c.l.b16 %v3173
      %v3313 = vunpack.c.l.b16 %v3174
      %v3314 = vunpack.c.l.b16 %v3175
      %v3315 = vunpack.c.l.b16 %v3176
      %v3316 = vunpack.c.l.b16 %v3177
      %v3317 = vunpack.c.l.b16 %v3178
      %v3318 = vunpack.c.l.b16 %v3179
      %v3319 = vpack.c.b16 %v3304, %v3303
      %v3320 = vpack.c.b16 %v3306, %v3305
      %v3321 = vpack.c.b16 %v3308, %v3307
      %v3322 = vpack.c.b16 %v3310, %v3309
      %v3323 = vpack.c.b16 %v3312, %v3311
      %v3324 = vpack.c.b16 %v3314, %v3313
      %v3325 = vpack.c.b16 %v3316, %v3315
      %v3326 = vpack.c.b16 %v3318, %v3317
      %3335 = vmatprep.subr.bf16.mxu0 0
      %3336 = vmatpush1.bf16.msra.mxu0 %v3326
      %3337 = vmatprep.subr.bf16.mxu0 0
      %3338 = vmatpush1.bf16.msra.mxu0 %v3325
      %3339 = vmatprep.subr.bf16.mxu0 0
      %3340 = vmatpush1.bf16.msra.mxu0 %v3324
      %3341 = vmatprep.subr.bf16.mxu0 0
      %3342 = vmatpush1.bf16.msra.mxu0 %v3323
      %3343 = vmatprep.subr.bf16.mxu0 0
      %3344 = vmatpush1.bf16.msra.mxu0 %v3322
      %3345 = vmatprep.subr.bf16.mxu0 0
      %3346 = vmatpush1.bf16.msra.mxu0 %v3321
      %3347 = vmatprep.subr.bf16.mxu0 0
      %3348 = vmatpush1.bf16.msra.mxu0 %v3320
      %3349 = vmatprep.subr.bf16.mxu0 0
      %3350 = vmatpush1.bf16.msra.mxu0 %v3319
      %3351 = vmatprep.subr.bf16.mxu0 0
      %3352 = vmatpush2.bf16.msra.mxu0 0
      %3353 = vmatprep.subr.bf16.mxu0 0
      %3354 = vmatpush2.bf16.msra.mxu0 0
      %3355 = vmatprep.subr.bf16.mxu0 0
      %3356 = vmatpush2.bf16.msra.mxu0 0
      %3357 = vmatprep.subr.bf16.mxu0 0
      %3358 = vmatpush2.bf16.msra.mxu0 0
      %3359 = vmatprep.subr.bf16.mxu0 0
      %3360 = vmatpush2.bf16.msra.mxu0 0
      %3361 = vmatprep.subr.bf16.mxu0 0
      %3362 = vmatpush2.bf16.msra.mxu0 0
      %3363 = vmatprep.subr.bf16.mxu0 0
      %3364 = vmatpush2.bf16.msra.mxu0 0
      %3365 = vmatprep.subr.bf16.mxu0 0
      %3366 = vmatpush2.bf16.msra.mxu0 0
      %3367 = vmatprep.mubr.bf16.mxu0 0
      %3368 = vmatmul.mubr.bf16.gmra.mxu0 %v3163
      %v3369 = vpop.f32.mrf.mxu0
      %v3370 = vadd.f32 %v3282, %v3369
      %v3371 = vpop.f32.mrf.mxu0
      %v3372 = vpop.f32.mrf.mxu0
      %v3373 = vpop.f32.mrf.mxu0
      %3374 = vdwg.mxu0
      %v3375 = vld [vmem:[%s29 + $0x80] sm:$0xf]
      %v3376 = vld [vmem:[%s29 + $0x84] sm:$0xf]
      %v3377 = vld [vmem:[%s29 + $0x88] sm:$0xf]
      %v3378 = vld [vmem:[%s29 + $0x8c] sm:$0xf]
      %v3379 = vld [vmem:[%s29 + $0x90] sm:$0xf]
      %v3380 = vld [vmem:[%s29 + $0x94] sm:$0xf]
      %v3381 = vld [vmem:[%s29 + $0x98] sm:$0xf]
      %v3382 = vld [vmem:[%s29 + $0x9c] sm:$0xf]
      %v3383 = vld [vmem:[%s29 + $0xa0] sm:$0xf]
      %v3384 = vld [vmem:[%s29 + $0xa4] sm:$0xf]
      %v3385 = vld [vmem:[%s29 + $0xa8] sm:$0xf]
      %v3386 = vld [vmem:[%s29 + $0xac] sm:$0xf]
      %v3387 = vld [vmem:[%s29 + $0xb0] sm:$0xf]
      %v3388 = vld [vmem:[%s29 + $0xb4] sm:$0xf]
      %v3389 = vld [vmem:[%s29 + $0xb8] sm:$0xf]
      %v3390 = vld [vmem:[%s29 + $0xbc] sm:$0xf]
      %v3391 = vrot.slane %v3163, 4
      %v3409 = vunpack.c.l.b16 %v3375
      %v3410 = vunpack.c.l.b16 %v3376
      %v3411 = vunpack.c.l.b16 %v3377
      %v3412 = vunpack.c.l.b16 %v3378
      %v3413 = vunpack.c.l.b16 %v3379
      %v3414 = vunpack.c.l.b16 %v3380
      %v3415 = vunpack.c.l.b16 %v3381
      %v3416 = vunpack.c.l.b16 %v3382
      %v3417 = vunpack.c.l.b16 %v3383
      %v3418 = vunpack.c.l.b16 %v3384
      %v3419 = vunpack.c.l.b16 %v3385
      %v3420 = vunpack.c.l.b16 %v3386
      %v3421 = vunpack.c.l.b16 %v3387
      %v3422 = vunpack.c.l.b16 %v3388
      %v3423 = vunpack.c.l.b16 %v3389
      %v3424 = vunpack.c.l.b16 %v3390
      %v3425 = vpack.c.b16 %v3410, %v3409
      %v3426 = vpack.c.b16 %v3412, %v3411
      %v3427 = vpack.c.b16 %v3414, %v3413
      %v3428 = vpack.c.b16 %v3416, %v3415
      %v3429 = vpack.c.b16 %v3418, %v3417
      %v3430 = vpack.c.b16 %v3420, %v3419
      %v3431 = vpack.c.b16 %v3422, %v3421
      %v3432 = vpack.c.b16 %v3424, %v3423
      %3441 = vmatprep.subr.bf16.mxu0 0
      %3442 = vmatpush1.bf16.msra.mxu0 %v3432
      %3443 = vmatprep.subr.bf16.mxu0 0
      %3444 = vmatpush1.bf16.msra.mxu0 %v3431
      %3445 = vmatprep.subr.bf16.mxu0 0
      %3446 = vmatpush1.bf16.msra.mxu0 %v3430
      %3447 = vmatprep.subr.bf16.mxu0 0
      %3448 = vmatpush1.bf16.msra.mxu0 %v3429
      %3449 = vmatprep.subr.bf16.mxu0 0
      %3450 = vmatpush1.bf16.msra.mxu0 %v3428
      %3451 = vmatprep.subr.bf16.mxu0 0
      %3452 = vmatpush1.bf16.msra.mxu0 %v3427
      %3453 = vmatprep.subr.bf16.mxu0 0
      %3454 = vmatpush1.bf16.msra.mxu0 %v3426
      %3455 = vmatprep.subr.bf16.mxu0 0
      %3456 = vmatpush1.bf16.msra.mxu0 %v3425
      %3457 = vmatprep.subr.bf16.mxu0 0
      %3458 = vmatpush2.bf16.msra.mxu0 0
      %3459 = vmatprep.subr.bf16.mxu0 0
      %3460 = vmatpush2.bf16.msra.mxu0 0
      %3461 = vmatprep.subr.bf16.mxu0 0
      %3462 = vmatpush2.bf16.msra.mxu0 0
      %3463 = vmatprep.subr.bf16.mxu0 0
      %3464 = vmatpush2.bf16.msra.mxu0 0
      %3465 = vmatprep.subr.bf16.mxu0 0
      %3466 = vmatpush2.bf16.msra.mxu0 0
      %3467 = vmatprep.subr.bf16.mxu0 0
      %3468 = vmatpush2.bf16.msra.mxu0 0
      %3469 = vmatprep.subr.bf16.mxu0 0
      %3470 = vmatpush2.bf16.msra.mxu0 0
      %3471 = vmatprep.subr.bf16.mxu0 0
      %3472 = vmatpush2.bf16.msra.mxu0 0
      %3473 = vmatprep.mubr.bf16.mxu0 0
      %3474 = vmatmul.mubr.bf16.gmra.mxu0 %v3391
      %v3475 = vpop.f32.mrf.mxu0
      %v3476 = vadd.f32 0.0, %v3475
      %v3477 = vpop.f32.mrf.mxu0
      %v3478 = vpop.f32.mrf.mxu0
      %v3479 = vpop.f32.mrf.mxu0
      %3480 = vdwg.mxu0
      %v3481 = vadd.f32 %v3370, %v3476
      %v3482 = vld [vmem:[%s31] sm:$0x1]
      %v3484 = vlaneseq
      %v3485 = vshrl.u32 %v3484, 7
      %v3486 = vsub.s32 0, %v3485
      %v3487 = vrot.slane %v3482, %v3486
      %v3489 = vadd.f32 %v3481, %v3487
      %v3490 = vmax.f32 %v3489, 0.0
      %v3491 = vpack.c.bf16 %v3490, %v3490
      %v3492 = vld [vmem:[%s33] sm:$0xf]
      %v3493 = vld [vmem:[%s33 + $0x4] sm:$0x3]
      %v3496 = vunpack.c.l.b16 %v3492
      %v3497 = vunpack.c.l.b16 %v3493
      %v3498 = vpack.c.b16 %v3497, %v3496
      %vm3499 = vcmask 31744
      %v3501 = vsel %vm3499, %v3498, 0
      %vm3503 = vcmask 1041408
      %v3505 = vsel %vm3503, %v3491, 0
      %3507 = vmatprep.subr.bf16.mxu0 0
      %3508 = vmatpush1.bf16.msra.mxu0 0
      %3509 = vmatprep.subr.bf16.mxu0 0
      %3510 = vmatpush1.bf16.msra.mxu0 0
      %3511 = vmatprep.subr.bf16.mxu0 0
      %3512 = vmatpush1.bf16.msra.mxu0 0
      %3513 = vmatprep.subr.bf16.mxu0 0
      %3514 = vmatpush1.bf16.msra.mxu0 0
      %3515 = vmatprep.subr.bf16.mxu0 0
      %3516 = vmatpush1.bf16.msra.mxu0 0
      %3517 = vmatprep.subr.bf16.mxu0 0
      %3518 = vmatpush1.bf16.msra.mxu0 0
      %3519 = vmatprep.subr.bf16.mxu0 0
      %3520 = vmatpush1.bf16.msra.mxu0 0
      %3521 = vmatprep.subr.bf16.mxu0 0
      %3522 = vmatpush1.bf16.msra.mxu0 %v3505
      %3523 = vmatprep.subr.bf16.mxu0 0
      %3524 = vmatpush2.bf16.msra.mxu0 0
      %3525 = vmatprep.subr.bf16.mxu0 0
      %3526 = vmatpush2.bf16.msra.mxu0 0
      %3527 = vmatprep.subr.bf16.mxu0 0
      %3528 = vmatpush2.bf16.msra.mxu0 0
      %3529 = vmatprep.subr.bf16.mxu0 0
      %3530 = vmatpush2.bf16.msra.mxu0 0
      %3531 = vmatprep.subr.bf16.mxu0 0
      %3532 = vmatpush2.bf16.msra.mxu0 0
      %3533 = vmatprep.subr.bf16.mxu0 0
      %3534 = vmatpush2.bf16.msra.mxu0 0
      %3535 = vmatprep.subr.bf16.mxu0 0
      %3536 = vmatpush2.bf16.msra.mxu0 0
      %3537 = vmatprep.subr.bf16.mxu0 0
      %3538 = vmatpush2.bf16.msra.mxu0 0
      %3539 = vmatprep.mubr.bf16.mxu0 0
      %3540 = vmatmul.mubr.bf16.gmra.mxu0 %v3501
      %v3541 = vpop.f32.mrf.mxu0
      %v3542 = vadd.f32 0.0, %v3541
      %v3543 = vpop.f32.mrf.mxu0
      %v3544 = vpop.f32.mrf.mxu0
      %v3545 = vadd.f32 0.0, %v3544
      %v3546 = vpop.f32.mrf.mxu0
      %3547 = vdwg.mxu0
      %v3548 = vpack.c.bf16 %v3545, %v3542
      %v3549 = vld [vmem:[%s35] sm:$0xf]
      %v3550 = vld [vmem:[%s35 + $0x4] sm:$0xf]
      %v3551 = vld [vmem:[%s35 + $0x8] sm:$0xf]
      %v3552 = vld [vmem:[%s35 + $0xc] sm:$0xf]
      %v3553 = vld [vmem:[%s35 + $0x10] sm:$0xf]
      %v3554 = vld [vmem:[%s35 + $0x14] sm:$0xf]
      %v3555 = vld [vmem:[%s35 + $0x18] sm:$0xf]
      %v3556 = vld [vmem:[%s35 + $0x1c] sm:$0xf]
      %v3557 = vld [vmem:[%s35 + $0x20] sm:$0xf]
      %v3558 = vld [vmem:[%s35 + $0x24] sm:$0xf]
      %v3559 = vld [vmem:[%s35 + $0x28] sm:$0xf]
      %v3560 = vld [vmem:[%s35 + $0x2c] sm:$0xf]
      %v3561 = vld [vmem:[%s35 + $0x30] sm:$0xf]
      %v3562 = vld [vmem:[%s35 + $0x34] sm:$0xf]
      %v3563 = vld [vmem:[%s35 + $0x38] sm:$0xf]
      %v3564 = vld [vmem:[%s35 + $0x3c] sm:$0xf]
      %v3566 = vrot.slane %v3548, 2
      %v3575 = vunpack.c.l.b16 %v3557
      %v3576 = vunpack.c.l.b16 %v3558
      %v3577 = vunpack.c.l.b16 %v3559
      %v3578 = vunpack.c.l.b16 %v3560
      %v3579 = vunpack.c.l.b16 %v3561
      %v3580 = vunpack.c.l.b16 %v3562
      %v3581 = vunpack.c.l.b16 %v3563
      %v3582 = vunpack.c.l.b16 %v3564
      %v3583 = vpack.c.b16 %v3576, %v3575
      %v3584 = vpack.c.b16 %v3578, %v3577
      %v3585 = vpack.c.b16 %v3580, %v3579
      %v3586 = vpack.c.b16 %v3582, %v3581
      %vm3591 = vcmask 523264
      %v3593 = vsel %vm3591, %v3566, 0
      %3595 = vmatprep.subr.bf16.mxu0 0
      %3596 = vmatpush1.bf16.msra.mxu0 0
      %3597 = vmatprep.subr.bf16.mxu0 0
      %3598 = vmatpush1.bf16.msra.mxu0 0
      %3599 = vmatprep.subr.bf16.mxu0 0
      %3600 = vmatpush1.bf16.msra.mxu0 0
      %3601 = vmatprep.subr.bf16.mxu0 0
      %3602 = vmatpush1.bf16.msra.mxu0 0
      %3603 = vmatprep.subr.bf16.mxu0 0
      %3604 = vmatpush1.bf16.msra.mxu0 %v3586
      %3605 = vmatprep.subr.bf16.mxu0 0
      %3606 = vmatpush1.bf16.msra.mxu0 %v3585
      %3607 = vmatprep.subr.bf16.mxu0 0
      %3608 = vmatpush1.bf16.msra.mxu0 %v3584
      %3609 = vmatprep.subr.bf16.mxu0 0
      %3610 = vmatpush1.bf16.msra.mxu0 %v3583
      %3611 = vmatprep.subr.bf16.mxu0 0
      %3612 = vmatpush2.bf16.msra.mxu0 0
      %3613 = vmatprep.subr.bf16.mxu0 0
      %3614 = vmatpush2.bf16.msra.mxu0 0
      %3615 = vmatprep.subr.bf16.mxu0 0
      %3616 = vmatpush2.bf16.msra.mxu0 0
      %3617 = vmatprep.subr.bf16.mxu0 0
      %3618 = vmatpush2.bf16.msra.mxu0 0
      %3619 = vmatprep.subr.bf16.mxu0 0
      %3620 = vmatpush2.bf16.msra.mxu0 0
      %3621 = vmatprep.subr.bf16.mxu0 0
      %3622 = vmatpush2.bf16.msra.mxu0 0
      %3623 = vmatprep.subr.bf16.mxu0 0
      %3624 = vmatpush2.bf16.msra.mxu0 0
      %3625 = vmatprep.subr.bf16.mxu0 0
      %3626 = vmatpush2.bf16.msra.mxu0 0
      %3627 = vmatprep.mubr.bf16.mxu0 0
      %3628 = vmatmul.mubr.bf16.gmra.mxu0 %v3593
      %v3629 = vpop.f32.mrf.mxu0
      %v3630 = vadd.f32 0.0, %v3629
      %v3631 = vpop.f32.mrf.mxu0
      %v3632 = vpop.f32.mrf.mxu0
      %v3633 = vpop.f32.mrf.mxu0
      %3634 = vdwg.mxu0
      %v3643 = vunpack.c.l.b16 %v3549
      %v3644 = vunpack.c.l.b16 %v3550
      %v3645 = vunpack.c.l.b16 %v3551
      %v3646 = vunpack.c.l.b16 %v3552
      %v3647 = vunpack.c.l.b16 %v3553
      %v3648 = vunpack.c.l.b16 %v3554
      %v3649 = vunpack.c.l.b16 %v3555
      %v3650 = vunpack.c.l.b16 %v3556
      %v3651 = vpack.c.b16 %v3644, %v3643
      %v3652 = vpack.c.b16 %v3646, %v3645
      %v3653 = vpack.c.b16 %v3648, %v3647
      %v3654 = vpack.c.b16 %v3650, %v3649
      %v3660 = vsel %vm3591, %v3548, 0
      %3662 = vmatprep.subr.bf16.mxu0 0
      %3663 = vmatpush1.bf16.msra.mxu0 0
      %3664 = vmatprep.subr.bf16.mxu0 0
      %3665 = vmatpush1.bf16.msra.mxu0 0
      %3666 = vmatprep.subr.bf16.mxu0 0
      %3667 = vmatpush1.bf16.msra.mxu0 0
      %3668 = vmatprep.subr.bf16.mxu0 0
      %3669 = vmatpush1.bf16.msra.mxu0 0
      %3670 = vmatprep.subr.bf16.mxu0 0
      %3671 = vmatpush1.bf16.msra.mxu0 %v3654
      %3672 = vmatprep.subr.bf16.mxu0 0
      %3673 = vmatpush1.bf16.msra.mxu0 %v3653
      %3674 = vmatprep.subr.bf16.mxu0 0
      %3675 = vmatpush1.bf16.msra.mxu0 %v3652
      %3676 = vmatprep.subr.bf16.mxu0 0
      %3677 = vmatpush1.bf16.msra.mxu0 %v3651
      %3678 = vmatprep.subr.bf16.mxu0 0
      %3679 = vmatpush2.bf16.msra.mxu0 0
      %3680 = vmatprep.subr.bf16.mxu0 0
      %3681 = vmatpush2.bf16.msra.mxu0 0
      %3682 = vmatprep.subr.bf16.mxu0 0
      %3683 = vmatpush2.bf16.msra.mxu0 0
      %3684 = vmatprep.subr.bf16.mxu0 0
      %3685 = vmatpush2.bf16.msra.mxu0 0
      %3686 = vmatprep.subr.bf16.mxu0 0
      %3687 = vmatpush2.bf16.msra.mxu0 0
      %3688 = vmatprep.subr.bf16.mxu0 0
      %3689 = vmatpush2.bf16.msra.mxu0 0
      %3690 = vmatprep.subr.bf16.mxu0 0
      %3691 = vmatpush2.bf16.msra.mxu0 0
      %3692 = vmatprep.subr.bf16.mxu0 0
      %3693 = vmatpush2.bf16.msra.mxu0 0
      %3694 = vmatprep.mubr.bf16.mxu0 0
      %3695 = vmatmul.mubr.bf16.gmra.mxu0 %v3660
      %v3696 = vpop.f32.mrf.mxu0
      %v3697 = vadd.f32 %v3630, %v3696
      %v3698 = vpop.f32.mrf.mxu0
      %v3699 = vpop.f32.mrf.mxu0
      %v3700 = vpop.f32.mrf.mxu0
      %3701 = vdwg.mxu0
      %v3702 = vld [vmem:[%s35 + $0x40] sm:$0xf]
      %v3703 = vld [vmem:[%s35 + $0x44] sm:$0xf]
      %v3704 = vld [vmem:[%s35 + $0x48] sm:$0xf]
      %v3705 = vld [vmem:[%s35 + $0x4c] sm:$0xf]
      %v3706 = vld [vmem:[%s35 + $0x50] sm:$0xf]
      %v3707 = vld [vmem:[%s35 + $0x54] sm:$0xf]
      %v3708 = vld [vmem:[%s35 + $0x58] sm:$0xf]
      %v3709 = vld [vmem:[%s35 + $0x5c] sm:$0xf]
      %v3710 = vrot.slane %v3548, 4
      %v3719 = vunpack.c.l.b16 %v3702
      %v3720 = vunpack.c.l.b16 %v3703
      %v3721 = vunpack.c.l.b16 %v3704
      %v3722 = vunpack.c.l.b16 %v3705
      %v3723 = vunpack.c.l.b16 %v3706
      %v3724 = vunpack.c.l.b16 %v3707
      %v3725 = vunpack.c.l.b16 %v3708
      %v3726 = vunpack.c.l.b16 %v3709
      %v3727 = vpack.c.b16 %v3720, %v3719
      %v3728 = vpack.c.b16 %v3722, %v3721
      %v3729 = vpack.c.b16 %v3724, %v3723
      %v3730 = vpack.c.b16 %v3726, %v3725
      %v3736 = vsel %vm3591, %v3710, 0
      %3738 = vmatprep.subr.bf16.mxu0 0
      %3739 = vmatpush1.bf16.msra.mxu0 0
      %3740 = vmatprep.subr.bf16.mxu0 0
      %3741 = vmatpush1.bf16.msra.mxu0 0
      %3742 = vmatprep.subr.bf16.mxu0 0
      %3743 = vmatpush1.bf16.msra.mxu0 0
      %3744 = vmatprep.subr.bf16.mxu0 0
      %3745 = vmatpush1.bf16.msra.mxu0 0
      %3746 = vmatprep.subr.bf16.mxu0 0
      %3747 = vmatpush1.bf16.msra.mxu0 %v3730
      %3748 = vmatprep.subr.bf16.mxu0 0
      %3749 = vmatpush1.bf16.msra.mxu0 %v3729
      %3750 = vmatprep.subr.bf16.mxu0 0
      %3751 = vmatpush1.bf16.msra.mxu0 %v3728
      %3752 = vmatprep.subr.bf16.mxu0 0
      %3753 = vmatpush1.bf16.msra.mxu0 %v3727
      %3754 = vmatprep.subr.bf16.mxu0 0
      %3755 = vmatpush2.bf16.msra.mxu0 0
      %3756 = vmatprep.subr.bf16.mxu0 0
      %3757 = vmatpush2.bf16.msra.mxu0 0
      %3758 = vmatprep.subr.bf16.mxu0 0
      %3759 = vmatpush2.bf16.msra.mxu0 0
      %3760 = vmatprep.subr.bf16.mxu0 0
      %3761 = vmatpush2.bf16.msra.mxu0 0
      %3762 = vmatprep.subr.bf16.mxu0 0
      %3763 = vmatpush2.bf16.msra.mxu0 0
      %3764 = vmatprep.subr.bf16.mxu0 0
      %3765 = vmatpush2.bf16.msra.mxu0 0
      %3766 = vmatprep.subr.bf16.mxu0 0
      %3767 = vmatpush2.bf16.msra.mxu0 0
      %3768 = vmatprep.subr.bf16.mxu0 0
      %3769 = vmatpush2.bf16.msra.mxu0 0
      %3770 = vmatprep.mubr.bf16.mxu0 0
      %3771 = vmatmul.mubr.bf16.gmra.mxu0 %v3736
      %v3772 = vpop.f32.mrf.mxu0
      %v3773 = vadd.f32 0.0, %v3772
      %v3774 = vpop.f32.mrf.mxu0
      %v3775 = vpop.f32.mrf.mxu0
      %v3776 = vpop.f32.mrf.mxu0
      %3777 = vdwg.mxu0
      %v3778 = vadd.f32 %v3697, %v3773
      %v3779 = vld [vmem:[%s37] sm:$0x1]
      %v3781 = vlaneseq
      %v3782 = vshrl.u32 %v3781, 7
      %v3783 = vsub.s32 0, %v3782
      %v3784 = vrot.slane %v3779, %v3783
      %v3786 = vadd.f32 %v3778, %v3784
      %v3787 = vmax.f32 %v3786, 0.0
      %v3788 = vpack.c.bf16 %v3787, %v3787
      %v3789 = vld [vmem:[%s39] sm:$0x7]
      %v3791 = vsel %vm3499, %v3789, 0
      %v3794 = vsel %vm3503, %v3788, 0
      %3796 = vmatprep.subr.bf16.mxu0 0
      %3797 = vmatpush1.bf16.msra.mxu0 0
      %3798 = vmatprep.subr.bf16.mxu0 0
      %3799 = vmatpush1.bf16.msra.mxu0 0
      %3800 = vmatprep.subr.bf16.mxu0 0
      %3801 = vmatpush1.bf16.msra.mxu0 0
      %3802 = vmatprep.subr.bf16.mxu0 0
      %3803 = vmatpush1.bf16.msra.mxu0 0
      %3804 = vmatprep.subr.bf16.mxu0 0
      %3805 = vmatpush1.bf16.msra.mxu0 0
      %3806 = vmatprep.subr.bf16.mxu0 0
      %3807 = vmatpush1.bf16.msra.mxu0 0
      %3808 = vmatprep.subr.bf16.mxu0 0
      %3809 = vmatpush1.bf16.msra.mxu0 0
      %3810 = vmatprep.subr.bf16.mxu0 0
      %3811 = vmatpush1.bf16.msra.mxu0 %v3794
      %3812 = vmatprep.subr.bf16.mxu0 0
      %3813 = vmatpush2.bf16.msra.mxu0 0
      %3814 = vmatprep.subr.bf16.mxu0 0
      %3815 = vmatpush2.bf16.msra.mxu0 0
      %3816 = vmatprep.subr.bf16.mxu0 0
      %3817 = vmatpush2.bf16.msra.mxu0 0
      %3818 = vmatprep.subr.bf16.mxu0 0
      %3819 = vmatpush2.bf16.msra.mxu0 0
      %3820 = vmatprep.subr.bf16.mxu0 0
      %3821 = vmatpush2.bf16.msra.mxu0 0
      %3822 = vmatprep.subr.bf16.mxu0 0
      %3823 = vmatpush2.bf16.msra.mxu0 0
      %3824 = vmatprep.subr.bf16.mxu0 0
      %3825 = vmatpush2.bf16.msra.mxu0 0
      %3826 = vmatprep.subr.bf16.mxu0 0
      %3827 = vmatpush2.bf16.msra.mxu0 0
      %3828 = vmatprep.mubr.bf16.mxu0 0
      %3829 = vmatmul.mubr.bf16.gmra.mxu0 %v3791
      %v3830 = vpop.f32.mrf.mxu0
      %v3831 = vadd.f32 0.0, %v3830
      %v3832 = vpop.f32.mrf.mxu0
      %v3833 = vpop.f32.mrf.mxu0
      %v3834 = vpop.f32.mrf.mxu0
      %3835 = vdwg.mxu0
      %v3836 = vpack.c.bf16 %v3831, %v3831
      %v3837 = vld [vmem:[%s41] sm:$0xf]
      %v3838 = vld [vmem:[%s41 + $0x4] sm:$0xf]
      %v3839 = vld [vmem:[%s41 + $0x8] sm:$0xf]
      %v3840 = vld [vmem:[%s41 + $0xc] sm:$0xf]
      %v3841 = vld [vmem:[%s41 + $0x10] sm:$0xf]
      %v3842 = vld [vmem:[%s41 + $0x14] sm:$0xf]
      %v3843 = vld [vmem:[%s41 + $0x18] sm:$0xf]
      %v3844 = vld [vmem:[%s41 + $0x1c] sm:$0xf]
      %v3845 = vld [vmem:[%s41 + $0x20] sm:$0xf]
      %v3846 = vld [vmem:[%s41 + $0x24] sm:$0xf]
      %v3847 = vld [vmem:[%s41 + $0x28] sm:$0xf]
      %v3848 = vld [vmem:[%s41 + $0x2c] sm:$0xf]
      %v3849 = vld [vmem:[%s41 + $0x30] sm:$0xf]
      %v3850 = vld [vmem:[%s41 + $0x34] sm:$0xf]
      %v3851 = vld [vmem:[%s41 + $0x38] sm:$0xf]
      %v3852 = vld [vmem:[%s41 + $0x3c] sm:$0xf]
      %v3854 = vrot.slane %v3836, 1
      %v3863 = vunpack.c.l.b16 %v3845
      %v3864 = vunpack.c.l.b16 %v3846
      %v3865 = vunpack.c.l.b16 %v3847
      %v3866 = vunpack.c.l.b16 %v3848
      %v3867 = vunpack.c.l.b16 %v3849
      %v3868 = vunpack.c.l.b16 %v3850
      %v3869 = vunpack.c.l.b16 %v3851
      %v3870 = vunpack.c.l.b16 %v3852
      %v3871 = vpack.c.b16 %v3864, %v3863
      %v3872 = vpack.c.b16 %v3866, %v3865
      %v3873 = vpack.c.b16 %v3868, %v3867
      %v3874 = vpack.c.b16 %v3870, %v3869
      %v3880 = vsel %vm3591, %v3854, 0
      %3882 = vmatprep.subr.bf16.mxu0 0
      %3883 = vmatpush1.bf16.msra.mxu0 0
      %3884 = vmatprep.subr.bf16.mxu0 0
      %3885 = vmatpush1.bf16.msra.mxu0 0
      %3886 = vmatprep.subr.bf16.mxu0 0
      %3887 = vmatpush1.bf16.msra.mxu0 0
      %3888 = vmatprep.subr.bf16.mxu0 0
      %3889 = vmatpush1.bf16.msra.mxu0 0
      %3890 = vmatprep.subr.bf16.mxu0 0
      %3891 = vmatpush1.bf16.msra.mxu0 %v3874
      %3892 = vmatprep.subr.bf16.mxu0 0
      %3893 = vmatpush1.bf16.msra.mxu0 %v3873
      %3894 = vmatprep.subr.bf16.mxu0 0
      %3895 = vmatpush1.bf16.msra.mxu0 %v3872
      %3896 = vmatprep.subr.bf16.mxu0 0
      %3897 = vmatpush1.bf16.msra.mxu0 %v3871
      %3898 = vmatprep.subr.bf16.mxu0 0
      %3899 = vmatpush2.bf16.msra.mxu0 0
      %3900 = vmatprep.subr.bf16.mxu0 0
      %3901 = vmatpush2.bf16.msra.mxu0 0
      %3902 = vmatprep.subr.bf16.mxu0 0
      %3903 = vmatpush2.bf16.msra.mxu0 0
      %3904 = vmatprep.subr.bf16.mxu0 0
      %3905 = vmatpush2.bf16.msra.mxu0 0
      %3906 = vmatprep.subr.bf16.mxu0 0
      %3907 = vmatpush2.bf16.msra.mxu0 0
      %3908 = vmatprep.subr.bf16.mxu0 0
      %3909 = vmatpush2.bf16.msra.mxu0 0
      %3910 = vmatprep.subr.bf16.mxu0 0
      %3911 = vmatpush2.bf16.msra.mxu0 0
      %3912 = vmatprep.subr.bf16.mxu0 0
      %3913 = vmatpush2.bf16.msra.mxu0 0
      %3914 = vmatprep.mubr.bf16.mxu0 0
      %3915 = vmatmul.mubr.bf16.gmra.mxu0 %v3880
      %v3916 = vpop.f32.mrf.mxu0
      %v3917 = vadd.f32 0.0, %v3916
      %v3918 = vpop.f32.mrf.mxu0
      %v3919 = vpop.f32.mrf.mxu0
      %v3920 = vpop.f32.mrf.mxu0
      %3921 = vdwg.mxu0
      %v3930 = vunpack.c.l.b16 %v3837
      %v3931 = vunpack.c.l.b16 %v3838
      %v3932 = vunpack.c.l.b16 %v3839
      %v3933 = vunpack.c.l.b16 %v3840
      %v3934 = vunpack.c.l.b16 %v3841
      %v3935 = vunpack.c.l.b16 %v3842
      %v3936 = vunpack.c.l.b16 %v3843
      %v3937 = vunpack.c.l.b16 %v3844
      %v3938 = vpack.c.b16 %v3931, %v3930
      %v3939 = vpack.c.b16 %v3933, %v3932
      %v3940 = vpack.c.b16 %v3935, %v3934
      %v3941 = vpack.c.b16 %v3937, %v3936
      %v3947 = vsel %vm3591, %v3836, 0
      %3949 = vmatprep.subr.bf16.mxu0 0
      %3950 = vmatpush1.bf16.msra.mxu0 0
      %3951 = vmatprep.subr.bf16.mxu0 0
      %3952 = vmatpush1.bf16.msra.mxu0 0
      %3953 = vmatprep.subr.bf16.mxu0 0
      %3954 = vmatpush1.bf16.msra.mxu0 0
      %3955 = vmatprep.subr.bf16.mxu0 0
      %3956 = vmatpush1.bf16.msra.mxu0 0
      %3957 = vmatprep.subr.bf16.mxu0 0
      %3958 = vmatpush1.bf16.msra.mxu0 %v3941
      %3959 = vmatprep.subr.bf16.mxu0 0
      %3960 = vmatpush1.bf16.msra.mxu0 %v3940
      %3961 = vmatprep.subr.bf16.mxu0 0
      %3962 = vmatpush1.bf16.msra.mxu0 %v3939
      %3963 = vmatprep.subr.bf16.mxu0 0
      %3964 = vmatpush1.bf16.msra.mxu0 %v3938
      %3965 = vmatprep.subr.bf16.mxu0 0
      %3966 = vmatpush2.bf16.msra.mxu0 0
      %3967 = vmatprep.subr.bf16.mxu0 0
      %3968 = vmatpush2.bf16.msra.mxu0 0
      %3969 = vmatprep.subr.bf16.mxu0 0
      %3970 = vmatpush2.bf16.msra.mxu0 0
      %3971 = vmatprep.subr.bf16.mxu0 0
      %3972 = vmatpush2.bf16.msra.mxu0 0
      %3973 = vmatprep.subr.bf16.mxu0 0
      %3974 = vmatpush2.bf16.msra.mxu0 0
      %3975 = vmatprep.subr.bf16.mxu0 0
      %3976 = vmatpush2.bf16.msra.mxu0 0
      %3977 = vmatprep.subr.bf16.mxu0 0
      %3978 = vmatpush2.bf16.msra.mxu0 0
      %3979 = vmatprep.subr.bf16.mxu0 0
      %3980 = vmatpush2.bf16.msra.mxu0 0
      %3981 = vmatprep.mubr.bf16.mxu0 0
      %3982 = vmatmul.mubr.bf16.gmra.mxu0 %v3947
      %v3983 = vpop.f32.mrf.mxu0
      %v3984 = vadd.f32 %v3917, %v3983
      %v3985 = vpop.f32.mrf.mxu0
      %v3986 = vpop.f32.mrf.mxu0
      %v3987 = vpop.f32.mrf.mxu0
      %3988 = vdwg.mxu0
      %v3989 = vld [vmem:[%s41 + $0x40] sm:$0xf]
      %v3990 = vld [vmem:[%s41 + $0x44] sm:$0xf]
      %v3991 = vld [vmem:[%s41 + $0x48] sm:$0xf]
      %v3992 = vld [vmem:[%s41 + $0x4c] sm:$0xf]
      %v3993 = vld [vmem:[%s41 + $0x50] sm:$0xf]
      %v3994 = vld [vmem:[%s41 + $0x54] sm:$0xf]
      %v3995 = vld [vmem:[%s41 + $0x58] sm:$0xf]
      %v3996 = vld [vmem:[%s41 + $0x5c] sm:$0xf]
      %v3997 = vrot.slane %v3836, 2
      %v4006 = vunpack.c.l.b16 %v3989
      %v4007 = vunpack.c.l.b16 %v3990
      %v4008 = vunpack.c.l.b16 %v3991
      %v4009 = vunpack.c.l.b16 %v3992
      %v4010 = vunpack.c.l.b16 %v3993
      %v4011 = vunpack.c.l.b16 %v3994
      %v4012 = vunpack.c.l.b16 %v3995
      %v4013 = vunpack.c.l.b16 %v3996
      %v4014 = vpack.c.b16 %v4007, %v4006
      %v4015 = vpack.c.b16 %v4009, %v4008
      %v4016 = vpack.c.b16 %v4011, %v4010
      %v4017 = vpack.c.b16 %v4013, %v4012
      %v4023 = vsel %vm3591, %v3997, 0
      %4025 = vmatprep.subr.bf16.mxu0 0
      %4026 = vmatpush1.bf16.msra.mxu0 0
      %4027 = vmatprep.subr.bf16.mxu0 0
      %4028 = vmatpush1.bf16.msra.mxu0 0
      %4029 = vmatprep.subr.bf16.mxu0 0
      %4030 = vmatpush1.bf16.msra.mxu0 0
      %4031 = vmatprep.subr.bf16.mxu0 0
      %4032 = vmatpush1.bf16.msra.mxu0 0
      %4033 = vmatprep.subr.bf16.mxu0 0
      %4034 = vmatpush1.bf16.msra.mxu0 %v4017
      %4035 = vmatprep.subr.bf16.mxu0 0
      %4036 = vmatpush1.bf16.msra.mxu0 %v4016
      %4037 = vmatprep.subr.bf16.mxu0 0
      %4038 = vmatpush1.bf16.msra.mxu0 %v4015
      %4039 = vmatprep.subr.bf16.mxu0 0
      %4040 = vmatpush1.bf16.msra.mxu0 %v4014
      %4041 = vmatprep.subr.bf16.mxu0 0
      %4042 = vmatpush2.bf16.msra.mxu0 0
      %4043 = vmatprep.subr.bf16.mxu0 0
      %4044 = vmatpush2.bf16.msra.mxu0 0
      %4045 = vmatprep.subr.bf16.mxu0 0
      %4046 = vmatpush2.bf16.msra.mxu0 0
      %4047 = vmatprep.subr.bf16.mxu0 0
      %4048 = vmatpush2.bf16.msra.mxu0 0
      %4049 = vmatprep.subr.bf16.mxu0 0
      %4050 = vmatpush2.bf16.msra.mxu0 0
      %4051 = vmatprep.subr.bf16.mxu0 0
      %4052 = vmatpush2.bf16.msra.mxu0 0
      %4053 = vmatprep.subr.bf16.mxu0 0
      %4054 = vmatpush2.bf16.msra.mxu0 0
      %4055 = vmatprep.subr.bf16.mxu0 0
      %4056 = vmatpush2.bf16.msra.mxu0 0
      %4057 = vmatprep.mubr.bf16.mxu0 0
      %4058 = vmatmul.mubr.bf16.gmra.mxu0 %v4023
      %v4059 = vpop.f32.mrf.mxu0
      %v4060 = vadd.f32 0.0, %v4059
      %v4061 = vpop.f32.mrf.mxu0
      %v4062 = vpop.f32.mrf.mxu0
      %v4063 = vpop.f32.mrf.mxu0
      %4064 = vdwg.mxu0
      %v4065 = vadd.f32 %v3984, %v4060
      %v4066 = vld [vmem:[%s43] sm:$0x1]
      %v4068 = vlaneseq
      %v4069 = vshrl.u32 %v4068, 7
      %v4070 = vsub.s32 0, %v4069
      %v4071 = vrot.slane %v4066, %v4070
      %v4073 = vadd.f32 %v4065, %v4071
      %v4074 = vmax.f32 %v4073, 0.0
      %v4075 = vpack.c.bf16 %v4074, %v4074
      %v4076 = vld [vmem:[%s45] sm:$0x7]
      %vm4077 = vcmask 15360
      %v4079 = vsel %vm4077, %v4076, 0
      %vm4081 = vcmask 1040384
      %v4083 = vsel %vm4081, %v4075, 0
      %4085 = vmatprep.subr.bf16.mxu0 0
      %4086 = vmatpush1.bf16.msra.mxu0 0
      %4087 = vmatprep.subr.bf16.mxu0 0
      %4088 = vmatpush1.bf16.msra.mxu0 0
      %4089 = vmatprep.subr.bf16.mxu0 0
      %4090 = vmatpush1.bf16.msra.mxu0 0
      %4091 = vmatprep.subr.bf16.mxu0 0
      %4092 = vmatpush1.bf16.msra.mxu0 0
      %4093 = vmatprep.subr.bf16.mxu0 0
      %4094 = vmatpush1.bf16.msra.mxu0 0
      %4095 = vmatprep.subr.bf16.mxu0 0
      %4096 = vmatpush1.bf16.msra.mxu0 0
      %4097 = vmatprep.subr.bf16.mxu0 0
      %4098 = vmatpush1.bf16.msra.mxu0 0
      %4099 = vmatprep.subr.bf16.mxu0 0
      %4100 = vmatpush1.bf16.msra.mxu0 %v4083
      %4101 = vmatprep.subr.bf16.mxu0 0
      %4102 = vmatpush2.bf16.msra.mxu0 0
      %4103 = vmatprep.subr.bf16.mxu0 0
      %4104 = vmatpush2.bf16.msra.mxu0 0
      %4105 = vmatprep.subr.bf16.mxu0 0
      %4106 = vmatpush2.bf16.msra.mxu0 0
      %4107 = vmatprep.subr.bf16.mxu0 0
      %4108 = vmatpush2.bf16.msra.mxu0 0
      %4109 = vmatprep.subr.bf16.mxu0 0
      %4110 = vmatpush2.bf16.msra.mxu0 0
      %4111 = vmatprep.subr.bf16.mxu0 0
      %4112 = vmatpush2.bf16.msra.mxu0 0
      %4113 = vmatprep.subr.bf16.mxu0 0
      %4114 = vmatpush2.bf16.msra.mxu0 0
      %4115 = vmatprep.subr.bf16.mxu0 0
      %4116 = vmatpush2.bf16.msra.mxu0 0
      %4117 = vmatprep.mubr.bf16.mxu0 0
      %4118 = vmatmul.mubr.bf16.gmra.mxu0 %v4079
      %v4119 = vpop.f32.mrf.mxu0
      %v4120 = vadd.f32 0.0, %v4119
      %v4121 = vpop.f32.mrf.mxu0
      %v4122 = vpop.f32.mrf.mxu0
      %v4123 = vpop.f32.mrf.mxu0
      %4124 = vdwg.mxu0
      %v4125 = vpack.c.bf16 %v4120, %v4120
      %v4126 = vld [vmem:[%s47] sm:$0xf]
      %v4127 = vld [vmem:[%s47 + $0x4] sm:$0xf]
      %v4128 = vld [vmem:[%s47 + $0x8] sm:$0xf]
      %v4129 = vld [vmem:[%s47 + $0xc] sm:$0xf]
      %v4130 = vld [vmem:[%s47 + $0x10] sm:$0xf]
      %v4131 = vld [vmem:[%s47 + $0x14] sm:$0xf]
      %v4132 = vld [vmem:[%s47 + $0x18] sm:$0xf]
      %v4133 = vld [vmem:[%s47 + $0x1c] sm:$0xf]
      %v4134 = vld [vmem:[%s47 + $0x20] sm:$0xf]
      %v4135 = vld [vmem:[%s47 + $0x24] sm:$0xf]
      %v4136 = vld [vmem:[%s47 + $0x28] sm:$0xf]
      %v4137 = vld [vmem:[%s47 + $0x2c] sm:$0xf]
      %v4138 = vld [vmem:[%s47 + $0x30] sm:$0xf]
      %v4139 = vld [vmem:[%s47 + $0x34] sm:$0xf]
      %v4140 = vld [vmem:[%s47 + $0x38] sm:$0xf]
      %v4141 = vld [vmem:[%s47 + $0x3c] sm:$0xf]
      %v4143 = vrot.slane %v4125, 1
      %v4152 = vunpack.c.l.b16 %v4134
      %v4153 = vunpack.c.l.b16 %v4135
      %v4154 = vunpack.c.l.b16 %v4136
      %v4155 = vunpack.c.l.b16 %v4137
      %v4156 = vunpack.c.l.b16 %v4138
      %v4157 = vunpack.c.l.b16 %v4139
      %v4158 = vunpack.c.l.b16 %v4140
      %v4159 = vunpack.c.l.b16 %v4141
      %v4160 = vpack.c.b16 %v4153, %v4152
      %v4161 = vpack.c.b16 %v4155, %v4154
      %v4162 = vpack.c.b16 %v4157, %v4156
      %v4163 = vpack.c.b16 %v4159, %v4158
      %v4169 = vsel %vm3591, %v4143, 0
      %4171 = vmatprep.subr.bf16.mxu0 0
      %4172 = vmatpush1.bf16.msra.mxu0 0
      %4173 = vmatprep.subr.bf16.mxu0 0
      %4174 = vmatpush1.bf16.msra.mxu0 0
      %4175 = vmatprep.subr.bf16.mxu0 0
      %4176 = vmatpush1.bf16.msra.mxu0 0
      %4177 = vmatprep.subr.bf16.mxu0 0
      %4178 = vmatpush1.bf16.msra.mxu0 0
      %4179 = vmatprep.subr.bf16.mxu0 0
      %4180 = vmatpush1.bf16.msra.mxu0 %v4163
      %4181 = vmatprep.subr.bf16.mxu0 0
      %4182 = vmatpush1.bf16.msra.mxu0 %v4162
      %4183 = vmatprep.subr.bf16.mxu0 0
      %4184 = vmatpush1.bf16.msra.mxu0 %v4161
      %4185 = vmatprep.subr.bf16.mxu0 0
      %4186 = vmatpush1.bf16.msra.mxu0 %v4160
      %4187 = vmatprep.subr.bf16.mxu0 0
      %4188 = vmatpush2.bf16.msra.mxu0 0
      %4189 = vmatprep.subr.bf16.mxu0 0
      %4190 = vmatpush2.bf16.msra.mxu0 0
      %4191 = vmatprep.subr.bf16.mxu0 0
      %4192 = vmatpush2.bf16.msra.mxu0 0
      %4193 = vmatprep.subr.bf16.mxu0 0
      %4194 = vmatpush2.bf16.msra.mxu0 0
      %4195 = vmatprep.subr.bf16.mxu0 0
      %4196 = vmatpush2.bf16.msra.mxu0 0
      %4197 = vmatprep.subr.bf16.mxu0 0
      %4198 = vmatpush2.bf16.msra.mxu0 0
      %4199 = vmatprep.subr.bf16.mxu0 0
      %4200 = vmatpush2.bf16.msra.mxu0 0
      %4201 = vmatprep.subr.bf16.mxu0 0
      %4202 = vmatpush2.bf16.msra.mxu0 0
      %4203 = vmatprep.mubr.bf16.mxu0 0
      %4204 = vmatmul.mubr.bf16.gmra.mxu0 %v4169
      %v4205 = vpop.f32.mrf.mxu0
      %v4206 = vadd.f32 0.0, %v4205
      %v4207 = vpop.f32.mrf.mxu0
      %v4208 = vpop.f32.mrf.mxu0
      %v4209 = vpop.f32.mrf.mxu0
      %4210 = vdwg.mxu0
      %v4219 = vunpack.c.l.b16 %v4126
      %v4220 = vunpack.c.l.b16 %v4127
      %v4221 = vunpack.c.l.b16 %v4128
      %v4222 = vunpack.c.l.b16 %v4129
      %v4223 = vunpack.c.l.b16 %v4130
      %v4224 = vunpack.c.l.b16 %v4131
      %v4225 = vunpack.c.l.b16 %v4132
      %v4226 = vunpack.c.l.b16 %v4133
      %v4227 = vpack.c.b16 %v4220, %v4219
      %v4228 = vpack.c.b16 %v4222, %v4221
      %v4229 = vpack.c.b16 %v4224, %v4223
      %v4230 = vpack.c.b16 %v4226, %v4225
      %v4236 = vsel %vm3591, %v4125, 0
      %4238 = vmatprep.subr.bf16.mxu0 0
      %4239 = vmatpush1.bf16.msra.mxu0 0
      %4240 = vmatprep.subr.bf16.mxu0 0
      %4241 = vmatpush1.bf16.msra.mxu0 0
      %4242 = vmatprep.subr.bf16.mxu0 0
      %4243 = vmatpush1.bf16.msra.mxu0 0
      %4244 = vmatprep.subr.bf16.mxu0 0
      %4245 = vmatpush1.bf16.msra.mxu0 0
      %4246 = vmatprep.subr.bf16.mxu0 0
      %4247 = vmatpush1.bf16.msra.mxu0 %v4230
      %4248 = vmatprep.subr.bf16.mxu0 0
      %4249 = vmatpush1.bf16.msra.mxu0 %v4229
      %4250 = vmatprep.subr.bf16.mxu0 0
      %4251 = vmatpush1.bf16.msra.mxu0 %v4228
      %4252 = vmatprep.subr.bf16.mxu0 0
      %4253 = vmatpush1.bf16.msra.mxu0 %v4227
      %4254 = vmatprep.subr.bf16.mxu0 0
      %4255 = vmatpush2.bf16.msra.mxu0 0
      %4256 = vmatprep.subr.bf16.mxu0 0
      %4257 = vmatpush2.bf16.msra.mxu0 0
      %4258 = vmatprep.subr.bf16.mxu0 0
      %4259 = vmatpush2.bf16.msra.mxu0 0
      %4260 = vmatprep.subr.bf16.mxu0 0
      %4261 = vmatpush2.bf16.msra.mxu0 0
      %4262 = vmatprep.subr.bf16.mxu0 0
      %4263 = vmatpush2.bf16.msra.mxu0 0
      %4264 = vmatprep.subr.bf16.mxu0 0
      %4265 = vmatpush2.bf16.msra.mxu0 0
      %4266 = vmatprep.subr.bf16.mxu0 0
      %4267 = vmatpush2.bf16.msra.mxu0 0
      %4268 = vmatprep.subr.bf16.mxu0 0
      %4269 = vmatpush2.bf16.msra.mxu0 0
      %4270 = vmatprep.mubr.bf16.mxu0 0
      %4271 = vmatmul.mubr.bf16.gmra.mxu0 %v4236
      %v4272 = vpop.f32.mrf.mxu0
      %v4273 = vadd.f32 %v4206, %v4272
      %v4274 = vpop.f32.mrf.mxu0
      %v4275 = vpop.f32.mrf.mxu0
      %v4276 = vpop.f32.mrf.mxu0
      %4277 = vdwg.mxu0
      %v4278 = vld [vmem:[%s47 + $0x40] sm:$0xf]
      %v4279 = vld [vmem:[%s47 + $0x44] sm:$0xf]
      %v4280 = vld [vmem:[%s47 + $0x48] sm:$0xf]
      %v4281 = vld [vmem:[%s47 + $0x4c] sm:$0xf]
      %v4282 = vld [vmem:[%s47 + $0x50] sm:$0xf]
      %v4283 = vld [vmem:[%s47 + $0x54] sm:$0xf]
      %v4284 = vld [vmem:[%s47 + $0x58] sm:$0xf]
      %v4285 = vld [vmem:[%s47 + $0x5c] sm:$0xf]
      %v4286 = vrot.slane %v4125, 2
      %v4295 = vunpack.c.l.b16 %v4278
      %v4296 = vunpack.c.l.b16 %v4279
      %v4297 = vunpack.c.l.b16 %v4280
      %v4298 = vunpack.c.l.b16 %v4281
      %v4299 = vunpack.c.l.b16 %v4282
      %v4300 = vunpack.c.l.b16 %v4283
      %v4301 = vunpack.c.l.b16 %v4284
      %v4302 = vunpack.c.l.b16 %v4285
      %v4303 = vpack.c.b16 %v4296, %v4295
      %v4304 = vpack.c.b16 %v4298, %v4297
      %v4305 = vpack.c.b16 %v4300, %v4299
      %v4306 = vpack.c.b16 %v4302, %v4301
      %v4312 = vsel %vm3591, %v4286, 0
      %4314 = vmatprep.subr.bf16.mxu0 0
      %4315 = vmatpush1.bf16.msra.mxu0 0
      %4316 = vmatprep.subr.bf16.mxu0 0
      %4317 = vmatpush1.bf16.msra.mxu0 0
      %4318 = vmatprep.subr.bf16.mxu0 0
      %4319 = vmatpush1.bf16.msra.mxu0 0
      %4320 = vmatprep.subr.bf16.mxu0 0
      %4321 = vmatpush1.bf16.msra.mxu0 0
      %4322 = vmatprep.subr.bf16.mxu0 0
      %4323 = vmatpush1.bf16.msra.mxu0 %v4306
      %4324 = vmatprep.subr.bf16.mxu0 0
      %4325 = vmatpush1.bf16.msra.mxu0 %v4305
      %4326 = vmatprep.subr.bf16.mxu0 0
      %4327 = vmatpush1.bf16.msra.mxu0 %v4304
      %4328 = vmatprep.subr.bf16.mxu0 0
      %4329 = vmatpush1.bf16.msra.mxu0 %v4303
      %4330 = vmatprep.subr.bf16.mxu0 0
      %4331 = vmatpush2.bf16.msra.mxu0 0
      %4332 = vmatprep.subr.bf16.mxu0 0
      %4333 = vmatpush2.bf16.msra.mxu0 0
      %4334 = vmatprep.subr.bf16.mxu0 0
      %4335 = vmatpush2.bf16.msra.mxu0 0
      %4336 = vmatprep.subr.bf16.mxu0 0
      %4337 = vmatpush2.bf16.msra.mxu0 0
      %4338 = vmatprep.subr.bf16.mxu0 0
      %4339 = vmatpush2.bf16.msra.mxu0 0
      %4340 = vmatprep.subr.bf16.mxu0 0
      %4341 = vmatpush2.bf16.msra.mxu0 0
      %4342 = vmatprep.subr.bf16.mxu0 0
      %4343 = vmatpush2.bf16.msra.mxu0 0
      %4344 = vmatprep.subr.bf16.mxu0 0
      %4345 = vmatpush2.bf16.msra.mxu0 0
      %4346 = vmatprep.mubr.bf16.mxu0 0
      %4347 = vmatmul.mubr.bf16.gmra.mxu0 %v4312
      %v4348 = vpop.f32.mrf.mxu0
      %v4349 = vadd.f32 0.0, %v4348
      %v4350 = vpop.f32.mrf.mxu0
      %v4351 = vpop.f32.mrf.mxu0
      %v4352 = vpop.f32.mrf.mxu0
      %4353 = vdwg.mxu0
      %v4354 = vadd.f32 %v4273, %v4349
      %v4355 = vld [vmem:[%s49] sm:$0x1]
      %v4357 = vlaneseq
      %v4358 = vshrl.u32 %v4357, 7
      %v4359 = vsub.s32 0, %v4358
      %v4360 = vrot.slane %v4355, %v4359
      %v4362 = vadd.f32 %v4354, %v4360
      %v4363 = vmax.f32 %v4362, 0.0
      %v4364 = vld [vmem:[%s51] sm:$0xf]
      %v4365 = vld [vmem:[%s51 + $0x4] sm:$0xf]
      %v4366 = vld [vmem:[%s51 + $0x8] sm:$0xf]
      %v4367 = vld [vmem:[%s51 + $0xc] sm:$0xf]
      %v4368 = vld [vmem:[%s51 + $0x10] sm:$0xf]
      %v4369 = vld [vmem:[%s51 + $0x14] sm:$0xf]
      %v4376 = vunpack.c.l.b16 %v4364
      %v4377 = vunpack.c.l.b16 %v4365
      %v4378 = vunpack.c.l.b16 %v4366
      %v4379 = vunpack.c.l.b16 %v4367
      %v4380 = vunpack.c.l.b16 %v4368
      %v4381 = vunpack.c.l.b16 %v4369
      %v4382 = vpack.c.b16 %v4377, %v4376
      %v4383 = vpack.c.b16 %v4379, %v4378
      %v4384 = vpack.c.b16 %v4381, %v4380
      %v4386 = vsel %vm1499, %v4382, 0
      %v4389 = vsel %vm1499, %v4383, 0
      %v4392 = vsel %vm1499, %v4384, 0
      %4394 = vmatprep.subr.bf16.mxu0 0
      %4395 = vmatpush1.bf16.msra.mxu0 0
      %4396 = vmatprep.subr.bf16.mxu0 0
      %4397 = vmatpush1.bf16.msra.mxu0 0
      %4398 = vmatprep.subr.bf16.mxu0 0
      %4399 = vmatpush1.bf16.msra.mxu0 0
      %4400 = vmatprep.subr.bf16.mxu0 0
      %4401 = vmatpush1.bf16.msra.mxu0 0
      %4402 = vmatprep.subr.bf16.mxu0 0
      %4403 = vmatpush1.bf16.msra.mxu0 0
      %4404 = vmatprep.subr.bf16.mxu0 0
      %4405 = vmatpush1.bf16.msra.mxu0 0
      %4406 = vmatprep.subr.bf16.mxu0 0
      %4407 = vmatpush1.bf16.msra.mxu0 %v1496
      %4408 = vmatprep.subr.bf16.mxu0 0
      %4409 = vmatpush1.bf16.msra.mxu0 %v1495
      %4410 = vmatprep.subr.bf16.mxu0 0
      %4411 = vmatpush2.bf16.msra.mxu0 0
      %4412 = vmatprep.subr.bf16.mxu0 0
      %4413 = vmatpush2.bf16.msra.mxu0 0
      %4414 = vmatprep.subr.bf16.mxu0 0
      %4415 = vmatpush2.bf16.msra.mxu0 0
      %4416 = vmatprep.subr.bf16.mxu0 0
      %4417 = vmatpush2.bf16.msra.mxu0 0
      %4418 = vmatprep.subr.bf16.mxu0 0
      %4419 = vmatpush2.bf16.msra.mxu0 0
      %4420 = vmatprep.subr.bf16.mxu0 0
      %4421 = vmatpush2.bf16.msra.mxu0 0
      %4422 = vmatprep.subr.bf16.mxu0 0
      %4423 = vmatpush2.bf16.msra.mxu0 0
      %4424 = vmatprep.subr.bf16.mxu0 0
      %4425 = vmatpush2.bf16.msra.mxu0 0
      %4426 = vmatprep.mubr.bf16.mxu0 0
      %4427 = vmatmul.mubr.bf16.gmra.mxu0 %v4386
      %v4428 = vpop.f32.mrf.mxu0
      %v4429 = vadd.f32 0.0, %v4428
      %v4430 = vpop.f32.mrf.mxu0
      %v4431 = vpop.f32.mrf.mxu0
      %v4432 = vadd.f32 0.0, %v4431
      %v4433 = vpop.f32.mrf.mxu0
      %4434 = vmatprep.mubr.bf16.mxu0 0
      %4435 = vmatmul.mubr.bf16.gmra.mxu0 %v4389
      %v4436 = vpop.f32.mrf.mxu0
      %v4437 = vadd.f32 0.0, %v4436
      %v4438 = vpop.f32.mrf.mxu0
      %v4439 = vpop.f32.mrf.mxu0
      %v4440 = vadd.f32 0.0, %v4439
      %v4441 = vpop.f32.mrf.mxu0
      %4442 = vmatprep.mubr.bf16.mxu0 0
      %4443 = vmatmul.mubr.bf16.gmra.mxu0 %v4392
      %v4444 = vpop.f32.mrf.mxu0
      %v4445 = vadd.f32 0.0, %v4444
      %v4446 = vpop.f32.mrf.mxu0
      %v4447 = vpop.f32.mrf.mxu0
      %v4448 = vadd.f32 0.0, %v4447
      %v4449 = vpop.f32.mrf.mxu0
      %4450 = vdwg.mxu0
      %v4451 = vpack.c.bf16 %v4432, %v4429
      %v4452 = vpack.c.bf16 %v4440, %v4437
      %v4453 = vpack.c.bf16 %v4448, %v4445
      %v4454 = vld [vmem:[%s53] sm:$0xf]
      %v4455 = vld [vmem:[%s53 + $0x4] sm:$0xf]
      %v4456 = vld [vmem:[%s53 + $0x8] sm:$0xf]
      %v4457 = vld [vmem:[%s53 + $0xc] sm:$0xf]
      %v4458 = vld [vmem:[%s53 + $0x10] sm:$0xf]
      %v4459 = vld [vmem:[%s53 + $0x14] sm:$0xf]
      %v4460 = vld [vmem:[%s53 + $0x18] sm:$0xf]
      %v4461 = vld [vmem:[%s53 + $0x1c] sm:$0xf]
      %v4462 = vld [vmem:[%s53 + $0x20] sm:$0xf]
      %v4463 = vld [vmem:[%s53 + $0x24] sm:$0xf]
      %v4464 = vld [vmem:[%s53 + $0x28] sm:$0xf]
      %v4465 = vld [vmem:[%s53 + $0x2c] sm:$0xf]
      %v4466 = vld [vmem:[%s53 + $0x30] sm:$0xf]
      %v4467 = vld [vmem:[%s53 + $0x34] sm:$0xf]
      %v4468 = vld [vmem:[%s53 + $0x38] sm:$0xf]
      %v4469 = vld [vmem:[%s53 + $0x3c] sm:$0xf]
      %v4478 = vunpack.c.l.b16 %v4462
      %v4479 = vunpack.c.l.b16 %v4463
      %v4480 = vunpack.c.l.b16 %v4464
      %v4481 = vunpack.c.l.b16 %v4465
      %v4482 = vunpack.c.l.b16 %v4466
      %v4483 = vunpack.c.l.b16 %v4467
      %v4484 = vunpack.c.l.b16 %v4468
      %v4485 = vunpack.c.l.b16 %v4469
      %v4486 = vpack.c.b16 %v4479, %v4478
      %v4487 = vpack.c.b16 %v4481, %v4480
      %v4488 = vpack.c.b16 %v4483, %v4482
      %v4489 = vpack.c.b16 %v4485, %v4484
      %v4495 = vsel %vm3591, %v4452, 0
      %4497 = vmatprep.subr.bf16.mxu0 0
      %4498 = vmatpush1.bf16.msra.mxu0 0
      %4499 = vmatprep.subr.bf16.mxu0 0
      %4500 = vmatpush1.bf16.msra.mxu0 0
      %4501 = vmatprep.subr.bf16.mxu0 0
      %4502 = vmatpush1.bf16.msra.mxu0 0
      %4503 = vmatprep.subr.bf16.mxu0 0
      %4504 = vmatpush1.bf16.msra.mxu0 0
      %4505 = vmatprep.subr.bf16.mxu0 0
      %4506 = vmatpush1.bf16.msra.mxu0 %v4489
      %4507 = vmatprep.subr.bf16.mxu0 0
      %4508 = vmatpush1.bf16.msra.mxu0 %v4488
      %4509 = vmatprep.subr.bf16.mxu0 0
      %4510 = vmatpush1.bf16.msra.mxu0 %v4487
      %4511 = vmatprep.subr.bf16.mxu0 0
      %4512 = vmatpush1.bf16.msra.mxu0 %v4486
      %4513 = vmatprep.subr.bf16.mxu0 0
      %4514 = vmatpush2.bf16.msra.mxu0 0
      %4515 = vmatprep.subr.bf16.mxu0 0
      %4516 = vmatpush2.bf16.msra.mxu0 0
      %4517 = vmatprep.subr.bf16.mxu0 0
      %4518 = vmatpush2.bf16.msra.mxu0 0
      %4519 = vmatprep.subr.bf16.mxu0 0
      %4520 = vmatpush2.bf16.msra.mxu0 0
      %4521 = vmatprep.subr.bf16.mxu0 0
      %4522 = vmatpush2.bf16.msra.mxu0 0
      %4523 = vmatprep.subr.bf16.mxu0 0
      %4524 = vmatpush2.bf16.msra.mxu0 0
      %4525 = vmatprep.subr.bf16.mxu0 0
      %4526 = vmatpush2.bf16.msra.mxu0 0
      %4527 = vmatprep.subr.bf16.mxu0 0
      %4528 = vmatpush2.bf16.msra.mxu0 0
      %4529 = vmatprep.mubr.bf16.mxu0 0
      %4530 = vmatmul.mubr.bf16.gmra.mxu0 %v4495
      %v4531 = vpop.f32.mrf.mxu0
      %v4532 = vadd.f32 0.0, %v4531
      %v4533 = vpop.f32.mrf.mxu0
      %v4534 = vpop.f32.mrf.mxu0
      %v4535 = vadd.f32 0.0, %v4534
      %v4536 = vpop.f32.mrf.mxu0
      %4537 = vdwg.mxu0
      %v4546 = vunpack.c.l.b16 %v4454
      %v4547 = vunpack.c.l.b16 %v4455
      %v4548 = vunpack.c.l.b16 %v4456
      %v4549 = vunpack.c.l.b16 %v4457
      %v4550 = vunpack.c.l.b16 %v4458
      %v4551 = vunpack.c.l.b16 %v4459
      %v4552 = vunpack.c.l.b16 %v4460
      %v4553 = vunpack.c.l.b16 %v4461
      %v4554 = vpack.c.b16 %v4547, %v4546
      %v4555 = vpack.c.b16 %v4549, %v4548
      %v4556 = vpack.c.b16 %v4551, %v4550
      %v4557 = vpack.c.b16 %v4553, %v4552
      %v4563 = vsel %vm3591, %v4451, 0
      %4565 = vmatprep.subr.bf16.mxu0 0
      %4566 = vmatpush1.bf16.msra.mxu0 0
      %4567 = vmatprep.subr.bf16.mxu0 0
      %4568 = vmatpush1.bf16.msra.mxu0 0
      %4569 = vmatprep.subr.bf16.mxu0 0
      %4570 = vmatpush1.bf16.msra.mxu0 0
      %4571 = vmatprep.subr.bf16.mxu0 0
      %4572 = vmatpush1.bf16.msra.mxu0 0
      %4573 = vmatprep.subr.bf16.mxu0 0
      %4574 = vmatpush1.bf16.msra.mxu0 %v4557
      %4575 = vmatprep.subr.bf16.mxu0 0
      %4576 = vmatpush1.bf16.msra.mxu0 %v4556
      %4577 = vmatprep.subr.bf16.mxu0 0
      %4578 = vmatpush1.bf16.msra.mxu0 %v4555
      %4579 = vmatprep.subr.bf16.mxu0 0
      %4580 = vmatpush1.bf16.msra.mxu0 %v4554
      %4581 = vmatprep.subr.bf16.mxu0 0
      %4582 = vmatpush2.bf16.msra.mxu0 0
      %4583 = vmatprep.subr.bf16.mxu0 0
      %4584 = vmatpush2.bf16.msra.mxu0 0
      %4585 = vmatprep.subr.bf16.mxu0 0
      %4586 = vmatpush2.bf16.msra.mxu0 0
      %4587 = vmatprep.subr.bf16.mxu0 0
      %4588 = vmatpush2.bf16.msra.mxu0 0
      %4589 = vmatprep.subr.bf16.mxu0 0
      %4590 = vmatpush2.bf16.msra.mxu0 0
      %4591 = vmatprep.subr.bf16.mxu0 0
      %4592 = vmatpush2.bf16.msra.mxu0 0
      %4593 = vmatprep.subr.bf16.mxu0 0
      %4594 = vmatpush2.bf16.msra.mxu0 0
      %4595 = vmatprep.subr.bf16.mxu0 0
      %4596 = vmatpush2.bf16.msra.mxu0 0
      %4597 = vmatprep.mubr.bf16.mxu0 0
      %4598 = vmatmul.mubr.bf16.gmra.mxu0 %v4563
      %v4599 = vpop.f32.mrf.mxu0
      %v4600 = vadd.f32 %v4532, %v4599
      %v4601 = vpop.f32.mrf.mxu0
      %v4602 = vpop.f32.mrf.mxu0
      %v4603 = vadd.f32 %v4535, %v4602
      %v4604 = vpop.f32.mrf.mxu0
      %4605 = vdwg.mxu0
      %v4606 = vld [vmem:[%s53 + $0x40] sm:$0xf]
      %v4607 = vld [vmem:[%s53 + $0x44] sm:$0xf]
      %v4608 = vld [vmem:[%s53 + $0x48] sm:$0xf]
      %v4609 = vld [vmem:[%s53 + $0x4c] sm:$0xf]
      %v4610 = vld [vmem:[%s53 + $0x50] sm:$0xf]
      %v4611 = vld [vmem:[%s53 + $0x54] sm:$0xf]
      %v4612 = vld [vmem:[%s53 + $0x58] sm:$0xf]
      %v4613 = vld [vmem:[%s53 + $0x5c] sm:$0xf]
      %v4622 = vunpack.c.l.b16 %v4606
      %v4623 = vunpack.c.l.b16 %v4607
      %v4624 = vunpack.c.l.b16 %v4608
      %v4625 = vunpack.c.l.b16 %v4609
      %v4626 = vunpack.c.l.b16 %v4610
      %v4627 = vunpack.c.l.b16 %v4611
      %v4628 = vunpack.c.l.b16 %v4612
      %v4629 = vunpack.c.l.b16 %v4613
      %v4630 = vpack.c.b16 %v4623, %v4622
      %v4631 = vpack.c.b16 %v4625, %v4624
      %v4632 = vpack.c.b16 %v4627, %v4626
      %v4633 = vpack.c.b16 %v4629, %v4628
      %v4639 = vsel %vm3591, %v4453, 0
      %4641 = vmatprep.subr.bf16.mxu0 0
      %4642 = vmatpush1.bf16.msra.mxu0 0
      %4643 = vmatprep.subr.bf16.mxu0 0
      %4644 = vmatpush1.bf16.msra.mxu0 0
      %4645 = vmatprep.subr.bf16.mxu0 0
      %4646 = vmatpush1.bf16.msra.mxu0 0
      %4647 = vmatprep.subr.bf16.mxu0 0
      %4648 = vmatpush1.bf16.msra.mxu0 0
      %4649 = vmatprep.subr.bf16.mxu0 0
      %4650 = vmatpush1.bf16.msra.mxu0 %v4633
      %4651 = vmatprep.subr.bf16.mxu0 0
      %4652 = vmatpush1.bf16.msra.mxu0 %v4632
      %4653 = vmatprep.subr.bf16.mxu0 0
      %4654 = vmatpush1.bf16.msra.mxu0 %v4631
      %4655 = vmatprep.subr.bf16.mxu0 0
      %4656 = vmatpush1.bf16.msra.mxu0 %v4630
      %4657 = vmatprep.subr.bf16.mxu0 0
      %4658 = vmatpush2.bf16.msra.mxu0 0
      %4659 = vmatprep.subr.bf16.mxu0 0
      %4660 = vmatpush2.bf16.msra.mxu0 0
      %4661 = vmatprep.subr.bf16.mxu0 0
      %4662 = vmatpush2.bf16.msra.mxu0 0
      %4663 = vmatprep.subr.bf16.mxu0 0
      %4664 = vmatpush2.bf16.msra.mxu0 0
      %4665 = vmatprep.subr.bf16.mxu0 0
      %4666 = vmatpush2.bf16.msra.mxu0 0
      %4667 = vmatprep.subr.bf16.mxu0 0
      %4668 = vmatpush2.bf16.msra.mxu0 0
      %4669 = vmatprep.subr.bf16.mxu0 0
      %4670 = vmatpush2.bf16.msra.mxu0 0
      %4671 = vmatprep.subr.bf16.mxu0 0
      %4672 = vmatpush2.bf16.msra.mxu0 0
      %4673 = vmatprep.mubr.bf16.mxu0 0
      %4674 = vmatmul.mubr.bf16.gmra.mxu0 %v4639
      %v4675 = vpop.f32.mrf.mxu0
      %v4676 = vadd.f32 0.0, %v4675
      %v4677 = vpop.f32.mrf.mxu0
      %v4678 = vpop.f32.mrf.mxu0
      %v4679 = vadd.f32 0.0, %v4678
      %v4680 = vpop.f32.mrf.mxu0
      %4681 = vdwg.mxu0
      %v4682 = vadd.f32 %v4600, %v4676
      %v4683 = vadd.f32 %v4603, %v4679
      %v4684 = vld [vmem:[%s55] sm:$0x1]
      %v4686 = vlaneseq
      %v4687 = vshrl.u32 %v4686, 7
      %v4688 = vsub.s32 0, %v4687
      %v4689 = vrot.slane %v4684, %v4688
      %v4691 = vadd.f32 %v4682, %v4689
      %v4692 = vadd.f32 %v4683, %v4689
      %v4693 = vmax.f32 %v4691, 0.0
      %v4694 = vmax.f32 %v4692, 0.0
      %v4695 = vpack.c.bf16 %v4694, %v4693
      %v4696 = vld [vmem:[%s57] sm:$0xf]
      %v4697 = vld [vmem:[%s57 + $0x4] sm:$0xf]
      %v4698 = vld [vmem:[%s57 + $0x8] sm:$0xf]
      %v4699 = vld [vmem:[%s57 + $0xc] sm:$0xf]
      %v4700 = vld [vmem:[%s57 + $0x10] sm:$0xf]
      %v4701 = vld [vmem:[%s57 + $0x14] sm:$0xf]
      %v4708 = vunpack.c.l.b16 %v4696
      %v4709 = vunpack.c.l.b16 %v4697
      %v4710 = vunpack.c.l.b16 %v4698
      %v4711 = vunpack.c.l.b16 %v4699
      %v4712 = vunpack.c.l.b16 %v4700
      %v4713 = vunpack.c.l.b16 %v4701
      %v4714 = vpack.c.b16 %v4709, %v4708
      %v4715 = vpack.c.b16 %v4711, %v4710
      %v4716 = vpack.c.b16 %v4713, %v4712
      %v4718 = vsel %vm1919, %v4714, 0
      %v4721 = vsel %vm1919, %v4715, 0
      %v4724 = vsel %vm1919, %v4716, 0
      %4726 = vmatprep.subr.bf16.mxu0 0
      %4727 = vmatpush1.bf16.msra.mxu0 0
      %4728 = vmatprep.subr.bf16.mxu0 0
      %4729 = vmatpush1.bf16.msra.mxu0 0
      %4730 = vmatprep.subr.bf16.mxu0 0
      %4731 = vmatpush1.bf16.msra.mxu0 0
      %4732 = vmatprep.subr.bf16.mxu0 0
      %4733 = vmatpush1.bf16.msra.mxu0 0
      %4734 = vmatprep.subr.bf16.mxu0 0
      %4735 = vmatpush1.bf16.msra.mxu0 0
      %4736 = vmatprep.subr.bf16.mxu0 0
      %4737 = vmatpush1.bf16.msra.mxu0 0
      %4738 = vmatprep.subr.bf16.mxu0 0
      %4739 = vmatpush1.bf16.msra.mxu0 0
      %4740 = vmatprep.subr.bf16.mxu0 0
      %4741 = vmatpush1.bf16.msra.mxu0 %v4695
      %4742 = vmatprep.subr.bf16.mxu0 0
      %4743 = vmatpush2.bf16.msra.mxu0 0
      %4744 = vmatprep.subr.bf16.mxu0 0
      %4745 = vmatpush2.bf16.msra.mxu0 0
      %4746 = vmatprep.subr.bf16.mxu0 0
      %4747 = vmatpush2.bf16.msra.mxu0 0
      %4748 = vmatprep.subr.bf16.mxu0 0
      %4749 = vmatpush2.bf16.msra.mxu0 0
      %4750 = vmatprep.subr.bf16.mxu0 0
      %4751 = vmatpush2.bf16.msra.mxu0 0
      %4752 = vmatprep.subr.bf16.mxu0 0
      %4753 = vmatpush2.bf16.msra.mxu0 0
      %4754 = vmatprep.subr.bf16.mxu0 0
      %4755 = vmatpush2.bf16.msra.mxu0 0
      %4756 = vmatprep.subr.bf16.mxu0 0
      %4757 = vmatpush2.bf16.msra.mxu0 0
      %4758 = vmatprep.mubr.bf16.mxu0 0
      %4759 = vmatmul.mubr.bf16.gmra.mxu0 %v4718
      %v4760 = vpop.f32.mrf.mxu0
      %v4761 = vadd.f32 0.0, %v4760
      %v4762 = vpop.f32.mrf.mxu0
      %v4763 = vpop.f32.mrf.mxu0
      %v4764 = vadd.f32 0.0, %v4763
      %v4765 = vpop.f32.mrf.mxu0
      %4766 = vmatprep.mubr.bf16.mxu0 0
      %4767 = vmatmul.mubr.bf16.gmra.mxu0 %v4721
      %v4768 = vpop.f32.mrf.mxu0
      %v4769 = vadd.f32 0.0, %v4768
      %v4770 = vpop.f32.mrf.mxu0
      %v4771 = vpop.f32.mrf.mxu0
      %v4772 = vadd.f32 0.0, %v4771
      %v4773 = vpop.f32.mrf.mxu0
      %4774 = vmatprep.mubr.bf16.mxu0 0
      %4775 = vmatmul.mubr.bf16.gmra.mxu0 %v4724
      %v4776 = vpop.f32.mrf.mxu0
      %v4777 = vadd.f32 0.0, %v4776
      %v4778 = vpop.f32.mrf.mxu0
      %v4779 = vpop.f32.mrf.mxu0
      %v4780 = vadd.f32 0.0, %v4779
      %v4781 = vpop.f32.mrf.mxu0
      %4782 = vdwg.mxu0
      %v4783 = vpack.c.bf16 %v4764, %v4761
      %v4784 = vpack.c.bf16 %v4772, %v4769
      %v4785 = vpack.c.bf16 %v4780, %v4777
      %v4786 = vld [vmem:[%s59] sm:$0xf]
      %v4787 = vld [vmem:[%s59 + $0x4] sm:$0xf]
      %v4788 = vld [vmem:[%s59 + $0x8] sm:$0xf]
      %v4789 = vld [vmem:[%s59 + $0xc] sm:$0xf]
      %v4790 = vld [vmem:[%s59 + $0x10] sm:$0xf]
      %v4791 = vld [vmem:[%s59 + $0x14] sm:$0xf]
      %v4792 = vld [vmem:[%s59 + $0x18] sm:$0xf]
      %v4793 = vld [vmem:[%s59 + $0x1c] sm:$0xf]
      %v4794 = vld [vmem:[%s59 + $0x20] sm:$0xf]
      %v4795 = vld [vmem:[%s59 + $0x24] sm:$0xf]
      %v4796 = vld [vmem:[%s59 + $0x28] sm:$0xf]
      %v4797 = vld [vmem:[%s59 + $0x2c] sm:$0xf]
      %v4798 = vld [vmem:[%s59 + $0x30] sm:$0xf]
      %v4799 = vld [vmem:[%s59 + $0x34] sm:$0xf]
      %v4800 = vld [vmem:[%s59 + $0x38] sm:$0xf]
      %v4801 = vld [vmem:[%s59 + $0x3c] sm:$0xf]
      %v4802 = vld [vmem:[%s59 + $0x40] sm:$0xf]
      %v4803 = vld [vmem:[%s59 + $0x44] sm:$0xf]
      %v4804 = vld [vmem:[%s59 + $0x48] sm:$0xf]
      %v4805 = vld [vmem:[%s59 + $0x4c] sm:$0xf]
      %v4806 = vld [vmem:[%s59 + $0x50] sm:$0xf]
      %v4807 = vld [vmem:[%s59 + $0x54] sm:$0xf]
      %v4808 = vld [vmem:[%s59 + $0x58] sm:$0xf]
      %v4809 = vld [vmem:[%s59 + $0x5c] sm:$0xf]
      %v4810 = vld [vmem:[%s59 + $0x60] sm:$0xf]
      %v4811 = vld [vmem:[%s59 + $0x64] sm:$0xf]
      %v4812 = vld [vmem:[%s59 + $0x68] sm:$0xf]
      %v4813 = vld [vmem:[%s59 + $0x6c] sm:$0xf]
      %v4814 = vld [vmem:[%s59 + $0x70] sm:$0xf]
      %v4815 = vld [vmem:[%s59 + $0x74] sm:$0xf]
      %v4816 = vld [vmem:[%s59 + $0x78] sm:$0xf]
      %v4817 = vld [vmem:[%s59 + $0x7c] sm:$0xf]
      %v4834 = vunpack.c.l.b16 %v4802
      %v4835 = vunpack.c.l.b16 %v4803
      %v4836 = vunpack.c.l.b16 %v4804
      %v4837 = vunpack.c.l.b16 %v4805
      %v4838 = vunpack.c.l.b16 %v4806
      %v4839 = vunpack.c.l.b16 %v4807
      %v4840 = vunpack.c.l.b16 %v4808
      %v4841 = vunpack.c.l.b16 %v4809
      %v4842 = vunpack.c.l.b16 %v4810
      %v4843 = vunpack.c.l.b16 %v4811
      %v4844 = vunpack.c.l.b16 %v4812
      %v4845 = vunpack.c.l.b16 %v4813
      %v4846 = vunpack.c.l.b16 %v4814
      %v4847 = vunpack.c.l.b16 %v4815
      %v4848 = vunpack.c.l.b16 %v4816
      %v4849 = vunpack.c.l.b16 %v4817
      %v4850 = vpack.c.b16 %v4835, %v4834
      %v4851 = vpack.c.b16 %v4837, %v4836
      %v4852 = vpack.c.b16 %v4839, %v4838
      %v4853 = vpack.c.b16 %v4841, %v4840
      %v4854 = vpack.c.b16 %v4843, %v4842
      %v4855 = vpack.c.b16 %v4845, %v4844
      %v4856 = vpack.c.b16 %v4847, %v4846
      %v4857 = vpack.c.b16 %v4849, %v4848
      %4866 = vmatprep.subr.bf16.mxu0 0
      %4867 = vmatpush1.bf16.msra.mxu0 %v4857
      %4868 = vmatprep.subr.bf16.mxu0 0
      %4869 = vmatpush1.bf16.msra.mxu0 %v4856
      %4870 = vmatprep.subr.bf16.mxu0 0
      %4871 = vmatpush1.bf16.msra.mxu0 %v4855
      %4872 = vmatprep.subr.bf16.mxu0 0
      %4873 = vmatpush1.bf16.msra.mxu0 %v4854
      %4874 = vmatprep.subr.bf16.mxu0 0
      %4875 = vmatpush1.bf16.msra.mxu0 %v4853
      %4876 = vmatprep.subr.bf16.mxu0 0
      %4877 = vmatpush1.bf16.msra.mxu0 %v4852
      %4878 = vmatprep.subr.bf16.mxu0 0
      %4879 = vmatpush1.bf16.msra.mxu0 %v4851
      %4880 = vmatprep.subr.bf16.mxu0 0
      %4881 = vmatpush1.bf16.msra.mxu0 %v4850
      %4882 = vmatprep.subr.bf16.mxu0 0
      %4883 = vmatpush2.bf16.msra.mxu0 0
      %4884 = vmatprep.subr.bf16.mxu0 0
      %4885 = vmatpush2.bf16.msra.mxu0 0
      %4886 = vmatprep.subr.bf16.mxu0 0
      %4887 = vmatpush2.bf16.msra.mxu0 0
      %4888 = vmatprep.subr.bf16.mxu0 0
      %4889 = vmatpush2.bf16.msra.mxu0 0
      %4890 = vmatprep.subr.bf16.mxu0 0
      %4891 = vmatpush2.bf16.msra.mxu0 0
      %4892 = vmatprep.subr.bf16.mxu0 0
      %4893 = vmatpush2.bf16.msra.mxu0 0
      %4894 = vmatprep.subr.bf16.mxu0 0
      %4895 = vmatpush2.bf16.msra.mxu0 0
      %4896 = vmatprep.subr.bf16.mxu0 0
      %4897 = vmatpush2.bf16.msra.mxu0 0
      %4898 = vmatprep.mubr.bf16.mxu0 0
      %4899 = vmatmul.mubr.bf16.gmra.mxu0 %v4784
      %v4900 = vpop.f32.mrf.mxu0
      %v4901 = vadd.f32 0.0, %v4900
      %v4902 = vpop.f32.mrf.mxu0
      %v4903 = vpop.f32.mrf.mxu0
      %v4904 = vadd.f32 0.0, %v4903
      %v4905 = vpop.f32.mrf.mxu0
      %4906 = vdwg.mxu0
      %v4923 = vunpack.c.l.b16 %v4786
      %v4924 = vunpack.c.l.b16 %v4787
      %v4925 = vunpack.c.l.b16 %v4788
      %v4926 = vunpack.c.l.b16 %v4789
      %v4927 = vunpack.c.l.b16 %v4790
      %v4928 = vunpack.c.l.b16 %v4791
      %v4929 = vunpack.c.l.b16 %v4792
      %v4930 = vunpack.c.l.b16 %v4793
      %v4931 = vunpack.c.l.b16 %v4794
      %v4932 = vunpack.c.l.b16 %v4795
      %v4933 = vunpack.c.l.b16 %v4796
      %v4934 = vunpack.c.l.b16 %v4797
      %v4935 = vunpack.c.l.b16 %v4798
      %v4936 = vunpack.c.l.b16 %v4799
      %v4937 = vunpack.c.l.b16 %v4800
      %v4938 = vunpack.c.l.b16 %v4801
      %v4939 = vpack.c.b16 %v4924, %v4923
      %v4940 = vpack.c.b16 %v4926, %v4925
      %v4941 = vpack.c.b16 %v4928, %v4927
      %v4942 = vpack.c.b16 %v4930, %v4929
      %v4943 = vpack.c.b16 %v4932, %v4931
      %v4944 = vpack.c.b16 %v4934, %v4933
      %v4945 = vpack.c.b16 %v4936, %v4935
      %v4946 = vpack.c.b16 %v4938, %v4937
      %4955 = vmatprep.subr.bf16.mxu0 0
      %4956 = vmatpush1.bf16.msra.mxu0 %v4946
      %4957 = vmatprep.subr.bf16.mxu0 0
      %4958 = vmatpush1.bf16.msra.mxu0 %v4945
      %4959 = vmatprep.subr.bf16.mxu0 0
      %4960 = vmatpush1.bf16.msra.mxu0 %v4944
      %4961 = vmatprep.subr.bf16.mxu0 0
      %4962 = vmatpush1.bf16.msra.mxu0 %v4943
      %4963 = vmatprep.subr.bf16.mxu0 0
      %4964 = vmatpush1.bf16.msra.mxu0 %v4942
      %4965 = vmatprep.subr.bf16.mxu0 0
      %4966 = vmatpush1.bf16.msra.mxu0 %v4941
      %4967 = vmatprep.subr.bf16.mxu0 0
      %4968 = vmatpush1.bf16.msra.mxu0 %v4940
      %4969 = vmatprep.subr.bf16.mxu0 0
      %4970 = vmatpush1.bf16.msra.mxu0 %v4939
      %4971 = vmatprep.subr.bf16.mxu0 0
      %4972 = vmatpush2.bf16.msra.mxu0 0
      %4973 = vmatprep.subr.bf16.mxu0 0
      %4974 = vmatpush2.bf16.msra.mxu0 0
      %4975 = vmatprep.subr.bf16.mxu0 0
      %4976 = vmatpush2.bf16.msra.mxu0 0
      %4977 = vmatprep.subr.bf16.mxu0 0
      %4978 = vmatpush2.bf16.msra.mxu0 0
      %4979 = vmatprep.subr.bf16.mxu0 0
      %4980 = vmatpush2.bf16.msra.mxu0 0
      %4981 = vmatprep.subr.bf16.mxu0 0
      %4982 = vmatpush2.bf16.msra.mxu0 0
      %4983 = vmatprep.subr.bf16.mxu0 0
      %4984 = vmatpush2.bf16.msra.mxu0 0
      %4985 = vmatprep.subr.bf16.mxu0 0
      %4986 = vmatpush2.bf16.msra.mxu0 0
      %4987 = vmatprep.mubr.bf16.mxu0 0
      %4988 = vmatmul.mubr.bf16.gmra.mxu0 %v4783
      %v4989 = vpop.f32.mrf.mxu0
      %v4990 = vadd.f32 %v4901, %v4989
      %v4991 = vpop.f32.mrf.mxu0
      %v4992 = vpop.f32.mrf.mxu0
      %v4993 = vadd.f32 %v4904, %v4992
      %v4994 = vpop.f32.mrf.mxu0
      %4995 = vdwg.mxu0
      %v4996 = vld [vmem:[%s59 + $0x80] sm:$0xf]
      %v4997 = vld [vmem:[%s59 + $0x84] sm:$0xf]
      %v4998 = vld [vmem:[%s59 + $0x88] sm:$0xf]
      %v4999 = vld [vmem:[%s59 + $0x8c] sm:$0xf]
      %v5000 = vld [vmem:[%s59 + $0x90] sm:$0xf]
      %v5001 = vld [vmem:[%s59 + $0x94] sm:$0xf]
      %v5002 = vld [vmem:[%s59 + $0x98] sm:$0xf]
      %v5003 = vld [vmem:[%s59 + $0x9c] sm:$0xf]
      %v5004 = vld [vmem:[%s59 + $0xa0] sm:$0xf]
      %v5005 = vld [vmem:[%s59 + $0xa4] sm:$0xf]
      %v5006 = vld [vmem:[%s59 + $0xa8] sm:$0xf]
      %v5007 = vld [vmem:[%s59 + $0xac] sm:$0xf]
      %v5008 = vld [vmem:[%s59 + $0xb0] sm:$0xf]
      %v5009 = vld [vmem:[%s59 + $0xb4] sm:$0xf]
      %v5010 = vld [vmem:[%s59 + $0xb8] sm:$0xf]
      %v5011 = vld [vmem:[%s59 + $0xbc] sm:$0xf]
      %v5028 = vunpack.c.l.b16 %v4996
      %v5029 = vunpack.c.l.b16 %v4997
      %v5030 = vunpack.c.l.b16 %v4998
      %v5031 = vunpack.c.l.b16 %v4999
      %v5032 = vunpack.c.l.b16 %v5000
      %v5033 = vunpack.c.l.b16 %v5001
      %v5034 = vunpack.c.l.b16 %v5002
      %v5035 = vunpack.c.l.b16 %v5003
      %v5036 = vunpack.c.l.b16 %v5004
      %v5037 = vunpack.c.l.b16 %v5005
      %v5038 = vunpack.c.l.b16 %v5006
      %v5039 = vunpack.c.l.b16 %v5007
      %v5040 = vunpack.c.l.b16 %v5008
      %v5041 = vunpack.c.l.b16 %v5009
      %v5042 = vunpack.c.l.b16 %v5010
      %v5043 = vunpack.c.l.b16 %v5011
      %v5044 = vpack.c.b16 %v5029, %v5028
      %v5045 = vpack.c.b16 %v5031, %v5030
      %v5046 = vpack.c.b16 %v5033, %v5032
      %v5047 = vpack.c.b16 %v5035, %v5034
      %v5048 = vpack.c.b16 %v5037, %v5036
      %v5049 = vpack.c.b16 %v5039, %v5038
      %v5050 = vpack.c.b16 %v5041, %v5040
      %v5051 = vpack.c.b16 %v5043, %v5042
      %5060 = vmatprep.subr.bf16.mxu0 0
      %5061 = vmatpush1.bf16.msra.mxu0 %v5051
      %5062 = vmatprep.subr.bf16.mxu0 0
      %5063 = vmatpush1.bf16.msra.mxu0 %v5050
      %5064 = vmatprep.subr.bf16.mxu0 0
      %5065 = vmatpush1.bf16.msra.mxu0 %v5049
      %5066 = vmatprep.subr.bf16.mxu0 0
      %5067 = vmatpush1.bf16.msra.mxu0 %v5048
      %5068 = vmatprep.subr.bf16.mxu0 0
      %5069 = vmatpush1.bf16.msra.mxu0 %v5047
      %5070 = vmatprep.subr.bf16.mxu0 0
      %5071 = vmatpush1.bf16.msra.mxu0 %v5046
      %5072 = vmatprep.subr.bf16.mxu0 0
      %5073 = vmatpush1.bf16.msra.mxu0 %v5045
      %5074 = vmatprep.subr.bf16.mxu0 0
      %5075 = vmatpush1.bf16.msra.mxu0 %v5044
      %5076 = vmatprep.subr.bf16.mxu0 0
      %5077 = vmatpush2.bf16.msra.mxu0 0
      %5078 = vmatprep.subr.bf16.mxu0 0
      %5079 = vmatpush2.bf16.msra.mxu0 0
      %5080 = vmatprep.subr.bf16.mxu0 0
      %5081 = vmatpush2.bf16.msra.mxu0 0
      %5082 = vmatprep.subr.bf16.mxu0 0
      %5083 = vmatpush2.bf16.msra.mxu0 0
      %5084 = vmatprep.subr.bf16.mxu0 0
      %5085 = vmatpush2.bf16.msra.mxu0 0
      %5086 = vmatprep.subr.bf16.mxu0 0
      %5087 = vmatpush2.bf16.msra.mxu0 0
      %5088 = vmatprep.subr.bf16.mxu0 0
      %5089 = vmatpush2.bf16.msra.mxu0 0
      %5090 = vmatprep.subr.bf16.mxu0 0
      %5091 = vmatpush2.bf16.msra.mxu0 0
      %5092 = vmatprep.mubr.bf16.mxu0 0
      %5093 = vmatmul.mubr.bf16.gmra.mxu0 %v4785
      %v5094 = vpop.f32.mrf.mxu0
      %v5095 = vadd.f32 0.0, %v5094
      %v5096 = vpop.f32.mrf.mxu0
      %v5097 = vpop.f32.mrf.mxu0
      %v5098 = vadd.f32 0.0, %v5097
      %v5099 = vpop.f32.mrf.mxu0
      %5100 = vdwg.mxu0
      %v5101 = vadd.f32 %v4990, %v5095
      %v5102 = vadd.f32 %v4993, %v5098
      %v5103 = vld [vmem:[%s61] sm:$0x1]
      %v5105 = vlaneseq
      %v5106 = vshrl.u32 %v5105, 7
      %v5107 = vsub.s32 0, %v5106
      %v5108 = vrot.slane %v5103, %v5107
      %v5110 = vadd.f32 %v5101, %v5108
      %v5111 = vadd.f32 %v5102, %v5108
      %v5112 = vmax.f32 %v5110, 0.0
      %v5113 = vmax.f32 %v5111, 0.0
      %v5114 = vpack.c.bf16 %v5113, %v5112
      %v5115 = vld [vmem:[%s63] sm:$0xf]
      %v5116 = vld [vmem:[%s63 + $0x4] sm:$0xf]
      %v5117 = vld [vmem:[%s63 + $0x8] sm:$0xf]
      %v5121 = vunpack.c.l.b16 %v5115
      %v5122 = vunpack.c.l.b16 %v5116
      %v5123 = vunpack.c.l.b16 %v5117
      %v5124 = vpack.c.b16 %v5122, %v5121
      %v5125 = vpack.c.b16 %v5123, %v5123
      %v5127 = vsel %vm1919, %v5124, 0
      %v5130 = vsel %vm1919, %v5125, 0
      %5132 = vmatprep.subr.bf16.mxu0 0
      %5133 = vmatpush1.bf16.msra.mxu0 0
      %5134 = vmatprep.subr.bf16.mxu0 0
      %5135 = vmatpush1.bf16.msra.mxu0 0
      %5136 = vmatprep.subr.bf16.mxu0 0
      %5137 = vmatpush1.bf16.msra.mxu0 0
      %5138 = vmatprep.subr.bf16.mxu0 0
      %5139 = vmatpush1.bf16.msra.mxu0 0
      %5140 = vmatprep.subr.bf16.mxu0 0
      %5141 = vmatpush1.bf16.msra.mxu0 0
      %5142 = vmatprep.subr.bf16.mxu0 0
      %5143 = vmatpush1.bf16.msra.mxu0 0
      %5144 = vmatprep.subr.bf16.mxu0 0
      %5145 = vmatpush1.bf16.msra.mxu0 0
      %5146 = vmatprep.subr.bf16.mxu0 0
      %5147 = vmatpush1.bf16.msra.mxu0 %v5114
      %5148 = vmatprep.subr.bf16.mxu0 0
      %5149 = vmatpush2.bf16.msra.mxu0 0
      %5150 = vmatprep.subr.bf16.mxu0 0
      %5151 = vmatpush2.bf16.msra.mxu0 0
      %5152 = vmatprep.subr.bf16.mxu0 0
      %5153 = vmatpush2.bf16.msra.mxu0 0
      %5154 = vmatprep.subr.bf16.mxu0 0
      %5155 = vmatpush2.bf16.msra.mxu0 0
      %5156 = vmatprep.subr.bf16.mxu0 0
      %5157 = vmatpush2.bf16.msra.mxu0 0
      %5158 = vmatprep.subr.bf16.mxu0 0
      %5159 = vmatpush2.bf16.msra.mxu0 0
      %5160 = vmatprep.subr.bf16.mxu0 0
      %5161 = vmatpush2.bf16.msra.mxu0 0
      %5162 = vmatprep.subr.bf16.mxu0 0
      %5163 = vmatpush2.bf16.msra.mxu0 0
      %5164 = vmatprep.mubr.bf16.mxu0 0
      %5165 = vmatmul.mubr.bf16.gmra.mxu0 %v5127
      %v5166 = vpop.f32.mrf.mxu0
      %v5167 = vadd.f32 0.0, %v5166
      %v5168 = vpop.f32.mrf.mxu0
      %v5169 = vpop.f32.mrf.mxu0
      %v5170 = vadd.f32 0.0, %v5169
      %v5171 = vpop.f32.mrf.mxu0
      %5172 = vmatprep.mubr.bf16.mxu0 0
      %5173 = vmatmul.mubr.bf16.gmra.mxu0 %v5130
      %v5174 = vpop.f32.mrf.mxu0
      %v5175 = vadd.f32 0.0, %v5174
      %v5176 = vpop.f32.mrf.mxu0
      %v5177 = vpop.f32.mrf.mxu0
      %v5178 = vpop.f32.mrf.mxu0
      %5179 = vdwg.mxu0
      %v5180 = vpack.c.bf16 %v5170, %v5167
      %v5181 = vpack.c.bf16 %v5175, %v5175
      %v5182 = vld [vmem:[%s65] sm:$0xf]
      %v5183 = vld [vmem:[%s65 + $0x4] sm:$0xf]
      %v5184 = vld [vmem:[%s65 + $0x8] sm:$0xf]
      %v5185 = vld [vmem:[%s65 + $0xc] sm:$0xf]
      %v5186 = vld [vmem:[%s65 + $0x10] sm:$0xf]
      %v5187 = vld [vmem:[%s65 + $0x14] sm:$0xf]
      %v5188 = vld [vmem:[%s65 + $0x18] sm:$0xf]
      %v5189 = vld [vmem:[%s65 + $0x1c] sm:$0xf]
      %v5190 = vld [vmem:[%s65 + $0x20] sm:$0xf]
      %v5191 = vld [vmem:[%s65 + $0x24] sm:$0xf]
      %v5192 = vld [vmem:[%s65 + $0x28] sm:$0xf]
      %v5193 = vld [vmem:[%s65 + $0x2c] sm:$0xf]
      %v5194 = vld [vmem:[%s65 + $0x30] sm:$0xf]
      %v5195 = vld [vmem:[%s65 + $0x34] sm:$0xf]
      %v5196 = vld [vmem:[%s65 + $0x38] sm:$0xf]
      %v5197 = vld [vmem:[%s65 + $0x3c] sm:$0xf]
      %v5198 = vld [vmem:[%s65 + $0x40] sm:$0xf]
      %v5199 = vld [vmem:[%s65 + $0x44] sm:$0xf]
      %v5200 = vld [vmem:[%s65 + $0x48] sm:$0xf]
      %v5201 = vld [vmem:[%s65 + $0x4c] sm:$0xf]
      %v5202 = vld [vmem:[%s65 + $0x50] sm:$0xf]
      %v5203 = vld [vmem:[%s65 + $0x54] sm:$0xf]
      %v5204 = vld [vmem:[%s65 + $0x58] sm:$0xf]
      %v5205 = vld [vmem:[%s65 + $0x5c] sm:$0xf]
      %v5206 = vld [vmem:[%s65 + $0x60] sm:$0xf]
      %v5207 = vld [vmem:[%s65 + $0x64] sm:$0xf]
      %v5208 = vld [vmem:[%s65 + $0x68] sm:$0xf]
      %v5209 = vld [vmem:[%s65 + $0x6c] sm:$0xf]
      %v5210 = vld [vmem:[%s65 + $0x70] sm:$0xf]
      %v5211 = vld [vmem:[%s65 + $0x74] sm:$0xf]
      %v5212 = vld [vmem:[%s65 + $0x78] sm:$0xf]
      %v5213 = vld [vmem:[%s65 + $0x7c] sm:$0xf]
      %v5215 = vrot.slane %v5180, 4
      %v5233 = vunpack.c.l.b16 %v5198
      %v5234 = vunpack.c.l.b16 %v5199
      %v5235 = vunpack.c.l.b16 %v5200
      %v5236 = vunpack.c.l.b16 %v5201
      %v5237 = vunpack.c.l.b16 %v5202
      %v5238 = vunpack.c.l.b16 %v5203
      %v5239 = vunpack.c.l.b16 %v5204
      %v5240 = vunpack.c.l.b16 %v5205
      %v5241 = vunpack.c.l.b16 %v5206
      %v5242 = vunpack.c.l.b16 %v5207
      %v5243 = vunpack.c.l.b16 %v5208
      %v5244 = vunpack.c.l.b16 %v5209
      %v5245 = vunpack.c.l.b16 %v5210
      %v5246 = vunpack.c.l.b16 %v5211
      %v5247 = vunpack.c.l.b16 %v5212
      %v5248 = vunpack.c.l.b16 %v5213
      %v5249 = vpack.c.b16 %v5234, %v5233
      %v5250 = vpack.c.b16 %v5236, %v5235
      %v5251 = vpack.c.b16 %v5238, %v5237
      %v5252 = vpack.c.b16 %v5240, %v5239
      %v5253 = vpack.c.b16 %v5242, %v5241
      %v5254 = vpack.c.b16 %v5244, %v5243
      %v5255 = vpack.c.b16 %v5246, %v5245
      %v5256 = vpack.c.b16 %v5248, %v5247
      %5265 = vmatprep.subr.bf16.mxu0 0
      %5266 = vmatpush1.bf16.msra.mxu0 %v5256
      %5267 = vmatprep.subr.bf16.mxu0 0
      %5268 = vmatpush1.bf16.msra.mxu0 %v5255
      %5269 = vmatprep.subr.bf16.mxu0 0
      %5270 = vmatpush1.bf16.msra.mxu0 %v5254
      %5271 = vmatprep.subr.bf16.mxu0 0
      %5272 = vmatpush1.bf16.msra.mxu0 %v5253
      %5273 = vmatprep.subr.bf16.mxu0 0
      %5274 = vmatpush1.bf16.msra.mxu0 %v5252
      %5275 = vmatprep.subr.bf16.mxu0 0
      %5276 = vmatpush1.bf16.msra.mxu0 %v5251
      %5277 = vmatprep.subr.bf16.mxu0 0
      %5278 = vmatpush1.bf16.msra.mxu0 %v5250
      %5279 = vmatprep.subr.bf16.mxu0 0
      %5280 = vmatpush1.bf16.msra.mxu0 %v5249
      %5281 = vmatprep.subr.bf16.mxu0 0
      %5282 = vmatpush2.bf16.msra.mxu0 0
      %5283 = vmatprep.subr.bf16.mxu0 0
      %5284 = vmatpush2.bf16.msra.mxu0 0
      %5285 = vmatprep.subr.bf16.mxu0 0
      %5286 = vmatpush2.bf16.msra.mxu0 0
      %5287 = vmatprep.subr.bf16.mxu0 0
      %5288 = vmatpush2.bf16.msra.mxu0 0
      %5289 = vmatprep.subr.bf16.mxu0 0
      %5290 = vmatpush2.bf16.msra.mxu0 0
      %5291 = vmatprep.subr.bf16.mxu0 0
      %5292 = vmatpush2.bf16.msra.mxu0 0
      %5293 = vmatprep.subr.bf16.mxu0 0
      %5294 = vmatpush2.bf16.msra.mxu0 0
      %5295 = vmatprep.subr.bf16.mxu0 0
      %5296 = vmatpush2.bf16.msra.mxu0 0
      %5297 = vmatprep.mubr.bf16.mxu0 0
      %5298 = vmatmul.mubr.bf16.gmra.mxu0 %v5215
      %v5299 = vpop.f32.mrf.mxu0
      %v5300 = vadd.f32 0.0, %v5299
      %v5301 = vpop.f32.mrf.mxu0
      %v5302 = vpop.f32.mrf.mxu0
      %v5303 = vpop.f32.mrf.mxu0
      %5304 = vdwg.mxu0
      %v5321 = vunpack.c.l.b16 %v5182
      %v5322 = vunpack.c.l.b16 %v5183
      %v5323 = vunpack.c.l.b16 %v5184
      %v5324 = vunpack.c.l.b16 %v5185
      %v5325 = vunpack.c.l.b16 %v5186
      %v5326 = vunpack.c.l.b16 %v5187
      %v5327 = vunpack.c.l.b16 %v5188
      %v5328 = vunpack.c.l.b16 %v5189
      %v5329 = vunpack.c.l.b16 %v5190
      %v5330 = vunpack.c.l.b16 %v5191
      %v5331 = vunpack.c.l.b16 %v5192
      %v5332 = vunpack.c.l.b16 %v5193
      %v5333 = vunpack.c.l.b16 %v5194
      %v5334 = vunpack.c.l.b16 %v5195
      %v5335 = vunpack.c.l.b16 %v5196
      %v5336 = vunpack.c.l.b16 %v5197
      %v5337 = vpack.c.b16 %v5322, %v5321
      %v5338 = vpack.c.b16 %v5324, %v5323
      %v5339 = vpack.c.b16 %v5326, %v5325
      %v5340 = vpack.c.b16 %v5328, %v5327
      %v5341 = vpack.c.b16 %v5330, %v5329
      %v5342 = vpack.c.b16 %v5332, %v5331
      %v5343 = vpack.c.b16 %v5334, %v5333
      %v5344 = vpack.c.b16 %v5336, %v5335
      %5353 = vmatprep.subr.bf16.mxu0 0
      %5354 = vmatpush1.bf16.msra.mxu0 %v5344
      %5355 = vmatprep.subr.bf16.mxu0 0
      %5356 = vmatpush1.bf16.msra.mxu0 %v5343
      %5357 = vmatprep.subr.bf16.mxu0 0
      %5358 = vmatpush1.bf16.msra.mxu0 %v5342
      %5359 = vmatprep.subr.bf16.mxu0 0
      %5360 = vmatpush1.bf16.msra.mxu0 %v5341
      %5361 = vmatprep.subr.bf16.mxu0 0
      %5362 = vmatpush1.bf16.msra.mxu0 %v5340
      %5363 = vmatprep.subr.bf16.mxu0 0
      %5364 = vmatpush1.bf16.msra.mxu0 %v5339
      %5365 = vmatprep.subr.bf16.mxu0 0
      %5366 = vmatpush1.bf16.msra.mxu0 %v5338
      %5367 = vmatprep.subr.bf16.mxu0 0
      %5368 = vmatpush1.bf16.msra.mxu0 %v5337
      %5369 = vmatprep.subr.bf16.mxu0 0
      %5370 = vmatpush2.bf16.msra.mxu0 0
      %5371 = vmatprep.subr.bf16.mxu0 0
      %5372 = vmatpush2.bf16.msra.mxu0 0
      %5373 = vmatprep.subr.bf16.mxu0 0
      %5374 = vmatpush2.bf16.msra.mxu0 0
      %5375 = vmatprep.subr.bf16.mxu0 0
      %5376 = vmatpush2.bf16.msra.mxu0 0
      %5377 = vmatprep.subr.bf16.mxu0 0
      %5378 = vmatpush2.bf16.msra.mxu0 0
      %5379 = vmatprep.subr.bf16.mxu0 0
      %5380 = vmatpush2.bf16.msra.mxu0 0
      %5381 = vmatprep.subr.bf16.mxu0 0
      %5382 = vmatpush2.bf16.msra.mxu0 0
      %5383 = vmatprep.subr.bf16.mxu0 0
      %5384 = vmatpush2.bf16.msra.mxu0 0
      %5385 = vmatprep.mubr.bf16.mxu0 0
      %5386 = vmatmul.mubr.bf16.gmra.mxu0 %v5180
      %v5387 = vpop.f32.mrf.mxu0
      %v5388 = vadd.f32 %v5300, %v5387
      %v5389 = vpop.f32.mrf.mxu0
      %v5390 = vpop.f32.mrf.mxu0
      %v5391 = vpop.f32.mrf.mxu0
      %5392 = vdwg.mxu0
      %v5393 = vld [vmem:[%s65 + $0x80] sm:$0xf]
      %v5394 = vld [vmem:[%s65 + $0x84] sm:$0xf]
      %v5395 = vld [vmem:[%s65 + $0x88] sm:$0xf]
      %v5396 = vld [vmem:[%s65 + $0x8c] sm:$0xf]
      %v5397 = vld [vmem:[%s65 + $0x90] sm:$0xf]
      %v5398 = vld [vmem:[%s65 + $0x94] sm:$0xf]
      %v5399 = vld [vmem:[%s65 + $0x98] sm:$0xf]
      %v5400 = vld [vmem:[%s65 + $0x9c] sm:$0xf]
      %v5401 = vld [vmem:[%s65 + $0xa0] sm:$0xf]
      %v5402 = vld [vmem:[%s65 + $0xa4] sm:$0xf]
      %v5403 = vld [vmem:[%s65 + $0xa8] sm:$0xf]
      %v5404 = vld [vmem:[%s65 + $0xac] sm:$0xf]
      %v5405 = vld [vmem:[%s65 + $0xb0] sm:$0xf]
      %v5406 = vld [vmem:[%s65 + $0xb4] sm:$0xf]
      %v5407 = vld [vmem:[%s65 + $0xb8] sm:$0xf]
      %v5408 = vld [vmem:[%s65 + $0xbc] sm:$0xf]
      %v5425 = vunpack.c.l.b16 %v5393
      %v5426 = vunpack.c.l.b16 %v5394
      %v5427 = vunpack.c.l.b16 %v5395
      %v5428 = vunpack.c.l.b16 %v5396
      %v5429 = vunpack.c.l.b16 %v5397
      %v5430 = vunpack.c.l.b16 %v5398
      %v5431 = vunpack.c.l.b16 %v5399
      %v5432 = vunpack.c.l.b16 %v5400
      %v5433 = vunpack.c.l.b16 %v5401
      %v5434 = vunpack.c.l.b16 %v5402
      %v5435 = vunpack.c.l.b16 %v5403
      %v5436 = vunpack.c.l.b16 %v5404
      %v5437 = vunpack.c.l.b16 %v5405
      %v5438 = vunpack.c.l.b16 %v5406
      %v5439 = vunpack.c.l.b16 %v5407
      %v5440 = vunpack.c.l.b16 %v5408
      %v5441 = vpack.c.b16 %v5426, %v5425
      %v5442 = vpack.c.b16 %v5428, %v5427
      %v5443 = vpack.c.b16 %v5430, %v5429
      %v5444 = vpack.c.b16 %v5432, %v5431
      %v5445 = vpack.c.b16 %v5434, %v5433
      %v5446 = vpack.c.b16 %v5436, %v5435
      %v5447 = vpack.c.b16 %v5438, %v5437
      %v5448 = vpack.c.b16 %v5440, %v5439
      %5457 = vmatprep.subr.bf16.mxu0 0
      %5458 = vmatpush1.bf16.msra.mxu0 %v5448
      %5459 = vmatprep.subr.bf16.mxu0 0
      %5460 = vmatpush1.bf16.msra.mxu0 %v5447
      %5461 = vmatprep.subr.bf16.mxu0 0
      %5462 = vmatpush1.bf16.msra.mxu0 %v5446
      %5463 = vmatprep.subr.bf16.mxu0 0
      %5464 = vmatpush1.bf16.msra.mxu0 %v5445
      %5465 = vmatprep.subr.bf16.mxu0 0
      %5466 = vmatpush1.bf16.msra.mxu0 %v5444
      %5467 = vmatprep.subr.bf16.mxu0 0
      %5468 = vmatpush1.bf16.msra.mxu0 %v5443
      %5469 = vmatprep.subr.bf16.mxu0 0
      %5470 = vmatpush1.bf16.msra.mxu0 %v5442
      %5471 = vmatprep.subr.bf16.mxu0 0
      %5472 = vmatpush1.bf16.msra.mxu0 %v5441
      %5473 = vmatprep.subr.bf16.mxu0 0
      %5474 = vmatpush2.bf16.msra.mxu0 0
      %5475 = vmatprep.subr.bf16.mxu0 0
      %5476 = vmatpush2.bf16.msra.mxu0 0
      %5477 = vmatprep.subr.bf16.mxu0 0
      %5478 = vmatpush2.bf16.msra.mxu0 0
      %5479 = vmatprep.subr.bf16.mxu0 0
      %5480 = vmatpush2.bf16.msra.mxu0 0
      %5481 = vmatprep.subr.bf16.mxu0 0
      %5482 = vmatpush2.bf16.msra.mxu0 0
      %5483 = vmatprep.subr.bf16.mxu0 0
      %5484 = vmatpush2.bf16.msra.mxu0 0
      %5485 = vmatprep.subr.bf16.mxu0 0
      %5486 = vmatpush2.bf16.msra.mxu0 0
      %5487 = vmatprep.subr.bf16.mxu0 0
      %5488 = vmatpush2.bf16.msra.mxu0 0
      %5489 = vmatprep.mubr.bf16.mxu0 0
      %5490 = vmatmul.mubr.bf16.gmra.mxu0 %v5181
      %v5491 = vpop.f32.mrf.mxu0
      %v5492 = vadd.f32 0.0, %v5491
      %v5493 = vpop.f32.mrf.mxu0
      %v5494 = vpop.f32.mrf.mxu0
      %v5495 = vpop.f32.mrf.mxu0
      %5496 = vdwg.mxu0
      %v5497 = vadd.f32 %v5388, %v5492
      %v5498 = vld [vmem:[%s67] sm:$0x1]
      %v5500 = vlaneseq
      %v5501 = vshrl.u32 %v5500, 7
      %v5502 = vsub.s32 0, %v5501
      %v5503 = vrot.slane %v5498, %v5502
      %v5505 = vadd.f32 %v5497, %v5503
      %v5506 = vmax.f32 %v5505, 0.0
      %v5507 = vpack.c.bf16 %v5506, %v5506
      %v5508 = vld [vmem:[%s69] sm:$0xf]
      %v5509 = vld [vmem:[%s69 + $0x4] sm:$0xf]
      %v5510 = vld [vmem:[%s69 + $0x8] sm:$0xf]
      %v5514 = vunpack.c.l.b16 %v5508
      %v5515 = vunpack.c.l.b16 %v5509
      %v5516 = vunpack.c.l.b16 %v5510
      %v5517 = vpack.c.b16 %v5515, %v5514
      %v5518 = vpack.c.b16 %v5516, %v5516
      %v5520 = vsel %vm2722, %v5517, 0
      %v5523 = vsel %vm2722, %v5518, 0
      %v5526 = vsel %vm2729, %v5507, 0
      %5528 = vmatprep.subr.bf16.mxu0 0
      %5529 = vmatpush1.bf16.msra.mxu0 0
      %5530 = vmatprep.subr.bf16.mxu0 0
      %5531 = vmatpush1.bf16.msra.mxu0 0
      %5532 = vmatprep.subr.bf16.mxu0 0
      %5533 = vmatpush1.bf16.msra.mxu0 0
      %5534 = vmatprep.subr.bf16.mxu0 0
      %5535 = vmatpush1.bf16.msra.mxu0 0
      %5536 = vmatprep.subr.bf16.mxu0 0
      %5537 = vmatpush1.bf16.msra.mxu0 0
      %5538 = vmatprep.subr.bf16.mxu0 0
      %5539 = vmatpush1.bf16.msra.mxu0 0
      %5540 = vmatprep.subr.bf16.mxu0 0
      %5541 = vmatpush1.bf16.msra.mxu0 0
      %5542 = vmatprep.subr.bf16.mxu0 0
      %5543 = vmatpush1.bf16.msra.mxu0 %v5526
      %5544 = vmatprep.subr.bf16.mxu0 0
      %5545 = vmatpush2.bf16.msra.mxu0 0
      %5546 = vmatprep.subr.bf16.mxu0 0
      %5547 = vmatpush2.bf16.msra.mxu0 0
      %5548 = vmatprep.subr.bf16.mxu0 0
      %5549 = vmatpush2.bf16.msra.mxu0 0
      %5550 = vmatprep.subr.bf16.mxu0 0
      %5551 = vmatpush2.bf16.msra.mxu0 0
      %5552 = vmatprep.subr.bf16.mxu0 0
      %5553 = vmatpush2.bf16.msra.mxu0 0
      %5554 = vmatprep.subr.bf16.mxu0 0
      %5555 = vmatpush2.bf16.msra.mxu0 0
      %5556 = vmatprep.subr.bf16.mxu0 0
      %5557 = vmatpush2.bf16.msra.mxu0 0
      %5558 = vmatprep.subr.bf16.mxu0 0
      %5559 = vmatpush2.bf16.msra.mxu0 0
      %5560 = vmatprep.mubr.bf16.mxu0 0
      %5561 = vmatmul.mubr.bf16.gmra.mxu0 %v5520
      %v5562 = vpop.f32.mrf.mxu0
      %v5563 = vadd.f32 0.0, %v5562
      %v5564 = vpop.f32.mrf.mxu0
      %v5565 = vpop.f32.mrf.mxu0
      %v5566 = vadd.f32 0.0, %v5565
      %v5567 = vpop.f32.mrf.mxu0
      %5568 = vmatprep.mubr.bf16.mxu0 0
      %5569 = vmatmul.mubr.bf16.gmra.mxu0 %v5523
      %v5570 = vpop.f32.mrf.mxu0
      %v5571 = vadd.f32 0.0, %v5570
      %v5572 = vpop.f32.mrf.mxu0
      %v5573 = vpop.f32.mrf.mxu0
      %v5574 = vpop.f32.mrf.mxu0
      %5575 = vdwg.mxu0
      %v5576 = vpack.c.bf16 %v5566, %v5563
      %v5577 = vpack.c.bf16 %v5571, %v5571
      %v5578 = vld [vmem:[%s71] sm:$0xf]
      %v5579 = vld [vmem:[%s71 + $0x4] sm:$0xf]
      %v5580 = vld [vmem:[%s71 + $0x8] sm:$0xf]
      %v5581 = vld [vmem:[%s71 + $0xc] sm:$0xf]
      %v5582 = vld [vmem:[%s71 + $0x10] sm:$0xf]
      %v5583 = vld [vmem:[%s71 + $0x14] sm:$0xf]
      %v5584 = vld [vmem:[%s71 + $0x18] sm:$0xf]
      %v5585 = vld [vmem:[%s71 + $0x1c] sm:$0xf]
      %v5586 = vld [vmem:[%s71 + $0x20] sm:$0xf]
      %v5587 = vld [vmem:[%s71 + $0x24] sm:$0xf]
      %v5588 = vld [vmem:[%s71 + $0x28] sm:$0xf]
      %v5589 = vld [vmem:[%s71 + $0x2c] sm:$0xf]
      %v5590 = vld [vmem:[%s71 + $0x30] sm:$0xf]
      %v5591 = vld [vmem:[%s71 + $0x34] sm:$0xf]
      %v5592 = vld [vmem:[%s71 + $0x38] sm:$0xf]
      %v5593 = vld [vmem:[%s71 + $0x3c] sm:$0xf]
      %v5594 = vld [vmem:[%s71 + $0x40] sm:$0xf]
      %v5595 = vld [vmem:[%s71 + $0x44] sm:$0xf]
      %v5596 = vld [vmem:[%s71 + $0x48] sm:$0xf]
      %v5597 = vld [vmem:[%s71 + $0x4c] sm:$0xf]
      %v5598 = vld [vmem:[%s71 + $0x50] sm:$0xf]
      %v5599 = vld [vmem:[%s71 + $0x54] sm:$0xf]
      %v5600 = vld [vmem:[%s71 + $0x58] sm:$0xf]
      %v5601 = vld [vmem:[%s71 + $0x5c] sm:$0xf]
      %v5602 = vld [vmem:[%s71 + $0x60] sm:$0xf]
      %v5603 = vld [vmem:[%s71 + $0x64] sm:$0xf]
      %v5604 = vld [vmem:[%s71 + $0x68] sm:$0xf]
      %v5605 = vld [vmem:[%s71 + $0x6c] sm:$0xf]
      %v5606 = vld [vmem:[%s71 + $0x70] sm:$0xf]
      %v5607 = vld [vmem:[%s71 + $0x74] sm:$0xf]
      %v5608 = vld [vmem:[%s71 + $0x78] sm:$0xf]
      %v5609 = vld [vmem:[%s71 + $0x7c] sm:$0xf]
      %v5611 = vrot.slane %v5576, 4
      %v5629 = vunpack.c.l.b16 %v5594
      %v5630 = vunpack.c.l.b16 %v5595
      %v5631 = vunpack.c.l.b16 %v5596
      %v5632 = vunpack.c.l.b16 %v5597
      %v5633 = vunpack.c.l.b16 %v5598
      %v5634 = vunpack.c.l.b16 %v5599
      %v5635 = vunpack.c.l.b16 %v5600
      %v5636 = vunpack.c.l.b16 %v5601
      %v5637 = vunpack.c.l.b16 %v5602
      %v5638 = vunpack.c.l.b16 %v5603
      %v5639 = vunpack.c.l.b16 %v5604
      %v5640 = vunpack.c.l.b16 %v5605
      %v5641 = vunpack.c.l.b16 %v5606
      %v5642 = vunpack.c.l.b16 %v5607
      %v5643 = vunpack.c.l.b16 %v5608
      %v5644 = vunpack.c.l.b16 %v5609
      %v5645 = vpack.c.b16 %v5630, %v5629
      %v5646 = vpack.c.b16 %v5632, %v5631
      %v5647 = vpack.c.b16 %v5634, %v5633
      %v5648 = vpack.c.b16 %v5636, %v5635
      %v5649 = vpack.c.b16 %v5638, %v5637
      %v5650 = vpack.c.b16 %v5640, %v5639
      %v5651 = vpack.c.b16 %v5642, %v5641
      %v5652 = vpack.c.b16 %v5644, %v5643
      %5661 = vmatprep.subr.bf16.mxu0 0
      %5662 = vmatpush1.bf16.msra.mxu0 %v5652
      %5663 = vmatprep.subr.bf16.mxu0 0
      %5664 = vmatpush1.bf16.msra.mxu0 %v5651
      %5665 = vmatprep.subr.bf16.mxu0 0
      %5666 = vmatpush1.bf16.msra.mxu0 %v5650
      %5667 = vmatprep.subr.bf16.mxu0 0
      %5668 = vmatpush1.bf16.msra.mxu0 %v5649
      %5669 = vmatprep.subr.bf16.mxu0 0
      %5670 = vmatpush1.bf16.msra.mxu0 %v5648
      %5671 = vmatprep.subr.bf16.mxu0 0
      %5672 = vmatpush1.bf16.msra.mxu0 %v5647
      %5673 = vmatprep.subr.bf16.mxu0 0
      %5674 = vmatpush1.bf16.msra.mxu0 %v5646
      %5675 = vmatprep.subr.bf16.mxu0 0
      %5676 = vmatpush1.bf16.msra.mxu0 %v5645
      %5677 = vmatprep.subr.bf16.mxu0 0
      %5678 = vmatpush2.bf16.msra.mxu0 0
      %5679 = vmatprep.subr.bf16.mxu0 0
      %5680 = vmatpush2.bf16.msra.mxu0 0
      %5681 = vmatprep.subr.bf16.mxu0 0
      %5682 = vmatpush2.bf16.msra.mxu0 0
      %5683 = vmatprep.subr.bf16.mxu0 0
      %5684 = vmatpush2.bf16.msra.mxu0 0
      %5685 = vmatprep.subr.bf16.mxu0 0
      %5686 = vmatpush2.bf16.msra.mxu0 0
      %5687 = vmatprep.subr.bf16.mxu0 0
      %5688 = vmatpush2.bf16.msra.mxu0 0
      %5689 = vmatprep.subr.bf16.mxu0 0
      %5690 = vmatpush2.bf16.msra.mxu0 0
      %5691 = vmatprep.subr.bf16.mxu0 0
      %5692 = vmatpush2.bf16.msra.mxu0 0
      %5693 = vmatprep.mubr.bf16.mxu0 0
      %5694 = vmatmul.mubr.bf16.gmra.mxu0 %v5611
      %v5695 = vpop.f32.mrf.mxu0
      %v5696 = vadd.f32 0.0, %v5695
      %v5697 = vpop.f32.mrf.mxu0
      %v5698 = vpop.f32.mrf.mxu0
      %v5699 = vpop.f32.mrf.mxu0
      %5700 = vdwg.mxu0
      %v5717 = vunpack.c.l.b16 %v5578
      %v5718 = vunpack.c.l.b16 %v5579
      %v5719 = vunpack.c.l.b16 %v5580
      %v5720 = vunpack.c.l.b16 %v5581
      %v5721 = vunpack.c.l.b16 %v5582
      %v5722 = vunpack.c.l.b16 %v5583
      %v5723 = vunpack.c.l.b16 %v5584
      %v5724 = vunpack.c.l.b16 %v5585
      %v5725 = vunpack.c.l.b16 %v5586
      %v5726 = vunpack.c.l.b16 %v5587
      %v5727 = vunpack.c.l.b16 %v5588
      %v5728 = vunpack.c.l.b16 %v5589
      %v5729 = vunpack.c.l.b16 %v5590
      %v5730 = vunpack.c.l.b16 %v5591
      %v5731 = vunpack.c.l.b16 %v5592
      %v5732 = vunpack.c.l.b16 %v5593
      %v5733 = vpack.c.b16 %v5718, %v5717
      %v5734 = vpack.c.b16 %v5720, %v5719
      %v5735 = vpack.c.b16 %v5722, %v5721
      %v5736 = vpack.c.b16 %v5724, %v5723
      %v5737 = vpack.c.b16 %v5726, %v5725
      %v5738 = vpack.c.b16 %v5728, %v5727
      %v5739 = vpack.c.b16 %v5730, %v5729
      %v5740 = vpack.c.b16 %v5732, %v5731
      %5749 = vmatprep.subr.bf16.mxu0 0
      %5750 = vmatpush1.bf16.msra.mxu0 %v5740
      %5751 = vmatprep.subr.bf16.mxu0 0
      %5752 = vmatpush1.bf16.msra.mxu0 %v5739
      %5753 = vmatprep.subr.bf16.mxu0 0
      %5754 = vmatpush1.bf16.msra.mxu0 %v5738
      %5755 = vmatprep.subr.bf16.mxu0 0
      %5756 = vmatpush1.bf16.msra.mxu0 %v5737
      %5757 = vmatprep.subr.bf16.mxu0 0
      %5758 = vmatpush1.bf16.msra.mxu0 %v5736
      %5759 = vmatprep.subr.bf16.mxu0 0
      %5760 = vmatpush1.bf16.msra.mxu0 %v5735
      %5761 = vmatprep.subr.bf16.mxu0 0
      %5762 = vmatpush1.bf16.msra.mxu0 %v5734
      %5763 = vmatprep.subr.bf16.mxu0 0
      %5764 = vmatpush1.bf16.msra.mxu0 %v5733
      %5765 = vmatprep.subr.bf16.mxu0 0
      %5766 = vmatpush2.bf16.msra.mxu0 0
      %5767 = vmatprep.subr.bf16.mxu0 0
      %5768 = vmatpush2.bf16.msra.mxu0 0
      %5769 = vmatprep.subr.bf16.mxu0 0
      %5770 = vmatpush2.bf16.msra.mxu0 0
      %5771 = vmatprep.subr.bf16.mxu0 0
      %5772 = vmatpush2.bf16.msra.mxu0 0
      %5773 = vmatprep.subr.bf16.mxu0 0
      %5774 = vmatpush2.bf16.msra.mxu0 0
      %5775 = vmatprep.subr.bf16.mxu0 0
      %5776 = vmatpush2.bf16.msra.mxu0 0
      %5777 = vmatprep.subr.bf16.mxu0 0
      %5778 = vmatpush2.bf16.msra.mxu0 0
      %5779 = vmatprep.subr.bf16.mxu0 0
      %5780 = vmatpush2.bf16.msra.mxu0 0
      %5781 = vmatprep.mubr.bf16.mxu0 0
      %5782 = vmatmul.mubr.bf16.gmra.mxu0 %v5576
      %v5783 = vpop.f32.mrf.mxu0
      %v5784 = vadd.f32 %v5696, %v5783
      %v5785 = vpop.f32.mrf.mxu0
      %v5786 = vpop.f32.mrf.mxu0
      %v5787 = vpop.f32.mrf.mxu0
      %5788 = vdwg.mxu0
      %v5789 = vld [vmem:[%s71 + $0x80] sm:$0xf]
      %v5790 = vld [vmem:[%s71 + $0x84] sm:$0xf]
      %v5791 = vld [vmem:[%s71 + $0x88] sm:$0xf]
      %v5792 = vld [vmem:[%s71 + $0x8c] sm:$0xf]
      %v5793 = vld [vmem:[%s71 + $0x90] sm:$0xf]
      %v5794 = vld [vmem:[%s71 + $0x94] sm:$0xf]
      %v5795 = vld [vmem:[%s71 + $0x98] sm:$0xf]
      %v5796 = vld [vmem:[%s71 + $0x9c] sm:$0xf]
      %v5797 = vld [vmem:[%s71 + $0xa0] sm:$0xf]
      %v5798 = vld [vmem:[%s71 + $0xa4] sm:$0xf]
      %v5799 = vld [vmem:[%s71 + $0xa8] sm:$0xf]
      %v5800 = vld [vmem:[%s71 + $0xac] sm:$0xf]
      %v5801 = vld [vmem:[%s71 + $0xb0] sm:$0xf]
      %v5802 = vld [vmem:[%s71 + $0xb4] sm:$0xf]
      %v5803 = vld [vmem:[%s71 + $0xb8] sm:$0xf]
      %v5804 = vld [vmem:[%s71 + $0xbc] sm:$0xf]
      %v5821 = vunpack.c.l.b16 %v5789
      %v5822 = vunpack.c.l.b16 %v5790
      %v5823 = vunpack.c.l.b16 %v5791
      %v5824 = vunpack.c.l.b16 %v5792
      %v5825 = vunpack.c.l.b16 %v5793
      %v5826 = vunpack.c.l.b16 %v5794
      %v5827 = vunpack.c.l.b16 %v5795
      %v5828 = vunpack.c.l.b16 %v5796
      %v5829 = vunpack.c.l.b16 %v5797
      %v5830 = vunpack.c.l.b16 %v5798
      %v5831 = vunpack.c.l.b16 %v5799
      %v5832 = vunpack.c.l.b16 %v5800
      %v5833 = vunpack.c.l.b16 %v5801
      %v5834 = vunpack.c.l.b16 %v5802
      %v5835 = vunpack.c.l.b16 %v5803
      %v5836 = vunpack.c.l.b16 %v5804
      %v5837 = vpack.c.b16 %v5822, %v5821
      %v5838 = vpack.c.b16 %v5824, %v5823
      %v5839 = vpack.c.b16 %v5826, %v5825
      %v5840 = vpack.c.b16 %v5828, %v5827
      %v5841 = vpack.c.b16 %v5830, %v5829
      %v5842 = vpack.c.b16 %v5832, %v5831
      %v5843 = vpack.c.b16 %v5834, %v5833
      %v5844 = vpack.c.b16 %v5836, %v5835
      %5853 = vmatprep.subr.bf16.mxu0 0
      %5854 = vmatpush1.bf16.msra.mxu0 %v5844
      %5855 = vmatprep.subr.bf16.mxu0 0
      %5856 = vmatpush1.bf16.msra.mxu0 %v5843
      %5857 = vmatprep.subr.bf16.mxu0 0
      %5858 = vmatpush1.bf16.msra.mxu0 %v5842
      %5859 = vmatprep.subr.bf16.mxu0 0
      %5860 = vmatpush1.bf16.msra.mxu0 %v5841
      %5861 = vmatprep.subr.bf16.mxu0 0
      %5862 = vmatpush1.bf16.msra.mxu0 %v5840
      %5863 = vmatprep.subr.bf16.mxu0 0
      %5864 = vmatpush1.bf16.msra.mxu0 %v5839
      %5865 = vmatprep.subr.bf16.mxu0 0
      %5866 = vmatpush1.bf16.msra.mxu0 %v5838
      %5867 = vmatprep.subr.bf16.mxu0 0
      %5868 = vmatpush1.bf16.msra.mxu0 %v5837
      %5869 = vmatprep.subr.bf16.mxu0 0
      %5870 = vmatpush2.bf16.msra.mxu0 0
      %5871 = vmatprep.subr.bf16.mxu0 0
      %5872 = vmatpush2.bf16.msra.mxu0 0
      %5873 = vmatprep.subr.bf16.mxu0 0
      %5874 = vmatpush2.bf16.msra.mxu0 0
      %5875 = vmatprep.subr.bf16.mxu0 0
      %5876 = vmatpush2.bf16.msra.mxu0 0
      %5877 = vmatprep.subr.bf16.mxu0 0
      %5878 = vmatpush2.bf16.msra.mxu0 0
      %5879 = vmatprep.subr.bf16.mxu0 0
      %5880 = vmatpush2.bf16.msra.mxu0 0
      %5881 = vmatprep.subr.bf16.mxu0 0
      %5882 = vmatpush2.bf16.msra.mxu0 0
      %5883 = vmatprep.subr.bf16.mxu0 0
      %5884 = vmatpush2.bf16.msra.mxu0 0
      %5885 = vmatprep.mubr.bf16.mxu0 0
      %5886 = vmatmul.mubr.bf16.gmra.mxu0 %v5577
      %v5887 = vpop.f32.mrf.mxu0
      %v5888 = vadd.f32 0.0, %v5887
      %v5889 = vpop.f32.mrf.mxu0
      %v5890 = vpop.f32.mrf.mxu0
      %v5891 = vpop.f32.mrf.mxu0
      %5892 = vdwg.mxu0
      %v5893 = vadd.f32 %v5784, %v5888
      %v5894 = vld [vmem:[%s73] sm:$0x1]
      %v5896 = vlaneseq
      %v5897 = vshrl.u32 %v5896, 7
      %v5898 = vsub.s32 0, %v5897
      %v5899 = vrot.slane %v5894, %v5898
      %v5901 = vadd.f32 %v5893, %v5899
      %v5902 = vmax.f32 %v5901, 0.0
      %v5903 = vpack.c.bf16 %v5902, %v5902
      %v5904 = vld [vmem:[%s75] sm:$0xf]
      %v5905 = vld [vmem:[%s75 + $0x4] sm:$0x3]
      %v5908 = vunpack.c.l.b16 %v5904
      %v5909 = vunpack.c.l.b16 %v5905
      %v5910 = vpack.c.b16 %v5909, %v5908
      %v5912 = vsel %vm2722, %v5910, 0
      %v5915 = vsel %vm2729, %v5903, 0
      %5917 = vmatprep.subr.bf16.mxu0 0
      %5918 = vmatpush1.bf16.msra.mxu0 0
      %5919 = vmatprep.subr.bf16.mxu0 0
      %5920 = vmatpush1.bf16.msra.mxu0 0
      %5921 = vmatprep.subr.bf16.mxu0 0
      %5922 = vmatpush1.bf16.msra.mxu0 0
      %5923 = vmatprep.subr.bf16.mxu0 0
      %5924 = vmatpush1.bf16.msra.mxu0 0
      %5925 = vmatprep.subr.bf16.mxu0 0
      %5926 = vmatpush1.bf16.msra.mxu0 0
      %5927 = vmatprep.subr.bf16.mxu0 0
      %5928 = vmatpush1.bf16.msra.mxu0 0
      %5929 = vmatprep.subr.bf16.mxu0 0
      %5930 = vmatpush1.bf16.msra.mxu0 0
      %5931 = vmatprep.subr.bf16.mxu0 0
      %5932 = vmatpush1.bf16.msra.mxu0 %v5915
      %5933 = vmatprep.subr.bf16.mxu0 0
      %5934 = vmatpush2.bf16.msra.mxu0 0
      %5935 = vmatprep.subr.bf16.mxu0 0
      %5936 = vmatpush2.bf16.msra.mxu0 0
      %5937 = vmatprep.subr.bf16.mxu0 0
      %5938 = vmatpush2.bf16.msra.mxu0 0
      %5939 = vmatprep.subr.bf16.mxu0 0
      %5940 = vmatpush2.bf16.msra.mxu0 0
      %5941 = vmatprep.subr.bf16.mxu0 0
      %5942 = vmatpush2.bf16.msra.mxu0 0
      %5943 = vmatprep.subr.bf16.mxu0 0
      %5944 = vmatpush2.bf16.msra.mxu0 0
      %5945 = vmatprep.subr.bf16.mxu0 0
      %5946 = vmatpush2.bf16.msra.mxu0 0
      %5947 = vmatprep.subr.bf16.mxu0 0
      %5948 = vmatpush2.bf16.msra.mxu0 0
      %5949 = vmatprep.mubr.bf16.mxu0 0
      %5950 = vmatmul.mubr.bf16.gmra.mxu0 %v5912
      %v5951 = vpop.f32.mrf.mxu0
      %v5952 = vadd.f32 0.0, %v5951
      %v5953 = vpop.f32.mrf.mxu0
      %v5954 = vpop.f32.mrf.mxu0
      %v5955 = vadd.f32 0.0, %v5954
      %v5956 = vpop.f32.mrf.mxu0
      %5957 = vdwg.mxu0
      %v5958 = vpack.c.bf16 %v5955, %v5952
      %v5959 = vld [vmem:[%s77] sm:$0xf]
      %v5960 = vld [vmem:[%s77 + $0x4] sm:$0xf]
      %v5961 = vld [vmem:[%s77 + $0x8] sm:$0xf]
      %v5962 = vld [vmem:[%s77 + $0xc] sm:$0xf]
      %v5963 = vld [vmem:[%s77 + $0x10] sm:$0xf]
      %v5964 = vld [vmem:[%s77 + $0x14] sm:$0xf]
      %v5965 = vld [vmem:[%s77 + $0x18] sm:$0xf]
      %v5966 = vld [vmem:[%s77 + $0x1c] sm:$0xf]
      %v5967 = vld [vmem:[%s77 + $0x20] sm:$0xf]
      %v5968 = vld [vmem:[%s77 + $0x24] sm:$0xf]
      %v5969 = vld [vmem:[%s77 + $0x28] sm:$0xf]
      %v5970 = vld [vmem:[%s77 + $0x2c] sm:$0xf]
      %v5971 = vld [vmem:[%s77 + $0x30] sm:$0xf]
      %v5972 = vld [vmem:[%s77 + $0x34] sm:$0xf]
      %v5973 = vld [vmem:[%s77 + $0x38] sm:$0xf]
      %v5974 = vld [vmem:[%s77 + $0x3c] sm:$0xf]
      %v5975 = vld [vmem:[%s77 + $0x40] sm:$0xf]
      %v5976 = vld [vmem:[%s77 + $0x44] sm:$0xf]
      %v5977 = vld [vmem:[%s77 + $0x48] sm:$0xf]
      %v5978 = vld [vmem:[%s77 + $0x4c] sm:$0xf]
      %v5979 = vld [vmem:[%s77 + $0x50] sm:$0xf]
      %v5980 = vld [vmem:[%s77 + $0x54] sm:$0xf]
      %v5981 = vld [vmem:[%s77 + $0x58] sm:$0xf]
      %v5982 = vld [vmem:[%s77 + $0x5c] sm:$0xf]
      %v5983 = vld [vmem:[%s77 + $0x60] sm:$0xf]
      %v5984 = vld [vmem:[%s77 + $0x64] sm:$0xf]
      %v5985 = vld [vmem:[%s77 + $0x68] sm:$0xf]
      %v5986 = vld [vmem:[%s77 + $0x6c] sm:$0xf]
      %v5987 = vld [vmem:[%s77 + $0x70] sm:$0xf]
      %v5988 = vld [vmem:[%s77 + $0x74] sm:$0xf]
      %v5989 = vld [vmem:[%s77 + $0x78] sm:$0xf]
      %v5990 = vld [vmem:[%s77 + $0x7c] sm:$0xf]
      %v5992 = vrot.slane %v5958, 2
      %v6010 = vunpack.c.l.b16 %v5975
      %v6011 = vunpack.c.l.b16 %v5976
      %v6012 = vunpack.c.l.b16 %v5977
      %v6013 = vunpack.c.l.b16 %v5978
      %v6014 = vunpack.c.l.b16 %v5979
      %v6015 = vunpack.c.l.b16 %v5980
      %v6016 = vunpack.c.l.b16 %v5981
      %v6017 = vunpack.c.l.b16 %v5982
      %v6018 = vunpack.c.l.b16 %v5983
      %v6019 = vunpack.c.l.b16 %v5984
      %v6020 = vunpack.c.l.b16 %v5985
      %v6021 = vunpack.c.l.b16 %v5986
      %v6022 = vunpack.c.l.b16 %v5987
      %v6023 = vunpack.c.l.b16 %v5988
      %v6024 = vunpack.c.l.b16 %v5989
      %v6025 = vunpack.c.l.b16 %v5990
      %v6026 = vpack.c.b16 %v6011, %v6010
      %v6027 = vpack.c.b16 %v6013, %v6012
      %v6028 = vpack.c.b16 %v6015, %v6014
      %v6029 = vpack.c.b16 %v6017, %v6016
      %v6030 = vpack.c.b16 %v6019, %v6018
      %v6031 = vpack.c.b16 %v6021, %v6020
      %v6032 = vpack.c.b16 %v6023, %v6022
      %v6033 = vpack.c.b16 %v6025, %v6024
      %6042 = vmatprep.subr.bf16.mxu0 0
      %6043 = vmatpush1.bf16.msra.mxu0 %v6033
      %6044 = vmatprep.subr.bf16.mxu0 0
      %6045 = vmatpush1.bf16.msra.mxu0 %v6032
      %6046 = vmatprep.subr.bf16.mxu0 0
      %6047 = vmatpush1.bf16.msra.mxu0 %v6031
      %6048 = vmatprep.subr.bf16.mxu0 0
      %6049 = vmatpush1.bf16.msra.mxu0 %v6030
      %6050 = vmatprep.subr.bf16.mxu0 0
      %6051 = vmatpush1.bf16.msra.mxu0 %v6029
      %6052 = vmatprep.subr.bf16.mxu0 0
      %6053 = vmatpush1.bf16.msra.mxu0 %v6028
      %6054 = vmatprep.subr.bf16.mxu0 0
      %6055 = vmatpush1.bf16.msra.mxu0 %v6027
      %6056 = vmatprep.subr.bf16.mxu0 0
      %6057 = vmatpush1.bf16.msra.mxu0 %v6026
      %6058 = vmatprep.subr.bf16.mxu0 0
      %6059 = vmatpush2.bf16.msra.mxu0 0
      %6060 = vmatprep.subr.bf16.mxu0 0
      %6061 = vmatpush2.bf16.msra.mxu0 0
      %6062 = vmatprep.subr.bf16.mxu0 0
      %6063 = vmatpush2.bf16.msra.mxu0 0
      %6064 = vmatprep.subr.bf16.mxu0 0
      %6065 = vmatpush2.bf16.msra.mxu0 0
      %6066 = vmatprep.subr.bf16.mxu0 0
      %6067 = vmatpush2.bf16.msra.mxu0 0
      %6068 = vmatprep.subr.bf16.mxu0 0
      %6069 = vmatpush2.bf16.msra.mxu0 0
      %6070 = vmatprep.subr.bf16.mxu0 0
      %6071 = vmatpush2.bf16.msra.mxu0 0
      %6072 = vmatprep.subr.bf16.mxu0 0
      %6073 = vmatpush2.bf16.msra.mxu0 0
      %6074 = vmatprep.mubr.bf16.mxu0 0
      %6075 = vmatmul.mubr.bf16.gmra.mxu0 %v5992
      %v6076 = vpop.f32.mrf.mxu0
      %v6077 = vadd.f32 0.0, %v6076
      %v6078 = vpop.f32.mrf.mxu0
      %v6079 = vpop.f32.mrf.mxu0
      %v6080 = vpop.f32.mrf.mxu0
      %6081 = vdwg.mxu0
      %v6098 = vunpack.c.l.b16 %v5959
      %v6099 = vunpack.c.l.b16 %v5960
      %v6100 = vunpack.c.l.b16 %v5961
      %v6101 = vunpack.c.l.b16 %v5962
      %v6102 = vunpack.c.l.b16 %v5963
      %v6103 = vunpack.c.l.b16 %v5964
      %v6104 = vunpack.c.l.b16 %v5965
      %v6105 = vunpack.c.l.b16 %v5966
      %v6106 = vunpack.c.l.b16 %v5967
      %v6107 = vunpack.c.l.b16 %v5968
      %v6108 = vunpack.c.l.b16 %v5969
      %v6109 = vunpack.c.l.b16 %v5970
      %v6110 = vunpack.c.l.b16 %v5971
      %v6111 = vunpack.c.l.b16 %v5972
      %v6112 = vunpack.c.l.b16 %v5973
      %v6113 = vunpack.c.l.b16 %v5974
      %v6114 = vpack.c.b16 %v6099, %v6098
      %v6115 = vpack.c.b16 %v6101, %v6100
      %v6116 = vpack.c.b16 %v6103, %v6102
      %v6117 = vpack.c.b16 %v6105, %v6104
      %v6118 = vpack.c.b16 %v6107, %v6106
      %v6119 = vpack.c.b16 %v6109, %v6108
      %v6120 = vpack.c.b16 %v6111, %v6110
      %v6121 = vpack.c.b16 %v6113, %v6112
      %6130 = vmatprep.subr.bf16.mxu0 0
      %6131 = vmatpush1.bf16.msra.mxu0 %v6121
      %6132 = vmatprep.subr.bf16.mxu0 0
      %6133 = vmatpush1.bf16.msra.mxu0 %v6120
      %6134 = vmatprep.subr.bf16.mxu0 0
      %6135 = vmatpush1.bf16.msra.mxu0 %v6119
      %6136 = vmatprep.subr.bf16.mxu0 0
      %6137 = vmatpush1.bf16.msra.mxu0 %v6118
      %6138 = vmatprep.subr.bf16.mxu0 0
      %6139 = vmatpush1.bf16.msra.mxu0 %v6117
      %6140 = vmatprep.subr.bf16.mxu0 0
      %6141 = vmatpush1.bf16.msra.mxu0 %v6116
      %6142 = vmatprep.subr.bf16.mxu0 0
      %6143 = vmatpush1.bf16.msra.mxu0 %v6115
      %6144 = vmatprep.subr.bf16.mxu0 0
      %6145 = vmatpush1.bf16.msra.mxu0 %v6114
      %6146 = vmatprep.subr.bf16.mxu0 0
      %6147 = vmatpush2.bf16.msra.mxu0 0
      %6148 = vmatprep.subr.bf16.mxu0 0
      %6149 = vmatpush2.bf16.msra.mxu0 0
      %6150 = vmatprep.subr.bf16.mxu0 0
      %6151 = vmatpush2.bf16.msra.mxu0 0
      %6152 = vmatprep.subr.bf16.mxu0 0
      %6153 = vmatpush2.bf16.msra.mxu0 0
      %6154 = vmatprep.subr.bf16.mxu0 0
      %6155 = vmatpush2.bf16.msra.mxu0 0
      %6156 = vmatprep.subr.bf16.mxu0 0
      %6157 = vmatpush2.bf16.msra.mxu0 0
      %6158 = vmatprep.subr.bf16.mxu0 0
      %6159 = vmatpush2.bf16.msra.mxu0 0
      %6160 = vmatprep.subr.bf16.mxu0 0
      %6161 = vmatpush2.bf16.msra.mxu0 0
      %6162 = vmatprep.mubr.bf16.mxu0 0
      %6163 = vmatmul.mubr.bf16.gmra.mxu0 %v5958
      %v6164 = vpop.f32.mrf.mxu0
      %v6165 = vadd.f32 %v6077, %v6164
      %v6166 = vpop.f32.mrf.mxu0
      %v6167 = vpop.f32.mrf.mxu0
      %v6168 = vpop.f32.mrf.mxu0
      %6169 = vdwg.mxu0
      %v6170 = vld [vmem:[%s77 + $0x80] sm:$0xf]
      %v6171 = vld [vmem:[%s77 + $0x84] sm:$0xf]
      %v6172 = vld [vmem:[%s77 + $0x88] sm:$0xf]
      %v6173 = vld [vmem:[%s77 + $0x8c] sm:$0xf]
      %v6174 = vld [vmem:[%s77 + $0x90] sm:$0xf]
      %v6175 = vld [vmem:[%s77 + $0x94] sm:$0xf]
      %v6176 = vld [vmem:[%s77 + $0x98] sm:$0xf]
      %v6177 = vld [vmem:[%s77 + $0x9c] sm:$0xf]
      %v6178 = vld [vmem:[%s77 + $0xa0] sm:$0xf]
      %v6179 = vld [vmem:[%s77 + $0xa4] sm:$0xf]
      %v6180 = vld [vmem:[%s77 + $0xa8] sm:$0xf]
      %v6181 = vld [vmem:[%s77 + $0xac] sm:$0xf]
      %v6182 = vld [vmem:[%s77 + $0xb0] sm:$0xf]
      %v6183 = vld [vmem:[%s77 + $0xb4] sm:$0xf]
      %v6184 = vld [vmem:[%s77 + $0xb8] sm:$0xf]
      %v6185 = vld [vmem:[%s77 + $0xbc] sm:$0xf]
      %v6186 = vrot.slane %v5958, 4
      %v6204 = vunpack.c.l.b16 %v6170
      %v6205 = vunpack.c.l.b16 %v6171
      %v6206 = vunpack.c.l.b16 %v6172
      %v6207 = vunpack.c.l.b16 %v6173
      %v6208 = vunpack.c.l.b16 %v6174
      %v6209 = vunpack.c.l.b16 %v6175
      %v6210 = vunpack.c.l.b16 %v6176
      %v6211 = vunpack.c.l.b16 %v6177
      %v6212 = vunpack.c.l.b16 %v6178
      %v6213 = vunpack.c.l.b16 %v6179
      %v6214 = vunpack.c.l.b16 %v6180
      %v6215 = vunpack.c.l.b16 %v6181
      %v6216 = vunpack.c.l.b16 %v6182
      %v6217 = vunpack.c.l.b16 %v6183
      %v6218 = vunpack.c.l.b16 %v6184
      %v6219 = vunpack.c.l.b16 %v6185
      %v6220 = vpack.c.b16 %v6205, %v6204
      %v6221 = vpack.c.b16 %v6207, %v6206
      %v6222 = vpack.c.b16 %v6209, %v6208
      %v6223 = vpack.c.b16 %v6211, %v6210
      %v6224 = vpack.c.b16 %v6213, %v6212
      %v6225 = vpack.c.b16 %v6215, %v6214
      %v6226 = vpack.c.b16 %v6217, %v6216
      %v6227 = vpack.c.b16 %v6219, %v6218
      %6236 = vmatprep.subr.bf16.mxu0 0
      %6237 = vmatpush1.bf16.msra.mxu0 %v6227
      %6238 = vmatprep.subr.bf16.mxu0 0
      %6239 = vmatpush1.bf16.msra.mxu0 %v6226
      %6240 = vmatprep.subr.bf16.mxu0 0
      %6241 = vmatpush1.bf16.msra.mxu0 %v6225
      %6242 = vmatprep.subr.bf16.mxu0 0
      %6243 = vmatpush1.bf16.msra.mxu0 %v6224
      %6244 = vmatprep.subr.bf16.mxu0 0
      %6245 = vmatpush1.bf16.msra.mxu0 %v6223
      %6246 = vmatprep.subr.bf16.mxu0 0
      %6247 = vmatpush1.bf16.msra.mxu0 %v6222
      %6248 = vmatprep.subr.bf16.mxu0 0
      %6249 = vmatpush1.bf16.msra.mxu0 %v6221
      %6250 = vmatprep.subr.bf16.mxu0 0
      %6251 = vmatpush1.bf16.msra.mxu0 %v6220
      %6252 = vmatprep.subr.bf16.mxu0 0
      %6253 = vmatpush2.bf16.msra.mxu0 0
      %6254 = vmatprep.subr.bf16.mxu0 0
      %6255 = vmatpush2.bf16.msra.mxu0 0
      %6256 = vmatprep.subr.bf16.mxu0 0
      %6257 = vmatpush2.bf16.msra.mxu0 0
      %6258 = vmatprep.subr.bf16.mxu0 0
      %6259 = vmatpush2.bf16.msra.mxu0 0
      %6260 = vmatprep.subr.bf16.mxu0 0
      %6261 = vmatpush2.bf16.msra.mxu0 0
      %6262 = vmatprep.subr.bf16.mxu0 0
      %6263 = vmatpush2.bf16.msra.mxu0 0
      %6264 = vmatprep.subr.bf16.mxu0 0
      %6265 = vmatpush2.bf16.msra.mxu0 0
      %6266 = vmatprep.subr.bf16.mxu0 0
      %6267 = vmatpush2.bf16.msra.mxu0 0
      %6268 = vmatprep.mubr.bf16.mxu0 0
      %6269 = vmatmul.mubr.bf16.gmra.mxu0 %v6186
      %v6270 = vpop.f32.mrf.mxu0
      %v6271 = vadd.f32 0.0, %v6270
      %v6272 = vpop.f32.mrf.mxu0
      %v6273 = vpop.f32.mrf.mxu0
      %v6274 = vpop.f32.mrf.mxu0
      %6275 = vdwg.mxu0
      %v6276 = vadd.f32 %v6165, %v6271
      %v6277 = vld [vmem:[%s79] sm:$0x1]
      %v6279 = vlaneseq
      %v6280 = vshrl.u32 %v6279, 7
      %v6281 = vsub.s32 0, %v6280
      %v6282 = vrot.slane %v6277, %v6281
      %v6284 = vadd.f32 %v6276, %v6282
      %v6285 = vmax.f32 %v6284, 0.0
      %v6286 = vpack.c.bf16 %v6285, %v6285
      %v6287 = vld [vmem:[%s81] sm:$0xf]
      %v6288 = vld [vmem:[%s81 + $0x4] sm:$0x3]
      %v6291 = vunpack.c.l.b16 %v6287
      %v6292 = vunpack.c.l.b16 %v6288
      %v6293 = vpack.c.b16 %v6292, %v6291
      %v6295 = vsel %vm3499, %v6293, 0
      %v6298 = vsel %vm3503, %v6286, 0
      %6300 = vmatprep.subr.bf16.mxu0 0
      %6301 = vmatpush1.bf16.msra.mxu0 0
      %6302 = vmatprep.subr.bf16.mxu0 0
      %6303 = vmatpush1.bf16.msra.mxu0 0
      %6304 = vmatprep.subr.bf16.mxu0 0
      %6305 = vmatpush1.bf16.msra.mxu0 0
      %6306 = vmatprep.subr.bf16.mxu0 0
      %6307 = vmatpush1.bf16.msra.mxu0 0
      %6308 = vmatprep.subr.bf16.mxu0 0
      %6309 = vmatpush1.bf16.msra.mxu0 0
      %6310 = vmatprep.subr.bf16.mxu0 0
      %6311 = vmatpush1.bf16.msra.mxu0 0
      %6312 = vmatprep.subr.bf16.mxu0 0
      %6313 = vmatpush1.bf16.msra.mxu0 0
      %6314 = vmatprep.subr.bf16.mxu0 0
      %6315 = vmatpush1.bf16.msra.mxu0 %v6298
      %6316 = vmatprep.subr.bf16.mxu0 0
      %6317 = vmatpush2.bf16.msra.mxu0 0
      %6318 = vmatprep.subr.bf16.mxu0 0
      %6319 = vmatpush2.bf16.msra.mxu0 0
      %6320 = vmatprep.subr.bf16.mxu0 0
      %6321 = vmatpush2.bf16.msra.mxu0 0
      %6322 = vmatprep.subr.bf16.mxu0 0
      %6323 = vmatpush2.bf16.msra.mxu0 0
      %6324 = vmatprep.subr.bf16.mxu0 0
      %6325 = vmatpush2.bf16.msra.mxu0 0
      %6326 = vmatprep.subr.bf16.mxu0 0
      %6327 = vmatpush2.bf16.msra.mxu0 0
      %6328 = vmatprep.subr.bf16.mxu0 0
      %6329 = vmatpush2.bf16.msra.mxu0 0
      %6330 = vmatprep.subr.bf16.mxu0 0
      %6331 = vmatpush2.bf16.msra.mxu0 0
      %6332 = vmatprep.mubr.bf16.mxu0 0
      %6333 = vmatmul.mubr.bf16.gmra.mxu0 %v6295
      %v6334 = vpop.f32.mrf.mxu0
      %v6335 = vadd.f32 0.0, %v6334
      %v6336 = vpop.f32.mrf.mxu0
      %v6337 = vpop.f32.mrf.mxu0
      %v6338 = vadd.f32 0.0, %v6337
      %v6339 = vpop.f32.mrf.mxu0
      %6340 = vdwg.mxu0
      %v6341 = vpack.c.bf16 %v6338, %v6335
      %v6342 = vld [vmem:[%s83] sm:$0xf]
      %v6343 = vld [vmem:[%s83 + $0x4] sm:$0xf]
      %v6344 = vld [vmem:[%s83 + $0x8] sm:$0xf]
      %v6345 = vld [vmem:[%s83 + $0xc] sm:$0xf]
      %v6346 = vld [vmem:[%s83 + $0x10] sm:$0xf]
      %v6347 = vld [vmem:[%s83 + $0x14] sm:$0xf]
      %v6348 = vld [vmem:[%s83 + $0x18] sm:$0xf]
      %v6349 = vld [vmem:[%s83 + $0x1c] sm:$0xf]
      %v6350 = vld [vmem:[%s83 + $0x20] sm:$0xf]
      %v6351 = vld [vmem:[%s83 + $0x24] sm:$0xf]
      %v6352 = vld [vmem:[%s83 + $0x28] sm:$0xf]
      %v6353 = vld [vmem:[%s83 + $0x2c] sm:$0xf]
      %v6354 = vld [vmem:[%s83 + $0x30] sm:$0xf]
      %v6355 = vld [vmem:[%s83 + $0x34] sm:$0xf]
      %v6356 = vld [vmem:[%s83 + $0x38] sm:$0xf]
      %v6357 = vld [vmem:[%s83 + $0x3c] sm:$0xf]
      %v6359 = vrot.slane %v6341, 2
      %v6368 = vunpack.c.l.b16 %v6350
      %v6369 = vunpack.c.l.b16 %v6351
      %v6370 = vunpack.c.l.b16 %v6352
      %v6371 = vunpack.c.l.b16 %v6353
      %v6372 = vunpack.c.l.b16 %v6354
      %v6373 = vunpack.c.l.b16 %v6355
      %v6374 = vunpack.c.l.b16 %v6356
      %v6375 = vunpack.c.l.b16 %v6357
      %v6376 = vpack.c.b16 %v6369, %v6368
      %v6377 = vpack.c.b16 %v6371, %v6370
      %v6378 = vpack.c.b16 %v6373, %v6372
      %v6379 = vpack.c.b16 %v6375, %v6374
      %v6385 = vsel %vm3591, %v6359, 0
      %6387 = vmatprep.subr.bf16.mxu0 0
      %6388 = vmatpush1.bf16.msra.mxu0 0
      %6389 = vmatprep.subr.bf16.mxu0 0
      %6390 = vmatpush1.bf16.msra.mxu0 0
      %6391 = vmatprep.subr.bf16.mxu0 0
      %6392 = vmatpush1.bf16.msra.mxu0 0
      %6393 = vmatprep.subr.bf16.mxu0 0
      %6394 = vmatpush1.bf16.msra.mxu0 0
      %6395 = vmatprep.subr.bf16.mxu0 0
      %6396 = vmatpush1.bf16.msra.mxu0 %v6379
      %6397 = vmatprep.subr.bf16.mxu0 0
      %6398 = vmatpush1.bf16.msra.mxu0 %v6378
      %6399 = vmatprep.subr.bf16.mxu0 0
      %6400 = vmatpush1.bf16.msra.mxu0 %v6377
      %6401 = vmatprep.subr.bf16.mxu0 0
      %6402 = vmatpush1.bf16.msra.mxu0 %v6376
      %6403 = vmatprep.subr.bf16.mxu0 0
      %6404 = vmatpush2.bf16.msra.mxu0 0
      %6405 = vmatprep.subr.bf16.mxu0 0
      %6406 = vmatpush2.bf16.msra.mxu0 0
      %6407 = vmatprep.subr.bf16.mxu0 0
      %6408 = vmatpush2.bf16.msra.mxu0 0
      %6409 = vmatprep.subr.bf16.mxu0 0
      %6410 = vmatpush2.bf16.msra.mxu0 0
      %6411 = vmatprep.subr.bf16.mxu0 0
      %6412 = vmatpush2.bf16.msra.mxu0 0
      %6413 = vmatprep.subr.bf16.mxu0 0
      %6414 = vmatpush2.bf16.msra.mxu0 0
      %6415 = vmatprep.subr.bf16.mxu0 0
      %6416 = vmatpush2.bf16.msra.mxu0 0
      %6417 = vmatprep.subr.bf16.mxu0 0
      %6418 = vmatpush2.bf16.msra.mxu0 0
      %6419 = vmatprep.mubr.bf16.mxu0 0
      %6420 = vmatmul.mubr.bf16.gmra.mxu0 %v6385
      %v6421 = vpop.f32.mrf.mxu0
      %v6422 = vadd.f32 0.0, %v6421
      %v6423 = vpop.f32.mrf.mxu0
      %v6424 = vpop.f32.mrf.mxu0
      %v6425 = vpop.f32.mrf.mxu0
      %6426 = vdwg.mxu0
      %v6435 = vunpack.c.l.b16 %v6342
      %v6436 = vunpack.c.l.b16 %v6343
      %v6437 = vunpack.c.l.b16 %v6344
      %v6438 = vunpack.c.l.b16 %v6345
      %v6439 = vunpack.c.l.b16 %v6346
      %v6440 = vunpack.c.l.b16 %v6347
      %v6441 = vunpack.c.l.b16 %v6348
      %v6442 = vunpack.c.l.b16 %v6349
      %v6443 = vpack.c.b16 %v6436, %v6435
      %v6444 = vpack.c.b16 %v6438, %v6437
      %v6445 = vpack.c.b16 %v6440, %v6439
      %v6446 = vpack.c.b16 %v6442, %v6441
      %v6452 = vsel %vm3591, %v6341, 0
      %6454 = vmatprep.subr.bf16.mxu0 0
      %6455 = vmatpush1.bf16.msra.mxu0 0
      %6456 = vmatprep.subr.bf16.mxu0 0
      %6457 = vmatpush1.bf16.msra.mxu0 0
      %6458 = vmatprep.subr.bf16.mxu0 0
      %6459 = vmatpush1.bf16.msra.mxu0 0
      %6460 = vmatprep.subr.bf16.mxu0 0
      %6461 = vmatpush1.bf16.msra.mxu0 0
      %6462 = vmatprep.subr.bf16.mxu0 0
      %6463 = vmatpush1.bf16.msra.mxu0 %v6446
      %6464 = vmatprep.subr.bf16.mxu0 0
      %6465 = vmatpush1.bf16.msra.mxu0 %v6445
      %6466 = vmatprep.subr.bf16.mxu0 0
      %6467 = vmatpush1.bf16.msra.mxu0 %v6444
      %6468 = vmatprep.subr.bf16.mxu0 0
      %6469 = vmatpush1.bf16.msra.mxu0 %v6443
      %6470 = vmatprep.subr.bf16.mxu0 0
      %6471 = vmatpush2.bf16.msra.mxu0 0
      %6472 = vmatprep.subr.bf16.mxu0 0
      %6473 = vmatpush2.bf16.msra.mxu0 0
      %6474 = vmatprep.subr.bf16.mxu0 0
      %6475 = vmatpush2.bf16.msra.mxu0 0
      %6476 = vmatprep.subr.bf16.mxu0 0
      %6477 = vmatpush2.bf16.msra.mxu0 0
      %6478 = vmatprep.subr.bf16.mxu0 0
      %6479 = vmatpush2.bf16.msra.mxu0 0
      %6480 = vmatprep.subr.bf16.mxu0 0
      %6481 = vmatpush2.bf16.msra.mxu0 0
      %6482 = vmatprep.subr.bf16.mxu0 0
      %6483 = vmatpush2.bf16.msra.mxu0 0
      %6484 = vmatprep.subr.bf16.mxu0 0
      %6485 = vmatpush2.bf16.msra.mxu0 0
      %6486 = vmatprep.mubr.bf16.mxu0 0
      %6487 = vmatmul.mubr.bf16.gmra.mxu0 %v6452
      %v6488 = vpop.f32.mrf.mxu0
      %v6489 = vadd.f32 %v6422, %v6488
      %v6490 = vpop.f32.mrf.mxu0
      %v6491 = vpop.f32.mrf.mxu0
      %v6492 = vpop.f32.mrf.mxu0
      %6493 = vdwg.mxu0
      %v6494 = vld [vmem:[%s83 + $0x40] sm:$0xf]
      %v6495 = vld [vmem:[%s83 + $0x44] sm:$0xf]
      %v6496 = vld [vmem:[%s83 + $0x48] sm:$0xf]
      %v6497 = vld [vmem:[%s83 + $0x4c] sm:$0xf]
      %v6498 = vld [vmem:[%s83 + $0x50] sm:$0xf]
      %v6499 = vld [vmem:[%s83 + $0x54] sm:$0xf]
      %v6500 = vld [vmem:[%s83 + $0x58] sm:$0xf]
      %v6501 = vld [vmem:[%s83 + $0x5c] sm:$0xf]
      %v6502 = vrot.slane %v6341, 4
      %v6511 = vunpack.c.l.b16 %v6494
      %v6512 = vunpack.c.l.b16 %v6495
      %v6513 = vunpack.c.l.b16 %v6496
      %v6514 = vunpack.c.l.b16 %v6497
      %v6515 = vunpack.c.l.b16 %v6498
      %v6516 = vunpack.c.l.b16 %v6499
      %v6517 = vunpack.c.l.b16 %v6500
      %v6518 = vunpack.c.l.b16 %v6501
      %v6519 = vpack.c.b16 %v6512, %v6511
      %v6520 = vpack.c.b16 %v6514, %v6513
      %v6521 = vpack.c.b16 %v6516, %v6515
      %v6522 = vpack.c.b16 %v6518, %v6517
      %v6528 = vsel %vm3591, %v6502, 0
      %6530 = vmatprep.subr.bf16.mxu0 0
      %6531 = vmatpush1.bf16.msra.mxu0 0
      %6532 = vmatprep.subr.bf16.mxu0 0
      %6533 = vmatpush1.bf16.msra.mxu0 0
      %6534 = vmatprep.subr.bf16.mxu0 0
      %6535 = vmatpush1.bf16.msra.mxu0 0
      %6536 = vmatprep.subr.bf16.mxu0 0
      %6537 = vmatpush1.bf16.msra.mxu0 0
      %6538 = vmatprep.subr.bf16.mxu0 0
      %6539 = vmatpush1.bf16.msra.mxu0 %v6522
      %6540 = vmatprep.subr.bf16.mxu0 0
      %6541 = vmatpush1.bf16.msra.mxu0 %v6521
      %6542 = vmatprep.subr.bf16.mxu0 0
      %6543 = vmatpush1.bf16.msra.mxu0 %v6520
      %6544 = vmatprep.subr.bf16.mxu0 0
      %6545 = vmatpush1.bf16.msra.mxu0 %v6519
      %6546 = vmatprep.subr.bf16.mxu0 0
      %6547 = vmatpush2.bf16.msra.mxu0 0
      %6548 = vmatprep.subr.bf16.mxu0 0
      %6549 = vmatpush2.bf16.msra.mxu0 0
      %6550 = vmatprep.subr.bf16.mxu0 0
      %6551 = vmatpush2.bf16.msra.mxu0 0
      %6552 = vmatprep.subr.bf16.mxu0 0
      %6553 = vmatpush2.bf16.msra.mxu0 0
      %6554 = vmatprep.subr.bf16.mxu0 0
      %6555 = vmatpush2.bf16.msra.mxu0 0
      %6556 = vmatprep.subr.bf16.mxu0 0
      %6557 = vmatpush2.bf16.msra.mxu0 0
      %6558 = vmatprep.subr.bf16.mxu0 0
      %6559 = vmatpush2.bf16.msra.mxu0 0
      %6560 = vmatprep.subr.bf16.mxu0 0
      %6561 = vmatpush2.bf16.msra.mxu0 0
      %6562 = vmatprep.mubr.bf16.mxu0 0
      %6563 = vmatmul.mubr.bf16.gmra.mxu0 %v6528
      %v6564 = vpop.f32.mrf.mxu0
      %v6565 = vadd.f32 0.0, %v6564
      %v6566 = vpop.f32.mrf.mxu0
      %v6567 = vpop.f32.mrf.mxu0
      %v6568 = vpop.f32.mrf.mxu0
      %6569 = vdwg.mxu0
      %v6570 = vadd.f32 %v6489, %v6565
      %v6571 = vld [vmem:[%s85] sm:$0x1]
      %v6573 = vlaneseq
      %v6574 = vshrl.u32 %v6573, 7
      %v6575 = vsub.s32 0, %v6574
      %v6576 = vrot.slane %v6571, %v6575
      %v6578 = vadd.f32 %v6570, %v6576
      %v6579 = vmax.f32 %v6578, 0.0
      %v6580 = vpack.c.bf16 %v6579, %v6579
      %v6581 = vld [vmem:[%s87] sm:$0x7]
      %v6583 = vsel %vm3499, %v6581, 0
      %v6586 = vsel %vm3503, %v6580, 0
      %6588 = vmatprep.subr.bf16.mxu0 0
      %6589 = vmatpush1.bf16.msra.mxu0 0
      %6590 = vmatprep.subr.bf16.mxu0 0
      %6591 = vmatpush1.bf16.msra.mxu0 0
      %6592 = vmatprep.subr.bf16.mxu0 0
      %6593 = vmatpush1.bf16.msra.mxu0 0
      %6594 = vmatprep.subr.bf16.mxu0 0
      %6595 = vmatpush1.bf16.msra.mxu0 0
      %6596 = vmatprep.subr.bf16.mxu0 0
      %6597 = vmatpush1.bf16.msra.mxu0 0
      %6598 = vmatprep.subr.bf16.mxu0 0
      %6599 = vmatpush1.bf16.msra.mxu0 0
      %6600 = vmatprep.subr.bf16.mxu0 0
      %6601 = vmatpush1.bf16.msra.mxu0 0
      %6602 = vmatprep.subr.bf16.mxu0 0
      %6603 = vmatpush1.bf16.msra.mxu0 %v6586
      %6604 = vmatprep.subr.bf16.mxu0 0
      %6605 = vmatpush2.bf16.msra.mxu0 0
      %6606 = vmatprep.subr.bf16.mxu0 0
      %6607 = vmatpush2.bf16.msra.mxu0 0
      %6608 = vmatprep.subr.bf16.mxu0 0
      %6609 = vmatpush2.bf16.msra.mxu0 0
      %6610 = vmatprep.subr.bf16.mxu0 0
      %6611 = vmatpush2.bf16.msra.mxu0 0
      %6612 = vmatprep.subr.bf16.mxu0 0
      %6613 = vmatpush2.bf16.msra.mxu0 0
      %6614 = vmatprep.subr.bf16.mxu0 0
      %6615 = vmatpush2.bf16.msra.mxu0 0
      %6616 = vmatprep.subr.bf16.mxu0 0
      %6617 = vmatpush2.bf16.msra.mxu0 0
      %6618 = vmatprep.subr.bf16.mxu0 0
      %6619 = vmatpush2.bf16.msra.mxu0 0
      %6620 = vmatprep.mubr.bf16.mxu0 0
      %6621 = vmatmul.mubr.bf16.gmra.mxu0 %v6583
      %v6622 = vpop.f32.mrf.mxu0
      %v6623 = vadd.f32 0.0, %v6622
      %v6624 = vpop.f32.mrf.mxu0
      %v6625 = vpop.f32.mrf.mxu0
      %v6626 = vpop.f32.mrf.mxu0
      %6627 = vdwg.mxu0
      %v6628 = vpack.c.bf16 %v6623, %v6623
      %v6629 = vld [vmem:[%s89] sm:$0xf]
      %v6630 = vld [vmem:[%s89 + $0x4] sm:$0xf]
      %v6631 = vld [vmem:[%s89 + $0x8] sm:$0xf]
      %v6632 = vld [vmem:[%s89 + $0xc] sm:$0xf]
      %v6633 = vld [vmem:[%s89 + $0x10] sm:$0xf]
      %v6634 = vld [vmem:[%s89 + $0x14] sm:$0xf]
      %v6635 = vld [vmem:[%s89 + $0x18] sm:$0xf]
      %v6636 = vld [vmem:[%s89 + $0x1c] sm:$0xf]
      %v6637 = vld [vmem:[%s89 + $0x20] sm:$0xf]
      %v6638 = vld [vmem:[%s89 + $0x24] sm:$0xf]
      %v6639 = vld [vmem:[%s89 + $0x28] sm:$0xf]
      %v6640 = vld [vmem:[%s89 + $0x2c] sm:$0xf]
      %v6641 = vld [vmem:[%s89 + $0x30] sm:$0xf]
      %v6642 = vld [vmem:[%s89 + $0x34] sm:$0xf]
      %v6643 = vld [vmem:[%s89 + $0x38] sm:$0xf]
      %v6644 = vld [vmem:[%s89 + $0x3c] sm:$0xf]
      %v6646 = vrot.slane %v6628, 1
      %v6655 = vunpack.c.l.b16 %v6637
      %v6656 = vunpack.c.l.b16 %v6638
      %v6657 = vunpack.c.l.b16 %v6639
      %v6658 = vunpack.c.l.b16 %v6640
      %v6659 = vunpack.c.l.b16 %v6641
      %v6660 = vunpack.c.l.b16 %v6642
      %v6661 = vunpack.c.l.b16 %v6643
      %v6662 = vunpack.c.l.b16 %v6644
      %v6663 = vpack.c.b16 %v6656, %v6655
      %v6664 = vpack.c.b16 %v6658, %v6657
      %v6665 = vpack.c.b16 %v6660, %v6659
      %v6666 = vpack.c.b16 %v6662, %v6661
      %v6672 = vsel %vm3591, %v6646, 0
      %6674 = vmatprep.subr.bf16.mxu0 0
      %6675 = vmatpush1.bf16.msra.mxu0 0
      %6676 = vmatprep.subr.bf16.mxu0 0
      %6677 = vmatpush1.bf16.msra.mxu0 0
      %6678 = vmatprep.subr.bf16.mxu0 0
      %6679 = vmatpush1.bf16.msra.mxu0 0
      %6680 = vmatprep.subr.bf16.mxu0 0
      %6681 = vmatpush1.bf16.msra.mxu0 0
      %6682 = vmatprep.subr.bf16.mxu0 0
      %6683 = vmatpush1.bf16.msra.mxu0 %v6666
      %6684 = vmatprep.subr.bf16.mxu0 0
      %6685 = vmatpush1.bf16.msra.mxu0 %v6665
      %6686 = vmatprep.subr.bf16.mxu0 0
      %6687 = vmatpush1.bf16.msra.mxu0 %v6664
      %6688 = vmatprep.subr.bf16.mxu0 0
      %6689 = vmatpush1.bf16.msra.mxu0 %v6663
      %6690 = vmatprep.subr.bf16.mxu0 0
      %6691 = vmatpush2.bf16.msra.mxu0 0
      %6692 = vmatprep.subr.bf16.mxu0 0
      %6693 = vmatpush2.bf16.msra.mxu0 0
      %6694 = vmatprep.subr.bf16.mxu0 0
      %6695 = vmatpush2.bf16.msra.mxu0 0
      %6696 = vmatprep.subr.bf16.mxu0 0
      %6697 = vmatpush2.bf16.msra.mxu0 0
      %6698 = vmatprep.subr.bf16.mxu0 0
      %6699 = vmatpush2.bf16.msra.mxu0 0
      %6700 = vmatprep.subr.bf16.mxu0 0
      %6701 = vmatpush2.bf16.msra.mxu0 0
      %6702 = vmatprep.subr.bf16.mxu0 0
      %6703 = vmatpush2.bf16.msra.mxu0 0
      %6704 = vmatprep.subr.bf16.mxu0 0
      %6705 = vmatpush2.bf16.msra.mxu0 0
      %6706 = vmatprep.mubr.bf16.mxu0 0
      %6707 = vmatmul.mubr.bf16.gmra.mxu0 %v6672
      %v6708 = vpop.f32.mrf.mxu0
      %v6709 = vadd.f32 0.0, %v6708
      %v6710 = vpop.f32.mrf.mxu0
      %v6711 = vpop.f32.mrf.mxu0
      %v6712 = vpop.f32.mrf.mxu0
      %6713 = vdwg.mxu0
      %v6722 = vunpack.c.l.b16 %v6629
      %v6723 = vunpack.c.l.b16 %v6630
      %v6724 = vunpack.c.l.b16 %v6631
      %v6725 = vunpack.c.l.b16 %v6632
      %v6726 = vunpack.c.l.b16 %v6633
      %v6727 = vunpack.c.l.b16 %v6634
      %v6728 = vunpack.c.l.b16 %v6635
      %v6729 = vunpack.c.l.b16 %v6636
      %v6730 = vpack.c.b16 %v6723, %v6722
      %v6731 = vpack.c.b16 %v6725, %v6724
      %v6732 = vpack.c.b16 %v6727, %v6726
      %v6733 = vpack.c.b16 %v6729, %v6728
      %v6739 = vsel %vm3591, %v6628, 0
      %6741 = vmatprep.subr.bf16.mxu0 0
      %6742 = vmatpush1.bf16.msra.mxu0 0
      %6743 = vmatprep.subr.bf16.mxu0 0
      %6744 = vmatpush1.bf16.msra.mxu0 0
      %6745 = vmatprep.subr.bf16.mxu0 0
      %6746 = vmatpush1.bf16.msra.mxu0 0
      %6747 = vmatprep.subr.bf16.mxu0 0
      %6748 = vmatpush1.bf16.msra.mxu0 0
      %6749 = vmatprep.subr.bf16.mxu0 0
      %6750 = vmatpush1.bf16.msra.mxu0 %v6733
      %6751 = vmatprep.subr.bf16.mxu0 0
      %6752 = vmatpush1.bf16.msra.mxu0 %v6732
      %6753 = vmatprep.subr.bf16.mxu0 0
      %6754 = vmatpush1.bf16.msra.mxu0 %v6731
      %6755 = vmatprep.subr.bf16.mxu0 0
      %6756 = vmatpush1.bf16.msra.mxu0 %v6730
      %6757 = vmatprep.subr.bf16.mxu0 0
      %6758 = vmatpush2.bf16.msra.mxu0 0
      %6759 = vmatprep.subr.bf16.mxu0 0
      %6760 = vmatpush2.bf16.msra.mxu0 0
      %6761 = vmatprep.subr.bf16.mxu0 0
      %6762 = vmatpush2.bf16.msra.mxu0 0
      %6763 = vmatprep.subr.bf16.mxu0 0
      %6764 = vmatpush2.bf16.msra.mxu0 0
      %6765 = vmatprep.subr.bf16.mxu0 0
      %6766 = vmatpush2.bf16.msra.mxu0 0
      %6767 = vmatprep.subr.bf16.mxu0 0
      %6768 = vmatpush2.bf16.msra.mxu0 0
      %6769 = vmatprep.subr.bf16.mxu0 0
      %6770 = vmatpush2.bf16.msra.mxu0 0
      %6771 = vmatprep.subr.bf16.mxu0 0
      %6772 = vmatpush2.bf16.msra.mxu0 0
      %6773 = vmatprep.mubr.bf16.mxu0 0
      %6774 = vmatmul.mubr.bf16.gmra.mxu0 %v6739
      %v6775 = vpop.f32.mrf.mxu0
      %v6776 = vadd.f32 %v6709, %v6775
      %v6777 = vpop.f32.mrf.mxu0
      %v6778 = vpop.f32.mrf.mxu0
      %v6779 = vpop.f32.mrf.mxu0
      %6780 = vdwg.mxu0
      %v6781 = vld [vmem:[%s89 + $0x40] sm:$0xf]
      %v6782 = vld [vmem:[%s89 + $0x44] sm:$0xf]
      %v6783 = vld [vmem:[%s89 + $0x48] sm:$0xf]
      %v6784 = vld [vmem:[%s89 + $0x4c] sm:$0xf]
      %v6785 = vld [vmem:[%s89 + $0x50] sm:$0xf]
      %v6786 = vld [vmem:[%s89 + $0x54] sm:$0xf]
      %v6787 = vld [vmem:[%s89 + $0x58] sm:$0xf]
      %v6788 = vld [vmem:[%s89 + $0x5c] sm:$0xf]
      %v6789 = vrot.slane %v6628, 2
      %v6798 = vunpack.c.l.b16 %v6781
      %v6799 = vunpack.c.l.b16 %v6782
      %v6800 = vunpack.c.l.b16 %v6783
      %v6801 = vunpack.c.l.b16 %v6784
      %v6802 = vunpack.c.l.b16 %v6785
      %v6803 = vunpack.c.l.b16 %v6786
      %v6804 = vunpack.c.l.b16 %v6787
      %v6805 = vunpack.c.l.b16 %v6788
      %v6806 = vpack.c.b16 %v6799, %v6798
      %v6807 = vpack.c.b16 %v6801, %v6800
      %v6808 = vpack.c.b16 %v6803, %v6802
      %v6809 = vpack.c.b16 %v6805, %v6804
      %v6815 = vsel %vm3591, %v6789, 0
      %6817 = vmatprep.subr.bf16.mxu0 0
      %6818 = vmatpush1.bf16.msra.mxu0 0
      %6819 = vmatprep.subr.bf16.mxu0 0
      %6820 = vmatpush1.bf16.msra.mxu0 0
      %6821 = vmatprep.subr.bf16.mxu0 0
      %6822 = vmatpush1.bf16.msra.mxu0 0
      %6823 = vmatprep.subr.bf16.mxu0 0
      %6824 = vmatpush1.bf16.msra.mxu0 0
      %6825 = vmatprep.subr.bf16.mxu0 0
      %6826 = vmatpush1.bf16.msra.mxu0 %v6809
      %6827 = vmatprep.subr.bf16.mxu0 0
      %6828 = vmatpush1.bf16.msra.mxu0 %v6808
      %6829 = vmatprep.subr.bf16.mxu0 0
      %6830 = vmatpush1.bf16.msra.mxu0 %v6807
      %6831 = vmatprep.subr.bf16.mxu0 0
      %6832 = vmatpush1.bf16.msra.mxu0 %v6806
      %6833 = vmatprep.subr.bf16.mxu0 0
      %6834 = vmatpush2.bf16.msra.mxu0 0
      %6835 = vmatprep.subr.bf16.mxu0 0
      %6836 = vmatpush2.bf16.msra.mxu0 0
      %6837 = vmatprep.subr.bf16.mxu0 0
      %6838 = vmatpush2.bf16.msra.mxu0 0
      %6839 = vmatprep.subr.bf16.mxu0 0
      %6840 = vmatpush2.bf16.msra.mxu0 0
      %6841 = vmatprep.subr.bf16.mxu0 0
      %6842 = vmatpush2.bf16.msra.mxu0 0
      %6843 = vmatprep.subr.bf16.mxu0 0
      %6844 = vmatpush2.bf16.msra.mxu0 0
      %6845 = vmatprep.subr.bf16.mxu0 0
      %6846 = vmatpush2.bf16.msra.mxu0 0
      %6847 = vmatprep.subr.bf16.mxu0 0
      %6848 = vmatpush2.bf16.msra.mxu0 0
      %6849 = vmatprep.mubr.bf16.mxu0 0
      %6850 = vmatmul.mubr.bf16.gmra.mxu0 %v6815
      %v6851 = vpop.f32.mrf.mxu0
      %v6852 = vadd.f32 0.0, %v6851
      %v6853 = vpop.f32.mrf.mxu0
      %v6854 = vpop.f32.mrf.mxu0
      %v6855 = vpop.f32.mrf.mxu0
      %6856 = vdwg.mxu0
      %v6857 = vadd.f32 %v6776, %v6852
      %v6858 = vld [vmem:[%s91] sm:$0x1]
      %v6860 = vlaneseq
      %v6861 = vshrl.u32 %v6860, 7
      %v6862 = vsub.s32 0, %v6861
      %v6863 = vrot.slane %v6858, %v6862
      %v6865 = vadd.f32 %v6857, %v6863
      %v6866 = vmax.f32 %v6865, 0.0
      %v6867 = vpack.c.bf16 %v6866, %v6866
      %v6868 = vld [vmem:[%s93] sm:$0x7]
      %v6870 = vsel %vm4077, %v6868, 0
      %v6873 = vsel %vm4081, %v6867, 0
      %6875 = vmatprep.subr.bf16.mxu0 0
      %6876 = vmatpush1.bf16.msra.mxu0 0
      %6877 = vmatprep.subr.bf16.mxu0 0
      %6878 = vmatpush1.bf16.msra.mxu0 0
      %6879 = vmatprep.subr.bf16.mxu0 0
      %6880 = vmatpush1.bf16.msra.mxu0 0
      %6881 = vmatprep.subr.bf16.mxu0 0
      %6882 = vmatpush1.bf16.msra.mxu0 0
      %6883 = vmatprep.subr.bf16.mxu0 0
      %6884 = vmatpush1.bf16.msra.mxu0 0
      %6885 = vmatprep.subr.bf16.mxu0 0
      %6886 = vmatpush1.bf16.msra.mxu0 0
      %6887 = vmatprep.subr.bf16.mxu0 0
      %6888 = vmatpush1.bf16.msra.mxu0 0
      %6889 = vmatprep.subr.bf16.mxu0 0
      %6890 = vmatpush1.bf16.msra.mxu0 %v6873
      %6891 = vmatprep.subr.bf16.mxu0 0
      %6892 = vmatpush2.bf16.msra.mxu0 0
      %6893 = vmatprep.subr.bf16.mxu0 0
      %6894 = vmatpush2.bf16.msra.mxu0 0
      %6895 = vmatprep.subr.bf16.mxu0 0
      %6896 = vmatpush2.bf16.msra.mxu0 0
      %6897 = vmatprep.subr.bf16.mxu0 0
      %6898 = vmatpush2.bf16.msra.mxu0 0
      %6899 = vmatprep.subr.bf16.mxu0 0
      %6900 = vmatpush2.bf16.msra.mxu0 0
      %6901 = vmatprep.subr.bf16.mxu0 0
      %6902 = vmatpush2.bf16.msra.mxu0 0
      %6903 = vmatprep.subr.bf16.mxu0 0
      %6904 = vmatpush2.bf16.msra.mxu0 0
      %6905 = vmatprep.subr.bf16.mxu0 0
      %6906 = vmatpush2.bf16.msra.mxu0 0
      %6907 = vmatprep.mubr.bf16.mxu0 0
      %6908 = vmatmul.mubr.bf16.gmra.mxu0 %v6870
      %v6909 = vpop.f32.mrf.mxu0
      %v6910 = vadd.f32 0.0, %v6909
      %v6911 = vpop.f32.mrf.mxu0
      %v6912 = vpop.f32.mrf.mxu0
      %v6913 = vpop.f32.mrf.mxu0
      %6914 = vdwg.mxu0
      %v6915 = vpack.c.bf16 %v6910, %v6910
      %v6916 = vld [vmem:[%s95] sm:$0xf]
      %v6917 = vld [vmem:[%s95 + $0x4] sm:$0xf]
      %v6918 = vld [vmem:[%s95 + $0x8] sm:$0xf]
      %v6919 = vld [vmem:[%s95 + $0xc] sm:$0xf]
      %v6920 = vld [vmem:[%s95 + $0x10] sm:$0xf]
      %v6921 = vld [vmem:[%s95 + $0x14] sm:$0xf]
      %v6922 = vld [vmem:[%s95 + $0x18] sm:$0xf]
      %v6923 = vld [vmem:[%s95 + $0x1c] sm:$0xf]
      %v6924 = vld [vmem:[%s95 + $0x20] sm:$0xf]
      %v6925 = vld [vmem:[%s95 + $0x24] sm:$0xf]
      %v6926 = vld [vmem:[%s95 + $0x28] sm:$0xf]
      %v6927 = vld [vmem:[%s95 + $0x2c] sm:$0xf]
      %v6928 = vld [vmem:[%s95 + $0x30] sm:$0xf]
      %v6929 = vld [vmem:[%s95 + $0x34] sm:$0xf]
      %v6930 = vld [vmem:[%s95 + $0x38] sm:$0xf]
      %v6931 = vld [vmem:[%s95 + $0x3c] sm:$0xf]
      %v6933 = vrot.slane %v6915, 1
      %v6942 = vunpack.c.l.b16 %v6924
      %v6943 = vunpack.c.l.b16 %v6925
      %v6944 = vunpack.c.l.b16 %v6926
      %v6945 = vunpack.c.l.b16 %v6927
      %v6946 = vunpack.c.l.b16 %v6928
      %v6947 = vunpack.c.l.b16 %v6929
      %v6948 = vunpack.c.l.b16 %v6930
      %v6949 = vunpack.c.l.b16 %v6931
      %v6950 = vpack.c.b16 %v6943, %v6942
      %v6951 = vpack.c.b16 %v6945, %v6944
      %v6952 = vpack.c.b16 %v6947, %v6946
      %v6953 = vpack.c.b16 %v6949, %v6948
      %v6959 = vsel %vm3591, %v6933, 0
      %6961 = vmatprep.subr.bf16.mxu0 0
      %6962 = vmatpush1.bf16.msra.mxu0 0
      %6963 = vmatprep.subr.bf16.mxu0 0
      %6964 = vmatpush1.bf16.msra.mxu0 0
      %6965 = vmatprep.subr.bf16.mxu0 0
      %6966 = vmatpush1.bf16.msra.mxu0 0
      %6967 = vmatprep.subr.bf16.mxu0 0
      %6968 = vmatpush1.bf16.msra.mxu0 0
      %6969 = vmatprep.subr.bf16.mxu0 0
      %6970 = vmatpush1.bf16.msra.mxu0 %v6953
      %6971 = vmatprep.subr.bf16.mxu0 0
      %6972 = vmatpush1.bf16.msra.mxu0 %v6952
      %6973 = vmatprep.subr.bf16.mxu0 0
      %6974 = vmatpush1.bf16.msra.mxu0 %v6951
      %6975 = vmatprep.subr.bf16.mxu0 0
      %6976 = vmatpush1.bf16.msra.mxu0 %v6950
      %6977 = vmatprep.subr.bf16.mxu0 0
      %6978 = vmatpush2.bf16.msra.mxu0 0
      %6979 = vmatprep.subr.bf16.mxu0 0
      %6980 = vmatpush2.bf16.msra.mxu0 0
      %6981 = vmatprep.subr.bf16.mxu0 0
      %6982 = vmatpush2.bf16.msra.mxu0 0
      %6983 = vmatprep.subr.bf16.mxu0 0
      %6984 = vmatpush2.bf16.msra.mxu0 0
      %6985 = vmatprep.subr.bf16.mxu0 0
      %6986 = vmatpush2.bf16.msra.mxu0 0
      %6987 = vmatprep.subr.bf16.mxu0 0
      %6988 = vmatpush2.bf16.msra.mxu0 0
      %6989 = vmatprep.subr.bf16.mxu0 0
      %6990 = vmatpush2.bf16.msra.mxu0 0
      %6991 = vmatprep.subr.bf16.mxu0 0
      %6992 = vmatpush2.bf16.msra.mxu0 0
      %6993 = vmatprep.mubr.bf16.mxu0 0
      %6994 = vmatmul.mubr.bf16.gmra.mxu0 %v6959
      %v6995 = vpop.f32.mrf.mxu0
      %v6996 = vadd.f32 0.0, %v6995
      %v6997 = vpop.f32.mrf.mxu0
      %v6998 = vpop.f32.mrf.mxu0
      %v6999 = vpop.f32.mrf.mxu0
      %7000 = vdwg.mxu0
      %v7009 = vunpack.c.l.b16 %v6916
      %v7010 = vunpack.c.l.b16 %v6917
      %v7011 = vunpack.c.l.b16 %v6918
      %v7012 = vunpack.c.l.b16 %v6919
      %v7013 = vunpack.c.l.b16 %v6920
      %v7014 = vunpack.c.l.b16 %v6921
      %v7015 = vunpack.c.l.b16 %v6922
      %v7016 = vunpack.c.l.b16 %v6923
      %v7017 = vpack.c.b16 %v7010, %v7009
      %v7018 = vpack.c.b16 %v7012, %v7011
      %v7019 = vpack.c.b16 %v7014, %v7013
      %v7020 = vpack.c.b16 %v7016, %v7015
      %v7026 = vsel %vm3591, %v6915, 0
      %7028 = vmatprep.subr.bf16.mxu0 0
      %7029 = vmatpush1.bf16.msra.mxu0 0
      %7030 = vmatprep.subr.bf16.mxu0 0
      %7031 = vmatpush1.bf16.msra.mxu0 0
      %7032 = vmatprep.subr.bf16.mxu0 0
      %7033 = vmatpush1.bf16.msra.mxu0 0
      %7034 = vmatprep.subr.bf16.mxu0 0
      %7035 = vmatpush1.bf16.msra.mxu0 0
      %7036 = vmatprep.subr.bf16.mxu0 0
      %7037 = vmatpush1.bf16.msra.mxu0 %v7020
      %7038 = vmatprep.subr.bf16.mxu0 0
      %7039 = vmatpush1.bf16.msra.mxu0 %v7019
      %7040 = vmatprep.subr.bf16.mxu0 0
      %7041 = vmatpush1.bf16.msra.mxu0 %v7018
      %7042 = vmatprep.subr.bf16.mxu0 0
      %7043 = vmatpush1.bf16.msra.mxu0 %v7017
      %7044 = vmatprep.subr.bf16.mxu0 0
      %7045 = vmatpush2.bf16.msra.mxu0 0
      %7046 = vmatprep.subr.bf16.mxu0 0
      %7047 = vmatpush2.bf16.msra.mxu0 0
      %7048 = vmatprep.subr.bf16.mxu0 0
      %7049 = vmatpush2.bf16.msra.mxu0 0
      %7050 = vmatprep.subr.bf16.mxu0 0
      %7051 = vmatpush2.bf16.msra.mxu0 0
      %7052 = vmatprep.subr.bf16.mxu0 0
      %7053 = vmatpush2.bf16.msra.mxu0 0
      %7054 = vmatprep.subr.bf16.mxu0 0
      %7055 = vmatpush2.bf16.msra.mxu0 0
      %7056 = vmatprep.subr.bf16.mxu0 0
      %7057 = vmatpush2.bf16.msra.mxu0 0
      %7058 = vmatprep.subr.bf16.mxu0 0
      %7059 = vmatpush2.bf16.msra.mxu0 0
      %7060 = vmatprep.mubr.bf16.mxu0 0
      %7061 = vmatmul.mubr.bf16.gmra.mxu0 %v7026
      %v7062 = vpop.f32.mrf.mxu0
      %v7063 = vadd.f32 %v6996, %v7062
      %v7064 = vpop.f32.mrf.mxu0
      %v7065 = vpop.f32.mrf.mxu0
      %v7066 = vpop.f32.mrf.mxu0
      %7067 = vdwg.mxu0
      %v7068 = vld [vmem:[%s95 + $0x40] sm:$0xf]
      %v7069 = vld [vmem:[%s95 + $0x44] sm:$0xf]
      %v7070 = vld [vmem:[%s95 + $0x48] sm:$0xf]
      %v7071 = vld [vmem:[%s95 + $0x4c] sm:$0xf]
      %v7072 = vld [vmem:[%s95 + $0x50] sm:$0xf]
      %v7073 = vld [vmem:[%s95 + $0x54] sm:$0xf]
      %v7074 = vld [vmem:[%s95 + $0x58] sm:$0xf]
      %v7075 = vld [vmem:[%s95 + $0x5c] sm:$0xf]
      %v7076 = vrot.slane %v6915, 2
      %v7085 = vunpack.c.l.b16 %v7068
      %v7086 = vunpack.c.l.b16 %v7069
      %v7087 = vunpack.c.l.b16 %v7070
      %v7088 = vunpack.c.l.b16 %v7071
      %v7089 = vunpack.c.l.b16 %v7072
      %v7090 = vunpack.c.l.b16 %v7073
      %v7091 = vunpack.c.l.b16 %v7074
      %v7092 = vunpack.c.l.b16 %v7075
      %v7093 = vpack.c.b16 %v7086, %v7085
      %v7094 = vpack.c.b16 %v7088, %v7087
      %v7095 = vpack.c.b16 %v7090, %v7089
      %v7096 = vpack.c.b16 %v7092, %v7091
      %v7102 = vsel %vm3591, %v7076, 0
      %7104 = vmatprep.subr.bf16.mxu0 0
      %7105 = vmatpush1.bf16.msra.mxu0 0
      %7106 = vmatprep.subr.bf16.mxu0 0
      %7107 = vmatpush1.bf16.msra.mxu0 0
      %7108 = vmatprep.subr.bf16.mxu0 0
      %7109 = vmatpush1.bf16.msra.mxu0 0
      %7110 = vmatprep.subr.bf16.mxu0 0
      %7111 = vmatpush1.bf16.msra.mxu0 0
      %7112 = vmatprep.subr.bf16.mxu0 0
      %7113 = vmatpush1.bf16.msra.mxu0 %v7096
      %7114 = vmatprep.subr.bf16.mxu0 0
      %7115 = vmatpush1.bf16.msra.mxu0 %v7095
      %7116 = vmatprep.subr.bf16.mxu0 0
      %7117 = vmatpush1.bf16.msra.mxu0 %v7094
      %7118 = vmatprep.subr.bf16.mxu0 0
      %7119 = vmatpush1.bf16.msra.mxu0 %v7093
      %7120 = vmatprep.subr.bf16.mxu0 0
      %7121 = vmatpush2.bf16.msra.mxu0 0
      %7122 = vmatprep.subr.bf16.mxu0 0
      %7123 = vmatpush2.bf16.msra.mxu0 0
      %7124 = vmatprep.subr.bf16.mxu0 0
      %7125 = vmatpush2.bf16.msra.mxu0 0
      %7126 = vmatprep.subr.bf16.mxu0 0
      %7127 = vmatpush2.bf16.msra.mxu0 0
      %7128 = vmatprep.subr.bf16.mxu0 0
      %7129 = vmatpush2.bf16.msra.mxu0 0
      %7130 = vmatprep.subr.bf16.mxu0 0
      %7131 = vmatpush2.bf16.msra.mxu0 0
      %7132 = vmatprep.subr.bf16.mxu0 0
      %7133 = vmatpush2.bf16.msra.mxu0 0
      %7134 = vmatprep.subr.bf16.mxu0 0
      %7135 = vmatpush2.bf16.msra.mxu0 0
      %7136 = vmatprep.mubr.bf16.mxu0 0
      %7137 = vmatmul.mubr.bf16.gmra.mxu0 %v7102
      %v7138 = vpop.f32.mrf.mxu0
      %v7139 = vadd.f32 0.0, %v7138
      %v7140 = vpop.f32.mrf.mxu0
      %v7141 = vpop.f32.mrf.mxu0
      %v7142 = vpop.f32.mrf.mxu0
      %7143 = vdwg.mxu0
      %v7144 = vadd.f32 %v7063, %v7139
      %v7145 = vld [vmem:[%s97] sm:$0x1]
      %v7147 = vlaneseq
      %v7148 = vshrl.u32 %v7147, 7
      %v7149 = vsub.s32 0, %v7148
      %v7150 = vrot.slane %v7145, %v7149
      %v7152 = vadd.f32 %v7144, %v7150
      %v7153 = vmax.f32 %v7152, 0.0
      %7155 = vrot.lane.b32.xlu0 %v7153, 64
      %v7156 = vpop.permute.xlu0 %7155
      %v7158 = vsel %vm3591, %v4363, %v7156
      %7159 = vst [vmem:[%s1460] sm:$0x3] %v7158
      %p7160 = scmp.lt.s32.totalorder %s110, 1
      %s7161 = scalar_select %p7160, %s110, 1
      %s7162 = smul.addr %s7161, 2
      %s7163 = scalar_lea.vmem %s99, %s7162
      // Predicated region
      $region217: #{encoder_forward.1} parent=215 // pred_check
        %p7164 = pneg %p1162
      $region218: #{encoder_forward.1} parent=215 // pred_check_branch
        %7166 = sbr.rel (%p7164) target = $region220
      $region219: #{encoder_forward.1} parent=215 // pred_region
        _
      $region220: #{encoder_forward.1} parent=215 // pred_fallthru
        _
    $region216: #{encoder_forward.1} parent=5 // pred_fallthru
      _
    %p7167 = scmp.le.s32.totalorder 2, %s105
    // Predicated region
    $region221: #{encoder_forward.1} parent=5 // pred_check
      %p7168 = pneg %p7167
    $region222: #{encoder_forward.1} parent=5 // pred_check_branch
      %7170 = sbr.rel (%p7168) target = $region224
    $region223: #{encoder_forward.1} parent=5 // pred_region
      %s7171 = ssub.s32 %s105, 2
      // Predicated region
      $region225: #{encoder_forward.1} parent=223 // pred_check
        %p7172 = pneg %p1168
      $region226: #{encoder_forward.1} parent=223 // pred_check_branch
        %7174 = sbr.rel (%p7172) target = $region228
      $region227: #{encoder_forward.1} parent=223 // pred_region
        %p7175 = scmp.lt.s32.totalorder %s111, 1
        %s7176 = scalar_select %p7175, %s111, 1
        %s7177 = smul.addr %s7176, 2
        %s7178 = scalar_lea.vmem %s99, %s7177
      $region228: #{encoder_forward.1} parent=223 // pred_fallthru
        _
    $region224: #{encoder_forward.1} parent=5 // pred_fallthru
      _
  $region6: #{encoder_forward.1} parent=0 // loop_footer
    %s109 = sadd.s32 1, %s105
  $region7: #{encoder_forward.1} parent=0 // loop_footer_branch
    %104 = sbr.rel target = $region3
  $region8: #{encoder_forward.1} parent=0 // loop_exit
    _

</llo_original>
